<compile_context>
chip_gen: v5e
topology: v5e:2x2
jax: 0.10.0
libtpu: 0.0.40
codegen_flags: <defaults>
</compile_context>

<pallas_src>
import functools

import jax
import jax.numpy as jnp
from jax.experimental import pallas as pl
from jax.experimental.pallas import tpu as pltpu


# ----------------------------------------------------------------------------
# Kernel 1: tiled matmul + bias (+ optional ReLU), A (M,K) @ B (K,N).
# Grid = (M tiles ["parallel"], K tiles ["arbitrary", innermost]); the output
# block index is constant over K so the block stays VMEM-resident and is used
# directly as the accumulator.
# ----------------------------------------------------------------------------
def _matmul_bias_kernel(a_ref, b_ref, bias_ref, o_ref, *, nk, relu):
    k = pl.program_id(1)
    part = jnp.dot(a_ref[...], b_ref[...], preferred_element_type=jnp.float32)

    @pl.when(jnp.logical_and(k == 0, k < nk - 1))
    def _():
        o_ref[...] = part.astype(o_ref.dtype)

    @pl.when(jnp.logical_and(k > 0, k < nk - 1))
    def _():
        o_ref[...] += part.astype(o_ref.dtype)

    @pl.when(k == nk - 1)
    def _():
        acc = part + bias_ref[...]
        if nk > 1:                       # static: only read back when reducing
            acc = acc + o_ref[...].astype(jnp.float32)
        if relu:
            acc = jnp.maximum(acc, 0.0)
        o_ref[...] = acc.astype(o_ref.dtype)


def _pick_tm(m, target=512):
    """Largest M tile that divides m, is <= target and keeps the sublane dim
    aligned (multiple of 8) unless it is the full axis."""
    if m <= target:
        return m
    for t in range(target, 0, -1):
        if m % t == 0 and (t % 8 == 0 or t == m):
            return t
    return m


def matmul_bias(a, b, bias, *, tk, relu, out_dtype=jnp.float32):
    M, K = a.shape
    K2, N = b.shape
    assert K == K2 and K % tk == 0
    nk = K // tk
    assert out_dtype == jnp.float32 or nk == 1, (
        "multi-step K reduction accumulates in the output block; keep it f32")
    tm = _pick_tm(M)
    nm = M // tm
    kern = functools.partial(_matmul_bias_kernel, nk=nk, relu=relu)
    return pl.pallas_call(
        kern,
        out_shape=jax.ShapeDtypeStruct((M, N), out_dtype),
        grid_spec=pltpu.PrefetchScalarGridSpec(
            num_scalar_prefetch=0,
            grid=(nm, nk),
            in_specs=[
                pl.BlockSpec((tm, tk), lambda i, k: (i, k)),
                pl.BlockSpec((tk, N), lambda i, k: (k, 0)),
                pl.BlockSpec((1, N), lambda i, k: (0, 0)),
            ],
            out_specs=pl.BlockSpec((tm, N), lambda i, k: (i, 0)),
        ),
        compiler_params=pltpu.CompilerParams(
            dimension_semantics=("parallel", "arbitrary")),
    )(a, b, bias.reshape(1, N).astype(jnp.float32))


# ----------------------------------------------------------------------------
# Kernel 2: PrimaryCaps squash over the 8-dim capsule axis (computed once,
# shared by all 10 digit capsules; node axis tiled across the grid).
# ----------------------------------------------------------------------------
def _primary_squash_kernel(u_ref, o_ref):
    # u_ref / o_ref: (8, B, node_chunk) f32
    sq = jnp.zeros(u_ref.shape[1:], jnp.float32)
    for c in range(8):
        uc = u_ref[c]
        sq = sq + uc * uc
    # scale = sq / (1 + sq) / sqrt(sq); eps guards the zero-norm case (the
    # reference would emit NaN there).  Reciprocal / rsqrt run on the EUP.
    scale = (sq * pl.reciprocal(1.0 + sq, approx=True)
             * jax.lax.rsqrt(sq + 1e-12))
    for c in range(8):
        o_ref[c] = u_ref[c] * scale


def primary_squash(u, *, node_chunk=384):
    C, B, NODES = u.shape
    assert NODES % node_chunk == 0
    return pl.pallas_call(
        _primary_squash_kernel,
        out_shape=jax.ShapeDtypeStruct((C, B, NODES), jnp.float32),
        grid_spec=pltpu.PrefetchScalarGridSpec(
            num_scalar_prefetch=0,
            grid=(NODES // node_chunk,),
            in_specs=[pl.BlockSpec((C, B, node_chunk), lambda i: (0, 0, i))],
            out_specs=pl.BlockSpec((C, B, node_chunk), lambda i: (0, 0, i)),
        ),
        compiler_params=pltpu.CompilerParams(
            dimension_semantics=("parallel",)),
    )(u)


# ----------------------------------------------------------------------------
# Kernel 3: DigitCaps — u_hat projection + 3 iterations of dynamic routing,
# one digit capsule per grid step (capsule axis fully independent -> parallel).
# ----------------------------------------------------------------------------
def _digitcaps_kernel(usq_ref, w_ref, v_ref, uhat_ref):
    # usq_ref: (8, B, NODES)      squashed primary capsules (shared over grid)
    # w_ref:   (1, 8, 16, NODES)  W[n] in (c_in, c_out, node) layout
    # v_ref:   (1, B, 16)         routed digit-capsule vector for capsule n
    # uhat_ref:(B, 16, NODES)     VMEM scratch for the per-capsule projection
    B = usq_ref.shape[1]
    NODES = usq_ref.shape[2]
    EPS = 1e-12

    # --- u_hat[b, o, i] = sum_c usq[c, b, i] * W[n, c, o, i], chunked over
    # the node axis to keep the live accumulator small. ----------------------
    CH = 384
    for s0 in range(0, NODES, CH):
        acc = jnp.zeros((B, 16, CH), jnp.float32)
        for c in range(8):
            acc = acc + (usq_ref[c, :, s0:s0 + CH][:, None, :] *
                         w_ref[0, c, :, s0:s0 + CH][None, :, :])
        uhat_ref[:, :, s0:s0 + CH] = acc

    def squash16(s):                       # squash over the 16-dim axis
        sqn = jnp.sum(s * s, axis=1, keepdims=True)            # (B, 1, 1)
        return s * (sqn * pl.reciprocal(1.0 + sqn, approx=True)
                    * jax.lax.rsqrt(sqn + EPS))

    # --- dynamic routing.  The reference keeps b_ij broadcast over the 16-dim
    # output axis, so carry it as (B, 1, NODES) and softmax over nodes. ------
    # Iteration 0: b_ij == 0  ->  coefficients are uniform 1/NODES.
    s = jnp.sum(uhat_ref[...], axis=-1, keepdims=True) * (1.0 / NODES)
    v = squash16(s)                                            # (B, 16, 1)
    b_ij = jnp.sum(uhat_ref[...] * v, axis=1, keepdims=True)   # (B, 1, NODES)

    for it in range(1, 3):
        m = jnp.max(b_ij, axis=-1, keepdims=True)
        e = jnp.exp(b_ij - m)
        c_ij = e * pl.reciprocal(jnp.sum(e, axis=-1, keepdims=True),
                                 approx=True)                  # (B, 1, NODES)
        s = jnp.sum(c_ij * uhat_ref[...], axis=-1, keepdims=True)   # (B,16,1)
        v = squash16(s)
        if it < 2:
            b_ij = b_ij + jnp.sum(uhat_ref[...] * v, axis=1, keepdims=True)

    v_ref[...] = v[:, :, 0].reshape(1, B, 16)


def digit_caps(usq, w_t):
    NC = w_t.shape[0]                    # 10 digit capsules
    _, B, NODES = usq.shape
    return pl.pallas_call(
        _digitcaps_kernel,
        out_shape=jax.ShapeDtypeStruct((NC, B, 16), jnp.float32),
        grid_spec=pltpu.PrefetchScalarGridSpec(
            num_scalar_prefetch=0,
            grid=(NC,),
            in_specs=[
                pl.BlockSpec((8, B, NODES), lambda n: (0, 0, 0)),
                pl.BlockSpec((1, 8, 16, NODES), lambda n: (n, 0, 0, 0)),
            ],
            out_specs=pl.BlockSpec((1, B, 16), lambda n: (n, 0, 0)),
            scratch_shapes=[pltpu.VMEM((B, 16, NODES), jnp.float32)],
        ),
        compiler_params=pltpu.CompilerParams(
            dimension_semantics=("parallel",)),
    )(usq, w_t)


# ----------------------------------------------------------------------------
# Weight preprocessing (one-time, hoisted out of the per-call forward).
# ----------------------------------------------------------------------------
def preprocess_params(params):
    W1, b1, W2, b2, Wd = params
    # conv1 weight -> (81, 256), zero-padded to (128, 256) so the im2col patch
    # axis is lane aligned; bf16 for the MXU (f32 accumulation in-kernel).
    Wm1 = jnp.pad(W1.reshape(256, 81), ((0, 0), (0, 128 - 81))).T
    Wm1 = Wm1.astype(jnp.bfloat16)
    # primary-caps weights -> (256*81, 256) bf16, column index = cap*32 + chan.
    Wm2 = W2.reshape(8 * 32, 256 * 81).T.astype(jnp.bfloat16)
    b2f = b2.reshape(8 * 32)
    # digit-caps weight -> (10, 8, 16, 1152): Wd_t[n, c, o, i] = Wd[n, i, c, o].
    Wd_t = jnp.transpose(Wd, (0, 2, 3, 1))
    return (Wm1, b1, Wm2, b2f, Wd_t)


# ----------------------------------------------------------------------------
# Full forward pass (glue: im2col patch extraction, reshapes, transposes).
# ----------------------------------------------------------------------------
def capsule_network_forward(images, prepared):
    Wm1, b1, Wm2, b2f, Wd_t = prepared
    B = images.shape[0]

    # --- ConvLayer: Conv2d(1, 256, k=9, s=1) + ReLU ------------------------
    x2d = images[:, 0]                                        # (B, 28, 28)
    p1 = jnp.stack([x2d[:, kh:kh + 20, kw:kw + 20]
                    for kh in range(9) for kw in range(9)], axis=-1)
    A1 = p1.reshape(B * 400, 81)
    A1 = jnp.pad(A1, ((0, 0), (0, 128 - 81))).astype(jnp.bfloat16)
    feat = matmul_bias(A1, Wm1, b1, tk=128, relu=True,
                       out_dtype=jnp.bfloat16)                # (B*400, 256)
    feat = feat.reshape(B, 20, 20, 256)                       # NHWC, bf16

    # --- PrimaryCaps: 8 x Conv2d(256, 32, k=9, s=2) ------------------------
    # TODO(synk): the stride-2 im2col is still materialized at the XLA level
    # (HBM amplification of `feat`); a fully fused in-kernel patch extraction
    # would need strided VMEM windows that BlockSpec cannot express. bf16
    # halves the traffic vs the previous f32 version.
    p2 = jnp.stack([feat[:, kh:kh + 11:2, kw:kw + 11:2, :]
                    for kh in range(9) for kw in range(9)], axis=-1)
    A2 = p2.reshape(B * 36, 256 * 81)                         # bf16, col = cin*81+kh*9+kw
    prim = matmul_bias(A2, Wm2, b2f, tk=1152, relu=False)     # (B*36, 256) f32
    prim = prim.reshape(B, 6, 6, 8, 32)
    # u_t[c, b, node], node = chan*36 + h*6 + w (torch .view(B, 32*6*6) order)
    u_t = jnp.transpose(prim, (3, 0, 4, 1, 2)).reshape(8, B, 1152)

    # --- PrimaryCaps squash (once, shared by all 10 digit capsules) --------
    usq = primary_squash(u_t)                                 # (8, B, 1152)

    # --- DigitCaps + dynamic routing ---------------------------------------
    v = digit_caps(usq, Wd_t)                                 # (10, B, 16)

    # squeeze().transpose(0, 1)  (batch > 1 path)
    # TODO(synk): the torch `if batch == 1` branch references an undefined
    # global `batch`; only the batch > 1 path is reproduced here.
    return jnp.transpose(v, (1, 0, 2))                        # (B, 10, 16)


def init_params(key):
    k1, k2, k3, k4, k5 = jax.random.split(key, 5)
    W1 = jax.random.normal(k1, (256, 1, 9, 9), jnp.float32) / 9.0
    b1 = jax.random.normal(k2, (256,), jnp.float32) * 0.01
    W2 = jax.random.normal(k3, (8, 32, 256, 9, 9), jnp.float32) / jnp.sqrt(
        jnp.float32(256 * 81))
    b2 = jax.random.normal(k4, (8, 32), jnp.float32) * 0.01
    Wd = jax.random.normal(k5, (10, 1152, 8, 16), jnp.float32)  # torch.randn
    return (W1, b1, W2, b2, Wd)


if __name__ == "__main__":
    key = jax.random.PRNGKey(0)
    k_params, k_x = jax.random.split(key)
    params = init_params(k_params)
    prepared = preprocess_params(params)           # one-time, outside the jit
    images = jax.random.normal(k_x, (2, 1, 28, 28), jnp.float32)  # NCHW

    fwd = jax.jit(capsule_network_forward)
    out = jax.block_until_ready(fwd(images, prepared))
    assert out.shape == (2, 10, 16), out.shape
    assert bool(jnp.all(jnp.isfinite(out)))
    print("KERNEL_OK")
</pallas_src>

<mosaic_0001>
module attributes {stable_mosaic.version = 11 : i64} {
  func.func @_matmul_bias_kernel(%arg0: i32, %arg1: i32, %arg2: memref<400x128xbf16, #tpu.memory_space<vmem>>, %arg3: memref<128x256xbf16, #tpu.memory_space<vmem>>, %arg4: memref<1x256xf32, #tpu.memory_space<vmem>>, %arg5: memref<400x256xbf16, #tpu.memory_space<vmem>>) attributes {dimension_semantics = [#tpu.dimension_semantics<parallel>, #tpu.dimension_semantics<arbitrary>], iteration_bounds = array<i64: 2, 1>, scalar_prefetch = 0 : i64, scratch_operands = 0 : i64, tpu.core_type = #tpu.core_type<tc>, window_params = [{transform_indices = @transform_0, window_bounds = array<i64: 400, 128>}, {transform_indices = @transform_1, window_bounds = array<i64: 128, 256>}, {pipeline_mode = #tpu.pipeline_mode<synchronous>, transform_indices = @transform_2, window_bounds = array<i64: 1, 256>}, {transform_indices = @transform_3, window_bounds = array<i64: 400, 256>}]} {
    %c0 = arith.constant 0 : index
    %c0_0 = arith.constant 0 : index
    %0 = vector.load %arg2[%c0, %c0_0] : memref<400x128xbf16, #tpu.memory_space<vmem>>, vector<400x128xbf16>
    %c0_1 = arith.constant 0 : index
    %c0_2 = arith.constant 0 : index
    %1 = vector.load %arg3[%c0_1, %c0_2] : memref<128x256xbf16, #tpu.memory_space<vmem>>, vector<128x256xbf16>
    %cst = arith.constant dense<0.000000e+00> : vector<400x256xf32>
    %2 = tpu.matmul %0, %1, %cst {dimension_numbers = #tpu.dot_dimension_numbers<[1], [0], [0], [1], [0, 0, 1, 1], [], []>} : vector<400x128xbf16>, vector<128x256xbf16>, vector<400x256xf32> -> vector<400x256xf32>
    %c0_i32 = arith.constant 0 : i32
    %3 = arith.cmpi eq, %arg1, %c0_i32 : i32
    %c0_i32_3 = arith.constant 0 : i32
    %4 = arith.cmpi slt, %arg1, %c0_i32_3 : i32
    %5 = arith.andi %3, %4 : i1
    %6 = arith.extui %5 : i1 to i32
    %c0_i32_4 = arith.constant 0 : i32
    %7 = arith.cmpi ne, %6, %c0_i32_4 : i32
    scf.if %7 {
      %16 = arith.truncf %2 : vector<400x256xf32> to vector<400x256xbf16>
      %c0_10 = arith.constant 0 : index
      %c0_11 = arith.constant 0 : index
      %17 = vector.load %arg5[%c0_10, %c0_11] : memref<400x256xbf16, #tpu.memory_space<vmem>>, vector<400x256xbf16>
      tpu.vector_store %arg5[%c0_10, %c0_11], %16 {strides = array<i32>} : memref<400x256xbf16, #tpu.memory_space<vmem>>, vector<400x256xbf16>,
    } else {
    }
    %c0_i32_5 = arith.constant 0 : i32
    %8 = arith.cmpi sgt, %arg1, %c0_i32_5 : i32
    %c0_i32_6 = arith.constant 0 : i32
    %9 = arith.cmpi slt, %arg1, %c0_i32_6 : i32
    %10 = arith.andi %8, %9 : i1
    %11 = arith.extui %10 : i1 to i32
    %c0_i32_7 = arith.constant 0 : i32
    %12 = arith.cmpi ne, %11, %c0_i32_7 : i32
    scf.if %12 {
      %c0_10 = arith.constant 0 : index
      %c0_11 = arith.constant 0 : index
      %16 = vector.load %arg5[%c0_10, %c0_11] : memref<400x256xbf16, #tpu.memory_space<vmem>>, vector<400x256xbf16>
      %17 = arith.truncf %2 : vector<400x256xf32> to vector<400x256xbf16>
      %18 = arith.addf %16, %17 : vector<400x256xbf16>
      %c0_12 = arith.constant 0 : index
      %c0_13 = arith.constant 0 : index
      %19 = vector.load %arg5[%c0_12, %c0_13] : memref<400x256xbf16, #tpu.memory_space<vmem>>, vector<400x256xbf16>
      tpu.vector_store %arg5[%c0_12, %c0_13], %18 {strides = array<i32>} : memref<400x256xbf16, #tpu.memory_space<vmem>>, vector<400x256xbf16>,
    } else {
    }
    %c0_i32_8 = arith.constant 0 : i32
    %13 = arith.cmpi eq, %arg1, %c0_i32_8 : i32
    %14 = arith.extui %13 : i1 to i32
    %c0_i32_9 = arith.constant 0 : i32
    %15 = arith.cmpi ne, %14, %c0_i32_9 : i32
    scf.if %15 {
      %c0_10 = arith.constant 0 : index
      %c0_11 = arith.constant 0 : index
      %16 = vector.load %arg4[%c0_10, %c0_11] : memref<1x256xf32, #tpu.memory_space<vmem>>, vector<1x256xf32>
      %17 = vector.broadcast %16 : vector<1x256xf32> to vector<400x256xf32>
      %18 = arith.addf %2, %17 : vector<400x256xf32>
      %cst_12 = arith.constant 0.000000e+00 : f32
      %19 = vector.broadcast %cst_12 : f32 to vector<400x256xf32>
      %20 = arith.maximumf %18, %19 : vector<400x256xf32>
      %21 = arith.truncf %20 : vector<400x256xf32> to vector<400x256xbf16>
      %c0_13 = arith.constant 0 : index
      %c0_14 = arith.constant 0 : index
      %22 = vector.load %arg5[%c0_13, %c0_14] : memref<400x256xbf16, #tpu.memory_space<vmem>>, vector<400x256xbf16>
      tpu.vector_store %arg5[%c0_13, %c0_14], %21 {strides = array<i32>} : memref<400x256xbf16, #tpu.memory_space<vmem>>, vector<400x256xbf16>,
    } else {
    }
    return
  }
  func.func @transform_0(%arg0: i32, %arg1: i32) -> (i32, i32) {
    %c0_i32 = arith.constant 0 : i32
    return %arg0, %arg1 : i32, i32
  }
  func.func @transform_1(%arg0: i32, %arg1: i32) -> (i32, i32) {
    %c0_i32 = arith.constant 0 : i32
    %c0_i32_0 = arith.constant 0 : i32
    return %arg1, %c0_i32 : i32, i32
  }
  func.func @transform_2(%arg0: i32, %arg1: i32) -> (i32, i32) {
    %c0_i32 = arith.constant 0 : i32
    %c0_i32_0 = arith.constant 0 : i32
    %c0_i32_1 = arith.constant 0 : i32
    return %c0_i32, %c0_i32_0 : i32, i32
  }
  func.func @transform_3(%arg0: i32, %arg1: i32) -> (i32, i32) {
    %c0_i32 = arith.constant 0 : i32
    %c0_i32_0 = arith.constant 0 : i32
    return %arg0, %c0_i32 : i32, i32
  }
}

module attributes {stable_mosaic.version = 11 : i64} {
  func.func @_matmul_bias_kernel(%arg0: i32, %arg1: i32, %arg2: memref<72x1152xbf16, #tpu.memory_space<vmem>>, %arg3: memref<1152x256xbf16, #tpu.memory_space<vmem>>, %arg4: memref<1x256xf32, #tpu.memory_space<vmem>>, %arg5: memref<72x256xf32, #tpu.memory_space<vmem>>) attributes {dimension_semantics = [#tpu.dimension_semantics<parallel>, #tpu.dimension_semantics<arbitrary>], iteration_bounds = array<i64: 1, 18>, scalar_prefetch = 0 : i64, scratch_operands = 0 : i64, tpu.core_type = #tpu.core_type<tc>, window_params = [{transform_indices = @transform_0, window_bounds = array<i64: 72, 1152>}, {transform_indices = @transform_1, window_bounds = array<i64: 1152, 256>}, {pipeline_mode = #tpu.pipeline_mode<synchronous>, transform_indices = @transform_2, window_bounds = array<i64: 1, 256>}, {transform_indices = @transform_3, window_bounds = array<i64: 72, 256>}]} {
    %c0 = arith.constant 0 : index
    %c0_0 = arith.constant 0 : index
    %0 = vector.load %arg2[%c0, %c0_0] : memref<72x1152xbf16, #tpu.memory_space<vmem>>, vector<72x1152xbf16>
    %c0_1 = arith.constant 0 : index
    %c0_2 = arith.constant 0 : index
    %1 = vector.load %arg3[%c0_1, %c0_2] : memref<1152x256xbf16, #tpu.memory_space<vmem>>, vector<1152x256xbf16>
    %cst = arith.constant dense<0.000000e+00> : vector<72x256xf32>
    %2 = tpu.matmul %0, %1, %cst {dimension_numbers = #tpu.dot_dimension_numbers<[1], [0], [0], [1], [0, 0, 1, 1], [], []>} : vector<72x1152xbf16>, vector<1152x256xbf16>, vector<72x256xf32> -> vector<72x256xf32>
    %c0_i32 = arith.constant 0 : i32
    %3 = arith.cmpi eq, %arg1, %c0_i32 : i32
    %c17_i32 = arith.constant 17 : i32
    %4 = arith.cmpi slt, %arg1, %c17_i32 : i32
    %5 = arith.andi %3, %4 : i1
    %6 = arith.extui %5 : i1 to i32
    %c0_i32_3 = arith.constant 0 : i32
    %7 = arith.cmpi ne, %6, %c0_i32_3 : i32
    scf.if %7 {
      %c0_9 = arith.constant 0 : index
      %c0_10 = arith.constant 0 : index
      %16 = vector.load %arg5[%c0_9, %c0_10] : memref<72x256xf32, #tpu.memory_space<vmem>>, vector<72x256xf32>
      tpu.vector_store %arg5[%c0_9, %c0_10], %2 {strides = array<i32>} : memref<72x256xf32, #tpu.memory_space<vmem>>, vector<72x256xf32>,
    } else {
    }
    %c0_i32_4 = arith.constant 0 : i32
    %8 = arith.cmpi sgt, %arg1, %c0_i32_4 : i32
    %c17_i32_5 = arith.constant 17 : i32
    %9 = arith.cmpi slt, %arg1, %c17_i32_5 : i32
    %10 = arith.andi %8, %9 : i1
    %11 = arith.extui %10 : i1 to i32
    %c0_i32_6 = arith.constant 0 : i32
    %12 = arith.cmpi ne, %11, %c0_i32_6 : i32
    scf.if %12 {
      %c0_9 = arith.constant 0 : index
      %c0_10 = arith.constant 0 : index
      %16 = vector.load %arg5[%c0_9, %c0_10] : memref<72x256xf32, #tpu.memory_space<vmem>>, vector<72x256xf32>
      %17 = arith.addf %16, %2 : vector<72x256xf32>
      %c0_11 = arith.constant 0 : index
      %c0_12 = arith.constant 0 : index
      %18 = vector.load %arg5[%c0_11, %c0_12] : memref<72x256xf32, #tpu.memory_space<vmem>>, vector<72x256xf32>
      tpu.vector_store %arg5[%c0_11, %c0_12], %17 {strides = array<i32>} : memref<72x256xf32, #tpu.memory_space<vmem>>, vector<72x256xf32>,
    } else {
    }
    %c17_i32_7 = arith.constant 17 : i32
    %13 = arith.cmpi eq, %arg1, %c17_i32_7 : i32
    %14 = arith.extui %13 : i1 to i32
    %c0_i32_8 = arith.constant 0 : i32
    %15 = arith.cmpi ne, %14, %c0_i32_8 : i32
    scf.if %15 {
      %c0_9 = arith.constant 0 : index
      %c0_10 = arith.constant 0 : index
      %16 = vector.load %arg4[%c0_9, %c0_10] : memref<1x256xf32, #tpu.memory_space<vmem>>, vector<1x256xf32>
      %17 = vector.broadcast %16 : vector<1x256xf32> to vector<72x256xf32>
      %18 = arith.addf %2, %17 : vector<72x256xf32>
      %c0_11 = arith.constant 0 : index
      %c0_12 = arith.constant 0 : index
      %19 = vector.load %arg5[%c0_11, %c0_12] : memref<72x256xf32, #tpu.memory_space<vmem>>, vector<72x256xf32>
      %20 = arith.addf %18, %19 : vector<72x256xf32>
      %c0_13 = arith.constant 0 : index
      %c0_14 = arith.constant 0 : index
      %21 = vector.load %arg5[%c0_13, %c0_14] : memref<72x256xf32, #tpu.memory_space<vmem>>, vector<72x256xf32>
      tpu.vector_store %arg5[%c0_13, %c0_14], %20 {strides = array<i32>} : memref<72x256xf32, #tpu.memory_space<vmem>>, vector<72x256xf32>,
    } else {
    }
    return
  }
  func.func @transform_0(%arg0: i32, %arg1: i32) -> (i32, i32) {
    %c0_i32 = arith.constant 0 : i32
    return %arg0, %arg1 : i32, i32
  }
  func.func @transform_1(%arg0: i32, %arg1: i32) -> (i32, i32) {
    %c0_i32 = arith.constant 0 : i32
    %c0_i32_0 = arith.constant 0 : i32
    return %arg1, %c0_i32 : i32, i32
  }
  func.func @transform_2(%arg0: i32, %arg1: i32) -> (i32, i32) {
    %c0_i32 = arith.constant 0 : i32
    %c0_i32_0 = arith.constant 0 : i32
    %c0_i32_1 = arith.constant 0 : i32
    return %c0_i32, %c0_i32_0 : i32, i32
  }
  func.func @transform_3(%arg0: i32, %arg1: i32) -> (i32, i32) {
    %c0_i32 = arith.constant 0 : i32
    %c0_i32_0 = arith.constant 0 : i32
    return %arg0, %c0_i32 : i32, i32
  }
}

module attributes {stable_mosaic.version = 11 : i64} {
  func.func @_primary_squash_kernel(%arg0: i32, %arg1: memref<8x2x384xf32, #tpu.memory_space<vmem>>, %arg2: memref<8x2x384xf32, #tpu.memory_space<vmem>>) attributes {dimension_semantics = [#tpu.dimension_semantics<parallel>], iteration_bounds = array<i64: 3>, scalar_prefetch = 0 : i64, scratch_operands = 0 : i64, tpu.core_type = #tpu.core_type<tc>, window_params = [{transform_indices = @transform_0, window_bounds = array<i64: 8, 2, 384>}, {transform_indices = @transform_1, window_bounds = array<i64: 8, 2, 384>}]} {
    %cst = arith.constant 0.000000e+00 : f32
    %0 = vector.broadcast %cst : f32 to vector<2x384xf32>
    %c0 = arith.constant 0 : index
    %c0_0 = arith.constant 0 : index
    %c0_1 = arith.constant 0 : index
    %1 = vector.load %arg1[%c0, %c0_0, %c0_1] : memref<8x2x384xf32, #tpu.memory_space<vmem>>, vector<1x2x384xf32>
    %2 = vector.shape_cast %1 : vector<1x2x384xf32> to vector<2x384xf32>
    %3 = arith.mulf %2, %2 : vector<2x384xf32>
    %4 = arith.addf %0, %3 : vector<2x384xf32>
    %c1 = arith.constant 1 : index
    %c0_2 = arith.constant 0 : index
    %c0_3 = arith.constant 0 : index
    %5 = vector.load %arg1[%c1, %c0_2, %c0_3] : memref<8x2x384xf32, #tpu.memory_space<vmem>>, vector<1x2x384xf32>
    %6 = vector.shape_cast %5 : vector<1x2x384xf32> to vector<2x384xf32>
    %7 = arith.mulf %6, %6 : vector<2x384xf32>
    %8 = arith.addf %4, %7 : vector<2x384xf32>
    %c2 = arith.constant 2 : index
    %c0_4 = arith.constant 0 : index
    %c0_5 = arith.constant 0 : index
    %9 = vector.load %arg1[%c2, %c0_4, %c0_5] : memref<8x2x384xf32, #tpu.memory_space<vmem>>, vector<1x2x384xf32>
    %10 = vector.shape_cast %9 : vector<1x2x384xf32> to vector<2x384xf32>
    %11 = arith.mulf %10, %10 : vector<2x384xf32>
    %12 = arith.addf %8, %11 : vector<2x384xf32>
    %c3 = arith.constant 3 : index
    %c0_6 = arith.constant 0 : index
    %c0_7 = arith.constant 0 : index
    %13 = vector.load %arg1[%c3, %c0_6, %c0_7] : memref<8x2x384xf32, #tpu.memory_space<vmem>>, vector<1x2x384xf32>
    %14 = vector.shape_cast %13 : vector<1x2x384xf32> to vector<2x384xf32>
    %15 = arith.mulf %14, %14 : vector<2x384xf32>
    %16 = arith.addf %12, %15 : vector<2x384xf32>
    %c4 = arith.constant 4 : index
    %c0_8 = arith.constant 0 : index
    %c0_9 = arith.constant 0 : index
    %17 = vector.load %arg1[%c4, %c0_8, %c0_9] : memref<8x2x384xf32, #tpu.memory_space<vmem>>, vector<1x2x384xf32>
    %18 = vector.shape_cast %17 : vector<1x2x384xf32> to vector<2x384xf32>
    %19 = arith.mulf %18, %18 : vector<2x384xf32>
    %20 = arith.addf %16, %19 : vector<2x384xf32>
    %c5 = arith.constant 5 : index
    %c0_10 = arith.constant 0 : index
    %c0_11 = arith.constant 0 : index
    %21 = vector.load %arg1[%c5, %c0_10, %c0_11] : memref<8x2x384xf32, #tpu.memory_space<vmem>>, vector<1x2x384xf32>
    %22 = vector.shape_cast %21 : vector<1x2x384xf32> to vector<2x384xf32>
    %23 = arith.mulf %22, %22 : vector<2x384xf32>
    %24 = arith.addf %20, %23 : vector<2x384xf32>
    %c6 = arith.constant 6 : index
    %c0_12 = arith.constant 0 : index
    %c0_13 = arith.constant 0 : index
    %25 = vector.load %arg1[%c6, %c0_12, %c0_13] : memref<8x2x384xf32, #tpu.memory_space<vmem>>, vector<1x2x384xf32>
    %26 = vector.shape_cast %25 : vector<1x2x384xf32> to vector<2x384xf32>
    %27 = arith.mulf %26, %26 : vector<2x384xf32>
    %28 = arith.addf %24, %27 : vector<2x384xf32>
    %c7 = arith.constant 7 : index
    %c0_14 = arith.constant 0 : index
    %c0_15 = arith.constant 0 : index
    %29 = vector.load %arg1[%c7, %c0_14, %c0_15] : memref<8x2x384xf32, #tpu.memory_space<vmem>>, vector<1x2x384xf32>
    %30 = vector.shape_cast %29 : vector<1x2x384xf32> to vector<2x384xf32>
    %31 = arith.mulf %30, %30 : vector<2x384xf32>
    %32 = arith.addf %28, %31 : vector<2x384xf32>
    %cst_16 = arith.constant 1.000000e+00 : f32
    %33 = vector.broadcast %cst_16 : f32 to vector<2x384xf32>
    %34 = arith.addf %33, %32 : vector<2x384xf32>
    %35 = tpu.reciprocal %34 {approx = true} : vector<2x384xf32> -> vector<2x384xf32>
    %36 = arith.mulf %32, %35 : vector<2x384xf32>
    %cst_17 = arith.constant 9.99999996E-13 : f32
    %37 = vector.broadcast %cst_17 : f32 to vector<2x384xf32>
    %38 = arith.addf %32, %37 : vector<2x384xf32>
    %39 = math.rsqrt %38 : vector<2x384xf32>
    %40 = arith.mulf %36, %39 : vector<2x384xf32>
    %c0_18 = arith.constant 0 : index
    %c0_19 = arith.constant 0 : index
    %c0_20 = arith.constant 0 : index
    %41 = vector.load %arg1[%c0_18, %c0_19, %c0_20] : memref<8x2x384xf32, #tpu.memory_space<vmem>>, vector<1x2x384xf32>
    %42 = vector.shape_cast %41 : vector<1x2x384xf32> to vector<2x384xf32>
    %43 = arith.mulf %42, %40 : vector<2x384xf32>
    %c0_21 = arith.constant 0 : index
    %c0_22 = arith.constant 0 : index
    %c0_23 = arith.constant 0 : index
    %44 = vector.load %arg2[%c0_21, %c0_22, %c0_23] : memref<8x2x384xf32, #tpu.memory_space<vmem>>, vector<1x2x384xf32>
    %45 = vector.shape_cast %44 : vector<1x2x384xf32> to vector<2x384xf32>
    %46 = vector.shape_cast %43 : vector<2x384xf32> to vector<1x2x384xf32>
    tpu.vector_store %arg2[%c0_21, %c0_22, %c0_23], %46 {strides = array<i32>} : memref<8x2x384xf32, #tpu.memory_space<vmem>>, vector<1x2x384xf32>,
    %c1_24 = arith.constant 1 : index
    %c0_25 = arith.constant 0 : index
    %c0_26 = arith.constant 0 : index
    %47 = vector.load %arg1[%c1_24, %c0_25, %c0_26] : memref<8x2x384xf32, #tpu.memory_space<vmem>>, vector<1x2x384xf32>
    %48 = vector.shape_cast %47 : vector<1x2x384xf32> to vector<2x384xf32>
    %49 = arith.mulf %48, %40 : vector<2x384xf32>
    %c1_27 = arith.constant 1 : index
    %c0_28 = arith.constant 0 : index
    %c0_29 = arith.constant 0 : index
    %50 = vector.load %arg2[%c1_27, %c0_28, %c0_29] : memref<8x2x384xf32, #tpu.memory_space<vmem>>, vector<1x2x384xf32>
    %51 = vector.shape_cast %50 : vector<1x2x384xf32> to vector<2x384xf32>
    %52 = vector.shape_cast %49 : vector<2x384xf32> to vector<1x2x384xf32>
    tpu.vector_store %arg2[%c1_27, %c0_28, %c0_29], %52 {strides = array<i32>} : memref<8x2x384xf32, #tpu.memory_space<vmem>>, vector<1x2x384xf32>,
    %c2_30 = arith.constant 2 : index
    %c0_31 = arith.constant 0 : index
    %c0_32 = arith.constant 0 : index
    %53 = vector.load %arg1[%c2_30, %c0_31, %c0_32] : memref<8x2x384xf32, #tpu.memory_space<vmem>>, vector<1x2x384xf32>
    %54 = vector.shape_cast %53 : vector<1x2x384xf32> to vector<2x384xf32>
    %55 = arith.mulf %54, %40 : vector<2x384xf32>
    %c2_33 = arith.constant 2 : index
    %c0_34 = arith.constant 0 : index
    %c0_35 = arith.constant 0 : index
    %56 = vector.load %arg2[%c2_33, %c0_34, %c0_35] : memref<8x2x384xf32, #tpu.memory_space<vmem>>, vector<1x2x384xf32>
    %57 = vector.shape_cast %56 : vector<1x2x384xf32> to vector<2x384xf32>
    %58 = vector.shape_cast %55 : vector<2x384xf32> to vector<1x2x384xf32>
    tpu.vector_store %arg2[%c2_33, %c0_34, %c0_35], %58 {strides = array<i32>} : memref<8x2x384xf32, #tpu.memory_space<vmem>>, vector<1x2x384xf32>,
    %c3_36 = arith.constant 3 : index
    %c0_37 = arith.constant 0 : index
    %c0_38 = arith.constant 0 : index
    %59 = vector.load %arg1[%c3_36, %c0_37, %c0_38] : memref<8x2x384xf32, #tpu.memory_space<vmem>>, vector<1x2x384xf32>
    %60 = vector.shape_cast %59 : vector<1x2x384xf32> to vector<2x384xf32>
    %61 = arith.mulf %60, %40 : vector<2x384xf32>
    %c3_39 = arith.constant 3 : index
    %c0_40 = arith.constant 0 : index
    %c0_41 = arith.constant 0 : index
    %62 = vector.load %arg2[%c3_39, %c0_40, %c0_41] : memref<8x2x384xf32, #tpu.memory_space<vmem>>, vector<1x2x384xf32>
    %63 = vector.shape_cast %62 : vector<1x2x384xf32> to vector<2x384xf32>
    %64 = vector.shape_cast %61 : vector<2x384xf32> to vector<1x2x384xf32>
    tpu.vector_store %arg2[%c3_39, %c0_40, %c0_41], %64 {strides = array<i32>} : memref<8x2x384xf32, #tpu.memory_space<vmem>>, vector<1x2x384xf32>,
    %c4_42 = arith.constant 4 : index
    %c0_43 = arith.constant 0 : index
    %c0_44 = arith.constant 0 : index
    %65 = vector.load %arg1[%c4_42, %c0_43, %c0_44] : memref<8x2x384xf32, #tpu.memory_space<vmem>>, vector<1x2x384xf32>
    %66 = vector.shape_cast %65 : vector<1x2x384xf32> to vector<2x384xf32>
    %67 = arith.mulf %66, %40 : vector<2x384xf32>
    %c4_45 = arith.constant 4 : index
    %c0_46 = arith.constant 0 : index
    %c0_47 = arith.constant 0 : index
    %68 = vector.load %arg2[%c4_45, %c0_46, %c0_47] : memref<8x2x384xf32, #tpu.memory_space<vmem>>, vector<1x2x384xf32>
    %69 = vector.shape_cast %68 : vector<1x2x384xf32> to vector<2x384xf32>
    %70 = vector.shape_cast %67 : vector<2x384xf32> to vector<1x2x384xf32>
    tpu.vector_store %arg2[%c4_45, %c0_46, %c0_47], %70 {strides = array<i32>} : memref<8x2x384xf32, #tpu.memory_space<vmem>>, vector<1x2x384xf32>,
    %c5_48 = arith.constant 5 : index
    %c0_49 = arith.constant 0 : index
    %c0_50 = arith.constant 0 : index
    %71 = vector.load %arg1[%c5_48, %c0_49, %c0_50] : memref<8x2x384xf32, #tpu.memory_space<vmem>>, vector<1x2x384xf32>
    %72 = vector.shape_cast %71 : vector<1x2x384xf32> to vector<2x384xf32>
    %73 = arith.mulf %72, %40 : vector<2x384xf32>
    %c5_51 = arith.constant 5 : index
    %c0_52 = arith.constant 0 : index
    %c0_53 = arith.constant 0 : index
    %74 = vector.load %arg2[%c5_51, %c0_52, %c0_53] : memref<8x2x384xf32, #tpu.memory_space<vmem>>, vector<1x2x384xf32>
    %75 = vector.shape_cast %74 : vector<1x2x384xf32> to vector<2x384xf32>
    %76 = vector.shape_cast %73 : vector<2x384xf32> to vector<1x2x384xf32>
    tpu.vector_store %arg2[%c5_51, %c0_52, %c0_53], %76 {strides = array<i32>} : memref<8x2x384xf32, #tpu.memory_space<vmem>>, vector<1x2x384xf32>,
    %c6_54 = arith.constant 6 : index
    %c0_55 = arith.constant 0 : index
    %c0_56 = arith.constant 0 : index
    %77 = vector.load %arg1[%c6_54, %c0_55, %c0_56] : memref<8x2x384xf32, #tpu.memory_space<vmem>>, vector<1x2x384xf32>
    %78 = vector.shape_cast %77 : vector<1x2x384xf32> to vector<2x384xf32>
    %79 = arith.mulf %78, %40 : vector<2x384xf32>
    %c6_57 = arith.constant 6 : index
    %c0_58 = arith.constant 0 : index
    %c0_59 = arith.constant 0 : index
    %80 = vector.load %arg2[%c6_57, %c0_58, %c0_59] : memref<8x2x384xf32, #tpu.memory_space<vmem>>, vector<1x2x384xf32>
    %81 = vector.shape_cast %80 : vector<1x2x384xf32> to vector<2x384xf32>
    %82 = vector.shape_cast %79 : vector<2x384xf32> to vector<1x2x384xf32>
    tpu.vector_store %arg2[%c6_57, %c0_58, %c0_59], %82 {strides = array<i32>} : memref<8x2x384xf32, #tpu.memory_space<vmem>>, vector<1x2x384xf32>,
    %c7_60 = arith.constant 7 : index
    %c0_61 = arith.constant 0 : index
    %c0_62 = arith.constant 0 : index
    %83 = vector.load %arg1[%c7_60, %c0_61, %c0_62] : memref<8x2x384xf32, #tpu.memory_space<vmem>>, vector<1x2x384xf32>
    %84 = vector.shape_cast %83 : vector<1x2x384xf32> to vector<2x384xf32>
    %85 = arith.mulf %84, %40 : vector<2x384xf32>
    %c7_63 = arith.constant 7 : index
    %c0_64 = arith.constant 0 : index
    %c0_65 = arith.constant 0 : index
    %86 = vector.load %arg2[%c7_63, %c0_64, %c0_65] : memref<8x2x384xf32, #tpu.memory_space<vmem>>, vector<1x2x384xf32>
    %87 = vector.shape_cast %86 : vector<1x2x384xf32> to vector<2x384xf32>
    %88 = vector.shape_cast %85 : vector<2x384xf32> to vector<1x2x384xf32>
    tpu.vector_store %arg2[%c7_63, %c0_64, %c0_65], %88 {strides = array<i32>} : memref<8x2x384xf32, #tpu.memory_space<vmem>>, vector<1x2x384xf32>,
    return
  }
  func.func @transform_0(%arg0: i32) -> (i32, i32, i32) {
    %c0_i32 = arith.constant 0 : i32
    %c0_i32_0 = arith.constant 0 : i32
    %c0_i32_1 = arith.constant 0 : i32
    return %c0_i32, %c0_i32_0, %arg0 : i32, i32, i32
  }
  func.func @transform_1(%arg0: i32) -> (i32, i32, i32) {
    %c0_i32 = arith.constant 0 : i32
    %c0_i32_0 = arith.constant 0 : i32
    %c0_i32_1 = arith.constant 0 : i32
    return %c0_i32, %c0_i32_0, %arg0 : i32, i32, i32
  }
}

module attributes {stable_mosaic.version = 11 : i64} {
  func.func @_digitcaps_kernel(%arg0: i32, %arg1: memref<8x2x1152xf32, #tpu.memory_space<vmem>>, %arg2: memref<1x8x16x1152xf32, #tpu.memory_space<vmem>>, %arg3: memref<1x2x16xf32, #tpu.memory_space<vmem>>, %arg4: memref<2x16x1152xf32, #tpu.memory_space<vmem>>) attributes {dimension_semantics = [#tpu.dimension_semantics<parallel>], iteration_bounds = array<i64: 10>, scalar_prefetch = 0 : i64, scratch_operands = 1 : i64, tpu.core_type = #tpu.core_type<tc>, window_params = [{pipeline_mode = #tpu.pipeline_mode<synchronous>, transform_indices = @transform_0, window_bounds = array<i64: 8, 2, 1152>}, {transform_indices = @transform_1, window_bounds = array<i64: 1, 8, 16, 1152>}, {transform_indices = @transform_2, window_bounds = array<i64: 1, 2, 16>}]} {
    %cst = arith.constant 0.000000e+00 : f32
    %0 = vector.broadcast %cst : f32 to vector<2x16x384xf32>
    %c0 = arith.constant 0 : index
    %c0_0 = arith.constant 0 : index
    %c0_1 = arith.constant 0 : index
    %1 = vector.load %arg1[%c0, %c0_0, %c0_1] : memref<8x2x1152xf32, #tpu.memory_space<vmem>>, vector<1x2x384xf32>
    %2 = vector.shape_cast %1 : vector<1x2x384xf32> to vector<2x384xf32>
    %3 = vector.shape_cast %2 : vector<2x384xf32> to vector<2x1x384xf32>
    %c0_2 = arith.constant 0 : index
    %c0_3 = arith.constant 0 : index
    %c0_4 = arith.constant 0 : index
    %c0_5 = arith.constant 0 : index
    %4 = vector.load %arg2[%c0_2, %c0_3, %c0_4, %c0_5] : memref<1x8x16x1152xf32, #tpu.memory_space<vmem>>, vector<1x1x16x384xf32>
    %5 = vector.shape_cast %4 : vector<1x1x16x384xf32> to vector<16x384xf32>
    %6 = vector.shape_cast %5 : vector<16x384xf32> to vector<1x16x384xf32>
    %7 = vector.broadcast %3 : vector<2x1x384xf32> to vector<2x16x384xf32>
    %8 = vector.broadcast %6 : vector<1x16x384xf32> to vector<2x16x384xf32>
    %9 = arith.mulf %7, %8 : vector<2x16x384xf32>
    %10 = arith.addf %0, %9 : vector<2x16x384xf32>
    %c1 = arith.constant 1 : index
    %c0_6 = arith.constant 0 : index
    %c0_7 = arith.constant 0 : index
    %11 = vector.load %arg1[%c1, %c0_6, %c0_7] : memref<8x2x1152xf32, #tpu.memory_space<vmem>>, vector<1x2x384xf32>
    %12 = vector.shape_cast %11 : vector<1x2x384xf32> to vector<2x384xf32>
    %13 = vector.shape_cast %12 : vector<2x384xf32> to vector<2x1x384xf32>
    %c0_8 = arith.constant 0 : index
    %c1_9 = arith.constant 1 : index
    %c0_10 = arith.constant 0 : index
    %c0_11 = arith.constant 0 : index
    %14 = vector.load %arg2[%c0_8, %c1_9, %c0_10, %c0_11] : memref<1x8x16x1152xf32, #tpu.memory_space<vmem>>, vector<1x1x16x384xf32>
    %15 = vector.shape_cast %14 : vector<1x1x16x384xf32> to vector<16x384xf32>
    %16 = vector.shape_cast %15 : vector<16x384xf32> to vector<1x16x384xf32>
    %17 = vector.broadcast %13 : vector<2x1x384xf32> to vector<2x16x384xf32>
    %18 = vector.broadcast %16 : vector<1x16x384xf32> to vector<2x16x384xf32>
    %19 = arith.mulf %17, %18 : vector<2x16x384xf32>
    %20 = arith.addf %10, %19 : vector<2x16x384xf32>
    %c2 = arith.constant 2 : index
    %c0_12 = arith.constant 0 : index
    %c0_13 = arith.constant 0 : index
    %21 = vector.load %arg1[%c2, %c0_12, %c0_13] : memref<8x2x1152xf32, #tpu.memory_space<vmem>>, vector<1x2x384xf32>
    %22 = vector.shape_cast %21 : vector<1x2x384xf32> to vector<2x384xf32>
    %23 = vector.shape_cast %22 : vector<2x384xf32> to vector<2x1x384xf32>
    %c0_14 = arith.constant 0 : index
    %c2_15 = arith.constant 2 : index
    %c0_16 = arith.constant 0 : index
    %c0_17 = arith.constant 0 : index
    %24 = vector.load %arg2[%c0_14, %c2_15, %c0_16, %c0_17] : memref<1x8x16x1152xf32, #tpu.memory_space<vmem>>, vector<1x1x16x384xf32>
    %25 = vector.shape_cast %24 : vector<1x1x16x384xf32> to vector<16x384xf32>
    %26 = vector.shape_cast %25 : vector<16x384xf32> to vector<1x16x384xf32>
    %27 = vector.broadcast %23 : vector<2x1x384xf32> to vector<2x16x384xf32>
    %28 = vector.broadcast %26 : vector<1x16x384xf32> to vector<2x16x384xf32>
    %29 = arith.mulf %27, %28 : vector<2x16x384xf32>
    %30 = arith.addf %20, %29 : vector<2x16x384xf32>
    %c3 = arith.constant 3 : index
    %c0_18 = arith.constant 0 : index
    %c0_19 = arith.constant 0 : index
    %31 = vector.load %arg1[%c3, %c0_18, %c0_19] : memref<8x2x1152xf32, #tpu.memory_space<vmem>>, vector<1x2x384xf32>
    %32 = vector.shape_cast %31 : vector<1x2x384xf32> to vector<2x384xf32>
    %33 = vector.shape_cast %32 : vector<2x384xf32> to vector<2x1x384xf32>
    %c0_20 = arith.constant 0 : index
    %c3_21 = arith.constant 3 : index
    %c0_22 = arith.constant 0 : index
    %c0_23 = arith.constant 0 : index
    %34 = vector.load %arg2[%c0_20, %c3_21, %c0_22, %c0_23] : memref<1x8x16x1152xf32, #tpu.memory_space<vmem>>, vector<1x1x16x384xf32>
    %35 = vector.shape_cast %34 : vector<1x1x16x384xf32> to vector<16x384xf32>
    %36 = vector.shape_cast %35 : vector<16x384xf32> to vector<1x16x384xf32>
    %37 = vector.broadcast %33 : vector<2x1x384xf32> to vector<2x16x384xf32>
    %38 = vector.broadcast %36 : vector<1x16x384xf32> to vector<2x16x384xf32>
    %39 = arith.mulf %37, %38 : vector<2x16x384xf32>
    %40 = arith.addf %30, %39 : vector<2x16x384xf32>
    %c4 = arith.constant 4 : index
    %c0_24 = arith.constant 0 : index
    %c0_25 = arith.constant 0 : index
    %41 = vector.load %arg1[%c4, %c0_24, %c0_25] : memref<8x2x1152xf32, #tpu.memory_space<vmem>>, vector<1x2x384xf32>
    %42 = vector.shape_cast %41 : vector<1x2x384xf32> to vector<2x384xf32>
    %43 = vector.shape_cast %42 : vector<2x384xf32> to vector<2x1x384xf32>
    %c0_26 = arith.constant 0 : index
    %c4_27 = arith.constant 4 : index
    %c0_28 = arith.constant 0 : index
    %c0_29 = arith.constant 0 : index
    %44 = vector.load %arg2[%c0_26, %c4_27, %c0_28, %c0_29] : memref<1x8x16x1152xf32, #tpu.memory_space<vmem>>, vector<1x1x16x384xf32>
    %45 = vector.shape_cast %44 : vector<1x1x16x384xf32> to vector<16x384xf32>
    %46 = vector.shape_cast %45 : vector<16x384xf32> to vector<1x16x384xf32>
    %47 = vector.broadcast %43 : vector<2x1x384xf32> to vector<2x16x384xf32>
    %48 = vector.broadcast %46 : vector<1x16x384xf32> to vector<2x16x384xf32>
    %49 = arith.mulf %47, %48 : vector<2x16x384xf32>
    %50 = arith.addf %40, %49 : vector<2x16x384xf32>
    %c5 = arith.constant 5 : index
    %c0_30 = arith.constant 0 : index
    %c0_31 = arith.constant 0 : index
    %51 = vector.load %arg1[%c5, %c0_30, %c0_31] : memref<8x2x1152xf32, #tpu.memory_space<vmem>>, vector<1x2x384xf32>
    %52 = vector.shape_cast %51 : vector<1x2x384xf32> to vector<2x384xf32>
    %53 = vector.shape_cast %52 : vector<2x384xf32> to vector<2x1x384xf32>
    %c0_32 = arith.constant 0 : index
    %c5_33 = arith.constant 5 : index
    %c0_34 = arith.constant 0 : index
    %c0_35 = arith.constant 0 : index
    %54 = vector.load %arg2[%c0_32, %c5_33, %c0_34, %c0_35] : memref<1x8x16x1152xf32, #tpu.memory_space<vmem>>, vector<1x1x16x384xf32>
    %55 = vector.shape_cast %54 : vector<1x1x16x384xf32> to vector<16x384xf32>
    %56 = vector.shape_cast %55 : vector<16x384xf32> to vector<1x16x384xf32>
    %57 = vector.broadcast %53 : vector<2x1x384xf32> to vector<2x16x384xf32>
    %58 = vector.broadcast %56 : vector<1x16x384xf32> to vector<2x16x384xf32>
    %59 = arith.mulf %57, %58 : vector<2x16x384xf32>
    %60 = arith.addf %50, %59 : vector<2x16x384xf32>
    %c6 = arith.constant 6 : index
    %c0_36 = arith.constant 0 : index
    %c0_37 = arith.constant 0 : index
    %61 = vector.load %arg1[%c6, %c0_36, %c0_37] : memref<8x2x1152xf32, #tpu.memory_space<vmem>>, vector<1x2x384xf32>
    %62 = vector.shape_cast %61 : vector<1x2x384xf32> to vector<2x384xf32>
    %63 = vector.shape_cast %62 : vector<2x384xf32> to vector<2x1x384xf32>
    %c0_38 = arith.constant 0 : index
    %c6_39 = arith.constant 6 : index
    %c0_40 = arith.constant 0 : index
    %c0_41 = arith.constant 0 : index
    %64 = vector.load %arg2[%c0_38, %c6_39, %c0_40, %c0_41] : memref<1x8x16x1152xf32, #tpu.memory_space<vmem>>, vector<1x1x16x384xf32>
    %65 = vector.shape_cast %64 : vector<1x1x16x384xf32> to vector<16x384xf32>
    %66 = vector.shape_cast %65 : vector<16x384xf32> to vector<1x16x384xf32>
    %67 = vector.broadcast %63 : vector<2x1x384xf32> to vector<2x16x384xf32>
    %68 = vector.broadcast %66 : vector<1x16x384xf32> to vector<2x16x384xf32>
    %69 = arith.mulf %67, %68 : vector<2x16x384xf32>
    %70 = arith.addf %60, %69 : vector<2x16x384xf32>
    %c7 = arith.constant 7 : index
    %c0_42 = arith.constant 0 : index
    %c0_43 = arith.constant 0 : index
    %71 = vector.load %arg1[%c7, %c0_42, %c0_43] : memref<8x2x1152xf32, #tpu.memory_space<vmem>>, vector<1x2x384xf32>
    %72 = vector.shape_cast %71 : vector<1x2x384xf32> to vector<2x384xf32>
    %73 = vector.shape_cast %72 : vector<2x384xf32> to vector<2x1x384xf32>
    %c0_44 = arith.constant 0 : index
    %c7_45 = arith.constant 7 : index
    %c0_46 = arith.constant 0 : index
    %c0_47 = arith.constant 0 : index
    %74 = vector.load %arg2[%c0_44, %c7_45, %c0_46, %c0_47] : memref<1x8x16x1152xf32, #tpu.memory_space<vmem>>, vector<1x1x16x384xf32>
    %75 = vector.shape_cast %74 : vector<1x1x16x384xf32> to vector<16x384xf32>
    %76 = vector.shape_cast %75 : vector<16x384xf32> to vector<1x16x384xf32>
    %77 = vector.broadcast %73 : vector<2x1x384xf32> to vector<2x16x384xf32>
    %78 = vector.broadcast %76 : vector<1x16x384xf32> to vector<2x16x384xf32>
    %79 = arith.mulf %77, %78 : vector<2x16x384xf32>
    %80 = arith.addf %70, %79 : vector<2x16x384xf32>
    %c0_48 = arith.constant 0 : index
    %c0_49 = arith.constant 0 : index
    %c0_50 = arith.constant 0 : index
    %81 = vector.load %arg4[%c0_48, %c0_49, %c0_50] : memref<2x16x1152xf32, #tpu.memory_space<vmem>>, vector<2x16x384xf32>
    tpu.vector_store %arg4[%c0_48, %c0_49, %c0_50], %80 {strides = array<i32>} : memref<2x16x1152xf32, #tpu.memory_space<vmem>>, vector<2x16x384xf32>,
    %cst_51 = arith.constant 0.000000e+00 : f32
    %82 = vector.broadcast %cst_51 : f32 to vector<2x16x384xf32>
    %c0_52 = arith.constant 0 : index
    %c0_53 = arith.constant 0 : index
    %c384 = arith.constant 384 : index
    %83 = vector.load %arg1[%c0_52, %c0_53, %c384] : memref<8x2x1152xf32, #tpu.memory_space<vmem>>, vector<1x2x384xf32>
    %84 = vector.shape_cast %83 : vector<1x2x384xf32> to vector<2x384xf32>
    %85 = vector.shape_cast %84 : vector<2x384xf32> to vector<2x1x384xf32>
    %c0_54 = arith.constant 0 : index
    %c0_55 = arith.constant 0 : index
    %c0_56 = arith.constant 0 : index
    %c384_57 = arith.constant 384 : index
    %86 = vector.load %arg2[%c0_54, %c0_55, %c0_56, %c384_57] : memref<1x8x16x1152xf32, #tpu.memory_space<vmem>>, vector<1x1x16x384xf32>
    %87 = vector.shape_cast %86 : vector<1x1x16x384xf32> to vector<16x384xf32>
    %88 = vector.shape_cast %87 : vector<16x384xf32> to vector<1x16x384xf32>
    %89 = vector.broadcast %85 : vector<2x1x384xf32> to vector<2x16x384xf32>
    %90 = vector.broadcast %88 : vector<1x16x384xf32> to vector<2x16x384xf32>
    %91 = arith.mulf %89, %90 : vector<2x16x384xf32>
    %92 = arith.addf %82, %91 : vector<2x16x384xf32>
    %c1_58 = arith.constant 1 : index
    %c0_59 = arith.constant 0 : index
    %c384_60 = arith.constant 384 : index
    %93 = vector.load %arg1[%c1_58, %c0_59, %c384_60] : memref<8x2x1152xf32, #tpu.memory_space<vmem>>, vector<1x2x384xf32>
    %94 = vector.shape_cast %93 : vector<1x2x384xf32> to vector<2x384xf32>
    %95 = vector.shape_cast %94 : vector<2x384xf32> to vector<2x1x384xf32>
    %c0_61 = arith.constant 0 : index
    %c1_62 = arith.constant 1 : index
    %c0_63 = arith.constant 0 : index
    %c384_64 = arith.constant 384 : index
    %96 = vector.load %arg2[%c0_61, %c1_62, %c0_63, %c384_64] : memref<1x8x16x1152xf32, #tpu.memory_space<vmem>>, vector<1x1x16x384xf32>
    %97 = vector.shape_cast %96 : vector<1x1x16x384xf32> to vector<16x384xf32>
    %98 = vector.shape_cast %97 : vector<16x384xf32> to vector<1x16x384xf32>
    %99 = vector.broadcast %95 : vector<2x1x384xf32> to vector<2x16x384xf32>
    %100 = vector.broadcast %98 : vector<1x16x384xf32> to vector<2x16x384xf32>
    %101 = arith.mulf %99, %100 : vector<2x16x384xf32>
    %102 = arith.addf %92, %101 : vector<2x16x384xf32>
    %c2_65 = arith.constant 2 : index
    %c0_66 = arith.constant 0 : index
    %c384_67 = arith.constant 384 : index
    %103 = vector.load %arg1[%c2_65, %c0_66, %c384_67] : memref<8x2x1152xf32, #tpu.memory_space<vmem>>, vector<1x2x384xf32>
    %104 = vector.shape_cast %103 : vector<1x2x384xf32> to vector<2x384xf32>
    %105 = vector.shape_cast %104 : vector<2x384xf32> to vector<2x1x384xf32>
    %c0_68 = arith.constant 0 : index
    %c2_69 = arith.constant 2 : index
    %c0_70 = arith.constant 0 : index
    %c384_71 = arith.constant 384 : index
    %106 = vector.load %arg2[%c0_68, %c2_69, %c0_70, %c384_71] : memref<1x8x16x1152xf32, #tpu.memory_space<vmem>>, vector<1x1x16x384xf32>
    %107 = vector.shape_cast %106 : vector<1x1x16x384xf32> to vector<16x384xf32>
    %108 = vector.shape_cast %107 : vector<16x384xf32> to vector<1x16x384xf32>
    %109 = vector.broadcast %105 : vector<2x1x384xf32> to vector<2x16x384xf32>
    %110 = vector.broadcast %108 : vector<1x16x384xf32> to vector<2x16x384xf32>
    %111 = arith.mulf %109, %110 : vector<2x16x384xf32>
    %112 = arith.addf %102, %111 : vector<2x16x384xf32>
    %c3_72 = arith.constant 3 : index
    %c0_73 = arith.constant 0 : index
    %c384_74 = arith.constant 384 : index
    %113 = vector.load %arg1[%c3_72, %c0_73, %c384_74] : memref<8x2x1152xf32, #tpu.memory_space<vmem>>, vector<1x2x384xf32>
    %114 = vector.shape_cast %113 : vector<1x2x384xf32> to vector<2x384xf32>
    %115 = vector.shape_cast %114 : vector<2x384xf32> to vector<2x1x384xf32>
    %c0_75 = arith.constant 0 : index
    %c3_76 = arith.constant 3 : index
    %c0_77 = arith.constant 0 : index
    %c384_78 = arith.constant 384 : index
    %116 = vector.load %arg2[%c0_75, %c3_76, %c0_77, %c384_78] : memref<1x8x16x1152xf32, #tpu.memory_space<vmem>>, vector<1x1x16x384xf32>
    %117 = vector.shape_cast %116 : vector<1x1x16x384xf32> to vector<16x384xf32>
    %118 = vector.shape_cast %117 : vector<16x384xf32> to vector<1x16x384xf32>
    %119 = vector.broadcast %115 : vector<2x1x384xf32> to vector<2x16x384xf32>
    %120 = vector.broadcast %118 : vector<1x16x384xf32> to vector<2x16x384xf32>
    %121 = arith.mulf %119, %120 : vector<2x16x384xf32>
    %122 = arith.addf %112, %121 : vector<2x16x384xf32>
    %c4_79 = arith.constant 4 : index
    %c0_80 = arith.constant 0 : index
    %c384_81 = arith.constant 384 : index
    %123 = vector.load %arg1[%c4_79, %c0_80, %c384_81] : memref<8x2x1152xf32, #tpu.memory_space<vmem>>, vector<1x2x384xf32>
    %124 = vector.shape_cast %123 : vector<1x2x384xf32> to vector<2x384xf32>
    %125 = vector.shape_cast %124 : vector<2x384xf32> to vector<2x1x384xf32>
    %c0_82 = arith.constant 0 : index
    %c4_83 = arith.constant 4 : index
    %c0_84 = arith.constant 0 : index
    %c384_85 = arith.constant 384 : index
    %126 = vector.load %arg2[%c0_82, %c4_83, %c0_84, %c384_85] : memref<1x8x16x1152xf32, #tpu.memory_space<vmem>>, vector<1x1x16x384xf32>
    %127 = vector.shape_cast %126 : vector<1x1x16x384xf32> to vector<16x384xf32>
    %128 = vector.shape_cast %127 : vector<16x384xf32> to vector<1x16x384xf32>
    %129 = vector.broadcast %125 : vector<2x1x384xf32> to vector<2x16x384xf32>
    %130 = vector.broadcast %128 : vector<1x16x384xf32> to vector<2x16x384xf32>
    %131 = arith.mulf %129, %130 : vector<2x16x384xf32>
    %132 = arith.addf %122, %131 : vector<2x16x384xf32>
    %c5_86 = arith.constant 5 : index
    %c0_87 = arith.constant 0 : index
    %c384_88 = arith.constant 384 : index
    %133 = vector.load %arg1[%c5_86, %c0_87, %c384_88] : memref<8x2x1152xf32, #tpu.memory_space<vmem>>, vector<1x2x384xf32>
    %134 = vector.shape_cast %133 : vector<1x2x384xf32> to vector<2x384xf32>
    %135 = vector.shape_cast %134 : vector<2x384xf32> to vector<2x1x384xf32>
    %c0_89 = arith.constant 0 : index
    %c5_90 = arith.constant 5 : index
    %c0_91 = arith.constant 0 : index
    %c384_92 = arith.constant 384 : index
    %136 = vector.load %arg2[%c0_89, %c5_90, %c0_91, %c384_92] : memref<1x8x16x1152xf32, #tpu.memory_space<vmem>>, vector<1x1x16x384xf32>
    %137 = vector.shape_cast %136 : vector<1x1x16x384xf32> to vector<16x384xf32>
    %138 = vector.shape_cast %137 : vector<16x384xf32> to vector<1x16x384xf32>
    %139 = vector.broadcast %135 : vector<2x1x384xf32> to vector<2x16x384xf32>
    %140 = vector.broadcast %138 : vector<1x16x384xf32> to vector<2x16x384xf32>
    %141 = arith.mulf %139, %140 : vector<2x16x384xf32>
    %142 = arith.addf %132, %141 : vector<2x16x384xf32>
    %c6_93 = arith.constant 6 : index
    %c0_94 = arith.constant 0 : index
    %c384_95 = arith.constant 384 : index
    %143 = vector.load %arg1[%c6_93, %c0_94, %c384_95] : memref<8x2x1152xf32, #tpu.memory_space<vmem>>, vector<1x2x384xf32>
    %144 = vector.shape_cast %143 : vector<1x2x384xf32> to vector<2x384xf32>
    %145 = vector.shape_cast %144 : vector<2x384xf32> to vector<2x1x384xf32>
    %c0_96 = arith.constant 0 : index
    %c6_97 = arith.constant 6 : index
    %c0_98 = arith.constant 0 : index
    %c384_99 = arith.constant 384 : index
    %146 = vector.load %arg2[%c0_96, %c6_97, %c0_98, %c384_99] : memref<1x8x16x1152xf32, #tpu.memory_space<vmem>>, vector<1x1x16x384xf32>
    %147 = vector.shape_cast %146 : vector<1x1x16x384xf32> to vector<16x384xf32>
    %148 = vector.shape_cast %147 : vector<16x384xf32> to vector<1x16x384xf32>
    %149 = vector.broadcast %145 : vector<2x1x384xf32> to vector<2x16x384xf32>
    %150 = vector.broadcast %148 : vector<1x16x384xf32> to vector<2x16x384xf32>
    %151 = arith.mulf %149, %150 : vector<2x16x384xf32>
    %152 = arith.addf %142, %151 : vector<2x16x384xf32>
    %c7_100 = arith.constant 7 : index
    %c0_101 = arith.constant 0 : index
    %c384_102 = arith.constant 384 : index
    %153 = vector.load %arg1[%c7_100, %c0_101, %c384_102] : memref<8x2x1152xf32, #tpu.memory_space<vmem>>, vector<1x2x384xf32>
    %154 = vector.shape_cast %153 : vector<1x2x384xf32> to vector<2x384xf32>
    %155 = vector.shape_cast %154 : vector<2x384xf32> to vector<2x1x384xf32>
    %c0_103 = arith.constant 0 : index
    %c7_104 = arith.constant 7 : index
    %c0_105 = arith.constant 0 : index
    %c384_106 = arith.constant 384 : index
    %156 = vector.load %arg2[%c0_103, %c7_104, %c0_105, %c384_106] : memref<1x8x16x1152xf32, #tpu.memory_space<vmem>>, vector<1x1x16x384xf32>
    %157 = vector.shape_cast %156 : vector<1x1x16x384xf32> to vector<16x384xf32>
    %158 = vector.shape_cast %157 : vector<16x384xf32> to vector<1x16x384xf32>
    %159 = vector.broadcast %155 : vector<2x1x384xf32> to vector<2x16x384xf32>
    %160 = vector.broadcast %158 : vector<1x16x384xf32> to vector<2x16x384xf32>
    %161 = arith.mulf %159, %160 : vector<2x16x384xf32>
    %162 = arith.addf %152, %161 : vector<2x16x384xf32>
    %c0_107 = arith.constant 0 : index
    %c0_108 = arith.constant 0 : index
    %c384_109 = arith.constant 384 : index
    %163 = vector.load %arg4[%c0_107, %c0_108, %c384_109] : memref<2x16x1152xf32, #tpu.memory_space<vmem>>, vector<2x16x384xf32>
    tpu.vector_store %arg4[%c0_107, %c0_108, %c384_109], %162 {strides = array<i32>} : memref<2x16x1152xf32, #tpu.memory_space<vmem>>, vector<2x16x384xf32>,
    %cst_110 = arith.constant 0.000000e+00 : f32
    %164 = vector.broadcast %cst_110 : f32 to vector<2x16x384xf32>
    %c0_111 = arith.constant 0 : index
    %c0_112 = arith.constant 0 : index
    %c768 = arith.constant 768 : index
    %165 = vector.load %arg1[%c0_111, %c0_112, %c768] : memref<8x2x1152xf32, #tpu.memory_space<vmem>>, vector<1x2x384xf32>
    %166 = vector.shape_cast %165 : vector<1x2x384xf32> to vector<2x384xf32>
    %167 = vector.shape_cast %166 : vector<2x384xf32> to vector<2x1x384xf32>
    %c0_113 = arith.constant 0 : index
    %c0_114 = arith.constant 0 : index
    %c0_115 = arith.constant 0 : index
    %c768_116 = arith.constant 768 : index
    %168 = vector.load %arg2[%c0_113, %c0_114, %c0_115, %c768_116] : memref<1x8x16x1152xf32, #tpu.memory_space<vmem>>, vector<1x1x16x384xf32>
    %169 = vector.shape_cast %168 : vector<1x1x16x384xf32> to vector<16x384xf32>
    %170 = vector.shape_cast %169 : vector<16x384xf32> to vector<1x16x384xf32>
    %171 = vector.broadcast %167 : vector<2x1x384xf32> to vector<2x16x384xf32>
    %172 = vector.broadcast %170 : vector<1x16x384xf32> to vector<2x16x384xf32>
    %173 = arith.mulf %171, %172 : vector<2x16x384xf32>
    %174 = arith.addf %164, %173 : vector<2x16x384xf32>
    %c1_117 = arith.constant 1 : index
    %c0_118 = arith.constant 0 : index
    %c768_119 = arith.constant 768 : index
    %175 = vector.load %arg1[%c1_117, %c0_118, %c768_119] : memref<8x2x1152xf32, #tpu.memory_space<vmem>>, vector<1x2x384xf32>
    %176 = vector.shape_cast %175 : vector<1x2x384xf32> to vector<2x384xf32>
    %177 = vector.shape_cast %176 : vector<2x384xf32> to vector<2x1x384xf32>
    %c0_120 = arith.constant 0 : index
    %c1_121 = arith.constant 1 : index
    %c0_122 = arith.constant 0 : index
    %c768_123 = arith.constant 768 : index
    %178 = vector.load %arg2[%c0_120, %c1_121, %c0_122, %c768_123] : memref<1x8x16x1152xf32, #tpu.memory_space<vmem>>, vector<1x1x16x384xf32>
    %179 = vector.shape_cast %178 : vector<1x1x16x384xf32> to vector<16x384xf32>
    %180 = vector.shape_cast %179 : vector<16x384xf32> to vector<1x16x384xf32>
    %181 = vector.broadcast %177 : vector<2x1x384xf32> to vector<2x16x384xf32>
    %182 = vector.broadcast %180 : vector<1x16x384xf32> to vector<2x16x384xf32>
    %183 = arith.mulf %181, %182 : vector<2x16x384xf32>
    %184 = arith.addf %174, %183 : vector<2x16x384xf32>
    %c2_124 = arith.constant 2 : index
    %c0_125 = arith.constant 0 : index
    %c768_126 = arith.constant 768 : index
    %185 = vector.load %arg1[%c2_124, %c0_125, %c768_126] : memref<8x2x1152xf32, #tpu.memory_space<vmem>>, vector<1x2x384xf32>
    %186 = vector.shape_cast %185 : vector<1x2x384xf32> to vector<2x384xf32>
    %187 = vector.shape_cast %186 : vector<2x384xf32> to vector<2x1x384xf32>
    %c0_127 = arith.constant 0 : index
    %c2_128 = arith.constant 2 : index
    %c0_129 = arith.constant 0 : index
    %c768_130 = arith.constant 768 : index
    %188 = vector.load %arg2[%c0_127, %c2_128, %c0_129, %c768_130] : memref<1x8x16x1152xf32, #tpu.memory_space<vmem>>, vector<1x1x16x384xf32>
    %189 = vector.shape_cast %188 : vector<1x1x16x384xf32> to vector<16x384xf32>
    %190 = vector.shape_cast %189 : vector<16x384xf32> to vector<1x16x384xf32>
    %191 = vector.broadcast %187 : vector<2x1x384xf32> to vector<2x16x384xf32>
    %192 = vector.broadcast %190 : vector<1x16x384xf32> to vector<2x16x384xf32>
    %193 = arith.mulf %191, %192 : vector<2x16x384xf32>
    %194 = arith.addf %184, %193 : vector<2x16x384xf32>
    %c3_131 = arith.constant 3 : index
    %c0_132 = arith.constant 0 : index
    %c768_133 = arith.constant 768 : index
    %195 = vector.load %arg1[%c3_131, %c0_132, %c768_133] : memref<8x2x1152xf32, #tpu.memory_space<vmem>>, vector<1x2x384xf32>
    %196 = vector.shape_cast %195 : vector<1x2x384xf32> to vector<2x384xf32>
    %197 = vector.shape_cast %196 : vector<2x384xf32> to vector<2x1x384xf32>
    %c0_134 = arith.constant 0 : index
    %c3_135 = arith.constant 3 : index
    %c0_136 = arith.constant 0 : index
    %c768_137 = arith.constant 768 : index
    %198 = vector.load %arg2[%c0_134, %c3_135, %c0_136, %c768_137] : memref<1x8x16x1152xf32, #tpu.memory_space<vmem>>, vector<1x1x16x384xf32>
    %199 = vector.shape_cast %198 : vector<1x1x16x384xf32> to vector<16x384xf32>
    %200 = vector.shape_cast %199 : vector<16x384xf32> to vector<1x16x384xf32>
    %201 = vector.broadcast %197 : vector<2x1x384xf32> to vector<2x16x384xf32>
    %202 = vector.broadcast %200 : vector<1x16x384xf32> to vector<2x16x384xf32>
    %203 = arith.mulf %201, %202 : vector<2x16x384xf32>
    %204 = arith.addf %194, %203 : vector<2x16x384xf32>
    %c4_138 = arith.constant 4 : index
    %c0_139 = arith.constant 0 : index
    %c768_140 = arith.constant 768 : index
    %205 = vector.load %arg1[%c4_138, %c0_139, %c768_140] : memref<8x2x1152xf32, #tpu.memory_space<vmem>>, vector<1x2x384xf32>
    %206 = vector.shape_cast %205 : vector<1x2x384xf32> to vector<2x384xf32>
    %207 = vector.shape_cast %206 : vector<2x384xf32> to vector<2x1x384xf32>
    %c0_141 = arith.constant 0 : index
    %c4_142 = arith.constant 4 : index
    %c0_143 = arith.constant 0 : index
    %c768_144 = arith.constant 768 : index
    %208 = vector.load %arg2[%c0_141, %c4_142, %c0_143, %c768_144] : memref<1x8x16x1152xf32, #tpu.memory_space<vmem>>, vector<1x1x16x384xf32>
    %209 = vector.shape_cast %208 : vector<1x1x16x384xf32> to vector<16x384xf32>
    %210 = vector.shape_cast %209 : vector<16x384xf32> to vector<1x16x384xf32>
    %211 = vector.broadcast %207 : vector<2x1x384xf32> to vector<2x16x384xf32>
    %212 = vector.broadcast %210 : vector<1x16x384xf32> to vector<2x16x384xf32>
    %213 = arith.mulf %211, %212 : vector<2x16x384xf32>
    %214 = arith.addf %204, %213 : vector<2x16x384xf32>
    %c5_145 = arith.constant 5 : index
    %c0_146 = arith.constant 0 : index
    %c768_147 = arith.constant 768 : index
    %215 = vector.load %arg1[%c5_145, %c0_146, %c768_147] : memref<8x2x1152xf32, #tpu.memory_space<vmem>>, vector<1x2x384xf32>
    %216 = vector.shape_cast %215 : vector<1x2x384xf32> to vector<2x384xf32>
    %217 = vector.shape_cast %216 : vector<2x384xf32> to vector<2x1x384xf32>
    %c0_148 = arith.constant 0 : index
    %c5_149 = arith.constant 5 : index
    %c0_150 = arith.constant 0 : index
    %c768_151 = arith.constant 768 : index
    %218 = vector.load %arg2[%c0_148, %c5_149, %c0_150, %c768_151] : memref<1x8x16x1152xf32, #tpu.memory_space<vmem>>, vector<1x1x16x384xf32>
    %219 = vector.shape_cast %218 : vector<1x1x16x384xf32> to vector<16x384xf32>
    %220 = vector.shape_cast %219 : vector<16x384xf32> to vector<1x16x384xf32>
    %221 = vector.broadcast %217 : vector<2x1x384xf32> to vector<2x16x384xf32>
    %222 = vector.broadcast %220 : vector<1x16x384xf32> to vector<2x16x384xf32>
    %223 = arith.mulf %221, %222 : vector<2x16x384xf32>
    %224 = arith.addf %214, %223 : vector<2x16x384xf32>
    %c6_152 = arith.constant 6 : index
    %c0_153 = arith.constant 0 : index
    %c768_154 = arith.constant 768 : index
    %225 = vector.load %arg1[%c6_152, %c0_153, %c768_154] : memref<8x2x1152xf32, #tpu.memory_space<vmem>>, vector<1x2x384xf32>
    %226 = vector.shape_cast %225 : vector<1x2x384xf32> to vector<2x384xf32>
    %227 = vector.shape_cast %226 : vector<2x384xf32> to vector<2x1x384xf32>
    %c0_155 = arith.constant 0 : index
    %c6_156 = arith.constant 6 : index
    %c0_157 = arith.constant 0 : index
    %c768_158 = arith.constant 768 : index
    %228 = vector.load %arg2[%c0_155, %c6_156, %c0_157, %c768_158] : memref<1x8x16x1152xf32, #tpu.memory_space<vmem>>, vector<1x1x16x384xf32>
    %229 = vector.shape_cast %228 : vector<1x1x16x384xf32> to vector<16x384xf32>
    %230 = vector.shape_cast %229 : vector<16x384xf32> to vector<1x16x384xf32>
    %231 = vector.broadcast %227 : vector<2x1x384xf32> to vector<2x16x384xf32>
    %232 = vector.broadcast %230 : vector<1x16x384xf32> to vector<2x16x384xf32>
    %233 = arith.mulf %231, %232 : vector<2x16x384xf32>
    %234 = arith.addf %224, %233 : vector<2x16x384xf32>
    %c7_159 = arith.constant 7 : index
    %c0_160 = arith.constant 0 : index
    %c768_161 = arith.constant 768 : index
    %235 = vector.load %arg1[%c7_159, %c0_160, %c768_161] : memref<8x2x1152xf32, #tpu.memory_space<vmem>>, vector<1x2x384xf32>
    %236 = vector.shape_cast %235 : vector<1x2x384xf32> to vector<2x384xf32>
    %237 = vector.shape_cast %236 : vector<2x384xf32> to vector<2x1x384xf32>
    %c0_162 = arith.constant 0 : index
    %c7_163 = arith.constant 7 : index
    %c0_164 = arith.constant 0 : index
    %c768_165 = arith.constant 768 : index
    %238 = vector.load %arg2[%c0_162, %c7_163, %c0_164, %c768_165] : memref<1x8x16x1152xf32, #tpu.memory_space<vmem>>, vector<1x1x16x384xf32>
    %239 = vector.shape_cast %238 : vector<1x1x16x384xf32> to vector<16x384xf32>
    %240 = vector.shape_cast %239 : vector<16x384xf32> to vector<1x16x384xf32>
    %241 = vector.broadcast %237 : vector<2x1x384xf32> to vector<2x16x384xf32>
    %242 = vector.broadcast %240 : vector<1x16x384xf32> to vector<2x16x384xf32>
    %243 = arith.mulf %241, %242 : vector<2x16x384xf32>
    %244 = arith.addf %234, %243 : vector<2x16x384xf32>
    %c0_166 = arith.constant 0 : index
    %c0_167 = arith.constant 0 : index
    %c768_168 = arith.constant 768 : index
    %245 = vector.load %arg4[%c0_166, %c0_167, %c768_168] : memref<2x16x1152xf32, #tpu.memory_space<vmem>>, vector<2x16x384xf32>
    tpu.vector_store %arg4[%c0_166, %c0_167, %c768_168], %244 {strides = array<i32>} : memref<2x16x1152xf32, #tpu.memory_space<vmem>>, vector<2x16x384xf32>,
    %c0_169 = arith.constant 0 : index
    %c0_170 = arith.constant 0 : index
    %c0_171 = arith.constant 0 : index
    %246 = vector.load %arg4[%c0_169, %c0_170, %c0_171] : memref<2x16x1152xf32, #tpu.memory_space<vmem>>, vector<2x16x1152xf32>
    %cst_172 = arith.constant dense<0.000000e+00> : vector<2x16xf32>
    %247 = vector.multi_reduction <add>, %246, %cst_172 [2] : vector<2x16x1152xf32> to vector<2x16xf32>
    %248 = vector.shape_cast %247 : vector<2x16xf32> to vector<2x16x1xf32>
    %cst_173 = arith.constant 8.68055562E-4 : f32
    %249 = vector.broadcast %cst_173 : f32 to vector<2x16x1xf32>
    %250 = arith.mulf %248, %249 : vector<2x16x1xf32>
    %251 = arith.mulf %250, %250 : vector<2x16x1xf32>
    %cst_174 = arith.constant dense<0.000000e+00> : vector<2x1xf32>
    %252 = vector.multi_reduction <add>, %251, %cst_174 [1] : vector<2x16x1xf32> to vector<2x1xf32>
    %253 = vector.shape_cast %252 : vector<2x1xf32> to vector<2x1x1xf32>
    %cst_175 = arith.constant 1.000000e+00 : f32
    %254 = vector.broadcast %cst_175 : f32 to vector<2x1x1xf32>
    %255 = arith.addf %254, %253 : vector<2x1x1xf32>
    %256 = tpu.reciprocal %255 {approx = true} : vector<2x1x1xf32> -> vector<2x1x1xf32>
    %257 = arith.mulf %253, %256 : vector<2x1x1xf32>
    %cst_176 = arith.constant 9.99999996E-13 : f32
    %258 = vector.broadcast %cst_176 : f32 to vector<2x1x1xf32>
    %259 = arith.addf %253, %258 : vector<2x1x1xf32>
    %260 = math.rsqrt %259 : vector<2x1x1xf32>
    %261 = arith.mulf %257, %260 : vector<2x1x1xf32>
    %262 = vector.broadcast %261 : vector<2x1x1xf32> to vector<2x16x1xf32>
    %263 = arith.mulf %250, %262 : vector<2x16x1xf32>
    %c0_177 = arith.constant 0 : index
    %c0_178 = arith.constant 0 : index
    %c0_179 = arith.constant 0 : index
    %264 = vector.load %arg4[%c0_177, %c0_178, %c0_179] : memref<2x16x1152xf32, #tpu.memory_space<vmem>>, vector<2x16x1152xf32>
    %265 = vector.broadcast %263 : vector<2x16x1xf32> to vector<2x16x1152xf32>
    %266 = arith.mulf %264, %265 : vector<2x16x1152xf32>
    %cst_180 = arith.constant dense<0.000000e+00> : vector<2x1152xf32>
    %267 = vector.multi_reduction <add>, %266, %cst_180 [1] : vector<2x16x1152xf32> to vector<2x1152xf32>
    %268 = vector.shape_cast %267 : vector<2x1152xf32> to vector<2x1x1152xf32>
    %cst_181 = arith.constant dense<0xFF800000> : vector<2x1xf32>
    %269 = vector.multi_reduction <maximumf>, %268, %cst_181 [2] : vector<2x1x1152xf32> to vector<2x1xf32>
    %270 = vector.shape_cast %269 : vector<2x1xf32> to vector<2x1x1xf32>
    %271 = vector.broadcast %270 : vector<2x1x1xf32> to vector<2x1x1152xf32>
    %272 = arith.subf %268, %271 : vector<2x1x1152xf32>
    %273 = math.exp %272 : vector<2x1x1152xf32>
    %cst_182 = arith.constant dense<0.000000e+00> : vector<2x1xf32>
    %274 = vector.multi_reduction <add>, %273, %cst_182 [2] : vector<2x1x1152xf32> to vector<2x1xf32>
    %275 = vector.shape_cast %274 : vector<2x1xf32> to vector<2x1x1xf32>
    %276 = tpu.reciprocal %275 {approx = true} : vector<2x1x1xf32> -> vector<2x1x1xf32>
    %277 = vector.broadcast %276 : vector<2x1x1xf32> to vector<2x1x1152xf32>
    %278 = arith.mulf %273, %277 : vector<2x1x1152xf32>
    %c0_183 = arith.constant 0 : index
    %c0_184 = arith.constant 0 : index
    %c0_185 = arith.constant 0 : index
    %279 = vector.load %arg4[%c0_183, %c0_184, %c0_185] : memref<2x16x1152xf32, #tpu.memory_space<vmem>>, vector<2x16x1152xf32>
    %280 = vector.broadcast %278 : vector<2x1x1152xf32> to vector<2x16x1152xf32>
    %281 = arith.mulf %280, %279 : vector<2x16x1152xf32>
    %cst_186 = arith.constant dense<0.000000e+00> : vector<2x16xf32>
    %282 = vector.multi_reduction <add>, %281, %cst_186 [2] : vector<2x16x1152xf32> to vector<2x16xf32>
    %283 = vector.shape_cast %282 : vector<2x16xf32> to vector<2x16x1xf32>
    %284 = arith.mulf %283, %283 : vector<2x16x1xf32>
    %cst_187 = arith.constant dense<0.000000e+00> : vector<2x1xf32>
    %285 = vector.multi_reduction <add>, %284, %cst_187 [1] : vector<2x16x1xf32> to vector<2x1xf32>
    %286 = vector.shape_cast %285 : vector<2x1xf32> to vector<2x1x1xf32>
    %cst_188 = arith.constant 1.000000e+00 : f32
    %287 = vector.broadcast %cst_188 : f32 to vector<2x1x1xf32>
    %288 = arith.addf %287, %286 : vector<2x1x1xf32>
    %289 = tpu.reciprocal %288 {approx = true} : vector<2x1x1xf32> -> vector<2x1x1xf32>
    %290 = arith.mulf %286, %289 : vector<2x1x1xf32>
    %cst_189 = arith.constant 9.99999996E-13 : f32
    %291 = vector.broadcast %cst_189 : f32 to vector<2x1x1xf32>
    %292 = arith.addf %286, %291 : vector<2x1x1xf32>
    %293 = math.rsqrt %292 : vector<2x1x1xf32>
    %294 = arith.mulf %290, %293 : vector<2x1x1xf32>
    %295 = vector.broadcast %294 : vector<2x1x1xf32> to vector<2x16x1xf32>
    %296 = arith.mulf %283, %295 : vector<2x16x1xf32>
    %c0_190 = arith.constant 0 : index
    %c0_191 = arith.constant 0 : index
    %c0_192 = arith.constant 0 : index
    %297 = vector.load %arg4[%c0_190, %c0_191, %c0_192] : memref<2x16x1152xf32, #tpu.memory_space<vmem>>, vector<2x16x1152xf32>
    %298 = vector.broadcast %296 : vector<2x16x1xf32> to vector<2x16x1152xf32>
    %299 = arith.mulf %297, %298 : vector<2x16x1152xf32>
    %cst_193 = arith.constant dense<0.000000e+00> : vector<2x1152xf32>
    %300 = vector.multi_reduction <add>, %299, %cst_193 [1] : vector<2x16x1152xf32> to vector<2x1152xf32>
    %301 = vector.shape_cast %300 : vector<2x1152xf32> to vector<2x1x1152xf32>
    %302 = arith.addf %268, %301 : vector<2x1x1152xf32>
    %cst_194 = arith.constant dense<0xFF800000> : vector<2x1xf32>
    %303 = vector.multi_reduction <maximumf>, %302, %cst_194 [2] : vector<2x1x1152xf32> to vector<2x1xf32>
    %304 = vector.shape_cast %303 : vector<2x1xf32> to vector<2x1x1xf32>
    %305 = vector.broadcast %304 : vector<2x1x1xf32> to vector<2x1x1152xf32>
    %306 = arith.subf %302, %305 : vector<2x1x1152xf32>
    %307 = math.exp %306 : vector<2x1x1152xf32>
    %cst_195 = arith.constant dense<0.000000e+00> : vector<2x1xf32>
    %308 = vector.multi_reduction <add>, %307, %cst_195 [2] : vector<2x1x1152xf32> to vector<2x1xf32>
    %309 = vector.shape_cast %308 : vector<2x1xf32> to vector<2x1x1xf32>
    %310 = tpu.reciprocal %309 {approx = true} : vector<2x1x1xf32> -> vector<2x1x1xf32>
    %311 = vector.broadcast %310 : vector<2x1x1xf32> to vector<2x1x1152xf32>
    %312 = arith.mulf %307, %311 : vector<2x1x1152xf32>
    %c0_196 = arith.constant 0 : index
    %c0_197 = arith.constant 0 : index
    %c0_198 = arith.constant 0 : index
    %313 = vector.load %arg4[%c0_196, %c0_197, %c0_198] : memref<2x16x1152xf32, #tpu.memory_space<vmem>>, vector<2x16x1152xf32>
    %314 = vector.broadcast %312 : vector<2x1x1152xf32> to vector<2x16x1152xf32>
    %315 = arith.mulf %314, %313 : vector<2x16x1152xf32>
    %cst_199 = arith.constant dense<0.000000e+00> : vector<2x16xf32>
    %316 = vector.multi_reduction <add>, %315, %cst_199 [2] : vector<2x16x1152xf32> to vector<2x16xf32>
    %317 = vector.shape_cast %316 : vector<2x16xf32> to vector<2x16x1xf32>
    %318 = arith.mulf %317, %317 : vector<2x16x1xf32>
    %cst_200 = arith.constant dense<0.000000e+00> : vector<2x1xf32>
    %319 = vector.multi_reduction <add>, %318, %cst_200 [1] : vector<2x16x1xf32> to vector<2x1xf32>
    %320 = vector.shape_cast %319 : vector<2x1xf32> to vector<2x1x1xf32>
    %cst_201 = arith.constant 1.000000e+00 : f32
    %321 = vector.broadcast %cst_201 : f32 to vector<2x1x1xf32>
    %322 = arith.addf %321, %320 : vector<2x1x1xf32>
    %323 = tpu.reciprocal %322 {approx = true} : vector<2x1x1xf32> -> vector<2x1x1xf32>
    %324 = arith.mulf %320, %323 : vector<2x1x1xf32>
    %cst_202 = arith.constant 9.99999996E-13 : f32
    %325 = vector.broadcast %cst_202 : f32 to vector<2x1x1xf32>
    %326 = arith.addf %320, %325 : vector<2x1x1xf32>
    %327 = math.rsqrt %326 : vector<2x1x1xf32>
    %328 = arith.mulf %324, %327 : vector<2x1x1xf32>
    %329 = vector.broadcast %328 : vector<2x1x1xf32> to vector<2x16x1xf32>
    %330 = arith.mulf %317, %329 : vector<2x16x1xf32>
    %331 = vector.shape_cast %330 : vector<2x16x1xf32> to vector<2x16xf32>
    %332 = vector.shape_cast %331 : vector<2x16xf32> to vector<1x2x16xf32>
    %c0_203 = arith.constant 0 : index
    %c0_204 = arith.constant 0 : index
    %c0_205 = arith.constant 0 : index
    %333 = vector.load %arg3[%c0_203, %c0_204, %c0_205] : memref<1x2x16xf32, #tpu.memory_space<vmem>>, vector<1x2x16xf32>
    tpu.vector_store %arg3[%c0_203, %c0_204, %c0_205], %332 {strides = array<i32>} : memref<1x2x16xf32, #tpu.memory_space<vmem>>, vector<1x2x16xf32>,
    return
  }
  func.func @transform_0(%arg0: i32) -> (i32, i32, i32) {
    %c0_i32 = arith.constant 0 : i32
    %c0_i32_0 = arith.constant 0 : i32
    %c0_i32_1 = arith.constant 0 : i32
    %c0_i32_2 = arith.constant 0 : i32
    return %c0_i32, %c0_i32_0, %c0_i32_1 : i32, i32, i32
  }
  func.func @transform_1(%arg0: i32) -> (i32, i32, i32, i32) {
    %c0_i32 = arith.constant 0 : i32
    %c0_i32_0 = arith.constant 0 : i32
    %c0_i32_1 = arith.constant 0 : i32
    %c0_i32_2 = arith.constant 0 : i32
    return %arg0, %c0_i32, %c0_i32_0, %c0_i32_1 : i32, i32, i32, i32
  }
  func.func @transform_2(%arg0: i32) -> (i32, i32, i32) {
    %c0_i32 = arith.constant 0 : i32
    %c0_i32_0 = arith.constant 0 : i32
    %c0_i32_1 = arith.constant 0 : i32
    return %arg0, %c0_i32, %c0_i32_0 : i32, i32, i32
  }
}

</mosaic_0001>

<llo_original>
// kernel: capsule_network_forward.4
$region0: #{capsule_network_forward.4}
  #allocation0 [shape = 'u32[]', space=smem, size = 0x4, offset = 0x4, fixed_abs, tag = 'smem constant byte address 0x4 - core index']
  #allocation1 [shape = 'u32[72,128]{1,0:T(1,128)}', space=vmem, size = 0x9000, scoped, tag = 'internal scratch']
  %s0 = inlined_call_operand.vmem [shape: bf16[800,128], index: 0, kind: input, shape index: {}]
  %s1 = inlined_call_operand.vmem [shape: bf16[128,256], index: 1, kind: input, shape index: {}]
  %s2 = inlined_call_operand.vmem [shape: f32[1,256], index: 2, kind: input, shape index: {}]
  %s3 = inlined_call_operand.vmem [shape: bf16[800,256], index: 3, kind: output, shape index: {}]
  %s4 = sld [smem:[#allocation0]]
  $region57: #{capsule_network_forward.4} parent=0
    _
  %s6 = ssub.s32 1, %s4
  %s7 = scalar_select 0, %s6, %s4
  loop: start=0, step=1, limit=4
  $region2: #{capsule_network_forward.4} parent=0 // loop_pre_header
    _
  $region3: #{capsule_network_forward.4} parent=0 // loop_header
    %s9 = sphi 0, %s13
    %p10 = scmp.ge.s32.totalorder %s9, 4
    %s16 = sphi 0, %s28
    %s17 = sphi 0, %s24
    %s18 = sphi 0, %s16
    %s19 = sphi 0, %s17
    %s20 = sphi 0, %s18
    %s21 = sphi 0, %s19
    %s33 = sphi 0, %s35
    %s36 = sphi 0, %s33
    %s37 = sphi 0, %s36
    %s53 = sphi 0, %s37
    %s59 = sphi 0, %s61
    %s62 = sphi 0, %s59
    %s63 = sphi 0, %s62
    %s79 = sphi 0, %s63
    %s83 = sphi 0, %s83
    %s85 = sphi 0, %s83
    %s86 = sphi 0, %s85
    %s100 = sphi 0, %s86
    %s106 = sphi 0, %s108
    %s109 = sphi 0, %s106
    %s110 = sphi 0, %s109
    %s126 = sphi 0, %s110
  $region4: #{capsule_network_forward.4} parent=0 // loop_header_branch
    %12 = sbr.rel (%p10) target = $region8
  $region5: #{capsule_network_forward.4} parent=0 // loop_body
    %s14 = ssub.s32 %s9, 1
    %s15 = ssub.s32 %s9, 2
    %s22 = sadd.s32 1, %s17
    %p23 = scmp.ge.s32.totalorder %s22, 1
    %s24 = scalar_select %p23, 0, %s22
    %s25 = sadd.s32 1, %s16
    %s26 = scalar_select %p23, %s25, %s16
    %p27 = scmp.ge.s32.totalorder %s26, 2
    %s28 = scalar_select %p27, 0, %s26
    %s29 = ssub.s32 %s16, %s28
    %s30 = ssub.s32 %s17, %s24
    %s31 = sor.u32 %s29, %s30
    %p32 = scmp.eq.s32.totalorder %s31, 0
    %s34 = sadd.s32 %s33, 1
    %s35 = scalar_select %p32, %s33, %s34
    %p38 = pneg %p32
    %p39 = scmp.eq.s32.totalorder %s9, 1
    %p40 = por %p38, %p39
    %p41 = scmp.ne.s32.totalorder %s33, %s36
    %p42 = scmp.eq.s32.totalorder %s9, 0
    %p43 = por %p41, %p42
    %p44 = scmp.ne.s32.totalorder %s33, %s36
    %p45 = scmp.eq.s32.totalorder %s14, 1
    %p46 = por %p44, %p45
    %p47 = scmp.ne.s32.totalorder %s36, %s37
    %p48 = scmp.eq.s32.totalorder %s14, 0
    %p49 = por %p47, %p48
    %p50 = scmp.ne.s32.totalorder %s36, %s37
    %p51 = scmp.eq.s32.totalorder %s15, 1
    %p52 = por %p50, %p51
    %p54 = scmp.ne.s32.totalorder %s37, %s53
    %p55 = scmp.eq.s32.totalorder %s15, 0
    %p56 = por %p54, %p55
    %s57 = ssub.s32 %s17, %s24
    %p58 = scmp.eq.s32.totalorder %s57, 0
    %s60 = sadd.s32 %s59, 1
    %s61 = scalar_select %p58, %s59, %s60
    %p64 = pneg %p58
    %p65 = scmp.eq.s32.totalorder %s9, 1
    %p66 = por %p64, %p65
    %p67 = scmp.ne.s32.totalorder %s59, %s62
    %p68 = scmp.eq.s32.totalorder %s9, 0
    %p69 = por %p67, %p68
    %p70 = scmp.ne.s32.totalorder %s59, %s62
    %p71 = scmp.eq.s32.totalorder %s14, 1
    %p72 = por %p70, %p71
    %p73 = scmp.ne.s32.totalorder %s62, %s63
    %p74 = scmp.eq.s32.totalorder %s14, 0
    %p75 = por %p73, %p74
    %p76 = scmp.ne.s32.totalorder %s62, %s63
    %p77 = scmp.eq.s32.totalorder %s15, 1
    %p78 = por %p76, %p77
    %p80 = scmp.ne.s32.totalorder %s63, %s79
    %p81 = scmp.eq.s32.totalorder %s15, 0
    %p82 = por %p80, %p81
    %s84 = sadd.s32 %s83, 1
    %p87 = scmp.eq.s32.totalorder %s9, 1
    %p88 = scmp.ne.s32.totalorder %s83, %s85
    %p89 = scmp.eq.s32.totalorder %s9, 0
    %p90 = por %p88, %p89
    %p91 = scmp.ne.s32.totalorder %s83, %s85
    %p92 = scmp.eq.s32.totalorder %s14, 1
    %p93 = por %p91, %p92
    %p94 = scmp.ne.s32.totalorder %s85, %s86
    %p95 = scmp.eq.s32.totalorder %s14, 0
    %p96 = por %p94, %p95
    %p97 = scmp.ne.s32.totalorder %s85, %s86
    %p98 = scmp.eq.s32.totalorder %s15, 1
    %p99 = por %p97, %p98
    %p101 = scmp.ne.s32.totalorder %s86, %s100
    %p102 = scmp.eq.s32.totalorder %s15, 0
    %p103 = por %p101, %p102
    %s104 = ssub.s32 %s16, %s28
    %p105 = scmp.eq.s32.totalorder %s104, 0
    %s107 = sadd.s32 %s106, 1
    %s108 = scalar_select %p105, %s106, %s107
    %p111 = pneg %p105
    %p112 = scmp.eq.s32.totalorder %s9, 1
    %p113 = por %p111, %p112
    %p114 = scmp.ne.s32.totalorder %s106, %s109
    %p115 = scmp.eq.s32.totalorder %s9, 0
    %p116 = por %p114, %p115
    %p117 = scmp.ne.s32.totalorder %s106, %s109
    %p118 = scmp.eq.s32.totalorder %s14, 1
    %p119 = por %p117, %p118
    %p120 = scmp.ne.s32.totalorder %s109, %s110
    %p121 = scmp.eq.s32.totalorder %s14, 0
    %p122 = por %p120, %p121
    %p123 = scmp.ne.s32.totalorder %s109, %s110
    %p124 = scmp.eq.s32.totalorder %s15, 1
    %p125 = por %p123, %p124
    %p127 = scmp.ne.s32.totalorder %s110, %s126
    %p128 = scmp.eq.s32.totalorder %s15, 0
    %p129 = por %p127, %p128
    %p130 = scmp.le.s32.totalorder 1, %s9
    %p131 = scmp.lt.s32.totalorder %s9, 3
    %p132 = pnand %p130, %p131
    %p133 = pneg %p132
    // Predicated region
    $region9: #{capsule_network_forward.4} parent=5 // pred_check
      _
    $region10: #{capsule_network_forward.4} parent=5 // pred_check_branch
      %135 = sbr.rel (%p132) target = $region12
    $region11: #{capsule_network_forward.4} parent=5 // pred_region
      %s136 = ssub.s32 %s9, 1
      // Predicated region
      $region13: #{capsule_network_forward.4} parent=11 // pred_check
        %p137 = pneg %p75
      $region14: #{capsule_network_forward.4} parent=11 // pred_check_branch
        %139 = sbr.rel (%p137) target = $region16
      $region15: #{capsule_network_forward.4} parent=11 // pred_region
        %s140 = smul.u32 16, %s19
        %p141 = scmp.lt.s32.totalorder %s140, 15
        %s142 = scalar_select %p141, %s140, 15
        %s143 = smul.addr %s142, 2
        %s144 = smul.addr %s143, 4
        %s145 = scalar_lea.vmem %s1, %s144
        %s146 = smul.u32 16, %s19
      $region16: #{capsule_network_forward.4} parent=11 // pred_fallthru
        _
      // Predicated region
      $region17: #{capsule_network_forward.4} parent=11 // pred_check
        %p147 = pneg %p96
      $region18: #{capsule_network_forward.4} parent=11 // pred_check_branch
        %149 = sbr.rel (%p147) target = $region20
      $region19: #{capsule_network_forward.4} parent=11 // pred_region
        _
      $region20: #{capsule_network_forward.4} parent=11 // pred_fallthru
        _
    $region12: #{capsule_network_forward.4} parent=5 // pred_fallthru
      _
    %p150 = scmp.lt.s32.totalorder %s9, 2
    // Predicated region
    $region21: #{capsule_network_forward.4} parent=5 // pred_check
      %p151 = pneg %p150
    $region22: #{capsule_network_forward.4} parent=5 // pred_check_branch
      %153 = sbr.rel (%p151) target = $region24
    $region23: #{capsule_network_forward.4} parent=5 // pred_region
      // Predicated region
      $region25: #{capsule_network_forward.4} parent=23 // pred_check
        %p154 = pneg %p43
      $region26: #{capsule_network_forward.4} parent=23 // pred_check_branch
        %156 = sbr.rel (%p154) target = $region28
      $region27: #{capsule_network_forward.4} parent=23 // pred_region
        %s157 = smul.u32 50, %s16
        %p158 = scmp.lt.s32.totalorder %s157, 99
        %s159 = scalar_select %p158, %s157, 99
        %p160 = scmp.lt.s32.totalorder %s17, 0
        %s161 = scalar_select %p160, %s17, 0
        %s162 = sadd.s32 %s161, %s159
        %s163 = smul.addr %s162, 4
        %s164 = scalar_lea.vmem %s0, %s163
        %s165 = smul.u32 50, %s16
      $region28: #{capsule_network_forward.4} parent=23 // pred_fallthru
        _
    $region24: #{capsule_network_forward.4} parent=5 // pred_fallthru
      _
    %p166 = scmp.le.s32.totalorder 1, %s9
    %p167 = scmp.lt.s32.totalorder %s9, 3
    %p168 = pnand %p166, %p167
    %p169 = pneg %p168
    // Predicated region
    $region29: #{capsule_network_forward.4} parent=5 // pred_check
      _
    $region30: #{capsule_network_forward.4} parent=5 // pred_check_branch
      %171 = sbr.rel (%p168) target = $region32
    $region31: #{capsule_network_forward.4} parent=5 // pred_region
      %s172 = ssub.s32 %s9, 1
      %s173 = smul.u32 50, %s18
      %p174 = scmp.lt.s32.totalorder %s173, 99
      %s175 = scalar_select %p174, %s173, 99
      %p176 = scmp.lt.s32.totalorder %s19, 0
      %s177 = scalar_select %p176, %s19, 0
      %s178 = sadd.s32 %s177, %s175
      %s179 = smul.addr %s178, 4
      %s180 = scalar_lea.vmem %s0, %s179
      %p181 = pneg %p49
      %p182 = pneg %p46
      %s183 = smul.u32 16, %s19
      %p184 = scmp.lt.s32.totalorder %s183, 15
      %s185 = scalar_select %p184, %s183, 15
      %s186 = smul.addr %s185, 2
      %s187 = smul.addr %s186, 4
      %s188 = scalar_lea.vmem %s1, %s187
      %p189 = pneg %p75
      %p190 = pneg %p72
      %p191 = pneg %p96
      %p192 = pneg %p93
      %p193 = pneg %p122
      %p194 = pneg %p119
      %s195 = smul.u32 50, %s18
      %p196 = scmp.lt.s32.totalorder %s195, 99
      %s197 = scalar_select %p196, %s195, 99
      %s198 = smul.addr %s197, 2
      %s199 = smul.addr %s198, 4
      %s200 = scalar_lea.vmem %s3, %s199
      %s201 = smul.u32 50, %s18
      %p202 = scmp.lt.s32.totalorder %s201, 99
      %s203 = scalar_select %p202, %s201, 99
      %p204 = scmp.lt.s32.totalorder %s19, 0
      %s205 = scalar_select %p204, %s19, 0
      %s206 = sadd.s32 %s205, %s203
      %s207 = smul.addr %s206, 4
      %s208 = scalar_lea.vmem %s0, %s207
      %s209 = smul.u32 50, %s18
      %s210 = smul.u32 16, %s19
      %p211 = scmp.lt.s32.totalorder %s210, 15
      %s212 = scalar_select %p211, %s210, 15
      %s213 = smul.addr %s212, 2
      %s214 = smul.addr %s213, 4
      %s215 = scalar_lea.vmem %s1, %s214
      %s216 = smul.u32 16, %s19
      %s217 = smul.u32 50, %s18
      %p218 = scmp.lt.s32.totalorder %s217, 99
      %s219 = scalar_select %p218, %s217, 99
      %s220 = smul.addr %s219, 2
      %s221 = smul.addr %s220, 4
      %s222 = scalar_lea.vmem %s3, %s221
      %s223 = smul.u32 50, %s18
      %v224 = vld [vmem:[%s208] sm:$0xf]
      %v225 = vld [vmem:[%s208 + $0x4] sm:$0xf]
      %v226 = vld [vmem:[%s208 + $0x8] sm:$0xf]
      %v227 = vld [vmem:[%s208 + $0xc] sm:$0xf]
      %v228 = vld [vmem:[%s208 + $0x10] sm:$0xf]
      %v229 = vld [vmem:[%s208 + $0x14] sm:$0xf]
      %v230 = vld [vmem:[%s208 + $0x18] sm:$0xf]
      %v231 = vld [vmem:[%s208 + $0x1c] sm:$0xf]
      %v232 = vld [vmem:[%s208 + $0x20] sm:$0xf]
      %v233 = vld [vmem:[%s208 + $0x24] sm:$0xf]
      %v234 = vld [vmem:[%s208 + $0x28] sm:$0xf]
      %v235 = vld [vmem:[%s208 + $0x2c] sm:$0xf]
      %v236 = vld [vmem:[%s208 + $0x30] sm:$0xf]
      %v237 = vld [vmem:[%s208 + $0x34] sm:$0xf]
      %v238 = vld [vmem:[%s208 + $0x38] sm:$0xf]
      %v239 = vld [vmem:[%s208 + $0x3c] sm:$0xf]
      %v240 = vld [vmem:[%s208 + $0x40] sm:$0xf]
      %v241 = vld [vmem:[%s208 + $0x44] sm:$0xf]
      %v242 = vld [vmem:[%s208 + $0x48] sm:$0xf]
      %v243 = vld [vmem:[%s208 + $0x4c] sm:$0xf]
      %v244 = vld [vmem:[%s208 + $0x50] sm:$0xf]
      %v245 = vld [vmem:[%s208 + $0x54] sm:$0xf]
      %v246 = vld [vmem:[%s208 + $0x58] sm:$0xf]
      %v247 = vld [vmem:[%s208 + $0x5c] sm:$0xf]
      %v248 = vld [vmem:[%s208 + $0x60] sm:$0xf]
      %v249 = vld [vmem:[%s208 + $0x64] sm:$0xf]
      %v250 = vld [vmem:[%s208 + $0x68] sm:$0xf]
      %v251 = vld [vmem:[%s208 + $0x6c] sm:$0xf]
      %v252 = vld [vmem:[%s208 + $0x70] sm:$0xf]
      %v253 = vld [vmem:[%s208 + $0x74] sm:$0xf]
      %v254 = vld [vmem:[%s208 + $0x78] sm:$0xf]
      %v255 = vld [vmem:[%s208 + $0x7c] sm:$0xf]
      %v256 = vld [vmem:[%s208 + $0x80] sm:$0xf]
      %v257 = vld [vmem:[%s208 + $0x84] sm:$0xf]
      %v258 = vld [vmem:[%s208 + $0x88] sm:$0xf]
      %v259 = vld [vmem:[%s208 + $0x8c] sm:$0xf]
      %v260 = vld [vmem:[%s208 + $0x90] sm:$0xf]
      %v261 = vld [vmem:[%s208 + $0x94] sm:$0xf]
      %v262 = vld [vmem:[%s208 + $0x98] sm:$0xf]
      %v263 = vld [vmem:[%s208 + $0x9c] sm:$0xf]
      %v264 = vld [vmem:[%s208 + $0xa0] sm:$0xf]
      %v265 = vld [vmem:[%s208 + $0xa4] sm:$0xf]
      %v266 = vld [vmem:[%s208 + $0xa8] sm:$0xf]
      %v267 = vld [vmem:[%s208 + $0xac] sm:$0xf]
      %v268 = vld [vmem:[%s208 + $0xb0] sm:$0xf]
      %v269 = vld [vmem:[%s208 + $0xb4] sm:$0xf]
      %v270 = vld [vmem:[%s208 + $0xb8] sm:$0xf]
      %v271 = vld [vmem:[%s208 + $0xbc] sm:$0xf]
      %v272 = vld [vmem:[%s208 + $0xc0] sm:$0xf]
      %v273 = vld [vmem:[%s208 + $0xc4] sm:$0xf]
      %v274 = vld [vmem:[%s215] sm:$0xff]
      %v275 = vld [vmem:[%s215 + $0x8] sm:$0xff]
      %v276 = vld [vmem:[%s215 + $0x10] sm:$0xff]
      %v277 = vld [vmem:[%s215 + $0x18] sm:$0xff]
      %v278 = vld [vmem:[%s215 + $0x20] sm:$0xff]
      %v279 = vld [vmem:[%s215 + $0x28] sm:$0xff]
      %v280 = vld [vmem:[%s215 + $0x30] sm:$0xff]
      %v281 = vld [vmem:[%s215 + $0x38] sm:$0xff]
      %v282 = vld [vmem:[%s215 + $0x40] sm:$0xff]
      %v283 = vld [vmem:[%s215 + $0x48] sm:$0xff]
      %v284 = vld [vmem:[%s215 + $0x50] sm:$0xff]
      %v285 = vld [vmem:[%s215 + $0x58] sm:$0xff]
      %v286 = vld [vmem:[%s215 + $0x60] sm:$0xff]
      %v287 = vld [vmem:[%s215 + $0x68] sm:$0xff]
      %v288 = vld [vmem:[%s215 + $0x70] sm:$0xff]
      %v289 = vld [vmem:[%s215 + $0x78] sm:$0xff]
      %v340 = vunpack.c.l.b16 %v224
      %v341 = vunpack.c.l.b16 %v225
      %v342 = vunpack.c.l.b16 %v226
      %v343 = vunpack.c.l.b16 %v227
      %v344 = vunpack.c.l.b16 %v228
      %v345 = vunpack.c.l.b16 %v229
      %v346 = vunpack.c.l.b16 %v230
      %v347 = vunpack.c.l.b16 %v231
      %v348 = vunpack.c.l.b16 %v232
      %v349 = vunpack.c.l.b16 %v233
      %v350 = vunpack.c.l.b16 %v234
      %v351 = vunpack.c.l.b16 %v235
      %v352 = vunpack.c.l.b16 %v236
      %v353 = vunpack.c.l.b16 %v237
      %v354 = vunpack.c.l.b16 %v238
      %v355 = vunpack.c.l.b16 %v239
      %v356 = vunpack.c.l.b16 %v240
      %v357 = vunpack.c.l.b16 %v241
      %v358 = vunpack.c.l.b16 %v242
      %v359 = vunpack.c.l.b16 %v243
      %v360 = vunpack.c.l.b16 %v244
      %v361 = vunpack.c.l.b16 %v245
      %v362 = vunpack.c.l.b16 %v246
      %v363 = vunpack.c.l.b16 %v247
      %v364 = vunpack.c.l.b16 %v248
      %v365 = vunpack.c.l.b16 %v249
      %v366 = vunpack.c.l.b16 %v250
      %v367 = vunpack.c.l.b16 %v251
      %v368 = vunpack.c.l.b16 %v252
      %v369 = vunpack.c.l.b16 %v253
      %v370 = vunpack.c.l.b16 %v254
      %v371 = vunpack.c.l.b16 %v255
      %v372 = vunpack.c.l.b16 %v256
      %v373 = vunpack.c.l.b16 %v257
      %v374 = vunpack.c.l.b16 %v258
      %v375 = vunpack.c.l.b16 %v259
      %v376 = vunpack.c.l.b16 %v260
      %v377 = vunpack.c.l.b16 %v261
      %v378 = vunpack.c.l.b16 %v262
      %v379 = vunpack.c.l.b16 %v263
      %v380 = vunpack.c.l.b16 %v264
      %v381 = vunpack.c.l.b16 %v265
      %v382 = vunpack.c.l.b16 %v266
      %v383 = vunpack.c.l.b16 %v267
      %v384 = vunpack.c.l.b16 %v268
      %v385 = vunpack.c.l.b16 %v269
      %v386 = vunpack.c.l.b16 %v270
      %v387 = vunpack.c.l.b16 %v271
      %v388 = vunpack.c.l.b16 %v272
      %v389 = vunpack.c.l.b16 %v273
      %v390 = vpack.c.b16 %v341, %v340
      %v391 = vpack.c.b16 %v343, %v342
      %v392 = vpack.c.b16 %v345, %v344
      %v393 = vpack.c.b16 %v347, %v346
      %v394 = vpack.c.b16 %v349, %v348
      %v395 = vpack.c.b16 %v351, %v350
      %v396 = vpack.c.b16 %v353, %v352
      %v397 = vpack.c.b16 %v355, %v354
      %v398 = vpack.c.b16 %v357, %v356
      %v399 = vpack.c.b16 %v359, %v358
      %v400 = vpack.c.b16 %v361, %v360
      %v401 = vpack.c.b16 %v363, %v362
      %v402 = vpack.c.b16 %v365, %v364
      %v403 = vpack.c.b16 %v367, %v366
      %v404 = vpack.c.b16 %v369, %v368
      %v405 = vpack.c.b16 %v371, %v370
      %v406 = vpack.c.b16 %v373, %v372
      %v407 = vpack.c.b16 %v375, %v374
      %v408 = vpack.c.b16 %v377, %v376
      %v409 = vpack.c.b16 %v379, %v378
      %v410 = vpack.c.b16 %v381, %v380
      %v411 = vpack.c.b16 %v383, %v382
      %v412 = vpack.c.b16 %v385, %v384
      %v413 = vpack.c.b16 %v387, %v386
      %v414 = vpack.c.b16 %v389, %v388
      %v456 = vunpack.c.l.b16 %v274
      %v457 = vunpack.c.h.b16 %v274
      %v458 = vunpack.c.l.b16 %v275
      %v459 = vunpack.c.h.b16 %v275
      %v460 = vunpack.c.l.b16 %v276
      %v461 = vunpack.c.h.b16 %v276
      %v462 = vunpack.c.l.b16 %v277
      %v463 = vunpack.c.h.b16 %v277
      %v464 = vunpack.c.l.b16 %v278
      %v465 = vunpack.c.h.b16 %v278
      %v466 = vunpack.c.l.b16 %v279
      %v467 = vunpack.c.h.b16 %v279
      %v468 = vunpack.c.l.b16 %v280
      %v469 = vunpack.c.h.b16 %v280
      %v470 = vunpack.c.l.b16 %v281
      %v471 = vunpack.c.h.b16 %v281
      %v472 = vunpack.c.l.b16 %v282
      %v473 = vunpack.c.h.b16 %v282
      %v474 = vunpack.c.l.b16 %v283
      %v475 = vunpack.c.h.b16 %v283
      %v476 = vunpack.c.l.b16 %v284
      %v477 = vunpack.c.h.b16 %v284
      %v478 = vunpack.c.l.b16 %v285
      %v479 = vunpack.c.h.b16 %v285
      %v480 = vunpack.c.l.b16 %v286
      %v481 = vunpack.c.h.b16 %v286
      %v482 = vunpack.c.l.b16 %v287
      %v483 = vunpack.c.h.b16 %v287
      %v484 = vunpack.c.l.b16 %v288
      %v485 = vunpack.c.h.b16 %v288
      %v486 = vunpack.c.l.b16 %v289
      %v487 = vunpack.c.h.b16 %v289
      %v488 = vpack.c.b16 %v458, %v456
      %v489 = vpack.c.b16 %v459, %v457
      %v490 = vpack.c.b16 %v462, %v460
      %v491 = vpack.c.b16 %v463, %v461
      %v492 = vpack.c.b16 %v466, %v464
      %v493 = vpack.c.b16 %v467, %v465
      %v494 = vpack.c.b16 %v470, %v468
      %v495 = vpack.c.b16 %v471, %v469
      %v496 = vpack.c.b16 %v474, %v472
      %v497 = vpack.c.b16 %v475, %v473
      %v498 = vpack.c.b16 %v478, %v476
      %v499 = vpack.c.b16 %v479, %v477
      %v500 = vpack.c.b16 %v482, %v480
      %v501 = vpack.c.b16 %v483, %v481
      %v502 = vpack.c.b16 %v486, %v484
      %v503 = vpack.c.b16 %v487, %v485
      %520 = vmatpush.bf16.msra.mxu0 %v502
      %521 = vmatpush.bf16.msra.mxu0 %v500
      %522 = vmatpush.bf16.msra.mxu0 %v498
      %523 = vmatpush.bf16.msra.mxu0 %v496
      %524 = vmatpush.bf16.msra.mxu0 %v494
      %525 = vmatpush.bf16.msra.mxu0 %v492
      %526 = vmatpush.bf16.msra.mxu0 %v490
      %527 = vmatpush.bf16.msra.mxu0 %v488
      %528 = vmatmul.bf16.gmra.mxu0 %v390
      %v529 = vpop.f32.mrf.mxu0
      %v530 = vadd.f32 0.0, %v529
      %v531 = vpop.f32.mrf.mxu0
      %v532 = vadd.f32 0.0, %v531
      %533 = vmatmul.bf16.gmra.mxu0 %v391
      %v534 = vpop.f32.mrf.mxu0
      %v535 = vadd.f32 0.0, %v534
      %v536 = vpop.f32.mrf.mxu0
      %v537 = vadd.f32 0.0, %v536
      %538 = vmatmul.bf16.gmra.mxu0 %v392
      %v539 = vpop.f32.mrf.mxu0
      %v540 = vadd.f32 0.0, %v539
      %v541 = vpop.f32.mrf.mxu0
      %v542 = vadd.f32 0.0, %v541
      %543 = vmatmul.bf16.gmra.mxu0 %v393
      %v544 = vpop.f32.mrf.mxu0
      %v545 = vadd.f32 0.0, %v544
      %v546 = vpop.f32.mrf.mxu0
      %v547 = vadd.f32 0.0, %v546
      %548 = vmatmul.bf16.gmra.mxu0 %v394
      %v549 = vpop.f32.mrf.mxu0
      %v550 = vadd.f32 0.0, %v549
      %v551 = vpop.f32.mrf.mxu0
      %v552 = vadd.f32 0.0, %v551
      %553 = vmatmul.bf16.gmra.mxu0 %v395
      %v554 = vpop.f32.mrf.mxu0
      %v555 = vadd.f32 0.0, %v554
      %v556 = vpop.f32.mrf.mxu0
      %v557 = vadd.f32 0.0, %v556
      %558 = vmatmul.bf16.gmra.mxu0 %v396
      %v559 = vpop.f32.mrf.mxu0
      %v560 = vadd.f32 0.0, %v559
      %v561 = vpop.f32.mrf.mxu0
      %v562 = vadd.f32 0.0, %v561
      %563 = vmatmul.bf16.gmra.mxu0 %v397
      %v564 = vpop.f32.mrf.mxu0
      %v565 = vadd.f32 0.0, %v564
      %v566 = vpop.f32.mrf.mxu0
      %v567 = vadd.f32 0.0, %v566
      %568 = vmatmul.bf16.gmra.mxu0 %v398
      %v569 = vpop.f32.mrf.mxu0
      %v570 = vadd.f32 0.0, %v569
      %v571 = vpop.f32.mrf.mxu0
      %v572 = vadd.f32 0.0, %v571
      %573 = vmatmul.bf16.gmra.mxu0 %v399
      %v574 = vpop.f32.mrf.mxu0
      %v575 = vadd.f32 0.0, %v574
      %v576 = vpop.f32.mrf.mxu0
      %v577 = vadd.f32 0.0, %v576
      %578 = vmatmul.bf16.gmra.mxu0 %v400
      %v579 = vpop.f32.mrf.mxu0
      %v580 = vadd.f32 0.0, %v579
      %v581 = vpop.f32.mrf.mxu0
      %v582 = vadd.f32 0.0, %v581
      %583 = vmatmul.bf16.gmra.mxu0 %v401
      %v584 = vpop.f32.mrf.mxu0
      %v585 = vadd.f32 0.0, %v584
      %v586 = vpop.f32.mrf.mxu0
      %v587 = vadd.f32 0.0, %v586
      %588 = vmatmul.bf16.gmra.mxu0 %v402
      %v589 = vpop.f32.mrf.mxu0
      %v590 = vadd.f32 0.0, %v589
      %v591 = vpop.f32.mrf.mxu0
      %v592 = vadd.f32 0.0, %v591
      %593 = vmatmul.bf16.gmra.mxu0 %v403
      %v594 = vpop.f32.mrf.mxu0
      %v595 = vadd.f32 0.0, %v594
      %v596 = vpop.f32.mrf.mxu0
      %v597 = vadd.f32 0.0, %v596
      %598 = vmatmul.bf16.gmra.mxu0 %v404
      %v599 = vpop.f32.mrf.mxu0
      %v600 = vadd.f32 0.0, %v599
      %v601 = vpop.f32.mrf.mxu0
      %v602 = vadd.f32 0.0, %v601
      %603 = vmatmul.bf16.gmra.mxu0 %v405
      %v604 = vpop.f32.mrf.mxu0
      %v605 = vadd.f32 0.0, %v604
      %v606 = vpop.f32.mrf.mxu0
      %v607 = vadd.f32 0.0, %v606
      %608 = vmatmul.bf16.gmra.mxu0 %v406
      %v609 = vpop.f32.mrf.mxu0
      %v610 = vadd.f32 0.0, %v609
      %v611 = vpop.f32.mrf.mxu0
      %v612 = vadd.f32 0.0, %v611
      %613 = vmatmul.bf16.gmra.mxu0 %v407
      %v614 = vpop.f32.mrf.mxu0
      %v615 = vadd.f32 0.0, %v614
      %v616 = vpop.f32.mrf.mxu0
      %v617 = vadd.f32 0.0, %v616
      %618 = vmatmul.bf16.gmra.mxu0 %v408
      %v619 = vpop.f32.mrf.mxu0
      %v620 = vadd.f32 0.0, %v619
      %v621 = vpop.f32.mrf.mxu0
      %v622 = vadd.f32 0.0, %v621
      %623 = vmatmul.bf16.gmra.mxu0 %v409
      %v624 = vpop.f32.mrf.mxu0
      %v625 = vadd.f32 0.0, %v624
      %v626 = vpop.f32.mrf.mxu0
      %v627 = vadd.f32 0.0, %v626
      %628 = vmatmul.bf16.gmra.mxu0 %v410
      %v629 = vpop.f32.mrf.mxu0
      %v630 = vadd.f32 0.0, %v629
      %v631 = vpop.f32.mrf.mxu0
      %v632 = vadd.f32 0.0, %v631
      %633 = vmatmul.bf16.gmra.mxu0 %v411
      %v634 = vpop.f32.mrf.mxu0
      %v635 = vadd.f32 0.0, %v634
      %v636 = vpop.f32.mrf.mxu0
      %v637 = vadd.f32 0.0, %v636
      %638 = vmatmul.bf16.gmra.mxu0 %v412
      %v639 = vpop.f32.mrf.mxu0
      %v640 = vadd.f32 0.0, %v639
      %v641 = vpop.f32.mrf.mxu0
      %v642 = vadd.f32 0.0, %v641
      %643 = vmatmul.bf16.gmra.mxu0 %v413
      %v644 = vpop.f32.mrf.mxu0
      %v645 = vadd.f32 0.0, %v644
      %v646 = vpop.f32.mrf.mxu0
      %v647 = vadd.f32 0.0, %v646
      %648 = vmatmul.bf16.gmra.mxu0 %v414
      %v649 = vpop.f32.mrf.mxu0
      %v650 = vadd.f32 0.0, %v649
      %v651 = vpop.f32.mrf.mxu0
      %v652 = vadd.f32 0.0, %v651
      %653 = vdwg.mxu0
      %654 = vmatpush.bf16.msra.mxu0 %v503
      %655 = vmatpush.bf16.msra.mxu0 %v501
      %656 = vmatpush.bf16.msra.mxu0 %v499
      %657 = vmatpush.bf16.msra.mxu0 %v497
      %658 = vmatpush.bf16.msra.mxu0 %v495
      %659 = vmatpush.bf16.msra.mxu0 %v493
      %660 = vmatpush.bf16.msra.mxu0 %v491
      %661 = vmatpush.bf16.msra.mxu0 %v489
      %662 = vmatmul.bf16.gmra.mxu0 %v390
      %v663 = vpop.f32.mrf.mxu0
      %v664 = vadd.f32 0.0, %v663
      %v665 = vpop.f32.mrf.mxu0
      %v666 = vadd.f32 0.0, %v665
      %667 = vmatmul.bf16.gmra.mxu0 %v391
      %v668 = vpop.f32.mrf.mxu0
      %v669 = vadd.f32 0.0, %v668
      %v670 = vpop.f32.mrf.mxu0
      %v671 = vadd.f32 0.0, %v670
      %672 = vmatmul.bf16.gmra.mxu0 %v392
      %v673 = vpop.f32.mrf.mxu0
      %v674 = vadd.f32 0.0, %v673
      %v675 = vpop.f32.mrf.mxu0
      %v676 = vadd.f32 0.0, %v675
      %677 = vmatmul.bf16.gmra.mxu0 %v393
      %v678 = vpop.f32.mrf.mxu0
      %v679 = vadd.f32 0.0, %v678
      %v680 = vpop.f32.mrf.mxu0
      %v681 = vadd.f32 0.0, %v680
      %682 = vmatmul.bf16.gmra.mxu0 %v394
      %v683 = vpop.f32.mrf.mxu0
      %v684 = vadd.f32 0.0, %v683
      %v685 = vpop.f32.mrf.mxu0
      %v686 = vadd.f32 0.0, %v685
      %687 = vmatmul.bf16.gmra.mxu0 %v395
      %v688 = vpop.f32.mrf.mxu0
      %v689 = vadd.f32 0.0, %v688
      %v690 = vpop.f32.mrf.mxu0
      %v691 = vadd.f32 0.0, %v690
      %692 = vmatmul.bf16.gmra.mxu0 %v396
      %v693 = vpop.f32.mrf.mxu0
      %v694 = vadd.f32 0.0, %v693
      %v695 = vpop.f32.mrf.mxu0
      %v696 = vadd.f32 0.0, %v695
      %697 = vmatmul.bf16.gmra.mxu0 %v397
      %v698 = vpop.f32.mrf.mxu0
      %v699 = vadd.f32 0.0, %v698
      %v700 = vpop.f32.mrf.mxu0
      %v701 = vadd.f32 0.0, %v700
      %702 = vmatmul.bf16.gmra.mxu0 %v398
      %v703 = vpop.f32.mrf.mxu0
      %v704 = vadd.f32 0.0, %v703
      %v705 = vpop.f32.mrf.mxu0
      %v706 = vadd.f32 0.0, %v705
      %707 = vmatmul.bf16.gmra.mxu0 %v399
      %v708 = vpop.f32.mrf.mxu0
      %v709 = vadd.f32 0.0, %v708
      %v710 = vpop.f32.mrf.mxu0
      %v711 = vadd.f32 0.0, %v710
      %712 = vmatmul.bf16.gmra.mxu0 %v400
      %v713 = vpop.f32.mrf.mxu0
      %v714 = vadd.f32 0.0, %v713
      %v715 = vpop.f32.mrf.mxu0
      %v716 = vadd.f32 0.0, %v715
      %717 = vmatmul.bf16.gmra.mxu0 %v401
      %v718 = vpop.f32.mrf.mxu0
      %v719 = vadd.f32 0.0, %v718
      %v720 = vpop.f32.mrf.mxu0
      %v721 = vadd.f32 0.0, %v720
      %722 = vmatmul.bf16.gmra.mxu0 %v402
      %v723 = vpop.f32.mrf.mxu0
      %v724 = vadd.f32 0.0, %v723
      %v725 = vpop.f32.mrf.mxu0
      %v726 = vadd.f32 0.0, %v725
      %727 = vmatmul.bf16.gmra.mxu0 %v403
      %v728 = vpop.f32.mrf.mxu0
      %v729 = vadd.f32 0.0, %v728
      %v730 = vpop.f32.mrf.mxu0
      %v731 = vadd.f32 0.0, %v730
      %732 = vmatmul.bf16.gmra.mxu0 %v404
      %v733 = vpop.f32.mrf.mxu0
      %v734 = vadd.f32 0.0, %v733
      %v735 = vpop.f32.mrf.mxu0
      %v736 = vadd.f32 0.0, %v735
      %737 = vmatmul.bf16.gmra.mxu0 %v405
      %v738 = vpop.f32.mrf.mxu0
      %v739 = vadd.f32 0.0, %v738
      %v740 = vpop.f32.mrf.mxu0
      %v741 = vadd.f32 0.0, %v740
      %742 = vmatmul.bf16.gmra.mxu0 %v406
      %v743 = vpop.f32.mrf.mxu0
      %v744 = vadd.f32 0.0, %v743
      %v745 = vpop.f32.mrf.mxu0
      %v746 = vadd.f32 0.0, %v745
      %747 = vmatmul.bf16.gmra.mxu0 %v407
      %v748 = vpop.f32.mrf.mxu0
      %v749 = vadd.f32 0.0, %v748
      %v750 = vpop.f32.mrf.mxu0
      %v751 = vadd.f32 0.0, %v750
      %752 = vmatmul.bf16.gmra.mxu0 %v408
      %v753 = vpop.f32.mrf.mxu0
      %v754 = vadd.f32 0.0, %v753
      %v755 = vpop.f32.mrf.mxu0
      %v756 = vadd.f32 0.0, %v755
      %757 = vmatmul.bf16.gmra.mxu0 %v409
      %v758 = vpop.f32.mrf.mxu0
      %v759 = vadd.f32 0.0, %v758
      %v760 = vpop.f32.mrf.mxu0
      %v761 = vadd.f32 0.0, %v760
      %762 = vmatmul.bf16.gmra.mxu0 %v410
      %v763 = vpop.f32.mrf.mxu0
      %v764 = vadd.f32 0.0, %v763
      %v765 = vpop.f32.mrf.mxu0
      %v766 = vadd.f32 0.0, %v765
      %767 = vmatmul.bf16.gmra.mxu0 %v411
      %v768 = vpop.f32.mrf.mxu0
      %v769 = vadd.f32 0.0, %v768
      %v770 = vpop.f32.mrf.mxu0
      %v771 = vadd.f32 0.0, %v770
      %772 = vmatmul.bf16.gmra.mxu0 %v412
      %v773 = vpop.f32.mrf.mxu0
      %v774 = vadd.f32 0.0, %v773
      %v775 = vpop.f32.mrf.mxu0
      %v776 = vadd.f32 0.0, %v775
      %777 = vmatmul.bf16.gmra.mxu0 %v413
      %v778 = vpop.f32.mrf.mxu0
      %v779 = vadd.f32 0.0, %v778
      %v780 = vpop.f32.mrf.mxu0
      %v781 = vadd.f32 0.0, %v780
      %782 = vmatmul.bf16.gmra.mxu0 %v414
      %v783 = vpop.f32.mrf.mxu0
      %v784 = vadd.f32 0.0, %v783
      %v785 = vpop.f32.mrf.mxu0
      %v786 = vadd.f32 0.0, %v785
      %787 = vdwg.mxu0
      %p788 = scmp.eq.s32.totalorder %s19, 0
      %p789 = scmp.lt.s32.totalorder %s19, 0
      %p790 = pnand %p788, %p789
      %p791 = pneg %p790
      // Predicated region
      $region33: #{capsule_network_forward.4} parent=31 // pred_check
        _
      $region34: #{capsule_network_forward.4} parent=31 // pred_check_branch
        %793 = sbr.rel (%p790) target = $region36
      $region35: #{capsule_network_forward.4} parent=31 // pred_region
        %v794 = vpack.c.bf16 %v664, %v530
        %v795 = vpack.c.bf16 %v666, %v532
        %v796 = vpack.c.bf16 %v669, %v535
        %v797 = vpack.c.bf16 %v671, %v537
        %v798 = vpack.c.bf16 %v674, %v540
        %v799 = vpack.c.bf16 %v676, %v542
        %v800 = vpack.c.bf16 %v679, %v545
        %v801 = vpack.c.bf16 %v681, %v547
        %v802 = vpack.c.bf16 %v684, %v550
        %v803 = vpack.c.bf16 %v686, %v552
        %v804 = vpack.c.bf16 %v689, %v555
        %v805 = vpack.c.bf16 %v691, %v557
        %v806 = vpack.c.bf16 %v694, %v560
        %v807 = vpack.c.bf16 %v696, %v562
        %v808 = vpack.c.bf16 %v699, %v565
        %v809 = vpack.c.bf16 %v701, %v567
        %v810 = vpack.c.bf16 %v704, %v570
        %v811 = vpack.c.bf16 %v706, %v572
        %v812 = vpack.c.bf16 %v709, %v575
        %v813 = vpack.c.bf16 %v711, %v577
        %v814 = vpack.c.bf16 %v714, %v580
        %v815 = vpack.c.bf16 %v716, %v582
        %v816 = vpack.c.bf16 %v719, %v585
        %v817 = vpack.c.bf16 %v721, %v587
        %v818 = vpack.c.bf16 %v724, %v590
        %v819 = vpack.c.bf16 %v726, %v592
        %v820 = vpack.c.bf16 %v729, %v595
        %v821 = vpack.c.bf16 %v731, %v597
        %v822 = vpack.c.bf16 %v734, %v600
        %v823 = vpack.c.bf16 %v736, %v602
        %v824 = vpack.c.bf16 %v739, %v605
        %v825 = vpack.c.bf16 %v741, %v607
        %v826 = vpack.c.bf16 %v744, %v610
        %v827 = vpack.c.bf16 %v746, %v612
        %v828 = vpack.c.bf16 %v749, %v615
        %v829 = vpack.c.bf16 %v751, %v617
        %v830 = vpack.c.bf16 %v754, %v620
        %v831 = vpack.c.bf16 %v756, %v622
        %v832 = vpack.c.bf16 %v759, %v625
        %v833 = vpack.c.bf16 %v761, %v627
        %v834 = vpack.c.bf16 %v764, %v630
        %v835 = vpack.c.bf16 %v766, %v632
        %v836 = vpack.c.bf16 %v769, %v635
        %v837 = vpack.c.bf16 %v771, %v637
        %v838 = vpack.c.bf16 %v774, %v640
        %v839 = vpack.c.bf16 %v776, %v642
        %v840 = vpack.c.bf16 %v779, %v645
        %v841 = vpack.c.bf16 %v781, %v647
        %v842 = vpack.c.bf16 %v784, %v650
        %v843 = vpack.c.bf16 %v786, %v652
        %844 = vst [vmem:[%s222] sm:$0xff] %v794
        %845 = vst [vmem:[%s222 + $0x8] sm:$0xff] %v795
        %846 = vst [vmem:[%s222 + $0x10] sm:$0xff] %v796
        %847 = vst [vmem:[%s222 + $0x18] sm:$0xff] %v797
        %848 = vst [vmem:[%s222 + $0x20] sm:$0xff] %v798
        %849 = vst [vmem:[%s222 + $0x28] sm:$0xff] %v799
        %850 = vst [vmem:[%s222 + $0x30] sm:$0xff] %v800
        %851 = vst [vmem:[%s222 + $0x38] sm:$0xff] %v801
        %852 = vst [vmem:[%s222 + $0x40] sm:$0xff] %v802
        %853 = vst [vmem:[%s222 + $0x48] sm:$0xff] %v803
        %854 = vst [vmem:[%s222 + $0x50] sm:$0xff] %v804
        %855 = vst [vmem:[%s222 + $0x58] sm:$0xff] %v805
        %856 = vst [vmem:[%s222 + $0x60] sm:$0xff] %v806
        %857 = vst [vmem:[%s222 + $0x68] sm:$0xff] %v807
        %858 = vst [vmem:[%s222 + $0x70] sm:$0xff] %v808
        %859 = vst [vmem:[%s222 + $0x78] sm:$0xff] %v809
        %860 = vst [vmem:[%s222 + $0x80] sm:$0xff] %v810
        %861 = vst [vmem:[%s222 + $0x88] sm:$0xff] %v811
        %862 = vst [vmem:[%s222 + $0x90] sm:$0xff] %v812
        %863 = vst [vmem:[%s222 + $0x98] sm:$0xff] %v813
        %864 = vst [vmem:[%s222 + $0xa0] sm:$0xff] %v814
        %865 = vst [vmem:[%s222 + $0xa8] sm:$0xff] %v815
        %866 = vst [vmem:[%s222 + $0xb0] sm:$0xff] %v816
        %867 = vst [vmem:[%s222 + $0xb8] sm:$0xff] %v817
        %868 = vst [vmem:[%s222 + $0xc0] sm:$0xff] %v818
        %869 = vst [vmem:[%s222 + $0xc8] sm:$0xff] %v819
        %870 = vst [vmem:[%s222 + $0xd0] sm:$0xff] %v820
        %871 = vst [vmem:[%s222 + $0xd8] sm:$0xff] %v821
        %872 = vst [vmem:[%s222 + $0xe0] sm:$0xff] %v822
        %873 = vst [vmem:[%s222 + $0xe8] sm:$0xff] %v823
        %874 = vst [vmem:[%s222 + $0xf0] sm:$0xff] %v824
        %875 = vst [vmem:[%s222 + $0xf8] sm:$0xff] %v825
        %876 = vst [vmem:[%s222 + $0x100] sm:$0xff] %v826
        %877 = vst [vmem:[%s222 + $0x108] sm:$0xff] %v827
        %878 = vst [vmem:[%s222 + $0x110] sm:$0xff] %v828
        %879 = vst [vmem:[%s222 + $0x118] sm:$0xff] %v829
        %880 = vst [vmem:[%s222 + $0x120] sm:$0xff] %v830
        %881 = vst [vmem:[%s222 + $0x128] sm:$0xff] %v831
        %882 = vst [vmem:[%s222 + $0x130] sm:$0xff] %v832
        %883 = vst [vmem:[%s222 + $0x138] sm:$0xff] %v833
        %884 = vst [vmem:[%s222 + $0x140] sm:$0xff] %v834
        %885 = vst [vmem:[%s222 + $0x148] sm:$0xff] %v835
        %886 = vst [vmem:[%s222 + $0x150] sm:$0xff] %v836
        %887 = vst [vmem:[%s222 + $0x158] sm:$0xff] %v837
        %888 = vst [vmem:[%s222 + $0x160] sm:$0xff] %v838
        %889 = vst [vmem:[%s222 + $0x168] sm:$0xff] %v839
        %890 = vst [vmem:[%s222 + $0x170] sm:$0xff] %v840
        %891 = vst [vmem:[%s222 + $0x178] sm:$0xff] %v841
        %892 = vst [vmem:[%s222 + $0x180] sm:$0xff] %v842
        %893 = vst [vmem:[%s222 + $0x188] sm:$0xff] %v843
      $region36: #{capsule_network_forward.4} parent=31 // pred_fallthru
        _
      %p894 = scmp.gt.s32.totalorder %s19, 0
      %p895 = pnand %p894, %p789
      %p896 = pneg %p895
      // Predicated region
      $region37: #{capsule_network_forward.4} parent=31 // pred_check
        _
      $region38: #{capsule_network_forward.4} parent=31 // pred_check_branch
        %898 = sbr.rel (%p895) target = $region40
      $region39: #{capsule_network_forward.4} parent=31 // pred_region
        %v899 = vld [vmem:[%s222] sm:$0xff]
        %v900 = vld [vmem:[%s222 + $0x8] sm:$0xff]
        %v901 = vld [vmem:[%s222 + $0x10] sm:$0xff]
        %v902 = vld [vmem:[%s222 + $0x18] sm:$0xff]
        %v903 = vld [vmem:[%s222 + $0x20] sm:$0xff]
        %v904 = vld [vmem:[%s222 + $0x28] sm:$0xff]
        %v905 = vld [vmem:[%s222 + $0x30] sm:$0xff]
        %v906 = vld [vmem:[%s222 + $0x38] sm:$0xff]
        %v907 = vld [vmem:[%s222 + $0x40] sm:$0xff]
        %v908 = vld [vmem:[%s222 + $0x48] sm:$0xff]
        %v909 = vld [vmem:[%s222 + $0x50] sm:$0xff]
        %v910 = vld [vmem:[%s222 + $0x58] sm:$0xff]
        %v911 = vld [vmem:[%s222 + $0x60] sm:$0xff]
        %v912 = vld [vmem:[%s222 + $0x68] sm:$0xff]
        %v913 = vld [vmem:[%s222 + $0x70] sm:$0xff]
        %v914 = vld [vmem:[%s222 + $0x78] sm:$0xff]
        %v915 = vld [vmem:[%s222 + $0x80] sm:$0xff]
        %v916 = vld [vmem:[%s222 + $0x88] sm:$0xff]
        %v917 = vld [vmem:[%s222 + $0x90] sm:$0xff]
        %v918 = vld [vmem:[%s222 + $0x98] sm:$0xff]
        %v919 = vld [vmem:[%s222 + $0xa0] sm:$0xff]
        %v920 = vld [vmem:[%s222 + $0xa8] sm:$0xff]
        %v921 = vld [vmem:[%s222 + $0xb0] sm:$0xff]
        %v922 = vld [vmem:[%s222 + $0xb8] sm:$0xff]
        %v923 = vld [vmem:[%s222 + $0xc0] sm:$0xff]
        %v924 = vld [vmem:[%s222 + $0xc8] sm:$0xff]
        %v925 = vld [vmem:[%s222 + $0xd0] sm:$0xff]
        %v926 = vld [vmem:[%s222 + $0xd8] sm:$0xff]
        %v927 = vld [vmem:[%s222 + $0xe0] sm:$0xff]
        %v928 = vld [vmem:[%s222 + $0xe8] sm:$0xff]
        %v929 = vld [vmem:[%s222 + $0xf0] sm:$0xff]
        %v930 = vld [vmem:[%s222 + $0xf8] sm:$0xff]
        %v931 = vld [vmem:[%s222 + $0x100] sm:$0xff]
        %v932 = vld [vmem:[%s222 + $0x108] sm:$0xff]
        %v933 = vld [vmem:[%s222 + $0x110] sm:$0xff]
        %v934 = vld [vmem:[%s222 + $0x118] sm:$0xff]
        %v935 = vld [vmem:[%s222 + $0x120] sm:$0xff]
        %v936 = vld [vmem:[%s222 + $0x128] sm:$0xff]
        %v937 = vld [vmem:[%s222 + $0x130] sm:$0xff]
        %v938 = vld [vmem:[%s222 + $0x138] sm:$0xff]
        %v939 = vld [vmem:[%s222 + $0x140] sm:$0xff]
        %v940 = vld [vmem:[%s222 + $0x148] sm:$0xff]
        %v941 = vld [vmem:[%s222 + $0x150] sm:$0xff]
        %v942 = vld [vmem:[%s222 + $0x158] sm:$0xff]
        %v943 = vld [vmem:[%s222 + $0x160] sm:$0xff]
        %v944 = vld [vmem:[%s222 + $0x168] sm:$0xff]
        %v945 = vld [vmem:[%s222 + $0x170] sm:$0xff]
        %v946 = vld [vmem:[%s222 + $0x178] sm:$0xff]
        %v947 = vld [vmem:[%s222 + $0x180] sm:$0xff]
        %v948 = vld [vmem:[%s222 + $0x188] sm:$0xff]
        %v949 = vpack.c.bf16 %v664, %v530
        %v950 = vpack.c.bf16 %v666, %v532
        %v951 = vpack.c.bf16 %v669, %v535
        %v952 = vpack.c.bf16 %v671, %v537
        %v953 = vpack.c.bf16 %v674, %v540
        %v954 = vpack.c.bf16 %v676, %v542
        %v955 = vpack.c.bf16 %v679, %v545
        %v956 = vpack.c.bf16 %v681, %v547
        %v957 = vpack.c.bf16 %v684, %v550
        %v958 = vpack.c.bf16 %v686, %v552
        %v959 = vpack.c.bf16 %v689, %v555
        %v960 = vpack.c.bf16 %v691, %v557
        %v961 = vpack.c.bf16 %v694, %v560
        %v962 = vpack.c.bf16 %v696, %v562
        %v963 = vpack.c.bf16 %v699, %v565
        %v964 = vpack.c.bf16 %v701, %v567
        %v965 = vpack.c.bf16 %v704, %v570
        %v966 = vpack.c.bf16 %v706, %v572
        %v967 = vpack.c.bf16 %v709, %v575
        %v968 = vpack.c.bf16 %v711, %v577
        %v969 = vpack.c.bf16 %v714, %v580
        %v970 = vpack.c.bf16 %v716, %v582
        %v971 = vpack.c.bf16 %v719, %v585
        %v972 = vpack.c.bf16 %v721, %v587
        %v973 = vpack.c.bf16 %v724, %v590
        %v974 = vpack.c.bf16 %v726, %v592
        %v975 = vpack.c.bf16 %v729, %v595
        %v976 = vpack.c.bf16 %v731, %v597
        %v977 = vpack.c.bf16 %v734, %v600
        %v978 = vpack.c.bf16 %v736, %v602
        %v979 = vpack.c.bf16 %v739, %v605
        %v980 = vpack.c.bf16 %v741, %v607
        %v981 = vpack.c.bf16 %v744, %v610
        %v982 = vpack.c.bf16 %v746, %v612
        %v983 = vpack.c.bf16 %v749, %v615
        %v984 = vpack.c.bf16 %v751, %v617
        %v985 = vpack.c.bf16 %v754, %v620
        %v986 = vpack.c.bf16 %v756, %v622
        %v987 = vpack.c.bf16 %v759, %v625
        %v988 = vpack.c.bf16 %v761, %v627
        %v989 = vpack.c.bf16 %v764, %v630
        %v990 = vpack.c.bf16 %v766, %v632
        %v991 = vpack.c.bf16 %v769, %v635
        %v992 = vpack.c.bf16 %v771, %v637
        %v993 = vpack.c.bf16 %v774, %v640
        %v994 = vpack.c.bf16 %v776, %v642
        %v995 = vpack.c.bf16 %v779, %v645
        %v996 = vpack.c.bf16 %v781, %v647
        %v997 = vpack.c.bf16 %v784, %v650
        %v998 = vpack.c.bf16 %v786, %v652
        %v999 = vunpack.c.l.bf16 %v899
        %v1000 = vunpack.c.h.bf16 %v899
        %v1001 = vunpack.c.l.bf16 %v900
        %v1002 = vunpack.c.h.bf16 %v900
        %v1003 = vunpack.c.l.bf16 %v901
        %v1004 = vunpack.c.h.bf16 %v901
        %v1005 = vunpack.c.l.bf16 %v902
        %v1006 = vunpack.c.h.bf16 %v902
        %v1007 = vunpack.c.l.bf16 %v903
        %v1008 = vunpack.c.h.bf16 %v903
        %v1009 = vunpack.c.l.bf16 %v904
        %v1010 = vunpack.c.h.bf16 %v904
        %v1011 = vunpack.c.l.bf16 %v905
        %v1012 = vunpack.c.h.bf16 %v905
        %v1013 = vunpack.c.l.bf16 %v906
        %v1014 = vunpack.c.h.bf16 %v906
        %v1015 = vunpack.c.l.bf16 %v907
        %v1016 = vunpack.c.h.bf16 %v907
        %v1017 = vunpack.c.l.bf16 %v908
        %v1018 = vunpack.c.h.bf16 %v908
        %v1019 = vunpack.c.l.bf16 %v909
        %v1020 = vunpack.c.h.bf16 %v909
        %v1021 = vunpack.c.l.bf16 %v910
        %v1022 = vunpack.c.h.bf16 %v910
        %v1023 = vunpack.c.l.bf16 %v911
        %v1024 = vunpack.c.h.bf16 %v911
        %v1025 = vunpack.c.l.bf16 %v912
        %v1026 = vunpack.c.h.bf16 %v912
        %v1027 = vunpack.c.l.bf16 %v913
        %v1028 = vunpack.c.h.bf16 %v913
        %v1029 = vunpack.c.l.bf16 %v914
        %v1030 = vunpack.c.h.bf16 %v914
        %v1031 = vunpack.c.l.bf16 %v915
        %v1032 = vunpack.c.h.bf16 %v915
        %v1033 = vunpack.c.l.bf16 %v916
        %v1034 = vunpack.c.h.bf16 %v916
        %v1035 = vunpack.c.l.bf16 %v917
        %v1036 = vunpack.c.h.bf16 %v917
        %v1037 = vunpack.c.l.bf16 %v918
        %v1038 = vunpack.c.h.bf16 %v918
        %v1039 = vunpack.c.l.bf16 %v919
        %v1040 = vunpack.c.h.bf16 %v919
        %v1041 = vunpack.c.l.bf16 %v920
        %v1042 = vunpack.c.h.bf16 %v920
        %v1043 = vunpack.c.l.bf16 %v921
        %v1044 = vunpack.c.h.bf16 %v921
        %v1045 = vunpack.c.l.bf16 %v922
        %v1046 = vunpack.c.h.bf16 %v922
        %v1047 = vunpack.c.l.bf16 %v923
        %v1048 = vunpack.c.h.bf16 %v923
        %v1049 = vunpack.c.l.bf16 %v924
        %v1050 = vunpack.c.h.bf16 %v924
        %v1051 = vunpack.c.l.bf16 %v925
        %v1052 = vunpack.c.h.bf16 %v925
        %v1053 = vunpack.c.l.bf16 %v926
        %v1054 = vunpack.c.h.bf16 %v926
        %v1055 = vunpack.c.l.bf16 %v927
        %v1056 = vunpack.c.h.bf16 %v927
        %v1057 = vunpack.c.l.bf16 %v928
        %v1058 = vunpack.c.h.bf16 %v928
        %v1059 = vunpack.c.l.bf16 %v929
        %v1060 = vunpack.c.h.bf16 %v929
        %v1061 = vunpack.c.l.bf16 %v930
        %v1062 = vunpack.c.h.bf16 %v930
        %v1063 = vunpack.c.l.bf16 %v931
        %v1064 = vunpack.c.h.bf16 %v931
        %v1065 = vunpack.c.l.bf16 %v932
        %v1066 = vunpack.c.h.bf16 %v932
        %v1067 = vunpack.c.l.bf16 %v933
        %v1068 = vunpack.c.h.bf16 %v933
        %v1069 = vunpack.c.l.bf16 %v934
        %v1070 = vunpack.c.h.bf16 %v934
        %v1071 = vunpack.c.l.bf16 %v935
        %v1072 = vunpack.c.h.bf16 %v935
        %v1073 = vunpack.c.l.bf16 %v936
        %v1074 = vunpack.c.h.bf16 %v936
        %v1075 = vunpack.c.l.bf16 %v937
        %v1076 = vunpack.c.h.bf16 %v937
        %v1077 = vunpack.c.l.bf16 %v938
        %v1078 = vunpack.c.h.bf16 %v938
        %v1079 = vunpack.c.l.bf16 %v939
        %v1080 = vunpack.c.h.bf16 %v939
        %v1081 = vunpack.c.l.bf16 %v940
        %v1082 = vunpack.c.h.bf16 %v940
        %v1083 = vunpack.c.l.bf16 %v941
        %v1084 = vunpack.c.h.bf16 %v941
        %v1085 = vunpack.c.l.bf16 %v942
        %v1086 = vunpack.c.h.bf16 %v942
        %v1087 = vunpack.c.l.bf16 %v943
        %v1088 = vunpack.c.h.bf16 %v943
        %v1089 = vunpack.c.l.bf16 %v944
        %v1090 = vunpack.c.h.bf16 %v944
        %v1091 = vunpack.c.l.bf16 %v945
        %v1092 = vunpack.c.h.bf16 %v945
        %v1093 = vunpack.c.l.bf16 %v946
        %v1094 = vunpack.c.h.bf16 %v946
        %v1095 = vunpack.c.l.bf16 %v947
        %v1096 = vunpack.c.h.bf16 %v947
        %v1097 = vunpack.c.l.bf16 %v948
        %v1098 = vunpack.c.h.bf16 %v948
        %v1099 = vunpack.c.l.bf16 %v949
        %v1100 = vunpack.c.h.bf16 %v949
        %v1101 = vunpack.c.l.bf16 %v950
        %v1102 = vunpack.c.h.bf16 %v950
        %v1103 = vunpack.c.l.bf16 %v951
        %v1104 = vunpack.c.h.bf16 %v951
        %v1105 = vunpack.c.l.bf16 %v952
        %v1106 = vunpack.c.h.bf16 %v952
        %v1107 = vunpack.c.l.bf16 %v953
        %v1108 = vunpack.c.h.bf16 %v953
        %v1109 = vunpack.c.l.bf16 %v954
        %v1110 = vunpack.c.h.bf16 %v954
        %v1111 = vunpack.c.l.bf16 %v955
        %v1112 = vunpack.c.h.bf16 %v955
        %v1113 = vunpack.c.l.bf16 %v956
        %v1114 = vunpack.c.h.bf16 %v956
        %v1115 = vunpack.c.l.bf16 %v957
        %v1116 = vunpack.c.h.bf16 %v957
        %v1117 = vunpack.c.l.bf16 %v958
        %v1118 = vunpack.c.h.bf16 %v958
        %v1119 = vunpack.c.l.bf16 %v959
        %v1120 = vunpack.c.h.bf16 %v959
        %v1121 = vunpack.c.l.bf16 %v960
        %v1122 = vunpack.c.h.bf16 %v960
        %v1123 = vunpack.c.l.bf16 %v961
        %v1124 = vunpack.c.h.bf16 %v961
        %v1125 = vunpack.c.l.bf16 %v962
        %v1126 = vunpack.c.h.bf16 %v962
        %v1127 = vunpack.c.l.bf16 %v963
        %v1128 = vunpack.c.h.bf16 %v963
        %v1129 = vunpack.c.l.bf16 %v964
        %v1130 = vunpack.c.h.bf16 %v964
        %v1131 = vunpack.c.l.bf16 %v965
        %v1132 = vunpack.c.h.bf16 %v965
        %v1133 = vunpack.c.l.bf16 %v966
        %v1134 = vunpack.c.h.bf16 %v966
        %v1135 = vunpack.c.l.bf16 %v967
        %v1136 = vunpack.c.h.bf16 %v967
        %v1137 = vunpack.c.l.bf16 %v968
        %v1138 = vunpack.c.h.bf16 %v968
        %v1139 = vunpack.c.l.bf16 %v969
        %v1140 = vunpack.c.h.bf16 %v969
        %v1141 = vunpack.c.l.bf16 %v970
        %v1142 = vunpack.c.h.bf16 %v970
        %v1143 = vunpack.c.l.bf16 %v971
        %v1144 = vunpack.c.h.bf16 %v971
        %v1145 = vunpack.c.l.bf16 %v972
        %v1146 = vunpack.c.h.bf16 %v972
        %v1147 = vunpack.c.l.bf16 %v973
        %v1148 = vunpack.c.h.bf16 %v973
        %v1149 = vunpack.c.l.bf16 %v974
        %v1150 = vunpack.c.h.bf16 %v974
        %v1151 = vunpack.c.l.bf16 %v975
        %v1152 = vunpack.c.h.bf16 %v975
        %v1153 = vunpack.c.l.bf16 %v976
        %v1154 = vunpack.c.h.bf16 %v976
        %v1155 = vunpack.c.l.bf16 %v977
        %v1156 = vunpack.c.h.bf16 %v977
        %v1157 = vunpack.c.l.bf16 %v978
        %v1158 = vunpack.c.h.bf16 %v978
        %v1159 = vunpack.c.l.bf16 %v979
        %v1160 = vunpack.c.h.bf16 %v979
        %v1161 = vunpack.c.l.bf16 %v980
        %v1162 = vunpack.c.h.bf16 %v980
        %v1163 = vunpack.c.l.bf16 %v981
        %v1164 = vunpack.c.h.bf16 %v981
        %v1165 = vunpack.c.l.bf16 %v982
        %v1166 = vunpack.c.h.bf16 %v982
        %v1167 = vunpack.c.l.bf16 %v983
        %v1168 = vunpack.c.h.bf16 %v983
        %v1169 = vunpack.c.l.bf16 %v984
        %v1170 = vunpack.c.h.bf16 %v984
        %v1171 = vunpack.c.l.bf16 %v985
        %v1172 = vunpack.c.h.bf16 %v985
        %v1173 = vunpack.c.l.bf16 %v986
        %v1174 = vunpack.c.h.bf16 %v986
        %v1175 = vunpack.c.l.bf16 %v987
        %v1176 = vunpack.c.h.bf16 %v987
        %v1177 = vunpack.c.l.bf16 %v988
        %v1178 = vunpack.c.h.bf16 %v988
        %v1179 = vunpack.c.l.bf16 %v989
        %v1180 = vunpack.c.h.bf16 %v989
        %v1181 = vunpack.c.l.bf16 %v990
        %v1182 = vunpack.c.h.bf16 %v990
        %v1183 = vunpack.c.l.bf16 %v991
        %v1184 = vunpack.c.h.bf16 %v991
        %v1185 = vunpack.c.l.bf16 %v992
        %v1186 = vunpack.c.h.bf16 %v992
        %v1187 = vunpack.c.l.bf16 %v993
        %v1188 = vunpack.c.h.bf16 %v993
        %v1189 = vunpack.c.l.bf16 %v994
        %v1190 = vunpack.c.h.bf16 %v994
        %v1191 = vunpack.c.l.bf16 %v995
        %v1192 = vunpack.c.h.bf16 %v995
        %v1193 = vunpack.c.l.bf16 %v996
        %v1194 = vunpack.c.h.bf16 %v996
        %v1195 = vunpack.c.l.bf16 %v997
        %v1196 = vunpack.c.h.bf16 %v997
        %v1197 = vunpack.c.l.bf16 %v998
        %v1198 = vunpack.c.h.bf16 %v998
        %v1199 = vadd.f32 %v999, %v1099
        %v1200 = vadd.f32 %v1000, %v1100
        %v1201 = vadd.f32 %v1001, %v1101
        %v1202 = vadd.f32 %v1002, %v1102
        %v1203 = vadd.f32 %v1003, %v1103
        %v1204 = vadd.f32 %v1004, %v1104
        %v1205 = vadd.f32 %v1005, %v1105
        %v1206 = vadd.f32 %v1006, %v1106
        %v1207 = vadd.f32 %v1007, %v1107
        %v1208 = vadd.f32 %v1008, %v1108
        %v1209 = vadd.f32 %v1009, %v1109
        %v1210 = vadd.f32 %v1010, %v1110
        %v1211 = vadd.f32 %v1011, %v1111
        %v1212 = vadd.f32 %v1012, %v1112
        %v1213 = vadd.f32 %v1013, %v1113
        %v1214 = vadd.f32 %v1014, %v1114
        %v1215 = vadd.f32 %v1015, %v1115
        %v1216 = vadd.f32 %v1016, %v1116
        %v1217 = vadd.f32 %v1017, %v1117
        %v1218 = vadd.f32 %v1018, %v1118
        %v1219 = vadd.f32 %v1019, %v1119
        %v1220 = vadd.f32 %v1020, %v1120
        %v1221 = vadd.f32 %v1021, %v1121
        %v1222 = vadd.f32 %v1022, %v1122
        %v1223 = vadd.f32 %v1023, %v1123
        %v1224 = vadd.f32 %v1024, %v1124
        %v1225 = vadd.f32 %v1025, %v1125
        %v1226 = vadd.f32 %v1026, %v1126
        %v1227 = vadd.f32 %v1027, %v1127
        %v1228 = vadd.f32 %v1028, %v1128
        %v1229 = vadd.f32 %v1029, %v1129
        %v1230 = vadd.f32 %v1030, %v1130
        %v1231 = vadd.f32 %v1031, %v1131
        %v1232 = vadd.f32 %v1032, %v1132
        %v1233 = vadd.f32 %v1033, %v1133
        %v1234 = vadd.f32 %v1034, %v1134
        %v1235 = vadd.f32 %v1035, %v1135
        %v1236 = vadd.f32 %v1036, %v1136
        %v1237 = vadd.f32 %v1037, %v1137
        %v1238 = vadd.f32 %v1038, %v1138
        %v1239 = vadd.f32 %v1039, %v1139
        %v1240 = vadd.f32 %v1040, %v1140
        %v1241 = vadd.f32 %v1041, %v1141
        %v1242 = vadd.f32 %v1042, %v1142
        %v1243 = vadd.f32 %v1043, %v1143
        %v1244 = vadd.f32 %v1044, %v1144
        %v1245 = vadd.f32 %v1045, %v1145
        %v1246 = vadd.f32 %v1046, %v1146
        %v1247 = vadd.f32 %v1047, %v1147
        %v1248 = vadd.f32 %v1048, %v1148
        %v1249 = vadd.f32 %v1049, %v1149
        %v1250 = vadd.f32 %v1050, %v1150
        %v1251 = vadd.f32 %v1051, %v1151
        %v1252 = vadd.f32 %v1052, %v1152
        %v1253 = vadd.f32 %v1053, %v1153
        %v1254 = vadd.f32 %v1054, %v1154
        %v1255 = vadd.f32 %v1055, %v1155
        %v1256 = vadd.f32 %v1056, %v1156
        %v1257 = vadd.f32 %v1057, %v1157
        %v1258 = vadd.f32 %v1058, %v1158
        %v1259 = vadd.f32 %v1059, %v1159
        %v1260 = vadd.f32 %v1060, %v1160
        %v1261 = vadd.f32 %v1061, %v1161
        %v1262 = vadd.f32 %v1062, %v1162
        %v1263 = vadd.f32 %v1063, %v1163
        %v1264 = vadd.f32 %v1064, %v1164
        %v1265 = vadd.f32 %v1065, %v1165
        %v1266 = vadd.f32 %v1066, %v1166
        %v1267 = vadd.f32 %v1067, %v1167
        %v1268 = vadd.f32 %v1068, %v1168
        %v1269 = vadd.f32 %v1069, %v1169
        %v1270 = vadd.f32 %v1070, %v1170
        %v1271 = vadd.f32 %v1071, %v1171
        %v1272 = vadd.f32 %v1072, %v1172
        %v1273 = vadd.f32 %v1073, %v1173
        %v1274 = vadd.f32 %v1074, %v1174
        %v1275 = vadd.f32 %v1075, %v1175
        %v1276 = vadd.f32 %v1076, %v1176
        %v1277 = vadd.f32 %v1077, %v1177
        %v1278 = vadd.f32 %v1078, %v1178
        %v1279 = vadd.f32 %v1079, %v1179
        %v1280 = vadd.f32 %v1080, %v1180
        %v1281 = vadd.f32 %v1081, %v1181
        %v1282 = vadd.f32 %v1082, %v1182
        %v1283 = vadd.f32 %v1083, %v1183
        %v1284 = vadd.f32 %v1084, %v1184
        %v1285 = vadd.f32 %v1085, %v1185
        %v1286 = vadd.f32 %v1086, %v1186
        %v1287 = vadd.f32 %v1087, %v1187
        %v1288 = vadd.f32 %v1088, %v1188
        %v1289 = vadd.f32 %v1089, %v1189
        %v1290 = vadd.f32 %v1090, %v1190
        %v1291 = vadd.f32 %v1091, %v1191
        %v1292 = vadd.f32 %v1092, %v1192
        %v1293 = vadd.f32 %v1093, %v1193
        %v1294 = vadd.f32 %v1094, %v1194
        %v1295 = vadd.f32 %v1095, %v1195
        %v1296 = vadd.f32 %v1096, %v1196
        %v1297 = vadd.f32 %v1097, %v1197
        %v1298 = vadd.f32 %v1098, %v1198
        %v1299 = vpack.c.bf16 %v1200, %v1199
        %v1300 = vpack.c.bf16 %v1202, %v1201
        %v1301 = vpack.c.bf16 %v1204, %v1203
        %v1302 = vpack.c.bf16 %v1206, %v1205
        %v1303 = vpack.c.bf16 %v1208, %v1207
        %v1304 = vpack.c.bf16 %v1210, %v1209
        %v1305 = vpack.c.bf16 %v1212, %v1211
        %v1306 = vpack.c.bf16 %v1214, %v1213
        %v1307 = vpack.c.bf16 %v1216, %v1215
        %v1308 = vpack.c.bf16 %v1218, %v1217
        %v1309 = vpack.c.bf16 %v1220, %v1219
        %v1310 = vpack.c.bf16 %v1222, %v1221
        %v1311 = vpack.c.bf16 %v1224, %v1223
        %v1312 = vpack.c.bf16 %v1226, %v1225
        %v1313 = vpack.c.bf16 %v1228, %v1227
        %v1314 = vpack.c.bf16 %v1230, %v1229
        %v1315 = vpack.c.bf16 %v1232, %v1231
        %v1316 = vpack.c.bf16 %v1234, %v1233
        %v1317 = vpack.c.bf16 %v1236, %v1235
        %v1318 = vpack.c.bf16 %v1238, %v1237
        %v1319 = vpack.c.bf16 %v1240, %v1239
        %v1320 = vpack.c.bf16 %v1242, %v1241
        %v1321 = vpack.c.bf16 %v1244, %v1243
        %v1322 = vpack.c.bf16 %v1246, %v1245
        %v1323 = vpack.c.bf16 %v1248, %v1247
        %v1324 = vpack.c.bf16 %v1250, %v1249
        %v1325 = vpack.c.bf16 %v1252, %v1251
        %v1326 = vpack.c.bf16 %v1254, %v1253
        %v1327 = vpack.c.bf16 %v1256, %v1255
        %v1328 = vpack.c.bf16 %v1258, %v1257
        %v1329 = vpack.c.bf16 %v1260, %v1259
        %v1330 = vpack.c.bf16 %v1262, %v1261
        %v1331 = vpack.c.bf16 %v1264, %v1263
        %v1332 = vpack.c.bf16 %v1266, %v1265
        %v1333 = vpack.c.bf16 %v1268, %v1267
        %v1334 = vpack.c.bf16 %v1270, %v1269
        %v1335 = vpack.c.bf16 %v1272, %v1271
        %v1336 = vpack.c.bf16 %v1274, %v1273
        %v1337 = vpack.c.bf16 %v1276, %v1275
        %v1338 = vpack.c.bf16 %v1278, %v1277
        %v1339 = vpack.c.bf16 %v1280, %v1279
        %v1340 = vpack.c.bf16 %v1282, %v1281
        %v1341 = vpack.c.bf16 %v1284, %v1283
        %v1342 = vpack.c.bf16 %v1286, %v1285
        %v1343 = vpack.c.bf16 %v1288, %v1287
        %v1344 = vpack.c.bf16 %v1290, %v1289
        %v1345 = vpack.c.bf16 %v1292, %v1291
        %v1346 = vpack.c.bf16 %v1294, %v1293
        %v1347 = vpack.c.bf16 %v1296, %v1295
        %v1348 = vpack.c.bf16 %v1298, %v1297
        %1349 = vst [vmem:[%s222] sm:$0xff] %v1299
        %1350 = vst [vmem:[%s222 + $0x8] sm:$0xff] %v1300
        %1351 = vst [vmem:[%s222 + $0x10] sm:$0xff] %v1301
        %1352 = vst [vmem:[%s222 + $0x18] sm:$0xff] %v1302
        %1353 = vst [vmem:[%s222 + $0x20] sm:$0xff] %v1303
        %1354 = vst [vmem:[%s222 + $0x28] sm:$0xff] %v1304
        %1355 = vst [vmem:[%s222 + $0x30] sm:$0xff] %v1305
        %1356 = vst [vmem:[%s222 + $0x38] sm:$0xff] %v1306
        %1357 = vst [vmem:[%s222 + $0x40] sm:$0xff] %v1307
        %1358 = vst [vmem:[%s222 + $0x48] sm:$0xff] %v1308
        %1359 = vst [vmem:[%s222 + $0x50] sm:$0xff] %v1309
        %1360 = vst [vmem:[%s222 + $0x58] sm:$0xff] %v1310
        %1361 = vst [vmem:[%s222 + $0x60] sm:$0xff] %v1311
        %1362 = vst [vmem:[%s222 + $0x68] sm:$0xff] %v1312
        %1363 = vst [vmem:[%s222 + $0x70] sm:$0xff] %v1313
        %1364 = vst [vmem:[%s222 + $0x78] sm:$0xff] %v1314
        %1365 = vst [vmem:[%s222 + $0x80] sm:$0xff] %v1315
        %1366 = vst [vmem:[%s222 + $0x88] sm:$0xff] %v1316
        %1367 = vst [vmem:[%s222 + $0x90] sm:$0xff] %v1317
        %1368 = vst [vmem:[%s222 + $0x98] sm:$0xff] %v1318
        %1369 = vst [vmem:[%s222 + $0xa0] sm:$0xff] %v1319
        %1370 = vst [vmem:[%s222 + $0xa8] sm:$0xff] %v1320
        %1371 = vst [vmem:[%s222 + $0xb0] sm:$0xff] %v1321
        %1372 = vst [vmem:[%s222 + $0xb8] sm:$0xff] %v1322
        %1373 = vst [vmem:[%s222 + $0xc0] sm:$0xff] %v1323
        %1374 = vst [vmem:[%s222 + $0xc8] sm:$0xff] %v1324
        %1375 = vst [vmem:[%s222 + $0xd0] sm:$0xff] %v1325
        %1376 = vst [vmem:[%s222 + $0xd8] sm:$0xff] %v1326
        %1377 = vst [vmem:[%s222 + $0xe0] sm:$0xff] %v1327
        %1378 = vst [vmem:[%s222 + $0xe8] sm:$0xff] %v1328
        %1379 = vst [vmem:[%s222 + $0xf0] sm:$0xff] %v1329
        %1380 = vst [vmem:[%s222 + $0xf8] sm:$0xff] %v1330
        %1381 = vst [vmem:[%s222 + $0x100] sm:$0xff] %v1331
        %1382 = vst [vmem:[%s222 + $0x108] sm:$0xff] %v1332
        %1383 = vst [vmem:[%s222 + $0x110] sm:$0xff] %v1333
        %1384 = vst [vmem:[%s222 + $0x118] sm:$0xff] %v1334
        %1385 = vst [vmem:[%s222 + $0x120] sm:$0xff] %v1335
        %1386 = vst [vmem:[%s222 + $0x128] sm:$0xff] %v1336
        %1387 = vst [vmem:[%s222 + $0x130] sm:$0xff] %v1337
        %1388 = vst [vmem:[%s222 + $0x138] sm:$0xff] %v1338
        %1389 = vst [vmem:[%s222 + $0x140] sm:$0xff] %v1339
        %1390 = vst [vmem:[%s222 + $0x148] sm:$0xff] %v1340
        %1391 = vst [vmem:[%s222 + $0x150] sm:$0xff] %v1341
        %1392 = vst [vmem:[%s222 + $0x158] sm:$0xff] %v1342
        %1393 = vst [vmem:[%s222 + $0x160] sm:$0xff] %v1343
        %1394 = vst [vmem:[%s222 + $0x168] sm:$0xff] %v1344
        %1395 = vst [vmem:[%s222 + $0x170] sm:$0xff] %v1345
        %1396 = vst [vmem:[%s222 + $0x178] sm:$0xff] %v1346
        %1397 = vst [vmem:[%s222 + $0x180] sm:$0xff] %v1347
        %1398 = vst [vmem:[%s222 + $0x188] sm:$0xff] %v1348
      $region40: #{capsule_network_forward.4} parent=31 // pred_fallthru
        _
      // Predicated region
      $region41: #{capsule_network_forward.4} parent=31 // pred_check
        %p1399 = pneg %p788
      $region42: #{capsule_network_forward.4} parent=31 // pred_check_branch
        %1401 = sbr.rel (%p1399) target = $region44
      $region43: #{capsule_network_forward.4} parent=31 // pred_region
        %v1402 = vld [vmem:[%s2] sm:$0x3]
        %v1404 = vperm.slane %v1402, 0
        %v1405 = vperm.slane %v1402, 1
        %v1408 = vadd.f32 %v530, %v1404
        %v1409 = vadd.f32 %v664, %v1405
        %v1410 = vadd.f32 %v532, %v1404
        %v1411 = vadd.f32 %v666, %v1405
        %v1412 = vadd.f32 %v535, %v1404
        %v1413 = vadd.f32 %v669, %v1405
        %v1414 = vadd.f32 %v537, %v1404
        %v1415 = vadd.f32 %v671, %v1405
        %v1416 = vadd.f32 %v540, %v1404
        %v1417 = vadd.f32 %v674, %v1405
        %v1418 = vadd.f32 %v542, %v1404
        %v1419 = vadd.f32 %v676, %v1405
        %v1420 = vadd.f32 %v545, %v1404
        %v1421 = vadd.f32 %v679, %v1405
        %v1422 = vadd.f32 %v547, %v1404
        %v1423 = vadd.f32 %v681, %v1405
        %v1424 = vadd.f32 %v550, %v1404
        %v1425 = vadd.f32 %v684, %v1405
        %v1426 = vadd.f32 %v552, %v1404
        %v1427 = vadd.f32 %v686, %v1405
        %v1428 = vadd.f32 %v555, %v1404
        %v1429 = vadd.f32 %v689, %v1405
        %v1430 = vadd.f32 %v557, %v1404
        %v1431 = vadd.f32 %v691, %v1405
        %v1432 = vadd.f32 %v560, %v1404
        %v1433 = vadd.f32 %v694, %v1405
        %v1434 = vadd.f32 %v562, %v1404
        %v1435 = vadd.f32 %v696, %v1405
        %v1436 = vadd.f32 %v565, %v1404
        %v1437 = vadd.f32 %v699, %v1405
        %v1438 = vadd.f32 %v567, %v1404
        %v1439 = vadd.f32 %v701, %v1405
        %v1440 = vadd.f32 %v570, %v1404
        %v1441 = vadd.f32 %v704, %v1405
        %v1442 = vadd.f32 %v572, %v1404
        %v1443 = vadd.f32 %v706, %v1405
        %v1444 = vadd.f32 %v575, %v1404
        %v1445 = vadd.f32 %v709, %v1405
        %v1446 = vadd.f32 %v577, %v1404
        %v1447 = vadd.f32 %v711, %v1405
        %v1448 = vadd.f32 %v580, %v1404
        %v1449 = vadd.f32 %v714, %v1405
        %v1450 = vadd.f32 %v582, %v1404
        %v1451 = vadd.f32 %v716, %v1405
        %v1452 = vadd.f32 %v585, %v1404
        %v1453 = vadd.f32 %v719, %v1405
        %v1454 = vadd.f32 %v587, %v1404
        %v1455 = vadd.f32 %v721, %v1405
        %v1456 = vadd.f32 %v590, %v1404
        %v1457 = vadd.f32 %v724, %v1405
        %v1458 = vadd.f32 %v592, %v1404
        %v1459 = vadd.f32 %v726, %v1405
        %v1460 = vadd.f32 %v595, %v1404
        %v1461 = vadd.f32 %v729, %v1405
        %v1462 = vadd.f32 %v597, %v1404
        %v1463 = vadd.f32 %v731, %v1405
        %v1464 = vadd.f32 %v600, %v1404
        %v1465 = vadd.f32 %v734, %v1405
        %v1466 = vadd.f32 %v602, %v1404
        %v1467 = vadd.f32 %v736, %v1405
        %v1468 = vadd.f32 %v605, %v1404
        %v1469 = vadd.f32 %v739, %v1405
        %v1470 = vadd.f32 %v607, %v1404
        %v1471 = vadd.f32 %v741, %v1405
        %v1472 = vadd.f32 %v610, %v1404
        %v1473 = vadd.f32 %v744, %v1405
        %v1474 = vadd.f32 %v612, %v1404
        %v1475 = vadd.f32 %v746, %v1405
        %v1476 = vadd.f32 %v615, %v1404
        %v1477 = vadd.f32 %v749, %v1405
        %v1478 = vadd.f32 %v617, %v1404
        %v1479 = vadd.f32 %v751, %v1405
        %v1480 = vadd.f32 %v620, %v1404
        %v1481 = vadd.f32 %v754, %v1405
        %v1482 = vadd.f32 %v622, %v1404
        %v1483 = vadd.f32 %v756, %v1405
        %v1484 = vadd.f32 %v625, %v1404
        %v1485 = vadd.f32 %v759, %v1405
        %v1486 = vadd.f32 %v627, %v1404
        %v1487 = vadd.f32 %v761, %v1405
        %v1488 = vadd.f32 %v630, %v1404
        %v1489 = vadd.f32 %v764, %v1405
        %v1490 = vadd.f32 %v632, %v1404
        %v1491 = vadd.f32 %v766, %v1405
        %v1492 = vadd.f32 %v635, %v1404
        %v1493 = vadd.f32 %v769, %v1405
        %v1494 = vadd.f32 %v637, %v1404
        %v1495 = vadd.f32 %v771, %v1405
        %v1496 = vadd.f32 %v640, %v1404
        %v1497 = vadd.f32 %v774, %v1405
        %v1498 = vadd.f32 %v642, %v1404
        %v1499 = vadd.f32 %v776, %v1405
        %v1500 = vadd.f32 %v645, %v1404
        %v1501 = vadd.f32 %v779, %v1405
        %v1502 = vadd.f32 %v647, %v1404
        %v1503 = vadd.f32 %v781, %v1405
        %v1504 = vadd.f32 %v650, %v1404
        %v1505 = vadd.f32 %v784, %v1405
        %v1506 = vadd.f32 %v652, %v1404
        %v1507 = vadd.f32 %v786, %v1405
        %v1508 = vmax.f32 %v1408, 0.0
        %v1509 = vmax.f32 %v1409, 0.0
        %v1510 = vmax.f32 %v1410, 0.0
        %v1511 = vmax.f32 %v1411, 0.0
        %v1512 = vmax.f32 %v1412, 0.0
        %v1513 = vmax.f32 %v1413, 0.0
        %v1514 = vmax.f32 %v1414, 0.0
        %v1515 = vmax.f32 %v1415, 0.0
        %v1516 = vmax.f32 %v1416, 0.0
        %v1517 = vmax.f32 %v1417, 0.0
        %v1518 = vmax.f32 %v1418, 0.0
        %v1519 = vmax.f32 %v1419, 0.0
        %v1520 = vmax.f32 %v1420, 0.0
        %v1521 = vmax.f32 %v1421, 0.0
        %v1522 = vmax.f32 %v1422, 0.0
        %v1523 = vmax.f32 %v1423, 0.0
        %v1524 = vmax.f32 %v1424, 0.0
        %v1525 = vmax.f32 %v1425, 0.0
        %v1526 = vmax.f32 %v1426, 0.0
        %v1527 = vmax.f32 %v1427, 0.0
        %v1528 = vmax.f32 %v1428, 0.0
        %v1529 = vmax.f32 %v1429, 0.0
        %v1530 = vmax.f32 %v1430, 0.0
        %v1531 = vmax.f32 %v1431, 0.0
        %v1532 = vmax.f32 %v1432, 0.0
        %v1533 = vmax.f32 %v1433, 0.0
        %v1534 = vmax.f32 %v1434, 0.0
        %v1535 = vmax.f32 %v1435, 0.0
        %v1536 = vmax.f32 %v1436, 0.0
        %v1537 = vmax.f32 %v1437, 0.0
        %v1538 = vmax.f32 %v1438, 0.0
        %v1539 = vmax.f32 %v1439, 0.0
        %v1540 = vmax.f32 %v1440, 0.0
        %v1541 = vmax.f32 %v1441, 0.0
        %v1542 = vmax.f32 %v1442, 0.0
        %v1543 = vmax.f32 %v1443, 0.0
        %v1544 = vmax.f32 %v1444, 0.0
        %v1545 = vmax.f32 %v1445, 0.0
        %v1546 = vmax.f32 %v1446, 0.0
        %v1547 = vmax.f32 %v1447, 0.0
        %v1548 = vmax.f32 %v1448, 0.0
        %v1549 = vmax.f32 %v1449, 0.0
        %v1550 = vmax.f32 %v1450, 0.0
        %v1551 = vmax.f32 %v1451, 0.0
        %v1552 = vmax.f32 %v1452, 0.0
        %v1553 = vmax.f32 %v1453, 0.0
        %v1554 = vmax.f32 %v1454, 0.0
        %v1555 = vmax.f32 %v1455, 0.0
        %v1556 = vmax.f32 %v1456, 0.0
        %v1557 = vmax.f32 %v1457, 0.0
        %v1558 = vmax.f32 %v1458, 0.0
        %v1559 = vmax.f32 %v1459, 0.0
        %v1560 = vmax.f32 %v1460, 0.0
        %v1561 = vmax.f32 %v1461, 0.0
        %v1562 = vmax.f32 %v1462, 0.0
        %v1563 = vmax.f32 %v1463, 0.0
        %v1564 = vmax.f32 %v1464, 0.0
        %v1565 = vmax.f32 %v1465, 0.0
        %v1566 = vmax.f32 %v1466, 0.0
        %v1567 = vmax.f32 %v1467, 0.0
        %v1568 = vmax.f32 %v1468, 0.0
        %v1569 = vmax.f32 %v1469, 0.0
        %v1570 = vmax.f32 %v1470, 0.0
        %v1571 = vmax.f32 %v1471, 0.0
        %v1572 = vmax.f32 %v1472, 0.0
        %v1573 = vmax.f32 %v1473, 0.0
        %v1574 = vmax.f32 %v1474, 0.0
        %v1575 = vmax.f32 %v1475, 0.0
        %v1576 = vmax.f32 %v1476, 0.0
        %v1577 = vmax.f32 %v1477, 0.0
        %v1578 = vmax.f32 %v1478, 0.0
        %v1579 = vmax.f32 %v1479, 0.0
        %v1580 = vmax.f32 %v1480, 0.0
        %v1581 = vmax.f32 %v1481, 0.0
        %v1582 = vmax.f32 %v1482, 0.0
        %v1583 = vmax.f32 %v1483, 0.0
        %v1584 = vmax.f32 %v1484, 0.0
        %v1585 = vmax.f32 %v1485, 0.0
        %v1586 = vmax.f32 %v1486, 0.0
        %v1587 = vmax.f32 %v1487, 0.0
        %v1588 = vmax.f32 %v1488, 0.0
        %v1589 = vmax.f32 %v1489, 0.0
        %v1590 = vmax.f32 %v1490, 0.0
        %v1591 = vmax.f32 %v1491, 0.0
        %v1592 = vmax.f32 %v1492, 0.0
        %v1593 = vmax.f32 %v1493, 0.0
        %v1594 = vmax.f32 %v1494, 0.0
        %v1595 = vmax.f32 %v1495, 0.0
        %v1596 = vmax.f32 %v1496, 0.0
        %v1597 = vmax.f32 %v1497, 0.0
        %v1598 = vmax.f32 %v1498, 0.0
        %v1599 = vmax.f32 %v1499, 0.0
        %v1600 = vmax.f32 %v1500, 0.0
        %v1601 = vmax.f32 %v1501, 0.0
        %v1602 = vmax.f32 %v1502, 0.0
        %v1603 = vmax.f32 %v1503, 0.0
        %v1604 = vmax.f32 %v1504, 0.0
        %v1605 = vmax.f32 %v1505, 0.0
        %v1606 = vmax.f32 %v1506, 0.0
        %v1607 = vmax.f32 %v1507, 0.0
        %v1608 = vpack.c.bf16 %v1509, %v1508
        %v1609 = vpack.c.bf16 %v1511, %v1510
        %v1610 = vpack.c.bf16 %v1513, %v1512
        %v1611 = vpack.c.bf16 %v1515, %v1514
        %v1612 = vpack.c.bf16 %v1517, %v1516
        %v1613 = vpack.c.bf16 %v1519, %v1518
        %v1614 = vpack.c.bf16 %v1521, %v1520
        %v1615 = vpack.c.bf16 %v1523, %v1522
        %v1616 = vpack.c.bf16 %v1525, %v1524
        %v1617 = vpack.c.bf16 %v1527, %v1526
        %v1618 = vpack.c.bf16 %v1529, %v1528
        %v1619 = vpack.c.bf16 %v1531, %v1530
        %v1620 = vpack.c.bf16 %v1533, %v1532
        %v1621 = vpack.c.bf16 %v1535, %v1534
        %v1622 = vpack.c.bf16 %v1537, %v1536
        %v1623 = vpack.c.bf16 %v1539, %v1538
        %v1624 = vpack.c.bf16 %v1541, %v1540
        %v1625 = vpack.c.bf16 %v1543, %v1542
        %v1626 = vpack.c.bf16 %v1545, %v1544
        %v1627 = vpack.c.bf16 %v1547, %v1546
        %v1628 = vpack.c.bf16 %v1549, %v1548
        %v1629 = vpack.c.bf16 %v1551, %v1550
        %v1630 = vpack.c.bf16 %v1553, %v1552
        %v1631 = vpack.c.bf16 %v1555, %v1554
        %v1632 = vpack.c.bf16 %v1557, %v1556
        %v1633 = vpack.c.bf16 %v1559, %v1558
        %v1634 = vpack.c.bf16 %v1561, %v1560
        %v1635 = vpack.c.bf16 %v1563, %v1562
        %v1636 = vpack.c.bf16 %v1565, %v1564
        %v1637 = vpack.c.bf16 %v1567, %v1566
        %v1638 = vpack.c.bf16 %v1569, %v1568
        %v1639 = vpack.c.bf16 %v1571, %v1570
        %v1640 = vpack.c.bf16 %v1573, %v1572
        %v1641 = vpack.c.bf16 %v1575, %v1574
        %v1642 = vpack.c.bf16 %v1577, %v1576
        %v1643 = vpack.c.bf16 %v1579, %v1578
        %v1644 = vpack.c.bf16 %v1581, %v1580
        %v1645 = vpack.c.bf16 %v1583, %v1582
        %v1646 = vpack.c.bf16 %v1585, %v1584
        %v1647 = vpack.c.bf16 %v1587, %v1586
        %v1648 = vpack.c.bf16 %v1589, %v1588
        %v1649 = vpack.c.bf16 %v1591, %v1590
        %v1650 = vpack.c.bf16 %v1593, %v1592
        %v1651 = vpack.c.bf16 %v1595, %v1594
        %v1652 = vpack.c.bf16 %v1597, %v1596
        %v1653 = vpack.c.bf16 %v1599, %v1598
        %v1654 = vpack.c.bf16 %v1601, %v1600
        %v1655 = vpack.c.bf16 %v1603, %v1602
        %v1656 = vpack.c.bf16 %v1605, %v1604
        %v1657 = vpack.c.bf16 %v1607, %v1606
        %1658 = vst [vmem:[%s222] sm:$0xff] %v1608
        %1659 = vst [vmem:[%s222 + $0x8] sm:$0xff] %v1609
        %1660 = vst [vmem:[%s222 + $0x10] sm:$0xff] %v1610
        %1661 = vst [vmem:[%s222 + $0x18] sm:$0xff] %v1611
        %1662 = vst [vmem:[%s222 + $0x20] sm:$0xff] %v1612
        %1663 = vst [vmem:[%s222 + $0x28] sm:$0xff] %v1613
        %1664 = vst [vmem:[%s222 + $0x30] sm:$0xff] %v1614
        %1665 = vst [vmem:[%s222 + $0x38] sm:$0xff] %v1615
        %1666 = vst [vmem:[%s222 + $0x40] sm:$0xff] %v1616
        %1667 = vst [vmem:[%s222 + $0x48] sm:$0xff] %v1617
        %1668 = vst [vmem:[%s222 + $0x50] sm:$0xff] %v1618
        %1669 = vst [vmem:[%s222 + $0x58] sm:$0xff] %v1619
        %1670 = vst [vmem:[%s222 + $0x60] sm:$0xff] %v1620
        %1671 = vst [vmem:[%s222 + $0x68] sm:$0xff] %v1621
        %1672 = vst [vmem:[%s222 + $0x70] sm:$0xff] %v1622
        %1673 = vst [vmem:[%s222 + $0x78] sm:$0xff] %v1623
        %1674 = vst [vmem:[%s222 + $0x80] sm:$0xff] %v1624
        %1675 = vst [vmem:[%s222 + $0x88] sm:$0xff] %v1625
        %1676 = vst [vmem:[%s222 + $0x90] sm:$0xff] %v1626
        %1677 = vst [vmem:[%s222 + $0x98] sm:$0xff] %v1627
        %1678 = vst [vmem:[%s222 + $0xa0] sm:$0xff] %v1628
        %1679 = vst [vmem:[%s222 + $0xa8] sm:$0xff] %v1629
        %1680 = vst [vmem:[%s222 + $0xb0] sm:$0xff] %v1630
        %1681 = vst [vmem:[%s222 + $0xb8] sm:$0xff] %v1631
        %1682 = vst [vmem:[%s222 + $0xc0] sm:$0xff] %v1632
        %1683 = vst [vmem:[%s222 + $0xc8] sm:$0xff] %v1633
        %1684 = vst [vmem:[%s222 + $0xd0] sm:$0xff] %v1634
        %1685 = vst [vmem:[%s222 + $0xd8] sm:$0xff] %v1635
        %1686 = vst [vmem:[%s222 + $0xe0] sm:$0xff] %v1636
        %1687 = vst [vmem:[%s222 + $0xe8] sm:$0xff] %v1637
        %1688 = vst [vmem:[%s222 + $0xf0] sm:$0xff] %v1638
        %1689 = vst [vmem:[%s222 + $0xf8] sm:$0xff] %v1639
        %1690 = vst [vmem:[%s222 + $0x100] sm:$0xff] %v1640
        %1691 = vst [vmem:[%s222 + $0x108] sm:$0xff] %v1641
        %1692 = vst [vmem:[%s222 + $0x110] sm:$0xff] %v1642
        %1693 = vst [vmem:[%s222 + $0x118] sm:$0xff] %v1643
        %1694 = vst [vmem:[%s222 + $0x120] sm:$0xff] %v1644
        %1695 = vst [vmem:[%s222 + $0x128] sm:$0xff] %v1645
        %1696 = vst [vmem:[%s222 + $0x130] sm:$0xff] %v1646
        %1697 = vst [vmem:[%s222 + $0x138] sm:$0xff] %v1647
        %1698 = vst [vmem:[%s222 + $0x140] sm:$0xff] %v1648
        %1699 = vst [vmem:[%s222 + $0x148] sm:$0xff] %v1649
        %1700 = vst [vmem:[%s222 + $0x150] sm:$0xff] %v1650
        %1701 = vst [vmem:[%s222 + $0x158] sm:$0xff] %v1651
        %1702 = vst [vmem:[%s222 + $0x160] sm:$0xff] %v1652
        %1703 = vst [vmem:[%s222 + $0x168] sm:$0xff] %v1653
        %1704 = vst [vmem:[%s222 + $0x170] sm:$0xff] %v1654
        %1705 = vst [vmem:[%s222 + $0x178] sm:$0xff] %v1655
        %1706 = vst [vmem:[%s222 + $0x180] sm:$0xff] %v1656
        %1707 = vst [vmem:[%s222 + $0x188] sm:$0xff] %v1657
      $region44: #{capsule_network_forward.4} parent=31 // pred_fallthru
        _
      %s1708 = smul.u32 50, %s18
      %p1709 = scmp.lt.s32.totalorder %s1708, 99
      %s1710 = scalar_select %p1709, %s1708, 99
      %s1711 = smul.addr %s1710, 2
      %s1712 = smul.addr %s1711, 4
      %s1713 = scalar_lea.vmem %s3, %s1712
      // Predicated region
      $region45: #{capsule_network_forward.4} parent=31 // pred_check
        %p1714 = pneg %p119
      $region46: #{capsule_network_forward.4} parent=31 // pred_check_branch
        %1716 = sbr.rel (%p1714) target = $region48
      $region47: #{capsule_network_forward.4} parent=31 // pred_region
        %s1717 = smul.u32 50, %s18
      $region48: #{capsule_network_forward.4} parent=31 // pred_fallthru
        _
    $region32: #{capsule_network_forward.4} parent=5 // pred_fallthru
      _
    %p1718 = scmp.le.s32.totalorder 2, %s9
    // Predicated region
    $region49: #{capsule_network_forward.4} parent=5 // pred_check
      %p1719 = pneg %p1718
    $region50: #{capsule_network_forward.4} parent=5 // pred_check_branch
      %1721 = sbr.rel (%p1719) target = $region52
    $region51: #{capsule_network_forward.4} parent=5 // pred_region
      %s1722 = ssub.s32 %s9, 2
      // Predicated region
      $region53: #{capsule_network_forward.4} parent=51 // pred_check
        %p1723 = pneg %p125
      $region54: #{capsule_network_forward.4} parent=51 // pred_check_branch
        %1725 = sbr.rel (%p1723) target = $region56
      $region55: #{capsule_network_forward.4} parent=51 // pred_region
        %s1726 = smul.u32 50, %s20
        %p1727 = scmp.lt.s32.totalorder %s1726, 99
        %s1728 = scalar_select %p1727, %s1726, 99
        %s1729 = smul.addr %s1728, 2
        %s1730 = smul.addr %s1729, 4
        %s1731 = scalar_lea.vmem %s3, %s1730
      $region56: #{capsule_network_forward.4} parent=51 // pred_fallthru
        _
    $region52: #{capsule_network_forward.4} parent=5 // pred_fallthru
      _
  $region6: #{capsule_network_forward.4} parent=0 // loop_footer
    %s13 = sadd.s32 1, %s9
  $region7: #{capsule_network_forward.4} parent=0 // loop_footer_branch
    %8 = sbr.rel target = $region3
  $region8: #{capsule_network_forward.4} parent=0 // loop_exit
    _

// kernel: capsule_network_forward.5
$region0: #{capsule_network_forward.5}
  #allocation0 [shape = 'u32[]', space=smem, size = 0x4, offset = 0x4, fixed_abs, tag = 'smem constant byte address 0x4 - core index']
  #allocation1 [shape = 'u32[72,128]{1,0:T(1,128)}', space=vmem, size = 0x9000, scoped, tag = 'internal scratch']
  %s0 = inlined_call_operand.vmem [shape: bf16[72,20736], index: 0, kind: input, shape index: {}]
  %s1 = inlined_call_operand.vmem [shape: bf16[20736,256], index: 1, kind: input, shape index: {}]
  %s2 = inlined_call_operand.vmem [shape: f32[1,256], index: 2, kind: input, shape index: {}]
  %s3 = inlined_call_operand.vmem [shape: f32[72,256], index: 3, kind: output, shape index: {}]
  %s4 = sld [smem:[#allocation0]]
  $region83: #{capsule_network_forward.5} parent=0
    _
  %s6 = ssub.s32 1, %s4
  %s7 = scalar_select 0, %s6, %s4
  $region1: #{capsule_network_forward.5} parent=0
    #allocation2 [shape = 'u8[331776]{0}', space=vmem, size = 0x51000, scoped, tag = 'input window, operand 0']
    loop: start=0, step=1, limit=20
    $region2: #{capsule_network_forward.5} parent=1 // loop_pre_header
      _
    $region3: #{capsule_network_forward.5} parent=1 // loop_header
      %s9 = sphi 0, %s13
      %p10 = scmp.ge.s32.totalorder %s9, 20
      %s16 = sphi 0, %s28
      %s17 = sphi 0, %s24
      %s18 = sphi 0, %s16
      %s19 = sphi 0, %s17
      %s20 = sphi 0, %s18
      %s21 = sphi 0, %s19
      %s33 = sphi 0, %s35
      %s36 = sphi 0, %s33
      %s37 = sphi 0, %s36
      %s53 = sphi 0, %s37
      %s59 = sphi 0, %s61
      %s62 = sphi 0, %s59
      %s63 = sphi 0, %s62
      %s79 = sphi 0, %s63
      %s83 = sphi 0, %s83
      %s85 = sphi 0, %s83
      %s86 = sphi 0, %s85
      %s100 = sphi 0, %s86
      %s106 = sphi 0, %s108
      %s109 = sphi 0, %s106
      %s110 = sphi 0, %s109
      %s126 = sphi 0, %s110
    $region4: #{capsule_network_forward.5} parent=1 // loop_header_branch
      %12 = sbr.rel (%p10) target = $region8
    $region5: #{capsule_network_forward.5} parent=1 // loop_body
      %s14 = ssub.s32 %s9, 1
      %s15 = ssub.s32 %s9, 2
      %s22 = sadd.s32 1, %s17
      %p23 = scmp.ge.s32.totalorder %s22, 18
      %s24 = scalar_select %p23, 0, %s22
      %s25 = sadd.s32 1, %s16
      %s26 = scalar_select %p23, %s25, %s16
      %p27 = scmp.ge.s32.totalorder %s26, 1
      %s28 = scalar_select %p27, 0, %s26
      %s29 = ssub.s32 %s16, %s28
      %s30 = ssub.s32 %s17, %s24
      %s31 = sor.u32 %s29, %s30
      %p32 = scmp.eq.s32.totalorder %s31, 0
      %s34 = sadd.s32 %s33, 1
      %s35 = scalar_select %p32, %s33, %s34
      %p38 = pneg %p32
      %p39 = scmp.eq.s32.totalorder %s9, 17
      %p40 = por %p38, %p39
      %p41 = scmp.ne.s32.totalorder %s33, %s36
      %p42 = scmp.eq.s32.totalorder %s9, 0
      %p43 = por %p41, %p42
      %p44 = scmp.ne.s32.totalorder %s33, %s36
      %p45 = scmp.eq.s32.totalorder %s14, 17
      %p46 = por %p44, %p45
      %p47 = scmp.ne.s32.totalorder %s36, %s37
      %p48 = scmp.eq.s32.totalorder %s14, 0
      %p49 = por %p47, %p48
      %p50 = scmp.ne.s32.totalorder %s36, %s37
      %p51 = scmp.eq.s32.totalorder %s15, 17
      %p52 = por %p50, %p51
      %p54 = scmp.ne.s32.totalorder %s37, %s53
      %p55 = scmp.eq.s32.totalorder %s15, 0
      %p56 = por %p54, %p55
      %s57 = ssub.s32 %s17, %s24
      %p58 = scmp.eq.s32.totalorder %s57, 0
      %s60 = sadd.s32 %s59, 1
      %s61 = scalar_select %p58, %s59, %s60
      %p64 = pneg %p58
      %p65 = scmp.eq.s32.totalorder %s9, 17
      %p66 = por %p64, %p65
      %p67 = scmp.ne.s32.totalorder %s59, %s62
      %p68 = scmp.eq.s32.totalorder %s9, 0
      %p69 = por %p67, %p68
      %p70 = scmp.ne.s32.totalorder %s59, %s62
      %p71 = scmp.eq.s32.totalorder %s14, 17
      %p72 = por %p70, %p71
      %p73 = scmp.ne.s32.totalorder %s62, %s63
      %p74 = scmp.eq.s32.totalorder %s14, 0
      %p75 = por %p73, %p74
      %p76 = scmp.ne.s32.totalorder %s62, %s63
      %p77 = scmp.eq.s32.totalorder %s15, 17
      %p78 = por %p76, %p77
      %p80 = scmp.ne.s32.totalorder %s63, %s79
      %p81 = scmp.eq.s32.totalorder %s15, 0
      %p82 = por %p80, %p81
      %s84 = sadd.s32 %s83, 1
      %p87 = scmp.eq.s32.totalorder %s9, 17
      %p88 = scmp.ne.s32.totalorder %s83, %s85
      %p89 = scmp.eq.s32.totalorder %s9, 0
      %p90 = por %p88, %p89
      %p91 = scmp.ne.s32.totalorder %s83, %s85
      %p92 = scmp.eq.s32.totalorder %s14, 17
      %p93 = por %p91, %p92
      %p94 = scmp.ne.s32.totalorder %s85, %s86
      %p95 = scmp.eq.s32.totalorder %s14, 0
      %p96 = por %p94, %p95
      %p97 = scmp.ne.s32.totalorder %s85, %s86
      %p98 = scmp.eq.s32.totalorder %s15, 17
      %p99 = por %p97, %p98
      %p101 = scmp.ne.s32.totalorder %s86, %s100
      %p102 = scmp.eq.s32.totalorder %s15, 0
      %p103 = por %p101, %p102
      %s104 = ssub.s32 %s16, %s28
      %p105 = scmp.eq.s32.totalorder %s104, 0
      %s107 = sadd.s32 %s106, 1
      %s108 = scalar_select %p105, %s106, %s107
      %p111 = pneg %p105
      %p112 = scmp.eq.s32.totalorder %s9, 17
      %p113 = por %p111, %p112
      %p114 = scmp.ne.s32.totalorder %s106, %s109
      %p115 = scmp.eq.s32.totalorder %s9, 0
      %p116 = por %p114, %p115
      %p117 = scmp.ne.s32.totalorder %s106, %s109
      %p118 = scmp.eq.s32.totalorder %s14, 17
      %p119 = por %p117, %p118
      %p120 = scmp.ne.s32.totalorder %s109, %s110
      %p121 = scmp.eq.s32.totalorder %s14, 0
      %p122 = por %p120, %p121
      %p123 = scmp.ne.s32.totalorder %s109, %s110
      %p124 = scmp.eq.s32.totalorder %s15, 17
      %p125 = por %p123, %p124
      %p127 = scmp.ne.s32.totalorder %s110, %s126
      %p128 = scmp.eq.s32.totalorder %s15, 0
      %p129 = por %p127, %p128
      %p130 = scmp.le.s32.totalorder 1, %s9
      %p131 = scmp.lt.s32.totalorder %s9, 19
      %p132 = pnand %p130, %p131
      %p133 = pneg %p132
      // Predicated region
      $region9: #{capsule_network_forward.5} parent=5 // pred_check
        _
      $region10: #{capsule_network_forward.5} parent=5 // pred_check_branch
        %135 = sbr.rel (%p132) target = $region12
      $region11: #{capsule_network_forward.5} parent=5 // pred_region
        %s136 = ssub.s32 %s9, 1
        // Predicated region
        $region13: #{capsule_network_forward.5} parent=11 // pred_check
          %p137 = pneg %p96
        $region14: #{capsule_network_forward.5} parent=11 // pred_check_branch
          %139 = sbr.rel (%p137) target = $region16
        $region15: #{capsule_network_forward.5} parent=11 // pred_region
          _
        $region16: #{capsule_network_forward.5} parent=11 // pred_fallthru
          _
      $region12: #{capsule_network_forward.5} parent=5 // pred_fallthru
        _
      %p140 = scmp.lt.s32.totalorder %s9, 18
      // Predicated region
      $region17: #{capsule_network_forward.5} parent=5 // pred_check
        %p141 = pneg %p140
      $region18: #{capsule_network_forward.5} parent=5 // pred_check_branch
        %143 = sbr.rel (%p141) target = $region20
      $region19: #{capsule_network_forward.5} parent=5 // pred_region
        // Predicated region
        $region21: #{capsule_network_forward.5} parent=19 // pred_check
          %p144 = pneg %p43
        $region22: #{capsule_network_forward.5} parent=19 // pred_check_branch
          %146 = sbr.rel (%p144) target = $region24
        $region23: #{capsule_network_forward.5} parent=19 // pred_region
          %s147 = sand.u32 %s33, 1
          %s148 = sand.u32 %s33, 1
          %s149 = smul.addr %s148, 324
          %s150 = scalar_lea.vmem [#allocation2], %s149
          %s151 = smul.u32 9, %s16
          %s152 = smul.u32 9, %s17
          %s153 = smul.addr %s151, 162
          %s154 = sadd.s32 %s152, %s153
          %s155 = smul.addr %s154, 4
          %s156 = scalar_lea.vmem %s0, %s155
          // Predicated region
          $region25: #{capsule_network_forward.5} parent=23 // pred_check
            _
          $region26: #{capsule_network_forward.5} parent=23 // pred_check_branch
            %158 = sbr.rel (0) target = $region28
          $region27: #{capsule_network_forward.5} parent=23 // pred_region
            // Predicated region
            $region29: #{capsule_network_forward.5} parent=27 // pred_check
              _
            $region30: #{capsule_network_forward.5} parent=27 // pred_check_branch
              %160 = sbr.rel (0) target = $region32
            $region31: #{capsule_network_forward.5} parent=27 // pred_region
              %s161 = scalar_lea.vmem %s156, 32
              %s162 = scalar_lea.vmem %s150, 32 [#allocation2]
              loop: start=0, step=1, limit=1
              $region33: #{capsule_network_forward.5} parent=31 // loop_pre_header
                _
              $region34: #{capsule_network_forward.5} parent=31 // loop_header
                %s164 = sphi 0, %s168
                %p165 = scmp.ge.s32.totalorder %s164, 1
                %s169 = sphi %s156, %s156
                %s170 = sphi %s150, %s150
              $region35: #{capsule_network_forward.5} parent=31 // loop_header_branch
                %167 = sbr.rel (%p165) target = $region39
              $region36: #{capsule_network_forward.5} parent=31 // loop_body
                %v171 = vld [vmem:[%s169] sm:$0xff]
                %172 = vst [vmem:[%s170] sm:$0xff] %v171
                %v173 = vld [vmem:[%s169 + $0x8] sm:$0xff]
                %174 = vst [vmem:[%s170 + $0x8] sm:$0xff] %v173
                %v175 = vld [vmem:[%s169 + $0x10] sm:$0xff]
                %176 = vst [vmem:[%s170 + $0x10] sm:$0xff] %v175
                %v177 = vld [vmem:[%s169 + $0x18] sm:$0xff]
                %178 = vst [vmem:[%s170 + $0x18] sm:$0xff] %v177
                %v179 = vld [vmem:[%s169 + $0x288] sm:$0xff]
                %180 = vst [vmem:[%s170 + $0x24] sm:$0xff] %v179
                %v181 = vld [vmem:[%s169 + $0x290] sm:$0xff]
                %182 = vst [vmem:[%s170 + $0x2c] sm:$0xff] %v181
                %v183 = vld [vmem:[%s169 + $0x298] sm:$0xff]
                %184 = vst [vmem:[%s170 + $0x34] sm:$0xff] %v183
                %v185 = vld [vmem:[%s169 + $0x2a0] sm:$0xff]
                %186 = vst [vmem:[%s170 + $0x3c] sm:$0xff] %v185
                %v187 = vld [vmem:[%s169 + $0x510] sm:$0xff]
                %188 = vst [vmem:[%s170 + $0x48] sm:$0xff] %v187
                %v189 = vld [vmem:[%s169 + $0x518] sm:$0xff]
                %190 = vst [vmem:[%s170 + $0x50] sm:$0xff] %v189
                %v191 = vld [vmem:[%s169 + $0x520] sm:$0xff]
                %192 = vst [vmem:[%s170 + $0x58] sm:$0xff] %v191
                %v193 = vld [vmem:[%s169 + $0x528] sm:$0xff]
                %194 = vst [vmem:[%s170 + $0x60] sm:$0xff] %v193
                %v195 = vld [vmem:[%s169 + $0x798] sm:$0xff]
                %196 = vst [vmem:[%s170 + $0x6c] sm:$0xff] %v195
                %v197 = vld [vmem:[%s169 + $0x7a0] sm:$0xff]
                %198 = vst [vmem:[%s170 + $0x74] sm:$0xff] %v197
                %v199 = vld [vmem:[%s169 + $0x7a8] sm:$0xff]
                %200 = vst [vmem:[%s170 + $0x7c] sm:$0xff] %v199
                %v201 = vld [vmem:[%s169 + $0x7b0] sm:$0xff]
                %202 = vst [vmem:[%s170 + $0x84] sm:$0xff] %v201
                %v203 = vld [vmem:[%s169 + $0xa20] sm:$0xff]
                %204 = vst [vmem:[%s170 + $0x90] sm:$0xff] %v203
                %v205 = vld [vmem:[%s169 + $0xa28] sm:$0xff]
                %206 = vst [vmem:[%s170 + $0x98] sm:$0xff] %v205
                %v207 = vld [vmem:[%s169 + $0xa30] sm:$0xff]
                %208 = vst [vmem:[%s170 + $0xa0] sm:$0xff] %v207
                %v209 = vld [vmem:[%s169 + $0xa38] sm:$0xff]
                %210 = vst [vmem:[%s170 + $0xa8] sm:$0xff] %v209
                %v211 = vld [vmem:[%s169 + $0xca8] sm:$0xff]
                %212 = vst [vmem:[%s170 + $0xb4] sm:$0xff] %v211
                %v213 = vld [vmem:[%s169 + $0xcb0] sm:$0xff]
                %214 = vst [vmem:[%s170 + $0xbc] sm:$0xff] %v213
                %v215 = vld [vmem:[%s169 + $0xcb8] sm:$0xff]
                %216 = vst [vmem:[%s170 + $0xc4] sm:$0xff] %v215
                %v217 = vld [vmem:[%s169 + $0xcc0] sm:$0xff]
                %218 = vst [vmem:[%s170 + $0xcc] sm:$0xff] %v217
                %v219 = vld [vmem:[%s169 + $0xf30] sm:$0xff]
                %220 = vst [vmem:[%s170 + $0xd8] sm:$0xff] %v219
                %v221 = vld [vmem:[%s169 + $0xf38] sm:$0xff]
                %222 = vst [vmem:[%s170 + $0xe0] sm:$0xff] %v221
                %v223 = vld [vmem:[%s169 + $0xf40] sm:$0xff]
                %224 = vst [vmem:[%s170 + $0xe8] sm:$0xff] %v223
                %v225 = vld [vmem:[%s169 + $0xf48] sm:$0xff]
                %226 = vst [vmem:[%s170 + $0xf0] sm:$0xff] %v225
                %v227 = vld [vmem:[%s169 + $0x11b8] sm:$0xff]
                %228 = vst [vmem:[%s170 + $0xfc] sm:$0xff] %v227
                %v229 = vld [vmem:[%s169 + $0x11c0] sm:$0xff]
                %230 = vst [vmem:[%s170 + $0x104] sm:$0xff] %v229
                %v231 = vld [vmem:[%s169 + $0x11c8] sm:$0xff]
                %232 = vst [vmem:[%s170 + $0x10c] sm:$0xff] %v231
                %v233 = vld [vmem:[%s169 + $0x11d0] sm:$0xff]
                %234 = vst [vmem:[%s170 + $0x114] sm:$0xff] %v233
                %v235 = vld [vmem:[%s169 + $0x1440] sm:$0xff]
                %236 = vst [vmem:[%s170 + $0x120] sm:$0xff] %v235
                %v237 = vld [vmem:[%s169 + $0x1448] sm:$0xff]
                %238 = vst [vmem:[%s170 + $0x128] sm:$0xff] %v237
                %v239 = vld [vmem:[%s169 + $0x1450] sm:$0xff]
                %240 = vst [vmem:[%s170 + $0x130] sm:$0xff] %v239
                %v241 = vld [vmem:[%s169 + $0x1458] sm:$0xff]
                %242 = vst [vmem:[%s170 + $0x138] sm:$0xff] %v241
              $region37: #{capsule_network_forward.5} parent=31 // loop_footer
                %s168 = sadd.s32 1, %s164
              $region38: #{capsule_network_forward.5} parent=31 // loop_footer_branch
                %163 = sbr.rel target = $region34
              $region39: #{capsule_network_forward.5} parent=31 // loop_exit
                _
              %s244 = ssub.s32 16, 1
              loop: start=0, step=1, limit=1
              $region40: #{capsule_network_forward.5} parent=31 // loop_pre_header
                _
              $region41: #{capsule_network_forward.5} parent=31 // loop_header
                %s246 = sphi 0, %s250
                %p247 = scmp.ge.s32.totalorder %s246, 1
                %s251 = sphi %s161, %s161
                %s252 = sphi %s162, %s162
              $region42: #{capsule_network_forward.5} parent=31 // loop_header_branch
                %249 = sbr.rel (%p247) target = $region46
              $region43: #{capsule_network_forward.5} parent=31 // loop_body
                %v253 = vld [vmem:[%s251] sm:%s244]
                %254 = vst [vmem:[%s252] sm:%s244] %v253
                %v255 = vld [vmem:[%s251 + $0x288] sm:%s244]
                %256 = vst [vmem:[%s252 + $0x24] sm:%s244] %v255
                %v257 = vld [vmem:[%s251 + $0x510] sm:%s244]
                %258 = vst [vmem:[%s252 + $0x48] sm:%s244] %v257
                %v259 = vld [vmem:[%s251 + $0x798] sm:%s244]
                %260 = vst [vmem:[%s252 + $0x6c] sm:%s244] %v259
                %v261 = vld [vmem:[%s251 + $0xa20] sm:%s244]
                %262 = vst [vmem:[%s252 + $0x90] sm:%s244] %v261
                %v263 = vld [vmem:[%s251 + $0xca8] sm:%s244]
                %264 = vst [vmem:[%s252 + $0xb4] sm:%s244] %v263
                %v265 = vld [vmem:[%s251 + $0xf30] sm:%s244]
                %266 = vst [vmem:[%s252 + $0xd8] sm:%s244] %v265
                %v267 = vld [vmem:[%s251 + $0x11b8] sm:%s244]
                %268 = vst [vmem:[%s252 + $0xfc] sm:%s244] %v267
                %v269 = vld [vmem:[%s251 + $0x1440] sm:%s244]
                %270 = vst [vmem:[%s252 + $0x120] sm:%s244] %v269
              $region44: #{capsule_network_forward.5} parent=31 // loop_footer
                %s250 = sadd.s32 1, %s246
              $region45: #{capsule_network_forward.5} parent=31 // loop_footer_branch
                %245 = sbr.rel target = $region41
              $region46: #{capsule_network_forward.5} parent=31 // loop_exit
                _
            $region32: #{capsule_network_forward.5} parent=27 // pred_fallthru
              _
          $region28: #{capsule_network_forward.5} parent=23 // pred_fallthru
            _
          %271 = vnop
        $region24: #{capsule_network_forward.5} parent=19 // pred_fallthru
          _
        // Predicated region
        $region47: #{capsule_network_forward.5} parent=19 // pred_check
          %p272 = pneg %p69
        $region48: #{capsule_network_forward.5} parent=19 // pred_check_branch
          %274 = sbr.rel (%p272) target = $region50
        $region49: #{capsule_network_forward.5} parent=19 // pred_region
          %s275 = smul.u32 144, %s17
          %p276 = scmp.lt.s32.totalorder %s275, 2591
          %s277 = scalar_select %p276, %s275, 2591
          %s278 = smul.addr %s277, 2
          %s279 = smul.addr %s278, 4
          %s280 = scalar_lea.vmem %s1, %s279
          %s281 = smul.u32 144, %s17
        $region50: #{capsule_network_forward.5} parent=19 // pred_fallthru
          _
      $region20: #{capsule_network_forward.5} parent=5 // pred_fallthru
        _
      %p282 = scmp.le.s32.totalorder 1, %s9
      %p283 = scmp.lt.s32.totalorder %s9, 19
      %p284 = pnand %p282, %p283
      %p285 = pneg %p284
      // Predicated region
      $region51: #{capsule_network_forward.5} parent=5 // pred_check
        _
      $region52: #{capsule_network_forward.5} parent=5 // pred_check_branch
        %287 = sbr.rel (%p284) target = $region54
      $region53: #{capsule_network_forward.5} parent=5 // pred_region
        %s288 = ssub.s32 %s9, 1
        %s289 = sand.u32 %s36, 1
        %s290 = sand.u32 %s36, 1
        %s291 = smul.addr %s290, 324
        %s292 = scalar_lea.vmem [#allocation2], %s291
        // Predicated region
        $region55: #{capsule_network_forward.5} parent=53 // pred_check
          %p293 = pneg %p49
        $region56: #{capsule_network_forward.5} parent=53 // pred_check_branch
          %295 = sbr.rel (%p293) target = $region58
        $region57: #{capsule_network_forward.5} parent=53 // pred_region
          _
        $region58: #{capsule_network_forward.5} parent=53 // pred_fallthru
          _
        %s296 = sand.u32 %s36, 1
        %s297 = sand.u32 %s36, 1
        %s298 = smul.addr %s297, 324
        %s299 = scalar_lea.vmem [#allocation2], %s298
        %p300 = pneg %p49
        %p301 = pneg %p46
        %s302 = smul.u32 144, %s19
        %p303 = scmp.lt.s32.totalorder %s302, 2591
        %s304 = scalar_select %p303, %s302, 2591
        %s305 = smul.addr %s304, 2
        %s306 = smul.addr %s305, 4
        %s307 = scalar_lea.vmem %s1, %s306
        %p308 = pneg %p75
        %p309 = pneg %p72
        %p310 = pneg %p96
        %p311 = pneg %p93
        %p312 = pneg %p122
        %p313 = pneg %p119
        %s314 = smul.u32 9, %s18
        %p315 = scmp.lt.s32.totalorder %s314, 8
        %s316 = scalar_select %p315, %s314, 8
        %s317 = smul.addr %s316, 2
        %s318 = smul.addr %s317, 8
        %s319 = scalar_lea.vmem %s3, %s318
        %s320 = smul.u32 9, %s18
        %s321 = smul.u32 9, %s19
        %s322 = smul.u32 144, %s19
        %p323 = scmp.lt.s32.totalorder %s322, 2591
        %s324 = scalar_select %p323, %s322, 2591
        %s325 = smul.addr %s324, 2
        %s326 = smul.addr %s325, 4
        %s327 = scalar_lea.vmem %s1, %s326
        %s328 = smul.u32 144, %s19
        %s329 = smul.u32 9, %s18
        %p330 = scmp.lt.s32.totalorder %s329, 8
        %s331 = scalar_select %p330, %s329, 8
        %s332 = smul.addr %s331, 2
        %s333 = smul.addr %s332, 8
        %s334 = scalar_lea.vmem %s3, %s333
        %s335 = smul.u32 9, %s18
        %v336 = vld [vmem:[%s292] sm:$0xff]
        %v337 = vld [vmem:[%s292 + $0x8] sm:$0xff]
        %v338 = vld [vmem:[%s292 + $0x10] sm:$0xff]
        %v339 = vld [vmem:[%s292 + $0x18] sm:$0xff]
        %v340 = vld [vmem:[%s292 + $0x20] sm:$0xf]
        %v341 = vld [vmem:[%s292 + $0x24] sm:$0xff]
        %v342 = vld [vmem:[%s292 + $0x2c] sm:$0xff]
        %v343 = vld [vmem:[%s292 + $0x34] sm:$0xff]
        %v344 = vld [vmem:[%s292 + $0x3c] sm:$0xff]
        %v345 = vld [vmem:[%s292 + $0x44] sm:$0xf]
        %v346 = vld [vmem:[%s292 + $0x48] sm:$0xff]
        %v347 = vld [vmem:[%s292 + $0x50] sm:$0xff]
        %v348 = vld [vmem:[%s292 + $0x58] sm:$0xff]
        %v349 = vld [vmem:[%s292 + $0x60] sm:$0xff]
        %v350 = vld [vmem:[%s292 + $0x68] sm:$0xf]
        %v351 = vld [vmem:[%s292 + $0x6c] sm:$0xff]
        %v352 = vld [vmem:[%s292 + $0x74] sm:$0xff]
        %v353 = vld [vmem:[%s292 + $0x7c] sm:$0xff]
        %v354 = vld [vmem:[%s292 + $0x84] sm:$0xff]
        %v355 = vld [vmem:[%s292 + $0x8c] sm:$0xf]
        %v356 = vld [vmem:[%s292 + $0x90] sm:$0xff]
        %v357 = vld [vmem:[%s292 + $0x98] sm:$0xff]
        %v358 = vld [vmem:[%s292 + $0xa0] sm:$0xff]
        %v359 = vld [vmem:[%s292 + $0xa8] sm:$0xff]
        %v360 = vld [vmem:[%s292 + $0xb0] sm:$0xf]
        %v361 = vld [vmem:[%s292 + $0xb4] sm:$0xff]
        %v362 = vld [vmem:[%s292 + $0xbc] sm:$0xff]
        %v363 = vld [vmem:[%s292 + $0xc4] sm:$0xff]
        %v364 = vld [vmem:[%s292 + $0xcc] sm:$0xff]
        %v365 = vld [vmem:[%s292 + $0xd4] sm:$0xf]
        %v366 = vld [vmem:[%s292 + $0xd8] sm:$0xff]
        %v367 = vld [vmem:[%s292 + $0xe0] sm:$0xff]
        %v368 = vld [vmem:[%s292 + $0xe8] sm:$0xff]
        %v369 = vld [vmem:[%s292 + $0xf0] sm:$0xff]
        %v370 = vld [vmem:[%s292 + $0xf8] sm:$0xf]
        %v371 = vld [vmem:[%s292 + $0xfc] sm:$0xff]
        %v372 = vld [vmem:[%s292 + $0x104] sm:$0xff]
        %v373 = vld [vmem:[%s292 + $0x10c] sm:$0xff]
        %v374 = vld [vmem:[%s292 + $0x114] sm:$0xff]
        %v375 = vld [vmem:[%s292 + $0x11c] sm:$0xf]
        %v376 = vld [vmem:[%s292 + $0x120] sm:$0xff]
        %v377 = vld [vmem:[%s292 + $0x128] sm:$0xff]
        %v378 = vld [vmem:[%s292 + $0x130] sm:$0xff]
        %v379 = vld [vmem:[%s292 + $0x138] sm:$0xff]
        %v380 = vld [vmem:[%s292 + $0x140] sm:$0xf]
        %v381 = vld [vmem:[%s327] sm:$0xff]
        %v382 = vld [vmem:[%s327 + $0x8] sm:$0xff]
        %v383 = vld [vmem:[%s327 + $0x10] sm:$0xff]
        %v384 = vld [vmem:[%s327 + $0x18] sm:$0xff]
        %v385 = vld [vmem:[%s327 + $0x20] sm:$0xff]
        %v386 = vld [vmem:[%s327 + $0x28] sm:$0xff]
        %v387 = vld [vmem:[%s327 + $0x30] sm:$0xff]
        %v388 = vld [vmem:[%s327 + $0x38] sm:$0xff]
        %v389 = vld [vmem:[%s327 + $0x40] sm:$0xff]
        %v390 = vld [vmem:[%s327 + $0x48] sm:$0xff]
        %v391 = vld [vmem:[%s327 + $0x50] sm:$0xff]
        %v392 = vld [vmem:[%s327 + $0x58] sm:$0xff]
        %v393 = vld [vmem:[%s327 + $0x60] sm:$0xff]
        %v394 = vld [vmem:[%s327 + $0x68] sm:$0xff]
        %v395 = vld [vmem:[%s327 + $0x70] sm:$0xff]
        %v396 = vld [vmem:[%s327 + $0x78] sm:$0xff]
        %v397 = vld [vmem:[%s327 + $0x80] sm:$0xff]
        %v398 = vld [vmem:[%s327 + $0x88] sm:$0xff]
        %v399 = vld [vmem:[%s327 + $0x90] sm:$0xff]
        %v400 = vld [vmem:[%s327 + $0x98] sm:$0xff]
        %v401 = vld [vmem:[%s327 + $0xa0] sm:$0xff]
        %v402 = vld [vmem:[%s327 + $0xa8] sm:$0xff]
        %v403 = vld [vmem:[%s327 + $0xb0] sm:$0xff]
        %v404 = vld [vmem:[%s327 + $0xb8] sm:$0xff]
        %v405 = vld [vmem:[%s327 + $0xc0] sm:$0xff]
        %v406 = vld [vmem:[%s327 + $0xc8] sm:$0xff]
        %v407 = vld [vmem:[%s327 + $0xd0] sm:$0xff]
        %v408 = vld [vmem:[%s327 + $0xd8] sm:$0xff]
        %v409 = vld [vmem:[%s327 + $0xe0] sm:$0xff]
        %v410 = vld [vmem:[%s327 + $0xe8] sm:$0xff]
        %v411 = vld [vmem:[%s327 + $0xf0] sm:$0xff]
        %v412 = vld [vmem:[%s327 + $0xf8] sm:$0xff]
        %v413 = vld [vmem:[%s327 + $0x100] sm:$0xff]
        %v414 = vld [vmem:[%s327 + $0x108] sm:$0xff]
        %v415 = vld [vmem:[%s327 + $0x110] sm:$0xff]
        %v416 = vld [vmem:[%s327 + $0x118] sm:$0xff]
        %v417 = vld [vmem:[%s327 + $0x120] sm:$0xff]
        %v418 = vld [vmem:[%s327 + $0x128] sm:$0xff]
        %v419 = vld [vmem:[%s327 + $0x130] sm:$0xff]
        %v420 = vld [vmem:[%s327 + $0x138] sm:$0xff]
        %v421 = vld [vmem:[%s327 + $0x140] sm:$0xff]
        %v422 = vld [vmem:[%s327 + $0x148] sm:$0xff]
        %v423 = vld [vmem:[%s327 + $0x150] sm:$0xff]
        %v424 = vld [vmem:[%s327 + $0x158] sm:$0xff]
        %v425 = vld [vmem:[%s327 + $0x160] sm:$0xff]
        %v426 = vld [vmem:[%s327 + $0x168] sm:$0xff]
        %v427 = vld [vmem:[%s327 + $0x170] sm:$0xff]
        %v428 = vld [vmem:[%s327 + $0x178] sm:$0xff]
        %v429 = vld [vmem:[%s327 + $0x180] sm:$0xff]
        %v430 = vld [vmem:[%s327 + $0x188] sm:$0xff]
        %v431 = vld [vmem:[%s327 + $0x190] sm:$0xff]
        %v432 = vld [vmem:[%s327 + $0x198] sm:$0xff]
        %v433 = vld [vmem:[%s327 + $0x1a0] sm:$0xff]
        %v434 = vld [vmem:[%s327 + $0x1a8] sm:$0xff]
        %v435 = vld [vmem:[%s327 + $0x1b0] sm:$0xff]
        %v436 = vld [vmem:[%s327 + $0x1b8] sm:$0xff]
        %v437 = vld [vmem:[%s327 + $0x1c0] sm:$0xff]
        %v438 = vld [vmem:[%s327 + $0x1c8] sm:$0xff]
        %v439 = vld [vmem:[%s327 + $0x1d0] sm:$0xff]
        %v440 = vld [vmem:[%s327 + $0x1d8] sm:$0xff]
        %v441 = vld [vmem:[%s327 + $0x1e0] sm:$0xff]
        %v442 = vld [vmem:[%s327 + $0x1e8] sm:$0xff]
        %v443 = vld [vmem:[%s327 + $0x1f0] sm:$0xff]
        %v444 = vld [vmem:[%s327 + $0x1f8] sm:$0xff]
        %v445 = vld [vmem:[%s327 + $0x200] sm:$0xff]
        %v446 = vld [vmem:[%s327 + $0x208] sm:$0xff]
        %v447 = vld [vmem:[%s327 + $0x210] sm:$0xff]
        %v448 = vld [vmem:[%s327 + $0x218] sm:$0xff]
        %v449 = vld [vmem:[%s327 + $0x220] sm:$0xff]
        %v450 = vld [vmem:[%s327 + $0x228] sm:$0xff]
        %v451 = vld [vmem:[%s327 + $0x230] sm:$0xff]
        %v452 = vld [vmem:[%s327 + $0x238] sm:$0xff]
        %v453 = vld [vmem:[%s327 + $0x240] sm:$0xff]
        %v454 = vld [vmem:[%s327 + $0x248] sm:$0xff]
        %v455 = vld [vmem:[%s327 + $0x250] sm:$0xff]
        %v456 = vld [vmem:[%s327 + $0x258] sm:$0xff]
        %v457 = vld [vmem:[%s327 + $0x260] sm:$0xff]
        %v458 = vld [vmem:[%s327 + $0x268] sm:$0xff]
        %v459 = vld [vmem:[%s327 + $0x270] sm:$0xff]
        %v460 = vld [vmem:[%s327 + $0x278] sm:$0xff]
        %v461 = vld [vmem:[%s327 + $0x280] sm:$0xff]
        %v462 = vld [vmem:[%s327 + $0x288] sm:$0xff]
        %v463 = vld [vmem:[%s327 + $0x290] sm:$0xff]
        %v464 = vld [vmem:[%s327 + $0x298] sm:$0xff]
        %v465 = vld [vmem:[%s327 + $0x2a0] sm:$0xff]
        %v466 = vld [vmem:[%s327 + $0x2a8] sm:$0xff]
        %v467 = vld [vmem:[%s327 + $0x2b0] sm:$0xff]
        %v468 = vld [vmem:[%s327 + $0x2b8] sm:$0xff]
        %v469 = vld [vmem:[%s327 + $0x2c0] sm:$0xff]
        %v470 = vld [vmem:[%s327 + $0x2c8] sm:$0xff]
        %v471 = vld [vmem:[%s327 + $0x2d0] sm:$0xff]
        %v472 = vld [vmem:[%s327 + $0x2d8] sm:$0xff]
        %v473 = vld [vmem:[%s327 + $0x2e0] sm:$0xff]
        %v474 = vld [vmem:[%s327 + $0x2e8] sm:$0xff]
        %v475 = vld [vmem:[%s327 + $0x2f0] sm:$0xff]
        %v476 = vld [vmem:[%s327 + $0x2f8] sm:$0xff]
        %v477 = vld [vmem:[%s327 + $0x300] sm:$0xff]
        %v478 = vld [vmem:[%s327 + $0x308] sm:$0xff]
        %v479 = vld [vmem:[%s327 + $0x310] sm:$0xff]
        %v480 = vld [vmem:[%s327 + $0x318] sm:$0xff]
        %v481 = vld [vmem:[%s327 + $0x320] sm:$0xff]
        %v482 = vld [vmem:[%s327 + $0x328] sm:$0xff]
        %v483 = vld [vmem:[%s327 + $0x330] sm:$0xff]
        %v484 = vld [vmem:[%s327 + $0x338] sm:$0xff]
        %v485 = vld [vmem:[%s327 + $0x340] sm:$0xff]
        %v486 = vld [vmem:[%s327 + $0x348] sm:$0xff]
        %v487 = vld [vmem:[%s327 + $0x350] sm:$0xff]
        %v488 = vld [vmem:[%s327 + $0x358] sm:$0xff]
        %v489 = vld [vmem:[%s327 + $0x360] sm:$0xff]
        %v490 = vld [vmem:[%s327 + $0x368] sm:$0xff]
        %v491 = vld [vmem:[%s327 + $0x370] sm:$0xff]
        %v492 = vld [vmem:[%s327 + $0x378] sm:$0xff]
        %v493 = vld [vmem:[%s327 + $0x380] sm:$0xff]
        %v494 = vld [vmem:[%s327 + $0x388] sm:$0xff]
        %v495 = vld [vmem:[%s327 + $0x390] sm:$0xff]
        %v496 = vld [vmem:[%s327 + $0x398] sm:$0xff]
        %v497 = vld [vmem:[%s327 + $0x3a0] sm:$0xff]
        %v498 = vld [vmem:[%s327 + $0x3a8] sm:$0xff]
        %v499 = vld [vmem:[%s327 + $0x3b0] sm:$0xff]
        %v500 = vld [vmem:[%s327 + $0x3b8] sm:$0xff]
        %v501 = vld [vmem:[%s327 + $0x3c0] sm:$0xff]
        %v502 = vld [vmem:[%s327 + $0x3c8] sm:$0xff]
        %v503 = vld [vmem:[%s327 + $0x3d0] sm:$0xff]
        %v504 = vld [vmem:[%s327 + $0x3d8] sm:$0xff]
        %v505 = vld [vmem:[%s327 + $0x3e0] sm:$0xff]
        %v506 = vld [vmem:[%s327 + $0x3e8] sm:$0xff]
        %v507 = vld [vmem:[%s327 + $0x3f0] sm:$0xff]
        %v508 = vld [vmem:[%s327 + $0x3f8] sm:$0xff]
        %v509 = vld [vmem:[%s327 + $0x400] sm:$0xff]
        %v510 = vld [vmem:[%s327 + $0x408] sm:$0xff]
        %v511 = vld [vmem:[%s327 + $0x410] sm:$0xff]
        %v512 = vld [vmem:[%s327 + $0x418] sm:$0xff]
        %v513 = vld [vmem:[%s327 + $0x420] sm:$0xff]
        %v514 = vld [vmem:[%s327 + $0x428] sm:$0xff]
        %v515 = vld [vmem:[%s327 + $0x430] sm:$0xff]
        %v516 = vld [vmem:[%s327 + $0x438] sm:$0xff]
        %v517 = vld [vmem:[%s327 + $0x440] sm:$0xff]
        %v518 = vld [vmem:[%s327 + $0x448] sm:$0xff]
        %v519 = vld [vmem:[%s327 + $0x450] sm:$0xff]
        %v520 = vld [vmem:[%s327 + $0x458] sm:$0xff]
        %v521 = vld [vmem:[%s327 + $0x460] sm:$0xff]
        %v522 = vld [vmem:[%s327 + $0x468] sm:$0xff]
        %v523 = vld [vmem:[%s327 + $0x470] sm:$0xff]
        %v524 = vld [vmem:[%s327 + $0x478] sm:$0xff]
        %v570 = vunpack.c.l.b16 %v336
        %v571 = vunpack.c.h.b16 %v336
        %v572 = vunpack.c.l.b16 %v337
        %v573 = vunpack.c.h.b16 %v337
        %v574 = vunpack.c.l.b16 %v338
        %v575 = vunpack.c.h.b16 %v338
        %v576 = vunpack.c.l.b16 %v339
        %v577 = vunpack.c.h.b16 %v339
        %v578 = vunpack.c.l.b16 %v340
        %v579 = vunpack.c.l.b16 %v341
        %v580 = vunpack.c.h.b16 %v341
        %v581 = vunpack.c.l.b16 %v342
        %v582 = vunpack.c.h.b16 %v342
        %v583 = vunpack.c.l.b16 %v343
        %v584 = vunpack.c.h.b16 %v343
        %v585 = vunpack.c.l.b16 %v344
        %v586 = vunpack.c.h.b16 %v344
        %v587 = vunpack.c.l.b16 %v345
        %v588 = vunpack.c.l.b16 %v346
        %v589 = vunpack.c.h.b16 %v346
        %v590 = vunpack.c.l.b16 %v347
        %v591 = vunpack.c.h.b16 %v347
        %v592 = vunpack.c.l.b16 %v348
        %v593 = vunpack.c.h.b16 %v348
        %v594 = vunpack.c.l.b16 %v349
        %v595 = vunpack.c.h.b16 %v349
        %v596 = vunpack.c.l.b16 %v350
        %v597 = vunpack.c.l.b16 %v351
        %v598 = vunpack.c.h.b16 %v351
        %v599 = vunpack.c.l.b16 %v352
        %v600 = vunpack.c.h.b16 %v352
        %v601 = vunpack.c.l.b16 %v353
        %v602 = vunpack.c.h.b16 %v353
        %v603 = vunpack.c.l.b16 %v354
        %v604 = vunpack.c.h.b16 %v354
        %v605 = vunpack.c.l.b16 %v355
        %v606 = vunpack.c.l.b16 %v356
        %v607 = vunpack.c.h.b16 %v356
        %v608 = vunpack.c.l.b16 %v357
        %v609 = vunpack.c.h.b16 %v357
        %v610 = vunpack.c.l.b16 %v358
        %v611 = vunpack.c.h.b16 %v358
        %v612 = vunpack.c.l.b16 %v359
        %v613 = vunpack.c.h.b16 %v359
        %v614 = vunpack.c.l.b16 %v360
        %v615 = vunpack.c.l.b16 %v361
        %v616 = vunpack.c.h.b16 %v361
        %v617 = vunpack.c.l.b16 %v362
        %v618 = vunpack.c.h.b16 %v362
        %v619 = vunpack.c.l.b16 %v363
        %v620 = vunpack.c.h.b16 %v363
        %v621 = vunpack.c.l.b16 %v364
        %v622 = vunpack.c.h.b16 %v364
        %v623 = vunpack.c.l.b16 %v365
        %v624 = vunpack.c.l.b16 %v366
        %v625 = vunpack.c.h.b16 %v366
        %v626 = vunpack.c.l.b16 %v367
        %v627 = vunpack.c.h.b16 %v367
        %v628 = vunpack.c.l.b16 %v368
        %v629 = vunpack.c.h.b16 %v368
        %v630 = vunpack.c.l.b16 %v369
        %v631 = vunpack.c.h.b16 %v369
        %v632 = vunpack.c.l.b16 %v370
        %v633 = vunpack.c.l.b16 %v371
        %v634 = vunpack.c.h.b16 %v371
        %v635 = vunpack.c.l.b16 %v372
        %v636 = vunpack.c.h.b16 %v372
        %v637 = vunpack.c.l.b16 %v373
        %v638 = vunpack.c.h.b16 %v373
        %v639 = vunpack.c.l.b16 %v374
        %v640 = vunpack.c.h.b16 %v374
        %v641 = vunpack.c.l.b16 %v375
        %v642 = vunpack.c.l.b16 %v376
        %v643 = vunpack.c.h.b16 %v376
        %v644 = vunpack.c.l.b16 %v377
        %v645 = vunpack.c.h.b16 %v377
        %v646 = vunpack.c.l.b16 %v378
        %v647 = vunpack.c.h.b16 %v378
        %v648 = vunpack.c.l.b16 %v379
        %v649 = vunpack.c.h.b16 %v379
        %v650 = vunpack.c.l.b16 %v380
        %v651 = vpack.c.b16 %v579, %v570
        %v652 = vpack.c.b16 %v580, %v571
        %v653 = vpack.c.b16 %v581, %v572
        %v654 = vpack.c.b16 %v582, %v573
        %v655 = vpack.c.b16 %v583, %v574
        %v656 = vpack.c.b16 %v584, %v575
        %v657 = vpack.c.b16 %v585, %v576
        %v658 = vpack.c.b16 %v586, %v577
        %v659 = vpack.c.b16 %v587, %v578
        %v660 = vpack.c.b16 %v597, %v588
        %v661 = vpack.c.b16 %v598, %v589
        %v662 = vpack.c.b16 %v599, %v590
        %v663 = vpack.c.b16 %v600, %v591
        %v664 = vpack.c.b16 %v601, %v592
        %v665 = vpack.c.b16 %v602, %v593
        %v666 = vpack.c.b16 %v603, %v594
        %v667 = vpack.c.b16 %v604, %v595
        %v668 = vpack.c.b16 %v605, %v596
        %v669 = vpack.c.b16 %v615, %v606
        %v670 = vpack.c.b16 %v616, %v607
        %v671 = vpack.c.b16 %v617, %v608
        %v672 = vpack.c.b16 %v618, %v609
        %v673 = vpack.c.b16 %v619, %v610
        %v674 = vpack.c.b16 %v620, %v611
        %v675 = vpack.c.b16 %v621, %v612
        %v676 = vpack.c.b16 %v622, %v613
        %v677 = vpack.c.b16 %v623, %v614
        %v678 = vpack.c.b16 %v633, %v624
        %v679 = vpack.c.b16 %v634, %v625
        %v680 = vpack.c.b16 %v635, %v626
        %v681 = vpack.c.b16 %v636, %v627
        %v682 = vpack.c.b16 %v637, %v628
        %v683 = vpack.c.b16 %v638, %v629
        %v684 = vpack.c.b16 %v639, %v630
        %v685 = vpack.c.b16 %v640, %v631
        %v686 = vpack.c.b16 %v641, %v632
        %v687 = vpack.c.b16 %v642, %v642
        %v688 = vpack.c.b16 %v643, %v643
        %v689 = vpack.c.b16 %v644, %v644
        %v690 = vpack.c.b16 %v645, %v645
        %v691 = vpack.c.b16 %v646, %v646
        %v692 = vpack.c.b16 %v647, %v647
        %v693 = vpack.c.b16 %v648, %v648
        %v694 = vpack.c.b16 %v649, %v649
        %v695 = vpack.c.b16 %v650, %v650
        %v885 = vunpack.c.l.b16 %v381
        %v886 = vunpack.c.h.b16 %v381
        %v887 = vunpack.c.l.b16 %v382
        %v888 = vunpack.c.h.b16 %v382
        %v889 = vunpack.c.l.b16 %v383
        %v890 = vunpack.c.h.b16 %v383
        %v891 = vunpack.c.l.b16 %v384
        %v892 = vunpack.c.h.b16 %v384
        %v893 = vunpack.c.l.b16 %v385
        %v894 = vunpack.c.h.b16 %v385
        %v895 = vunpack.c.l.b16 %v386
        %v896 = vunpack.c.h.b16 %v386
        %v897 = vunpack.c.l.b16 %v387
        %v898 = vunpack.c.h.b16 %v387
        %v899 = vunpack.c.l.b16 %v388
        %v900 = vunpack.c.h.b16 %v388
        %v901 = vunpack.c.l.b16 %v389
        %v902 = vunpack.c.h.b16 %v389
        %v903 = vunpack.c.l.b16 %v390
        %v904 = vunpack.c.h.b16 %v390
        %v905 = vunpack.c.l.b16 %v391
        %v906 = vunpack.c.h.b16 %v391
        %v907 = vunpack.c.l.b16 %v392
        %v908 = vunpack.c.h.b16 %v392
        %v909 = vunpack.c.l.b16 %v393
        %v910 = vunpack.c.h.b16 %v393
        %v911 = vunpack.c.l.b16 %v394
        %v912 = vunpack.c.h.b16 %v394
        %v913 = vunpack.c.l.b16 %v395
        %v914 = vunpack.c.h.b16 %v395
        %v915 = vunpack.c.l.b16 %v396
        %v916 = vunpack.c.h.b16 %v396
        %v917 = vunpack.c.l.b16 %v397
        %v918 = vunpack.c.h.b16 %v397
        %v919 = vunpack.c.l.b16 %v398
        %v920 = vunpack.c.h.b16 %v398
        %v921 = vunpack.c.l.b16 %v399
        %v922 = vunpack.c.h.b16 %v399
        %v923 = vunpack.c.l.b16 %v400
        %v924 = vunpack.c.h.b16 %v400
        %v925 = vunpack.c.l.b16 %v401
        %v926 = vunpack.c.h.b16 %v401
        %v927 = vunpack.c.l.b16 %v402
        %v928 = vunpack.c.h.b16 %v402
        %v929 = vunpack.c.l.b16 %v403
        %v930 = vunpack.c.h.b16 %v403
        %v931 = vunpack.c.l.b16 %v404
        %v932 = vunpack.c.h.b16 %v404
        %v933 = vunpack.c.l.b16 %v405
        %v934 = vunpack.c.h.b16 %v405
        %v935 = vunpack.c.l.b16 %v406
        %v936 = vunpack.c.h.b16 %v406
        %v937 = vunpack.c.l.b16 %v407
        %v938 = vunpack.c.h.b16 %v407
        %v939 = vunpack.c.l.b16 %v408
        %v940 = vunpack.c.h.b16 %v408
        %v941 = vunpack.c.l.b16 %v409
        %v942 = vunpack.c.h.b16 %v409
        %v943 = vunpack.c.l.b16 %v410
        %v944 = vunpack.c.h.b16 %v410
        %v945 = vunpack.c.l.b16 %v411
        %v946 = vunpack.c.h.b16 %v411
        %v947 = vunpack.c.l.b16 %v412
        %v948 = vunpack.c.h.b16 %v412
        %v949 = vunpack.c.l.b16 %v413
        %v950 = vunpack.c.h.b16 %v413
        %v951 = vunpack.c.l.b16 %v414
        %v952 = vunpack.c.h.b16 %v414
        %v953 = vunpack.c.l.b16 %v415
        %v954 = vunpack.c.h.b16 %v415
        %v955 = vunpack.c.l.b16 %v416
        %v956 = vunpack.c.h.b16 %v416
        %v957 = vunpack.c.l.b16 %v417
        %v958 = vunpack.c.h.b16 %v417
        %v959 = vunpack.c.l.b16 %v418
        %v960 = vunpack.c.h.b16 %v418
        %v961 = vunpack.c.l.b16 %v419
        %v962 = vunpack.c.h.b16 %v419
        %v963 = vunpack.c.l.b16 %v420
        %v964 = vunpack.c.h.b16 %v420
        %v965 = vunpack.c.l.b16 %v421
        %v966 = vunpack.c.h.b16 %v421
        %v967 = vunpack.c.l.b16 %v422
        %v968 = vunpack.c.h.b16 %v422
        %v969 = vunpack.c.l.b16 %v423
        %v970 = vunpack.c.h.b16 %v423
        %v971 = vunpack.c.l.b16 %v424
        %v972 = vunpack.c.h.b16 %v424
        %v973 = vunpack.c.l.b16 %v425
        %v974 = vunpack.c.h.b16 %v425
        %v975 = vunpack.c.l.b16 %v426
        %v976 = vunpack.c.h.b16 %v426
        %v977 = vunpack.c.l.b16 %v427
        %v978 = vunpack.c.h.b16 %v427
        %v979 = vunpack.c.l.b16 %v428
        %v980 = vunpack.c.h.b16 %v428
        %v981 = vunpack.c.l.b16 %v429
        %v982 = vunpack.c.h.b16 %v429
        %v983 = vunpack.c.l.b16 %v430
        %v984 = vunpack.c.h.b16 %v430
        %v985 = vunpack.c.l.b16 %v431
        %v986 = vunpack.c.h.b16 %v431
        %v987 = vunpack.c.l.b16 %v432
        %v988 = vunpack.c.h.b16 %v432
        %v989 = vunpack.c.l.b16 %v433
        %v990 = vunpack.c.h.b16 %v433
        %v991 = vunpack.c.l.b16 %v434
        %v992 = vunpack.c.h.b16 %v434
        %v993 = vunpack.c.l.b16 %v435
        %v994 = vunpack.c.h.b16 %v435
        %v995 = vunpack.c.l.b16 %v436
        %v996 = vunpack.c.h.b16 %v436
        %v997 = vunpack.c.l.b16 %v437
        %v998 = vunpack.c.h.b16 %v437
        %v999 = vunpack.c.l.b16 %v438
        %v1000 = vunpack.c.h.b16 %v438
        %v1001 = vunpack.c.l.b16 %v439
        %v1002 = vunpack.c.h.b16 %v439
        %v1003 = vunpack.c.l.b16 %v440
        %v1004 = vunpack.c.h.b16 %v440
        %v1005 = vunpack.c.l.b16 %v441
        %v1006 = vunpack.c.h.b16 %v441
        %v1007 = vunpack.c.l.b16 %v442
        %v1008 = vunpack.c.h.b16 %v442
        %v1009 = vunpack.c.l.b16 %v443
        %v1010 = vunpack.c.h.b16 %v443
        %v1011 = vunpack.c.l.b16 %v444
        %v1012 = vunpack.c.h.b16 %v444
        %v1013 = vunpack.c.l.b16 %v445
        %v1014 = vunpack.c.h.b16 %v445
        %v1015 = vunpack.c.l.b16 %v446
        %v1016 = vunpack.c.h.b16 %v446
        %v1017 = vunpack.c.l.b16 %v447
        %v1018 = vunpack.c.h.b16 %v447
        %v1019 = vunpack.c.l.b16 %v448
        %v1020 = vunpack.c.h.b16 %v448
        %v1021 = vunpack.c.l.b16 %v449
        %v1022 = vunpack.c.h.b16 %v449
        %v1023 = vunpack.c.l.b16 %v450
        %v1024 = vunpack.c.h.b16 %v450
        %v1025 = vunpack.c.l.b16 %v451
        %v1026 = vunpack.c.h.b16 %v451
        %v1027 = vunpack.c.l.b16 %v452
        %v1028 = vunpack.c.h.b16 %v452
        %v1029 = vunpack.c.l.b16 %v453
        %v1030 = vunpack.c.h.b16 %v453
        %v1031 = vunpack.c.l.b16 %v454
        %v1032 = vunpack.c.h.b16 %v454
        %v1033 = vunpack.c.l.b16 %v455
        %v1034 = vunpack.c.h.b16 %v455
        %v1035 = vunpack.c.l.b16 %v456
        %v1036 = vunpack.c.h.b16 %v456
        %v1037 = vunpack.c.l.b16 %v457
        %v1038 = vunpack.c.h.b16 %v457
        %v1039 = vunpack.c.l.b16 %v458
        %v1040 = vunpack.c.h.b16 %v458
        %v1041 = vunpack.c.l.b16 %v459
        %v1042 = vunpack.c.h.b16 %v459
        %v1043 = vunpack.c.l.b16 %v460
        %v1044 = vunpack.c.h.b16 %v460
        %v1045 = vunpack.c.l.b16 %v461
        %v1046 = vunpack.c.h.b16 %v461
        %v1047 = vunpack.c.l.b16 %v462
        %v1048 = vunpack.c.h.b16 %v462
        %v1049 = vunpack.c.l.b16 %v463
        %v1050 = vunpack.c.h.b16 %v463
        %v1051 = vunpack.c.l.b16 %v464
        %v1052 = vunpack.c.h.b16 %v464
        %v1053 = vunpack.c.l.b16 %v465
        %v1054 = vunpack.c.h.b16 %v465
        %v1055 = vunpack.c.l.b16 %v466
        %v1056 = vunpack.c.h.b16 %v466
        %v1057 = vunpack.c.l.b16 %v467
        %v1058 = vunpack.c.h.b16 %v467
        %v1059 = vunpack.c.l.b16 %v468
        %v1060 = vunpack.c.h.b16 %v468
        %v1061 = vunpack.c.l.b16 %v469
        %v1062 = vunpack.c.h.b16 %v469
        %v1063 = vunpack.c.l.b16 %v470
        %v1064 = vunpack.c.h.b16 %v470
        %v1065 = vunpack.c.l.b16 %v471
        %v1066 = vunpack.c.h.b16 %v471
        %v1067 = vunpack.c.l.b16 %v472
        %v1068 = vunpack.c.h.b16 %v472
        %v1069 = vunpack.c.l.b16 %v473
        %v1070 = vunpack.c.h.b16 %v473
        %v1071 = vunpack.c.l.b16 %v474
        %v1072 = vunpack.c.h.b16 %v474
        %v1073 = vunpack.c.l.b16 %v475
        %v1074 = vunpack.c.h.b16 %v475
        %v1075 = vunpack.c.l.b16 %v476
        %v1076 = vunpack.c.h.b16 %v476
        %v1077 = vunpack.c.l.b16 %v477
        %v1078 = vunpack.c.h.b16 %v477
        %v1079 = vunpack.c.l.b16 %v478
        %v1080 = vunpack.c.h.b16 %v478
        %v1081 = vunpack.c.l.b16 %v479
        %v1082 = vunpack.c.h.b16 %v479
        %v1083 = vunpack.c.l.b16 %v480
        %v1084 = vunpack.c.h.b16 %v480
        %v1085 = vunpack.c.l.b16 %v481
        %v1086 = vunpack.c.h.b16 %v481
        %v1087 = vunpack.c.l.b16 %v482
        %v1088 = vunpack.c.h.b16 %v482
        %v1089 = vunpack.c.l.b16 %v483
        %v1090 = vunpack.c.h.b16 %v483
        %v1091 = vunpack.c.l.b16 %v484
        %v1092 = vunpack.c.h.b16 %v484
        %v1093 = vunpack.c.l.b16 %v485
        %v1094 = vunpack.c.h.b16 %v485
        %v1095 = vunpack.c.l.b16 %v486
        %v1096 = vunpack.c.h.b16 %v486
        %v1097 = vunpack.c.l.b16 %v487
        %v1098 = vunpack.c.h.b16 %v487
        %v1099 = vunpack.c.l.b16 %v488
        %v1100 = vunpack.c.h.b16 %v488
        %v1101 = vunpack.c.l.b16 %v489
        %v1102 = vunpack.c.h.b16 %v489
        %v1103 = vunpack.c.l.b16 %v490
        %v1104 = vunpack.c.h.b16 %v490
        %v1105 = vunpack.c.l.b16 %v491
        %v1106 = vunpack.c.h.b16 %v491
        %v1107 = vunpack.c.l.b16 %v492
        %v1108 = vunpack.c.h.b16 %v492
        %v1109 = vunpack.c.l.b16 %v493
        %v1110 = vunpack.c.h.b16 %v493
        %v1111 = vunpack.c.l.b16 %v494
        %v1112 = vunpack.c.h.b16 %v494
        %v1113 = vunpack.c.l.b16 %v495
        %v1114 = vunpack.c.h.b16 %v495
        %v1115 = vunpack.c.l.b16 %v496
        %v1116 = vunpack.c.h.b16 %v496
        %v1117 = vunpack.c.l.b16 %v497
        %v1118 = vunpack.c.h.b16 %v497
        %v1119 = vunpack.c.l.b16 %v498
        %v1120 = vunpack.c.h.b16 %v498
        %v1121 = vunpack.c.l.b16 %v499
        %v1122 = vunpack.c.h.b16 %v499
        %v1123 = vunpack.c.l.b16 %v500
        %v1124 = vunpack.c.h.b16 %v500
        %v1125 = vunpack.c.l.b16 %v501
        %v1126 = vunpack.c.h.b16 %v501
        %v1127 = vunpack.c.l.b16 %v502
        %v1128 = vunpack.c.h.b16 %v502
        %v1129 = vunpack.c.l.b16 %v503
        %v1130 = vunpack.c.h.b16 %v503
        %v1131 = vunpack.c.l.b16 %v504
        %v1132 = vunpack.c.h.b16 %v504
        %v1133 = vunpack.c.l.b16 %v505
        %v1134 = vunpack.c.h.b16 %v505
        %v1135 = vunpack.c.l.b16 %v506
        %v1136 = vunpack.c.h.b16 %v506
        %v1137 = vunpack.c.l.b16 %v507
        %v1138 = vunpack.c.h.b16 %v507
        %v1139 = vunpack.c.l.b16 %v508
        %v1140 = vunpack.c.h.b16 %v508
        %v1141 = vunpack.c.l.b16 %v509
        %v1142 = vunpack.c.h.b16 %v509
        %v1143 = vunpack.c.l.b16 %v510
        %v1144 = vunpack.c.h.b16 %v510
        %v1145 = vunpack.c.l.b16 %v511
        %v1146 = vunpack.c.h.b16 %v511
        %v1147 = vunpack.c.l.b16 %v512
        %v1148 = vunpack.c.h.b16 %v512
        %v1149 = vunpack.c.l.b16 %v513
        %v1150 = vunpack.c.h.b16 %v513
        %v1151 = vunpack.c.l.b16 %v514
        %v1152 = vunpack.c.h.b16 %v514
        %v1153 = vunpack.c.l.b16 %v515
        %v1154 = vunpack.c.h.b16 %v515
        %v1155 = vunpack.c.l.b16 %v516
        %v1156 = vunpack.c.h.b16 %v516
        %v1157 = vunpack.c.l.b16 %v517
        %v1158 = vunpack.c.h.b16 %v517
        %v1159 = vunpack.c.l.b16 %v518
        %v1160 = vunpack.c.h.b16 %v518
        %v1161 = vunpack.c.l.b16 %v519
        %v1162 = vunpack.c.h.b16 %v519
        %v1163 = vunpack.c.l.b16 %v520
        %v1164 = vunpack.c.h.b16 %v520
        %v1165 = vunpack.c.l.b16 %v521
        %v1166 = vunpack.c.h.b16 %v521
        %v1167 = vunpack.c.l.b16 %v522
        %v1168 = vunpack.c.h.b16 %v522
        %v1169 = vunpack.c.l.b16 %v523
        %v1170 = vunpack.c.h.b16 %v523
        %v1171 = vunpack.c.l.b16 %v524
        %v1172 = vunpack.c.h.b16 %v524
        %v1173 = vpack.c.b16 %v887, %v885
        %v1174 = vpack.c.b16 %v888, %v886
        %v1175 = vpack.c.b16 %v891, %v889
        %v1176 = vpack.c.b16 %v892, %v890
        %v1177 = vpack.c.b16 %v895, %v893
        %v1178 = vpack.c.b16 %v896, %v894
        %v1179 = vpack.c.b16 %v899, %v897
        %v1180 = vpack.c.b16 %v900, %v898
        %v1181 = vpack.c.b16 %v903, %v901
        %v1182 = vpack.c.b16 %v904, %v902
        %v1183 = vpack.c.b16 %v907, %v905
        %v1184 = vpack.c.b16 %v908, %v906
        %v1185 = vpack.c.b16 %v911, %v909
        %v1186 = vpack.c.b16 %v912, %v910
        %v1187 = vpack.c.b16 %v915, %v913
        %v1188 = vpack.c.b16 %v916, %v914
        %v1189 = vpack.c.b16 %v919, %v917
        %v1190 = vpack.c.b16 %v920, %v918
        %v1191 = vpack.c.b16 %v923, %v921
        %v1192 = vpack.c.b16 %v924, %v922
        %v1193 = vpack.c.b16 %v927, %v925
        %v1194 = vpack.c.b16 %v928, %v926
        %v1195 = vpack.c.b16 %v931, %v929
        %v1196 = vpack.c.b16 %v932, %v930
        %v1197 = vpack.c.b16 %v935, %v933
        %v1198 = vpack.c.b16 %v936, %v934
        %v1199 = vpack.c.b16 %v939, %v937
        %v1200 = vpack.c.b16 %v940, %v938
        %v1201 = vpack.c.b16 %v943, %v941
        %v1202 = vpack.c.b16 %v944, %v942
        %v1203 = vpack.c.b16 %v947, %v945
        %v1204 = vpack.c.b16 %v948, %v946
        %v1205 = vpack.c.b16 %v951, %v949
        %v1206 = vpack.c.b16 %v952, %v950
        %v1207 = vpack.c.b16 %v955, %v953
        %v1208 = vpack.c.b16 %v956, %v954
        %v1209 = vpack.c.b16 %v959, %v957
        %v1210 = vpack.c.b16 %v960, %v958
        %v1211 = vpack.c.b16 %v963, %v961
        %v1212 = vpack.c.b16 %v964, %v962
        %v1213 = vpack.c.b16 %v967, %v965
        %v1214 = vpack.c.b16 %v968, %v966
        %v1215 = vpack.c.b16 %v971, %v969
        %v1216 = vpack.c.b16 %v972, %v970
        %v1217 = vpack.c.b16 %v975, %v973
        %v1218 = vpack.c.b16 %v976, %v974
        %v1219 = vpack.c.b16 %v979, %v977
        %v1220 = vpack.c.b16 %v980, %v978
        %v1221 = vpack.c.b16 %v983, %v981
        %v1222 = vpack.c.b16 %v984, %v982
        %v1223 = vpack.c.b16 %v987, %v985
        %v1224 = vpack.c.b16 %v988, %v986
        %v1225 = vpack.c.b16 %v991, %v989
        %v1226 = vpack.c.b16 %v992, %v990
        %v1227 = vpack.c.b16 %v995, %v993
        %v1228 = vpack.c.b16 %v996, %v994
        %v1229 = vpack.c.b16 %v999, %v997
        %v1230 = vpack.c.b16 %v1000, %v998
        %v1231 = vpack.c.b16 %v1003, %v1001
        %v1232 = vpack.c.b16 %v1004, %v1002
        %v1233 = vpack.c.b16 %v1007, %v1005
        %v1234 = vpack.c.b16 %v1008, %v1006
        %v1235 = vpack.c.b16 %v1011, %v1009
        %v1236 = vpack.c.b16 %v1012, %v1010
        %v1237 = vpack.c.b16 %v1015, %v1013
        %v1238 = vpack.c.b16 %v1016, %v1014
        %v1239 = vpack.c.b16 %v1019, %v1017
        %v1240 = vpack.c.b16 %v1020, %v1018
        %v1241 = vpack.c.b16 %v1023, %v1021
        %v1242 = vpack.c.b16 %v1024, %v1022
        %v1243 = vpack.c.b16 %v1027, %v1025
        %v1244 = vpack.c.b16 %v1028, %v1026
        %v1245 = vpack.c.b16 %v1031, %v1029
        %v1246 = vpack.c.b16 %v1032, %v1030
        %v1247 = vpack.c.b16 %v1035, %v1033
        %v1248 = vpack.c.b16 %v1036, %v1034
        %v1249 = vpack.c.b16 %v1039, %v1037
        %v1250 = vpack.c.b16 %v1040, %v1038
        %v1251 = vpack.c.b16 %v1043, %v1041
        %v1252 = vpack.c.b16 %v1044, %v1042
        %v1253 = vpack.c.b16 %v1047, %v1045
        %v1254 = vpack.c.b16 %v1048, %v1046
        %v1255 = vpack.c.b16 %v1051, %v1049
        %v1256 = vpack.c.b16 %v1052, %v1050
        %v1257 = vpack.c.b16 %v1055, %v1053
        %v1258 = vpack.c.b16 %v1056, %v1054
        %v1259 = vpack.c.b16 %v1059, %v1057
        %v1260 = vpack.c.b16 %v1060, %v1058
        %v1261 = vpack.c.b16 %v1063, %v1061
        %v1262 = vpack.c.b16 %v1064, %v1062
        %v1263 = vpack.c.b16 %v1067, %v1065
        %v1264 = vpack.c.b16 %v1068, %v1066
        %v1265 = vpack.c.b16 %v1071, %v1069
        %v1266 = vpack.c.b16 %v1072, %v1070
        %v1267 = vpack.c.b16 %v1075, %v1073
        %v1268 = vpack.c.b16 %v1076, %v1074
        %v1269 = vpack.c.b16 %v1079, %v1077
        %v1270 = vpack.c.b16 %v1080, %v1078
        %v1271 = vpack.c.b16 %v1083, %v1081
        %v1272 = vpack.c.b16 %v1084, %v1082
        %v1273 = vpack.c.b16 %v1087, %v1085
        %v1274 = vpack.c.b16 %v1088, %v1086
        %v1275 = vpack.c.b16 %v1091, %v1089
        %v1276 = vpack.c.b16 %v1092, %v1090
        %v1277 = vpack.c.b16 %v1095, %v1093
        %v1278 = vpack.c.b16 %v1096, %v1094
        %v1279 = vpack.c.b16 %v1099, %v1097
        %v1280 = vpack.c.b16 %v1100, %v1098
        %v1281 = vpack.c.b16 %v1103, %v1101
        %v1282 = vpack.c.b16 %v1104, %v1102
        %v1283 = vpack.c.b16 %v1107, %v1105
        %v1284 = vpack.c.b16 %v1108, %v1106
        %v1285 = vpack.c.b16 %v1111, %v1109
        %v1286 = vpack.c.b16 %v1112, %v1110
        %v1287 = vpack.c.b16 %v1115, %v1113
        %v1288 = vpack.c.b16 %v1116, %v1114
        %v1289 = vpack.c.b16 %v1119, %v1117
        %v1290 = vpack.c.b16 %v1120, %v1118
        %v1291 = vpack.c.b16 %v1123, %v1121
        %v1292 = vpack.c.b16 %v1124, %v1122
        %v1293 = vpack.c.b16 %v1127, %v1125
        %v1294 = vpack.c.b16 %v1128, %v1126
        %v1295 = vpack.c.b16 %v1131, %v1129
        %v1296 = vpack.c.b16 %v1132, %v1130
        %v1297 = vpack.c.b16 %v1135, %v1133
        %v1298 = vpack.c.b16 %v1136, %v1134
        %v1299 = vpack.c.b16 %v1139, %v1137
        %v1300 = vpack.c.b16 %v1140, %v1138
        %v1301 = vpack.c.b16 %v1143, %v1141
        %v1302 = vpack.c.b16 %v1144, %v1142
        %v1303 = vpack.c.b16 %v1147, %v1145
        %v1304 = vpack.c.b16 %v1148, %v1146
        %v1305 = vpack.c.b16 %v1151, %v1149
        %v1306 = vpack.c.b16 %v1152, %v1150
        %v1307 = vpack.c.b16 %v1155, %v1153
        %v1308 = vpack.c.b16 %v1156, %v1154
        %v1309 = vpack.c.b16 %v1159, %v1157
        %v1310 = vpack.c.b16 %v1160, %v1158
        %v1311 = vpack.c.b16 %v1163, %v1161
        %v1312 = vpack.c.b16 %v1164, %v1162
        %v1313 = vpack.c.b16 %v1167, %v1165
        %v1314 = vpack.c.b16 %v1168, %v1166
        %v1315 = vpack.c.b16 %v1171, %v1169
        %v1316 = vpack.c.b16 %v1172, %v1170
        %1461 = vmatpush.bf16.msra.mxu0 %v1187
        %1462 = vmatpush.bf16.msra.mxu0 %v1185
        %1463 = vmatpush.bf16.msra.mxu0 %v1183
        %1464 = vmatpush.bf16.msra.mxu0 %v1181
        %1465 = vmatpush.bf16.msra.mxu0 %v1179
        %1466 = vmatpush.bf16.msra.mxu0 %v1177
        %1467 = vmatpush.bf16.msra.mxu0 %v1175
        %1468 = vmatpush.bf16.msra.mxu0 %v1173
        %1469 = vmatmul.bf16.gmra.mxu0 %v651
        %v1470 = vpop.f32.mrf.mxu0
        %v1471 = vadd.f32 0.0, %v1470
        %v1472 = vpop.f32.mrf.mxu0
        %v1473 = vadd.f32 0.0, %v1472
        %1474 = vmatmul.bf16.gmra.mxu0 %v660
        %v1475 = vpop.f32.mrf.mxu0
        %v1476 = vadd.f32 0.0, %v1475
        %v1477 = vpop.f32.mrf.mxu0
        %v1478 = vadd.f32 0.0, %v1477
        %1479 = vmatmul.bf16.gmra.mxu0 %v669
        %v1480 = vpop.f32.mrf.mxu0
        %v1481 = vadd.f32 0.0, %v1480
        %v1482 = vpop.f32.mrf.mxu0
        %v1483 = vadd.f32 0.0, %v1482
        %1484 = vmatmul.bf16.gmra.mxu0 %v678
        %v1485 = vpop.f32.mrf.mxu0
        %v1486 = vadd.f32 0.0, %v1485
        %v1487 = vpop.f32.mrf.mxu0
        %v1488 = vadd.f32 0.0, %v1487
        %1489 = vmatmul.bf16.gmra.mxu0 %v687
        %v1490 = vpop.f32.mrf.mxu0
        %v1491 = vadd.f32 0.0, %v1490
        %v1492 = vpop.f32.mrf.mxu0
        %1493 = vdwg.mxu0
        %1494 = vmatpush.bf16.msra.mxu0 %v1203
        %1495 = vmatpush.bf16.msra.mxu0 %v1201
        %1496 = vmatpush.bf16.msra.mxu0 %v1199
        %1497 = vmatpush.bf16.msra.mxu0 %v1197
        %1498 = vmatpush.bf16.msra.mxu0 %v1195
        %1499 = vmatpush.bf16.msra.mxu0 %v1193
        %1500 = vmatpush.bf16.msra.mxu0 %v1191
        %1501 = vmatpush.bf16.msra.mxu0 %v1189
        %1502 = vmatmul.bf16.gmra.mxu0 %v652
        %v1503 = vpop.f32.mrf.mxu0
        %v1504 = vadd.f32 %v1471, %v1503
        %v1505 = vpop.f32.mrf.mxu0
        %v1506 = vadd.f32 %v1473, %v1505
        %1507 = vmatmul.bf16.gmra.mxu0 %v661
        %v1508 = vpop.f32.mrf.mxu0
        %v1509 = vadd.f32 %v1476, %v1508
        %v1510 = vpop.f32.mrf.mxu0
        %v1511 = vadd.f32 %v1478, %v1510
        %1512 = vmatmul.bf16.gmra.mxu0 %v670
        %v1513 = vpop.f32.mrf.mxu0
        %v1514 = vadd.f32 %v1481, %v1513
        %v1515 = vpop.f32.mrf.mxu0
        %v1516 = vadd.f32 %v1483, %v1515
        %1517 = vmatmul.bf16.gmra.mxu0 %v679
        %v1518 = vpop.f32.mrf.mxu0
        %v1519 = vadd.f32 %v1486, %v1518
        %v1520 = vpop.f32.mrf.mxu0
        %v1521 = vadd.f32 %v1488, %v1520
        %1522 = vmatmul.bf16.gmra.mxu0 %v688
        %v1523 = vpop.f32.mrf.mxu0
        %v1524 = vadd.f32 %v1491, %v1523
        %v1525 = vpop.f32.mrf.mxu0
        %1526 = vdwg.mxu0
        %1527 = vmatpush.bf16.msra.mxu0 %v1219
        %1528 = vmatpush.bf16.msra.mxu0 %v1217
        %1529 = vmatpush.bf16.msra.mxu0 %v1215
        %1530 = vmatpush.bf16.msra.mxu0 %v1213
        %1531 = vmatpush.bf16.msra.mxu0 %v1211
        %1532 = vmatpush.bf16.msra.mxu0 %v1209
        %1533 = vmatpush.bf16.msra.mxu0 %v1207
        %1534 = vmatpush.bf16.msra.mxu0 %v1205
        %1535 = vmatmul.bf16.gmra.mxu0 %v653
        %v1536 = vpop.f32.mrf.mxu0
        %v1537 = vadd.f32 %v1504, %v1536
        %v1538 = vpop.f32.mrf.mxu0
        %v1539 = vadd.f32 %v1506, %v1538
        %1540 = vmatmul.bf16.gmra.mxu0 %v662
        %v1541 = vpop.f32.mrf.mxu0
        %v1542 = vadd.f32 %v1509, %v1541
        %v1543 = vpop.f32.mrf.mxu0
        %v1544 = vadd.f32 %v1511, %v1543
        %1545 = vmatmul.bf16.gmra.mxu0 %v671
        %v1546 = vpop.f32.mrf.mxu0
        %v1547 = vadd.f32 %v1514, %v1546
        %v1548 = vpop.f32.mrf.mxu0
        %v1549 = vadd.f32 %v1516, %v1548
        %1550 = vmatmul.bf16.gmra.mxu0 %v680
        %v1551 = vpop.f32.mrf.mxu0
        %v1552 = vadd.f32 %v1519, %v1551
        %v1553 = vpop.f32.mrf.mxu0
        %v1554 = vadd.f32 %v1521, %v1553
        %1555 = vmatmul.bf16.gmra.mxu0 %v689
        %v1556 = vpop.f32.mrf.mxu0
        %v1557 = vadd.f32 %v1524, %v1556
        %v1558 = vpop.f32.mrf.mxu0
        %1559 = vdwg.mxu0
        %1560 = vmatpush.bf16.msra.mxu0 %v1235
        %1561 = vmatpush.bf16.msra.mxu0 %v1233
        %1562 = vmatpush.bf16.msra.mxu0 %v1231
        %1563 = vmatpush.bf16.msra.mxu0 %v1229
        %1564 = vmatpush.bf16.msra.mxu0 %v1227
        %1565 = vmatpush.bf16.msra.mxu0 %v1225
        %1566 = vmatpush.bf16.msra.mxu0 %v1223
        %1567 = vmatpush.bf16.msra.mxu0 %v1221
        %1568 = vmatmul.bf16.gmra.mxu0 %v654
        %v1569 = vpop.f32.mrf.mxu0
        %v1570 = vadd.f32 %v1537, %v1569
        %v1571 = vpop.f32.mrf.mxu0
        %v1572 = vadd.f32 %v1539, %v1571
        %1573 = vmatmul.bf16.gmra.mxu0 %v663
        %v1574 = vpop.f32.mrf.mxu0
        %v1575 = vadd.f32 %v1542, %v1574
        %v1576 = vpop.f32.mrf.mxu0
        %v1577 = vadd.f32 %v1544, %v1576
        %1578 = vmatmul.bf16.gmra.mxu0 %v672
        %v1579 = vpop.f32.mrf.mxu0
        %v1580 = vadd.f32 %v1547, %v1579
        %v1581 = vpop.f32.mrf.mxu0
        %v1582 = vadd.f32 %v1549, %v1581
        %1583 = vmatmul.bf16.gmra.mxu0 %v681
        %v1584 = vpop.f32.mrf.mxu0
        %v1585 = vadd.f32 %v1552, %v1584
        %v1586 = vpop.f32.mrf.mxu0
        %v1587 = vadd.f32 %v1554, %v1586
        %1588 = vmatmul.bf16.gmra.mxu0 %v690
        %v1589 = vpop.f32.mrf.mxu0
        %v1590 = vadd.f32 %v1557, %v1589
        %v1591 = vpop.f32.mrf.mxu0
        %1592 = vdwg.mxu0
        %1593 = vmatpush.bf16.msra.mxu0 %v1251
        %1594 = vmatpush.bf16.msra.mxu0 %v1249
        %1595 = vmatpush.bf16.msra.mxu0 %v1247
        %1596 = vmatpush.bf16.msra.mxu0 %v1245
        %1597 = vmatpush.bf16.msra.mxu0 %v1243
        %1598 = vmatpush.bf16.msra.mxu0 %v1241
        %1599 = vmatpush.bf16.msra.mxu0 %v1239
        %1600 = vmatpush.bf16.msra.mxu0 %v1237
        %1601 = vmatmul.bf16.gmra.mxu0 %v655
        %v1602 = vpop.f32.mrf.mxu0
        %v1603 = vadd.f32 %v1570, %v1602
        %v1604 = vpop.f32.mrf.mxu0
        %v1605 = vadd.f32 %v1572, %v1604
        %1606 = vmatmul.bf16.gmra.mxu0 %v664
        %v1607 = vpop.f32.mrf.mxu0
        %v1608 = vadd.f32 %v1575, %v1607
        %v1609 = vpop.f32.mrf.mxu0
        %v1610 = vadd.f32 %v1577, %v1609
        %1611 = vmatmul.bf16.gmra.mxu0 %v673
        %v1612 = vpop.f32.mrf.mxu0
        %v1613 = vadd.f32 %v1580, %v1612
        %v1614 = vpop.f32.mrf.mxu0
        %v1615 = vadd.f32 %v1582, %v1614
        %1616 = vmatmul.bf16.gmra.mxu0 %v682
        %v1617 = vpop.f32.mrf.mxu0
        %v1618 = vadd.f32 %v1585, %v1617
        %v1619 = vpop.f32.mrf.mxu0
        %v1620 = vadd.f32 %v1587, %v1619
        %1621 = vmatmul.bf16.gmra.mxu0 %v691
        %v1622 = vpop.f32.mrf.mxu0
        %v1623 = vadd.f32 %v1590, %v1622
        %v1624 = vpop.f32.mrf.mxu0
        %1625 = vdwg.mxu0
        %1626 = vmatpush.bf16.msra.mxu0 %v1267
        %1627 = vmatpush.bf16.msra.mxu0 %v1265
        %1628 = vmatpush.bf16.msra.mxu0 %v1263
        %1629 = vmatpush.bf16.msra.mxu0 %v1261
        %1630 = vmatpush.bf16.msra.mxu0 %v1259
        %1631 = vmatpush.bf16.msra.mxu0 %v1257
        %1632 = vmatpush.bf16.msra.mxu0 %v1255
        %1633 = vmatpush.bf16.msra.mxu0 %v1253
        %1634 = vmatmul.bf16.gmra.mxu0 %v656
        %v1635 = vpop.f32.mrf.mxu0
        %v1636 = vadd.f32 %v1603, %v1635
        %v1637 = vpop.f32.mrf.mxu0
        %v1638 = vadd.f32 %v1605, %v1637
        %1639 = vmatmul.bf16.gmra.mxu0 %v665
        %v1640 = vpop.f32.mrf.mxu0
        %v1641 = vadd.f32 %v1608, %v1640
        %v1642 = vpop.f32.mrf.mxu0
        %v1643 = vadd.f32 %v1610, %v1642
        %1644 = vmatmul.bf16.gmra.mxu0 %v674
        %v1645 = vpop.f32.mrf.mxu0
        %v1646 = vadd.f32 %v1613, %v1645
        %v1647 = vpop.f32.mrf.mxu0
        %v1648 = vadd.f32 %v1615, %v1647
        %1649 = vmatmul.bf16.gmra.mxu0 %v683
        %v1650 = vpop.f32.mrf.mxu0
        %v1651 = vadd.f32 %v1618, %v1650
        %v1652 = vpop.f32.mrf.mxu0
        %v1653 = vadd.f32 %v1620, %v1652
        %1654 = vmatmul.bf16.gmra.mxu0 %v692
        %v1655 = vpop.f32.mrf.mxu0
        %v1656 = vadd.f32 %v1623, %v1655
        %v1657 = vpop.f32.mrf.mxu0
        %1658 = vdwg.mxu0
        %1659 = vmatpush.bf16.msra.mxu0 %v1283
        %1660 = vmatpush.bf16.msra.mxu0 %v1281
        %1661 = vmatpush.bf16.msra.mxu0 %v1279
        %1662 = vmatpush.bf16.msra.mxu0 %v1277
        %1663 = vmatpush.bf16.msra.mxu0 %v1275
        %1664 = vmatpush.bf16.msra.mxu0 %v1273
        %1665 = vmatpush.bf16.msra.mxu0 %v1271
        %1666 = vmatpush.bf16.msra.mxu0 %v1269
        %1667 = vmatmul.bf16.gmra.mxu0 %v657
        %v1668 = vpop.f32.mrf.mxu0
        %v1669 = vadd.f32 %v1636, %v1668
        %v1670 = vpop.f32.mrf.mxu0
        %v1671 = vadd.f32 %v1638, %v1670
        %1672 = vmatmul.bf16.gmra.mxu0 %v666
        %v1673 = vpop.f32.mrf.mxu0
        %v1674 = vadd.f32 %v1641, %v1673
        %v1675 = vpop.f32.mrf.mxu0
        %v1676 = vadd.f32 %v1643, %v1675
        %1677 = vmatmul.bf16.gmra.mxu0 %v675
        %v1678 = vpop.f32.mrf.mxu0
        %v1679 = vadd.f32 %v1646, %v1678
        %v1680 = vpop.f32.mrf.mxu0
        %v1681 = vadd.f32 %v1648, %v1680
        %1682 = vmatmul.bf16.gmra.mxu0 %v684
        %v1683 = vpop.f32.mrf.mxu0
        %v1684 = vadd.f32 %v1651, %v1683
        %v1685 = vpop.f32.mrf.mxu0
        %v1686 = vadd.f32 %v1653, %v1685
        %1687 = vmatmul.bf16.gmra.mxu0 %v693
        %v1688 = vpop.f32.mrf.mxu0
        %v1689 = vadd.f32 %v1656, %v1688
        %v1690 = vpop.f32.mrf.mxu0
        %1691 = vdwg.mxu0
        %1692 = vmatpush.bf16.msra.mxu0 %v1299
        %1693 = vmatpush.bf16.msra.mxu0 %v1297
        %1694 = vmatpush.bf16.msra.mxu0 %v1295
        %1695 = vmatpush.bf16.msra.mxu0 %v1293
        %1696 = vmatpush.bf16.msra.mxu0 %v1291
        %1697 = vmatpush.bf16.msra.mxu0 %v1289
        %1698 = vmatpush.bf16.msra.mxu0 %v1287
        %1699 = vmatpush.bf16.msra.mxu0 %v1285
        %1700 = vmatmul.bf16.gmra.mxu0 %v658
        %v1701 = vpop.f32.mrf.mxu0
        %v1702 = vadd.f32 %v1669, %v1701
        %v1703 = vpop.f32.mrf.mxu0
        %v1704 = vadd.f32 %v1671, %v1703
        %1705 = vmatmul.bf16.gmra.mxu0 %v667
        %v1706 = vpop.f32.mrf.mxu0
        %v1707 = vadd.f32 %v1674, %v1706
        %v1708 = vpop.f32.mrf.mxu0
        %v1709 = vadd.f32 %v1676, %v1708
        %1710 = vmatmul.bf16.gmra.mxu0 %v676
        %v1711 = vpop.f32.mrf.mxu0
        %v1712 = vadd.f32 %v1679, %v1711
        %v1713 = vpop.f32.mrf.mxu0
        %v1714 = vadd.f32 %v1681, %v1713
        %1715 = vmatmul.bf16.gmra.mxu0 %v685
        %v1716 = vpop.f32.mrf.mxu0
        %v1717 = vadd.f32 %v1684, %v1716
        %v1718 = vpop.f32.mrf.mxu0
        %v1719 = vadd.f32 %v1686, %v1718
        %1720 = vmatmul.bf16.gmra.mxu0 %v694
        %v1721 = vpop.f32.mrf.mxu0
        %v1722 = vadd.f32 %v1689, %v1721
        %v1723 = vpop.f32.mrf.mxu0
        %1724 = vdwg.mxu0
        %1725 = vmatpush.bf16.msra.mxu0 %v1315
        %1726 = vmatpush.bf16.msra.mxu0 %v1313
        %1727 = vmatpush.bf16.msra.mxu0 %v1311
        %1728 = vmatpush.bf16.msra.mxu0 %v1309
        %1729 = vmatpush.bf16.msra.mxu0 %v1307
        %1730 = vmatpush.bf16.msra.mxu0 %v1305
        %1731 = vmatpush.bf16.msra.mxu0 %v1303
        %1732 = vmatpush.bf16.msra.mxu0 %v1301
        %1733 = vmatmul.bf16.gmra.mxu0 %v659
        %v1734 = vpop.f32.mrf.mxu0
        %v1735 = vadd.f32 %v1702, %v1734
        %v1736 = vpop.f32.mrf.mxu0
        %v1737 = vadd.f32 %v1704, %v1736
        %1738 = vmatmul.bf16.gmra.mxu0 %v668
        %v1739 = vpop.f32.mrf.mxu0
        %v1740 = vadd.f32 %v1707, %v1739
        %v1741 = vpop.f32.mrf.mxu0
        %v1742 = vadd.f32 %v1709, %v1741
        %1743 = vmatmul.bf16.gmra.mxu0 %v677
        %v1744 = vpop.f32.mrf.mxu0
        %v1745 = vadd.f32 %v1712, %v1744
        %v1746 = vpop.f32.mrf.mxu0
        %v1747 = vadd.f32 %v1714, %v1746
        %1748 = vmatmul.bf16.gmra.mxu0 %v686
        %v1749 = vpop.f32.mrf.mxu0
        %v1750 = vadd.f32 %v1717, %v1749
        %v1751 = vpop.f32.mrf.mxu0
        %v1752 = vadd.f32 %v1719, %v1751
        %1753 = vmatmul.bf16.gmra.mxu0 %v695
        %v1754 = vpop.f32.mrf.mxu0
        %v1755 = vadd.f32 %v1722, %v1754
        %v1756 = vpop.f32.mrf.mxu0
        %1757 = vdwg.mxu0
        %1758 = vmatpush.bf16.msra.mxu0 %v1188
        %1759 = vmatpush.bf16.msra.mxu0 %v1186
        %1760 = vmatpush.bf16.msra.mxu0 %v1184
        %1761 = vmatpush.bf16.msra.mxu0 %v1182
        %1762 = vmatpush.bf16.msra.mxu0 %v1180
        %1763 = vmatpush.bf16.msra.mxu0 %v1178
        %1764 = vmatpush.bf16.msra.mxu0 %v1176
        %1765 = vmatpush.bf16.msra.mxu0 %v1174
        %1766 = vmatmul.bf16.gmra.mxu0 %v651
        %v1767 = vpop.f32.mrf.mxu0
        %v1768 = vadd.f32 0.0, %v1767
        %v1769 = vpop.f32.mrf.mxu0
        %v1770 = vadd.f32 0.0, %v1769
        %1771 = vmatmul.bf16.gmra.mxu0 %v660
        %v1772 = vpop.f32.mrf.mxu0
        %v1773 = vadd.f32 0.0, %v1772
        %v1774 = vpop.f32.mrf.mxu0
        %v1775 = vadd.f32 0.0, %v1774
        %1776 = vmatmul.bf16.gmra.mxu0 %v669
        %v1777 = vpop.f32.mrf.mxu0
        %v1778 = vadd.f32 0.0, %v1777
        %v1779 = vpop.f32.mrf.mxu0
        %v1780 = vadd.f32 0.0, %v1779
        %1781 = vmatmul.bf16.gmra.mxu0 %v678
        %v1782 = vpop.f32.mrf.mxu0
        %v1783 = vadd.f32 0.0, %v1782
        %v1784 = vpop.f32.mrf.mxu0
        %v1785 = vadd.f32 0.0, %v1784
        %1786 = vmatmul.bf16.gmra.mxu0 %v687
        %v1787 = vpop.f32.mrf.mxu0
        %v1788 = vadd.f32 0.0, %v1787
        %v1789 = vpop.f32.mrf.mxu0
        %1790 = vdwg.mxu0
        %1791 = vmatpush.bf16.msra.mxu0 %v1204
        %1792 = vmatpush.bf16.msra.mxu0 %v1202
        %1793 = vmatpush.bf16.msra.mxu0 %v1200
        %1794 = vmatpush.bf16.msra.mxu0 %v1198
        %1795 = vmatpush.bf16.msra.mxu0 %v1196
        %1796 = vmatpush.bf16.msra.mxu0 %v1194
        %1797 = vmatpush.bf16.msra.mxu0 %v1192
        %1798 = vmatpush.bf16.msra.mxu0 %v1190
        %1799 = vmatmul.bf16.gmra.mxu0 %v652
        %v1800 = vpop.f32.mrf.mxu0
        %v1801 = vadd.f32 %v1768, %v1800
        %v1802 = vpop.f32.mrf.mxu0
        %v1803 = vadd.f32 %v1770, %v1802
        %1804 = vmatmul.bf16.gmra.mxu0 %v661
        %v1805 = vpop.f32.mrf.mxu0
        %v1806 = vadd.f32 %v1773, %v1805
        %v1807 = vpop.f32.mrf.mxu0
        %v1808 = vadd.f32 %v1775, %v1807
        %1809 = vmatmul.bf16.gmra.mxu0 %v670
        %v1810 = vpop.f32.mrf.mxu0
        %v1811 = vadd.f32 %v1778, %v1810
        %v1812 = vpop.f32.mrf.mxu0
        %v1813 = vadd.f32 %v1780, %v1812
        %1814 = vmatmul.bf16.gmra.mxu0 %v679
        %v1815 = vpop.f32.mrf.mxu0
        %v1816 = vadd.f32 %v1783, %v1815
        %v1817 = vpop.f32.mrf.mxu0
        %v1818 = vadd.f32 %v1785, %v1817
        %1819 = vmatmul.bf16.gmra.mxu0 %v688
        %v1820 = vpop.f32.mrf.mxu0
        %v1821 = vadd.f32 %v1788, %v1820
        %v1822 = vpop.f32.mrf.mxu0
        %1823 = vdwg.mxu0
        %1824 = vmatpush.bf16.msra.mxu0 %v1220
        %1825 = vmatpush.bf16.msra.mxu0 %v1218
        %1826 = vmatpush.bf16.msra.mxu0 %v1216
        %1827 = vmatpush.bf16.msra.mxu0 %v1214
        %1828 = vmatpush.bf16.msra.mxu0 %v1212
        %1829 = vmatpush.bf16.msra.mxu0 %v1210
        %1830 = vmatpush.bf16.msra.mxu0 %v1208
        %1831 = vmatpush.bf16.msra.mxu0 %v1206
        %1832 = vmatmul.bf16.gmra.mxu0 %v653
        %v1833 = vpop.f32.mrf.mxu0
        %v1834 = vadd.f32 %v1801, %v1833
        %v1835 = vpop.f32.mrf.mxu0
        %v1836 = vadd.f32 %v1803, %v1835
        %1837 = vmatmul.bf16.gmra.mxu0 %v662
        %v1838 = vpop.f32.mrf.mxu0
        %v1839 = vadd.f32 %v1806, %v1838
        %v1840 = vpop.f32.mrf.mxu0
        %v1841 = vadd.f32 %v1808, %v1840
        %1842 = vmatmul.bf16.gmra.mxu0 %v671
        %v1843 = vpop.f32.mrf.mxu0
        %v1844 = vadd.f32 %v1811, %v1843
        %v1845 = vpop.f32.mrf.mxu0
        %v1846 = vadd.f32 %v1813, %v1845
        %1847 = vmatmul.bf16.gmra.mxu0 %v680
        %v1848 = vpop.f32.mrf.mxu0
        %v1849 = vadd.f32 %v1816, %v1848
        %v1850 = vpop.f32.mrf.mxu0
        %v1851 = vadd.f32 %v1818, %v1850
        %1852 = vmatmul.bf16.gmra.mxu0 %v689
        %v1853 = vpop.f32.mrf.mxu0
        %v1854 = vadd.f32 %v1821, %v1853
        %v1855 = vpop.f32.mrf.mxu0
        %1856 = vdwg.mxu0
        %1857 = vmatpush.bf16.msra.mxu0 %v1236
        %1858 = vmatpush.bf16.msra.mxu0 %v1234
        %1859 = vmatpush.bf16.msra.mxu0 %v1232
        %1860 = vmatpush.bf16.msra.mxu0 %v1230
        %1861 = vmatpush.bf16.msra.mxu0 %v1228
        %1862 = vmatpush.bf16.msra.mxu0 %v1226
        %1863 = vmatpush.bf16.msra.mxu0 %v1224
        %1864 = vmatpush.bf16.msra.mxu0 %v1222
        %1865 = vmatmul.bf16.gmra.mxu0 %v654
        %v1866 = vpop.f32.mrf.mxu0
        %v1867 = vadd.f32 %v1834, %v1866
        %v1868 = vpop.f32.mrf.mxu0
        %v1869 = vadd.f32 %v1836, %v1868
        %1870 = vmatmul.bf16.gmra.mxu0 %v663
        %v1871 = vpop.f32.mrf.mxu0
        %v1872 = vadd.f32 %v1839, %v1871
        %v1873 = vpop.f32.mrf.mxu0
        %v1874 = vadd.f32 %v1841, %v1873
        %1875 = vmatmul.bf16.gmra.mxu0 %v672
        %v1876 = vpop.f32.mrf.mxu0
        %v1877 = vadd.f32 %v1844, %v1876
        %v1878 = vpop.f32.mrf.mxu0
        %v1879 = vadd.f32 %v1846, %v1878
        %1880 = vmatmul.bf16.gmra.mxu0 %v681
        %v1881 = vpop.f32.mrf.mxu0
        %v1882 = vadd.f32 %v1849, %v1881
        %v1883 = vpop.f32.mrf.mxu0
        %v1884 = vadd.f32 %v1851, %v1883
        %1885 = vmatmul.bf16.gmra.mxu0 %v690
        %v1886 = vpop.f32.mrf.mxu0
        %v1887 = vadd.f32 %v1854, %v1886
        %v1888 = vpop.f32.mrf.mxu0
        %1889 = vdwg.mxu0
        %1890 = vmatpush.bf16.msra.mxu0 %v1252
        %1891 = vmatpush.bf16.msra.mxu0 %v1250
        %1892 = vmatpush.bf16.msra.mxu0 %v1248
        %1893 = vmatpush.bf16.msra.mxu0 %v1246
        %1894 = vmatpush.bf16.msra.mxu0 %v1244
        %1895 = vmatpush.bf16.msra.mxu0 %v1242
        %1896 = vmatpush.bf16.msra.mxu0 %v1240
        %1897 = vmatpush.bf16.msra.mxu0 %v1238
        %1898 = vmatmul.bf16.gmra.mxu0 %v655
        %v1899 = vpop.f32.mrf.mxu0
        %v1900 = vadd.f32 %v1867, %v1899
        %v1901 = vpop.f32.mrf.mxu0
        %v1902 = vadd.f32 %v1869, %v1901
        %1903 = vmatmul.bf16.gmra.mxu0 %v664
        %v1904 = vpop.f32.mrf.mxu0
        %v1905 = vadd.f32 %v1872, %v1904
        %v1906 = vpop.f32.mrf.mxu0
        %v1907 = vadd.f32 %v1874, %v1906
        %1908 = vmatmul.bf16.gmra.mxu0 %v673
        %v1909 = vpop.f32.mrf.mxu0
        %v1910 = vadd.f32 %v1877, %v1909
        %v1911 = vpop.f32.mrf.mxu0
        %v1912 = vadd.f32 %v1879, %v1911
        %1913 = vmatmul.bf16.gmra.mxu0 %v682
        %v1914 = vpop.f32.mrf.mxu0
        %v1915 = vadd.f32 %v1882, %v1914
        %v1916 = vpop.f32.mrf.mxu0
        %v1917 = vadd.f32 %v1884, %v1916
        %1918 = vmatmul.bf16.gmra.mxu0 %v691
        %v1919 = vpop.f32.mrf.mxu0
        %v1920 = vadd.f32 %v1887, %v1919
        %v1921 = vpop.f32.mrf.mxu0
        %1922 = vdwg.mxu0
        %1923 = vmatpush.bf16.msra.mxu0 %v1268
        %1924 = vmatpush.bf16.msra.mxu0 %v1266
        %1925 = vmatpush.bf16.msra.mxu0 %v1264
        %1926 = vmatpush.bf16.msra.mxu0 %v1262
        %1927 = vmatpush.bf16.msra.mxu0 %v1260
        %1928 = vmatpush.bf16.msra.mxu0 %v1258
        %1929 = vmatpush.bf16.msra.mxu0 %v1256
        %1930 = vmatpush.bf16.msra.mxu0 %v1254
        %1931 = vmatmul.bf16.gmra.mxu0 %v656
        %v1932 = vpop.f32.mrf.mxu0
        %v1933 = vadd.f32 %v1900, %v1932
        %v1934 = vpop.f32.mrf.mxu0
        %v1935 = vadd.f32 %v1902, %v1934
        %1936 = vmatmul.bf16.gmra.mxu0 %v665
        %v1937 = vpop.f32.mrf.mxu0
        %v1938 = vadd.f32 %v1905, %v1937
        %v1939 = vpop.f32.mrf.mxu0
        %v1940 = vadd.f32 %v1907, %v1939
        %1941 = vmatmul.bf16.gmra.mxu0 %v674
        %v1942 = vpop.f32.mrf.mxu0
        %v1943 = vadd.f32 %v1910, %v1942
        %v1944 = vpop.f32.mrf.mxu0
        %v1945 = vadd.f32 %v1912, %v1944
        %1946 = vmatmul.bf16.gmra.mxu0 %v683
        %v1947 = vpop.f32.mrf.mxu0
        %v1948 = vadd.f32 %v1915, %v1947
        %v1949 = vpop.f32.mrf.mxu0
        %v1950 = vadd.f32 %v1917, %v1949
        %1951 = vmatmul.bf16.gmra.mxu0 %v692
        %v1952 = vpop.f32.mrf.mxu0
        %v1953 = vadd.f32 %v1920, %v1952
        %v1954 = vpop.f32.mrf.mxu0
        %1955 = vdwg.mxu0
        %1956 = vmatpush.bf16.msra.mxu0 %v1284
        %1957 = vmatpush.bf16.msra.mxu0 %v1282
        %1958 = vmatpush.bf16.msra.mxu0 %v1280
        %1959 = vmatpush.bf16.msra.mxu0 %v1278
        %1960 = vmatpush.bf16.msra.mxu0 %v1276
        %1961 = vmatpush.bf16.msra.mxu0 %v1274
        %1962 = vmatpush.bf16.msra.mxu0 %v1272
        %1963 = vmatpush.bf16.msra.mxu0 %v1270
        %1964 = vmatmul.bf16.gmra.mxu0 %v657
        %v1965 = vpop.f32.mrf.mxu0
        %v1966 = vadd.f32 %v1933, %v1965
        %v1967 = vpop.f32.mrf.mxu0
        %v1968 = vadd.f32 %v1935, %v1967
        %1969 = vmatmul.bf16.gmra.mxu0 %v666
        %v1970 = vpop.f32.mrf.mxu0
        %v1971 = vadd.f32 %v1938, %v1970
        %v1972 = vpop.f32.mrf.mxu0
        %v1973 = vadd.f32 %v1940, %v1972
        %1974 = vmatmul.bf16.gmra.mxu0 %v675
        %v1975 = vpop.f32.mrf.mxu0
        %v1976 = vadd.f32 %v1943, %v1975
        %v1977 = vpop.f32.mrf.mxu0
        %v1978 = vadd.f32 %v1945, %v1977
        %1979 = vmatmul.bf16.gmra.mxu0 %v684
        %v1980 = vpop.f32.mrf.mxu0
        %v1981 = vadd.f32 %v1948, %v1980
        %v1982 = vpop.f32.mrf.mxu0
        %v1983 = vadd.f32 %v1950, %v1982
        %1984 = vmatmul.bf16.gmra.mxu0 %v693
        %v1985 = vpop.f32.mrf.mxu0
        %v1986 = vadd.f32 %v1953, %v1985
        %v1987 = vpop.f32.mrf.mxu0
        %1988 = vdwg.mxu0
        %1989 = vmatpush.bf16.msra.mxu0 %v1300
        %1990 = vmatpush.bf16.msra.mxu0 %v1298
        %1991 = vmatpush.bf16.msra.mxu0 %v1296
        %1992 = vmatpush.bf16.msra.mxu0 %v1294
        %1993 = vmatpush.bf16.msra.mxu0 %v1292
        %1994 = vmatpush.bf16.msra.mxu0 %v1290
        %1995 = vmatpush.bf16.msra.mxu0 %v1288
        %1996 = vmatpush.bf16.msra.mxu0 %v1286
        %1997 = vmatmul.bf16.gmra.mxu0 %v658
        %v1998 = vpop.f32.mrf.mxu0
        %v1999 = vadd.f32 %v1966, %v1998
        %v2000 = vpop.f32.mrf.mxu0
        %v2001 = vadd.f32 %v1968, %v2000
        %2002 = vmatmul.bf16.gmra.mxu0 %v667
        %v2003 = vpop.f32.mrf.mxu0
        %v2004 = vadd.f32 %v1971, %v2003
        %v2005 = vpop.f32.mrf.mxu0
        %v2006 = vadd.f32 %v1973, %v2005
        %2007 = vmatmul.bf16.gmra.mxu0 %v676
        %v2008 = vpop.f32.mrf.mxu0
        %v2009 = vadd.f32 %v1976, %v2008
        %v2010 = vpop.f32.mrf.mxu0
        %v2011 = vadd.f32 %v1978, %v2010
        %2012 = vmatmul.bf16.gmra.mxu0 %v685
        %v2013 = vpop.f32.mrf.mxu0
        %v2014 = vadd.f32 %v1981, %v2013
        %v2015 = vpop.f32.mrf.mxu0
        %v2016 = vadd.f32 %v1983, %v2015
        %2017 = vmatmul.bf16.gmra.mxu0 %v694
        %v2018 = vpop.f32.mrf.mxu0
        %v2019 = vadd.f32 %v1986, %v2018
        %v2020 = vpop.f32.mrf.mxu0
        %2021 = vdwg.mxu0
        %2022 = vmatpush.bf16.msra.mxu0 %v1316
        %2023 = vmatpush.bf16.msra.mxu0 %v1314
        %2024 = vmatpush.bf16.msra.mxu0 %v1312
        %2025 = vmatpush.bf16.msra.mxu0 %v1310
        %2026 = vmatpush.bf16.msra.mxu0 %v1308
        %2027 = vmatpush.bf16.msra.mxu0 %v1306
        %2028 = vmatpush.bf16.msra.mxu0 %v1304
        %2029 = vmatpush.bf16.msra.mxu0 %v1302
        %2030 = vmatmul.bf16.gmra.mxu0 %v659
        %v2031 = vpop.f32.mrf.mxu0
        %v2032 = vadd.f32 %v1999, %v2031
        %v2033 = vpop.f32.mrf.mxu0
        %v2034 = vadd.f32 %v2001, %v2033
        %2035 = vmatmul.bf16.gmra.mxu0 %v668
        %v2036 = vpop.f32.mrf.mxu0
        %v2037 = vadd.f32 %v2004, %v2036
        %v2038 = vpop.f32.mrf.mxu0
        %v2039 = vadd.f32 %v2006, %v2038
        %2040 = vmatmul.bf16.gmra.mxu0 %v677
        %v2041 = vpop.f32.mrf.mxu0
        %v2042 = vadd.f32 %v2009, %v2041
        %v2043 = vpop.f32.mrf.mxu0
        %v2044 = vadd.f32 %v2011, %v2043
        %2045 = vmatmul.bf16.gmra.mxu0 %v686
        %v2046 = vpop.f32.mrf.mxu0
        %v2047 = vadd.f32 %v2014, %v2046
        %v2048 = vpop.f32.mrf.mxu0
        %v2049 = vadd.f32 %v2016, %v2048
        %2050 = vmatmul.bf16.gmra.mxu0 %v695
        %v2051 = vpop.f32.mrf.mxu0
        %v2052 = vadd.f32 %v2019, %v2051
        %v2053 = vpop.f32.mrf.mxu0
        %2054 = vdwg.mxu0
        %p2055 = scmp.eq.s32.totalorder %s19, 0
        %p2056 = scmp.lt.s32.totalorder %s19, 17
        %p2057 = pnand %p2055, %p2056
        %p2058 = pneg %p2057
        // Predicated region
        $region59: #{capsule_network_forward.5} parent=53 // pred_check
          _
        $region60: #{capsule_network_forward.5} parent=53 // pred_check_branch
          %2060 = sbr.rel (%p2057) target = $region62
        $region61: #{capsule_network_forward.5} parent=53 // pred_region
          %2061 = vst [vmem:[%s334] sm:$0xff] %v1735
          %2062 = vst [vmem:[%s334 + $0x8] sm:$0xff] %v2032
          %2063 = vst [vmem:[%s334 + $0x10] sm:$0xff] %v1737
          %2064 = vst [vmem:[%s334 + $0x18] sm:$0xff] %v2034
          %2065 = vst [vmem:[%s334 + $0x20] sm:$0xff] %v1740
          %2066 = vst [vmem:[%s334 + $0x28] sm:$0xff] %v2037
          %2067 = vst [vmem:[%s334 + $0x30] sm:$0xff] %v1742
          %2068 = vst [vmem:[%s334 + $0x38] sm:$0xff] %v2039
          %2069 = vst [vmem:[%s334 + $0x40] sm:$0xff] %v1745
          %2070 = vst [vmem:[%s334 + $0x48] sm:$0xff] %v2042
          %2071 = vst [vmem:[%s334 + $0x50] sm:$0xff] %v1747
          %2072 = vst [vmem:[%s334 + $0x58] sm:$0xff] %v2044
          %2073 = vst [vmem:[%s334 + $0x60] sm:$0xff] %v1750
          %2074 = vst [vmem:[%s334 + $0x68] sm:$0xff] %v2047
          %2075 = vst [vmem:[%s334 + $0x70] sm:$0xff] %v1752
          %2076 = vst [vmem:[%s334 + $0x78] sm:$0xff] %v2049
          %2077 = vst [vmem:[%s334 + $0x80] sm:$0xff] %v1755
          %2078 = vst [vmem:[%s334 + $0x88] sm:$0xff] %v2052
        $region62: #{capsule_network_forward.5} parent=53 // pred_fallthru
          _
        %p2079 = scmp.gt.s32.totalorder %s19, 0
        %p2080 = pnand %p2079, %p2056
        %p2081 = pneg %p2080
        // Predicated region
        $region63: #{capsule_network_forward.5} parent=53 // pred_check
          _
        $region64: #{capsule_network_forward.5} parent=53 // pred_check_branch
          %2083 = sbr.rel (%p2080) target = $region66
        $region65: #{capsule_network_forward.5} parent=53 // pred_region
          %v2084 = vld [vmem:[%s334] sm:$0xff]
          %v2085 = vld [vmem:[%s334 + $0x8] sm:$0xff]
          %v2086 = vld [vmem:[%s334 + $0x10] sm:$0xff]
          %v2087 = vld [vmem:[%s334 + $0x18] sm:$0xff]
          %v2088 = vld [vmem:[%s334 + $0x20] sm:$0xff]
          %v2089 = vld [vmem:[%s334 + $0x28] sm:$0xff]
          %v2090 = vld [vmem:[%s334 + $0x30] sm:$0xff]
          %v2091 = vld [vmem:[%s334 + $0x38] sm:$0xff]
          %v2092 = vld [vmem:[%s334 + $0x40] sm:$0xff]
          %v2093 = vld [vmem:[%s334 + $0x48] sm:$0xff]
          %v2094 = vld [vmem:[%s334 + $0x50] sm:$0xff]
          %v2095 = vld [vmem:[%s334 + $0x58] sm:$0xff]
          %v2096 = vld [vmem:[%s334 + $0x60] sm:$0xff]
          %v2097 = vld [vmem:[%s334 + $0x68] sm:$0xff]
          %v2098 = vld [vmem:[%s334 + $0x70] sm:$0xff]
          %v2099 = vld [vmem:[%s334 + $0x78] sm:$0xff]
          %v2100 = vld [vmem:[%s334 + $0x80] sm:$0xff]
          %v2101 = vld [vmem:[%s334 + $0x88] sm:$0xff]
          %v2102 = vadd.f32 %v2084, %v1735
          %v2103 = vadd.f32 %v2085, %v2032
          %v2104 = vadd.f32 %v2086, %v1737
          %v2105 = vadd.f32 %v2087, %v2034
          %v2106 = vadd.f32 %v2088, %v1740
          %v2107 = vadd.f32 %v2089, %v2037
          %v2108 = vadd.f32 %v2090, %v1742
          %v2109 = vadd.f32 %v2091, %v2039
          %v2110 = vadd.f32 %v2092, %v1745
          %v2111 = vadd.f32 %v2093, %v2042
          %v2112 = vadd.f32 %v2094, %v1747
          %v2113 = vadd.f32 %v2095, %v2044
          %v2114 = vadd.f32 %v2096, %v1750
          %v2115 = vadd.f32 %v2097, %v2047
          %v2116 = vadd.f32 %v2098, %v1752
          %v2117 = vadd.f32 %v2099, %v2049
          %v2118 = vadd.f32 %v2100, %v1755
          %v2119 = vadd.f32 %v2101, %v2052
          %2120 = vst [vmem:[%s334] sm:$0xff] %v2102
          %2121 = vst [vmem:[%s334 + $0x8] sm:$0xff] %v2103
          %2122 = vst [vmem:[%s334 + $0x10] sm:$0xff] %v2104
          %2123 = vst [vmem:[%s334 + $0x18] sm:$0xff] %v2105
          %2124 = vst [vmem:[%s334 + $0x20] sm:$0xff] %v2106
          %2125 = vst [vmem:[%s334 + $0x28] sm:$0xff] %v2107
          %2126 = vst [vmem:[%s334 + $0x30] sm:$0xff] %v2108
          %2127 = vst [vmem:[%s334 + $0x38] sm:$0xff] %v2109
          %2128 = vst [vmem:[%s334 + $0x40] sm:$0xff] %v2110
          %2129 = vst [vmem:[%s334 + $0x48] sm:$0xff] %v2111
          %2130 = vst [vmem:[%s334 + $0x50] sm:$0xff] %v2112
          %2131 = vst [vmem:[%s334 + $0x58] sm:$0xff] %v2113
          %2132 = vst [vmem:[%s334 + $0x60] sm:$0xff] %v2114
          %2133 = vst [vmem:[%s334 + $0x68] sm:$0xff] %v2115
          %2134 = vst [vmem:[%s334 + $0x70] sm:$0xff] %v2116
          %2135 = vst [vmem:[%s334 + $0x78] sm:$0xff] %v2117
          %2136 = vst [vmem:[%s334 + $0x80] sm:$0xff] %v2118
          %2137 = vst [vmem:[%s334 + $0x88] sm:$0xff] %v2119
        $region66: #{capsule_network_forward.5} parent=53 // pred_fallthru
          _
        %p2138 = scmp.eq.s32.totalorder %s19, 17
        // Predicated region
        $region67: #{capsule_network_forward.5} parent=53 // pred_check
          %p2139 = pneg %p2138
        $region68: #{capsule_network_forward.5} parent=53 // pred_check_branch
          %2141 = sbr.rel (%p2139) target = $region70
        $region69: #{capsule_network_forward.5} parent=53 // pred_region
          %v2142 = vld [vmem:[%s2] sm:$0x3]
          %v2144 = vperm.slane %v2142, 0
          %v2145 = vperm.slane %v2142, 1
          %v2148 = vadd.f32 %v1735, %v2144
          %v2149 = vadd.f32 %v2032, %v2145
          %v2150 = vadd.f32 %v1737, %v2144
          %v2151 = vadd.f32 %v2034, %v2145
          %v2152 = vadd.f32 %v1740, %v2144
          %v2153 = vadd.f32 %v2037, %v2145
          %v2154 = vadd.f32 %v1742, %v2144
          %v2155 = vadd.f32 %v2039, %v2145
          %v2156 = vadd.f32 %v1745, %v2144
          %v2157 = vadd.f32 %v2042, %v2145
          %v2158 = vadd.f32 %v1747, %v2144
          %v2159 = vadd.f32 %v2044, %v2145
          %v2160 = vadd.f32 %v1750, %v2144
          %v2161 = vadd.f32 %v2047, %v2145
          %v2162 = vadd.f32 %v1752, %v2144
          %v2163 = vadd.f32 %v2049, %v2145
          %v2164 = vadd.f32 %v1755, %v2144
          %v2165 = vadd.f32 %v2052, %v2145
          %v2166 = vld [vmem:[%s334] sm:$0xff]
          %v2167 = vld [vmem:[%s334 + $0x8] sm:$0xff]
          %v2168 = vld [vmem:[%s334 + $0x10] sm:$0xff]
          %v2169 = vld [vmem:[%s334 + $0x18] sm:$0xff]
          %v2170 = vld [vmem:[%s334 + $0x20] sm:$0xff]
          %v2171 = vld [vmem:[%s334 + $0x28] sm:$0xff]
          %v2172 = vld [vmem:[%s334 + $0x30] sm:$0xff]
          %v2173 = vld [vmem:[%s334 + $0x38] sm:$0xff]
          %v2174 = vld [vmem:[%s334 + $0x40] sm:$0xff]
          %v2175 = vld [vmem:[%s334 + $0x48] sm:$0xff]
          %v2176 = vld [vmem:[%s334 + $0x50] sm:$0xff]
          %v2177 = vld [vmem:[%s334 + $0x58] sm:$0xff]
          %v2178 = vld [vmem:[%s334 + $0x60] sm:$0xff]
          %v2179 = vld [vmem:[%s334 + $0x68] sm:$0xff]
          %v2180 = vld [vmem:[%s334 + $0x70] sm:$0xff]
          %v2181 = vld [vmem:[%s334 + $0x78] sm:$0xff]
          %v2182 = vld [vmem:[%s334 + $0x80] sm:$0xff]
          %v2183 = vld [vmem:[%s334 + $0x88] sm:$0xff]
          %v2184 = vadd.f32 %v2148, %v2166
          %v2185 = vadd.f32 %v2149, %v2167
          %v2186 = vadd.f32 %v2150, %v2168
          %v2187 = vadd.f32 %v2151, %v2169
          %v2188 = vadd.f32 %v2152, %v2170
          %v2189 = vadd.f32 %v2153, %v2171
          %v2190 = vadd.f32 %v2154, %v2172
          %v2191 = vadd.f32 %v2155, %v2173
          %v2192 = vadd.f32 %v2156, %v2174
          %v2193 = vadd.f32 %v2157, %v2175
          %v2194 = vadd.f32 %v2158, %v2176
          %v2195 = vadd.f32 %v2159, %v2177
          %v2196 = vadd.f32 %v2160, %v2178
          %v2197 = vadd.f32 %v2161, %v2179
          %v2198 = vadd.f32 %v2162, %v2180
          %v2199 = vadd.f32 %v2163, %v2181
          %v2200 = vadd.f32 %v2164, %v2182
          %v2201 = vadd.f32 %v2165, %v2183
          %2202 = vst [vmem:[%s334] sm:$0xff] %v2184
          %2203 = vst [vmem:[%s334 + $0x8] sm:$0xff] %v2185
          %2204 = vst [vmem:[%s334 + $0x10] sm:$0xff] %v2186
          %2205 = vst [vmem:[%s334 + $0x18] sm:$0xff] %v2187
          %2206 = vst [vmem:[%s334 + $0x20] sm:$0xff] %v2188
          %2207 = vst [vmem:[%s334 + $0x28] sm:$0xff] %v2189
          %2208 = vst [vmem:[%s334 + $0x30] sm:$0xff] %v2190
          %2209 = vst [vmem:[%s334 + $0x38] sm:$0xff] %v2191
          %2210 = vst [vmem:[%s334 + $0x40] sm:$0xff] %v2192
          %2211 = vst [vmem:[%s334 + $0x48] sm:$0xff] %v2193
          %2212 = vst [vmem:[%s334 + $0x50] sm:$0xff] %v2194
          %2213 = vst [vmem:[%s334 + $0x58] sm:$0xff] %v2195
          %2214 = vst [vmem:[%s334 + $0x60] sm:$0xff] %v2196
          %2215 = vst [vmem:[%s334 + $0x68] sm:$0xff] %v2197
          %2216 = vst [vmem:[%s334 + $0x70] sm:$0xff] %v2198
          %2217 = vst [vmem:[%s334 + $0x78] sm:$0xff] %v2199
          %2218 = vst [vmem:[%s334 + $0x80] sm:$0xff] %v2200
          %2219 = vst [vmem:[%s334 + $0x88] sm:$0xff] %v2201
        $region70: #{capsule_network_forward.5} parent=53 // pred_fallthru
          _
        %s2220 = smul.u32 9, %s18
        %p2221 = scmp.lt.s32.totalorder %s2220, 8
        %s2222 = scalar_select %p2221, %s2220, 8
        %s2223 = smul.addr %s2222, 2
        %s2224 = smul.addr %s2223, 8
        %s2225 = scalar_lea.vmem %s3, %s2224
        // Predicated region
        $region71: #{capsule_network_forward.5} parent=53 // pred_check
          %p2226 = pneg %p119
        $region72: #{capsule_network_forward.5} parent=53 // pred_check_branch
          %2228 = sbr.rel (%p2226) target = $region74
        $region73: #{capsule_network_forward.5} parent=53 // pred_region
          %s2229 = smul.u32 9, %s18
        $region74: #{capsule_network_forward.5} parent=53 // pred_fallthru
          _
        // Predicated region
        $region75: #{capsule_network_forward.5} parent=53 // pred_check
          %p2230 = pneg %p119
        $region76: #{capsule_network_forward.5} parent=53 // pred_check_branch
          %2232 = sbr.rel (%p2230) target = $region78
        $region77: #{capsule_network_forward.5} parent=53 // pred_region
          %s2233 = smul.u32 9, %s18
          %p2234 = scmp.lt.s32.totalorder %s2233, 8
          %s2235 = scalar_select %p2234, %s2233, 8
          %s2236 = smul.addr %s2235, 2
          %s2237 = smul.addr %s2236, 8
          %s2238 = scalar_lea.vmem %s3, %s2237
        $region78: #{capsule_network_forward.5} parent=53 // pred_fallthru
          _
      $region54: #{capsule_network_forward.5} parent=5 // pred_fallthru
        _
      %p2239 = scmp.le.s32.totalorder 2, %s9
      // Predicated region
      $region79: #{capsule_network_forward.5} parent=5 // pred_check
        %p2240 = pneg %p2239
      $region80: #{capsule_network_forward.5} parent=5 // pred_check_branch
        %2242 = sbr.rel (%p2240) target = $region82
      $region81: #{capsule_network_forward.5} parent=5 // pred_region
        %s2243 = ssub.s32 %s9, 2
      $region82: #{capsule_network_forward.5} parent=5 // pred_fallthru
        _
    $region6: #{capsule_network_forward.5} parent=1 // loop_footer
      %s13 = sadd.s32 1, %s9
    $region7: #{capsule_network_forward.5} parent=1 // loop_footer_branch
      %8 = sbr.rel target = $region3
    $region8: #{capsule_network_forward.5} parent=1 // loop_exit
      _

// kernel: capsule_network_forward.6
$region0: #{capsule_network_forward.6}
  #allocation0 [shape = 'u32[]', space=smem, size = 0x4, offset = 0x4, fixed_abs, tag = 'smem constant byte address 0x4 - core index']
  #allocation1 [shape = 'u32[72,128]{1,0:T(1,128)}', space=vmem, size = 0x9000, scoped, tag = 'internal scratch']
  %s0 = inlined_call_operand.vmem [shape: f32[8,2,1152], index: 0, kind: input, shape index: {}]
  %s1 = inlined_call_operand.vmem [shape: f32[8,2,1152], index: 1, kind: output, shape index: {}]
  %s2 = sld [smem:[#allocation0]]
  $region115: #{capsule_network_forward.6} parent=0
    _
  %s4 = ssub.s32 1, %s2
  %s5 = scalar_select 0, %s4, %s2
  $region1: #{capsule_network_forward.6} parent=0
    #allocation2 [shape = 'u8[49152]{0}', space=vmem, size = 0xc000, scoped, tag = 'input window, operand 0']
    #allocation3 [shape = 'u8[49152]{0}', space=vmem, size = 0xc000, scoped, tag = 'output window, operand 0']
    loop: start=0, step=1, limit=5
    $region2: #{capsule_network_forward.6} parent=1 // loop_pre_header
      _
    $region3: #{capsule_network_forward.6} parent=1 // loop_header
      %s7 = sphi 0, %s11
      %p8 = scmp.ge.s32.totalorder %s7, 5
      %s17 = sphi 0, %s19
      %s20 = sphi 0, %s17
      %s21 = sphi 0, %s20
      %s37 = sphi 0, %s21
      %s43 = sphi 0, %s45
      %s46 = sphi 0, %s43
      %s47 = sphi 0, %s46
      %s63 = sphi 0, %s47
    $region4: #{capsule_network_forward.6} parent=1 // loop_header_branch
      %10 = sbr.rel (%p8) target = $region8
    $region5: #{capsule_network_forward.6} parent=1 // loop_body
      %s12 = ssub.s32 %s7, 1
      %s13 = ssub.s32 %s7, 2
      %s14 = sadd.s32 %s7, 1
      %s15 = ssub.s32 %s7, %s14
      %p16 = scmp.eq.s32.totalorder %s15, 0
      %s18 = sadd.s32 %s17, 1
      %s19 = scalar_select %p16, %s17, %s18
      %p22 = pneg %p16
      %p23 = scmp.eq.s32.totalorder %s7, 2
      %p24 = por %p22, %p23
      %p25 = scmp.ne.s32.totalorder %s17, %s20
      %p26 = scmp.eq.s32.totalorder %s7, 0
      %p27 = por %p25, %p26
      %p28 = scmp.ne.s32.totalorder %s17, %s20
      %p29 = scmp.eq.s32.totalorder %s12, 2
      %p30 = por %p28, %p29
      %p31 = scmp.ne.s32.totalorder %s20, %s21
      %p32 = scmp.eq.s32.totalorder %s12, 0
      %p33 = por %p31, %p32
      %p34 = scmp.ne.s32.totalorder %s20, %s21
      %p35 = scmp.eq.s32.totalorder %s13, 2
      %p36 = por %p34, %p35
      %p38 = scmp.ne.s32.totalorder %s21, %s37
      %p39 = scmp.eq.s32.totalorder %s13, 0
      %p40 = por %p38, %p39
      %s41 = ssub.s32 %s7, %s14
      %p42 = scmp.eq.s32.totalorder %s41, 0
      %s44 = sadd.s32 %s43, 1
      %s45 = scalar_select %p42, %s43, %s44
      %p48 = pneg %p42
      %p49 = scmp.eq.s32.totalorder %s7, 2
      %p50 = por %p48, %p49
      %p51 = scmp.ne.s32.totalorder %s43, %s46
      %p52 = scmp.eq.s32.totalorder %s7, 0
      %p53 = por %p51, %p52
      %p54 = scmp.ne.s32.totalorder %s43, %s46
      %p55 = scmp.eq.s32.totalorder %s12, 2
      %p56 = por %p54, %p55
      %p57 = scmp.ne.s32.totalorder %s46, %s47
      %p58 = scmp.eq.s32.totalorder %s12, 0
      %p59 = por %p57, %p58
      %p60 = scmp.ne.s32.totalorder %s46, %s47
      %p61 = scmp.eq.s32.totalorder %s13, 2
      %p62 = por %p60, %p61
      %p64 = scmp.ne.s32.totalorder %s47, %s63
      %p65 = scmp.eq.s32.totalorder %s13, 0
      %p66 = por %p64, %p65
      %p67 = scmp.le.s32.totalorder 1, %s7
      %p68 = scmp.lt.s32.totalorder %s7, 4
      %p69 = pnand %p67, %p68
      %p70 = pneg %p69
      // Predicated region
      $region9: #{capsule_network_forward.6} parent=5 // pred_check
        _
      $region10: #{capsule_network_forward.6} parent=5 // pred_check_branch
        %72 = sbr.rel (%p69) target = $region12
      $region11: #{capsule_network_forward.6} parent=5 // pred_region
        %s73 = ssub.s32 %s7, 1
      $region12: #{capsule_network_forward.6} parent=5 // pred_fallthru
        _
      %p74 = scmp.lt.s32.totalorder %s7, 3
      // Predicated region
      $region13: #{capsule_network_forward.6} parent=5 // pred_check
        %p75 = pneg %p74
      $region14: #{capsule_network_forward.6} parent=5 // pred_check_branch
        %77 = sbr.rel (%p75) target = $region16
      $region15: #{capsule_network_forward.6} parent=5 // pred_region
        // Predicated region
        $region17: #{capsule_network_forward.6} parent=15 // pred_check
          %p78 = pneg %p27
        $region18: #{capsule_network_forward.6} parent=15 // pred_check_branch
          %80 = sbr.rel (%p78) target = $region20
        $region19: #{capsule_network_forward.6} parent=15 // pred_region
          %s81 = sand.u32 %s17, 1
          %s82 = sand.u32 %s17, 1
          %s83 = smul.addr %s82, 48
          %s84 = scalar_lea.vmem [#allocation2], %s83
          %s85 = smul.u32 3, %s7
          %s86 = smul.addr %s85, 2
          %s87 = scalar_lea.vmem %s0, %s86
          // Predicated region
          $region21: #{capsule_network_forward.6} parent=19 // pred_check
            _
          $region22: #{capsule_network_forward.6} parent=19 // pred_check_branch
            %89 = sbr.rel (0) target = $region24
          $region23: #{capsule_network_forward.6} parent=19 // pred_region
            // Predicated region
            $region25: #{capsule_network_forward.6} parent=23 // pred_check
              _
            $region26: #{capsule_network_forward.6} parent=23 // pred_check_branch
              %91 = sbr.rel target = $region28
            $region27: #{capsule_network_forward.6} parent=23 // pred_region
              // Predicated region
              $region40: #{capsule_network_forward.6} parent=27 // pred_check
                _
              $region41: #{capsule_network_forward.6} parent=27 // pred_check_branch
                %121 = sbr.rel (0) target = $region43
              $region42: #{capsule_network_forward.6} parent=27 // pred_region
                loop: start=0, step=1, limit=1
                $region44: #{capsule_network_forward.6} parent=42 // loop_pre_header
                  _
                $region45: #{capsule_network_forward.6} parent=42 // loop_header
                  %s123 = sphi 0, %s127
                  %p124 = scmp.ge.s32.totalorder %s123, 1
                  %s128 = sphi %s87, %s87
                  %s129 = sphi %s84, %s84
                $region46: #{capsule_network_forward.6} parent=42 // loop_header_branch
                  %126 = sbr.rel (%p124) target = $region50
                $region47: #{capsule_network_forward.6} parent=42 // loop_body
                  _
                $region48: #{capsule_network_forward.6} parent=42 // loop_footer
                  %s127 = sadd.s32 1, %s123
                $region49: #{capsule_network_forward.6} parent=42 // loop_footer_branch
                  %122 = sbr.rel target = $region45
                $region50: #{capsule_network_forward.6} parent=42 // loop_exit
                  _
                %s131 = ssub.s32 64, 1
                loop: start=0, step=1, limit=1
                $region51: #{capsule_network_forward.6} parent=42 // loop_pre_header
                  _
                $region52: #{capsule_network_forward.6} parent=42 // loop_header
                  %s133 = sphi 0, %s137
                  %p134 = scmp.ge.s32.totalorder %s133, 1
                  %s138 = sphi %s87, %s87
                  %s139 = sphi %s84, %s84
                $region53: #{capsule_network_forward.6} parent=42 // loop_header_branch
                  %136 = sbr.rel (%p134) target = $region57
                $region54: #{capsule_network_forward.6} parent=42 // loop_body
                  %v140 = vld [vmem:[%s138] sm:%s131]
                  %141 = vst [vmem:[%s139] sm:%s131] %v140
                  %v142 = vld [vmem:[%s138 + $0x12] sm:%s131]
                  %143 = vst [vmem:[%s139 + $0x6] sm:%s131] %v142
                  %v144 = vld [vmem:[%s138 + $0x24] sm:%s131]
                  %145 = vst [vmem:[%s139 + $0xc] sm:%s131] %v144
                  %v146 = vld [vmem:[%s138 + $0x36] sm:%s131]
                  %147 = vst [vmem:[%s139 + $0x12] sm:%s131] %v146
                  %v148 = vld [vmem:[%s138 + $0x48] sm:%s131]
                  %149 = vst [vmem:[%s139 + $0x18] sm:%s131] %v148
                  %v150 = vld [vmem:[%s138 + $0x5a] sm:%s131]
                  %151 = vst [vmem:[%s139 + $0x1e] sm:%s131] %v150
                  %v152 = vld [vmem:[%s138 + $0x6c] sm:%s131]
                  %153 = vst [vmem:[%s139 + $0x24] sm:%s131] %v152
                  %v154 = vld [vmem:[%s138 + $0x7e] sm:%s131]
                  %155 = vst [vmem:[%s139 + $0x2a] sm:%s131] %v154
                $region55: #{capsule_network_forward.6} parent=42 // loop_footer
                  %s137 = sadd.s32 1, %s133
                $region56: #{capsule_network_forward.6} parent=42 // loop_footer_branch
                  %132 = sbr.rel target = $region52
                $region57: #{capsule_network_forward.6} parent=42 // loop_exit
                  _
              $region43: #{capsule_network_forward.6} parent=27 // pred_fallthru
                _
            $region28: #{capsule_network_forward.6} parent=23 // pred_fallthru
              _
            // Predicated region
            $region29: #{capsule_network_forward.6} parent=23 // pred_check
              _
            $region30: #{capsule_network_forward.6} parent=23 // pred_check_branch
              %93 = sbr.rel (0) target = $region32
            $region31: #{capsule_network_forward.6} parent=23 // pred_region
              %s95 = ssub.s32 64, 1
              loop: start=0, step=1, limit=1
              $region33: #{capsule_network_forward.6} parent=31 // loop_pre_header
                _
              $region34: #{capsule_network_forward.6} parent=31 // loop_header
                %s97 = sphi 0, %s101
                %p98 = scmp.ge.s32.totalorder %s97, 1
                %s102 = sphi %s87, %s87
                %s103 = sphi %s84, %s84
              $region35: #{capsule_network_forward.6} parent=31 // loop_header_branch
                %100 = sbr.rel (%p98) target = $region39
              $region36: #{capsule_network_forward.6} parent=31 // loop_body
                %v104 = vld [vmem:[%s102] sm:%s95]
                %105 = vst [vmem:[%s103] sm:%s95] %v104
                %v106 = vld [vmem:[%s102 + $0x12] sm:%s95]
                %107 = vst [vmem:[%s103 + $0x6] sm:%s95] %v106
                %v108 = vld [vmem:[%s102 + $0x24] sm:%s95]
                %109 = vst [vmem:[%s103 + $0xc] sm:%s95] %v108
                %v110 = vld [vmem:[%s102 + $0x36] sm:%s95]
                %111 = vst [vmem:[%s103 + $0x12] sm:%s95] %v110
                %v112 = vld [vmem:[%s102 + $0x48] sm:%s95]
                %113 = vst [vmem:[%s103 + $0x18] sm:%s95] %v112
                %v114 = vld [vmem:[%s102 + $0x5a] sm:%s95]
                %115 = vst [vmem:[%s103 + $0x1e] sm:%s95] %v114
                %v116 = vld [vmem:[%s102 + $0x6c] sm:%s95]
                %117 = vst [vmem:[%s103 + $0x24] sm:%s95] %v116
                %v118 = vld [vmem:[%s102 + $0x7e] sm:%s95]
                %119 = vst [vmem:[%s103 + $0x2a] sm:%s95] %v118
              $region37: #{capsule_network_forward.6} parent=31 // loop_footer
                %s101 = sadd.s32 1, %s97
              $region38: #{capsule_network_forward.6} parent=31 // loop_footer_branch
                %96 = sbr.rel target = $region34
              $region39: #{capsule_network_forward.6} parent=31 // loop_exit
                _
            $region32: #{capsule_network_forward.6} parent=23 // pred_fallthru
              _
          $region24: #{capsule_network_forward.6} parent=19 // pred_fallthru
            _
          %156 = vnop
        $region20: #{capsule_network_forward.6} parent=15 // pred_fallthru
          _
      $region16: #{capsule_network_forward.6} parent=5 // pred_fallthru
        _
      %p157 = scmp.le.s32.totalorder 1, %s7
      %p158 = scmp.lt.s32.totalorder %s7, 4
      %p159 = pnand %p157, %p158
      %p160 = pneg %p159
      // Predicated region
      $region58: #{capsule_network_forward.6} parent=5 // pred_check
        _
      $region59: #{capsule_network_forward.6} parent=5 // pred_check_branch
        %162 = sbr.rel (%p159) target = $region61
      $region60: #{capsule_network_forward.6} parent=5 // pred_region
        %s163 = ssub.s32 %s7, 1
        %s164 = sand.u32 %s20, 1
        %s165 = sand.u32 %s20, 1
        %s166 = smul.addr %s165, 48
        %s167 = scalar_lea.vmem [#allocation2], %s166
        // Predicated region
        $region62: #{capsule_network_forward.6} parent=60 // pred_check
          %p168 = pneg %p33
        $region63: #{capsule_network_forward.6} parent=60 // pred_check_branch
          %170 = sbr.rel (%p168) target = $region65
        $region64: #{capsule_network_forward.6} parent=60 // pred_region
          _
        $region65: #{capsule_network_forward.6} parent=60 // pred_fallthru
          _
        %s171 = sand.u32 %s20, 1
        %s172 = sand.u32 %s20, 1
        %s173 = smul.addr %s172, 48
        %s174 = scalar_lea.vmem [#allocation2], %s173
        %p175 = pneg %p33
        %p176 = pneg %p30
        %p177 = pneg %p59
        %p178 = pneg %p56
        %s179 = sand.u32 %s46, 1
        %s180 = sand.u32 %s46, 1
        %s181 = smul.addr %s180, 48
        %s182 = scalar_lea.vmem [#allocation3], %s181
        %s183 = smul.u32 3, %s12
        %s184 = smul.u32 3, %s12
        %v185 = vld [vmem:[%s167] sm:$0x3f]
        %v186 = vmul.f32 %v185, %v185
        %v187 = vadd.f32 %v186, 0.0
        %s188 = scalar_lea.vmem %s167, 6 [#allocation2]
        %v189 = vld [vmem:[%s188] sm:$0x3f]
        %v190 = vmul.f32 %v189, %v189
        %v191 = vadd.f32 %v187, %v190
        %s192 = scalar_lea.vmem %s167, 12 [#allocation2]
        %v193 = vld [vmem:[%s192] sm:$0x3f]
        %v194 = vmul.f32 %v193, %v193
        %v195 = vadd.f32 %v191, %v194
        %s196 = scalar_lea.vmem %s167, 18 [#allocation2]
        %v197 = vld [vmem:[%s196] sm:$0x3f]
        %v198 = vmul.f32 %v197, %v197
        %v199 = vadd.f32 %v195, %v198
        %s200 = scalar_lea.vmem %s167, 24 [#allocation2]
        %v201 = vld [vmem:[%s200] sm:$0x3f]
        %v202 = vmul.f32 %v201, %v201
        %v203 = vadd.f32 %v199, %v202
        %s204 = scalar_lea.vmem %s167, 30 [#allocation2]
        %v205 = vld [vmem:[%s204] sm:$0x3f]
        %v206 = vmul.f32 %v205, %v205
        %v207 = vadd.f32 %v203, %v206
        %s208 = scalar_lea.vmem %s167, 36 [#allocation2]
        %v209 = vld [vmem:[%s208] sm:$0x3f]
        %v210 = vmul.f32 %v209, %v209
        %v211 = vadd.f32 %v207, %v210
        %s212 = scalar_lea.vmem %s167, 42 [#allocation2]
        %v213 = vld [vmem:[%s212] sm:$0x3f]
        %v214 = vmul.f32 %v213, %v213
        %v215 = vadd.f32 %v211, %v214
        %v216 = vadd.f32 %v215, 1.0
        %v217 = vrcp.pop %v216
        %v218 = vmul.f32 %v215, %v217
        %v219 = vadd.f32 %v215, 1e-12
        %v220 = vrsqrt.pop %v219
        %v221 = vmul.f32 %v220, %v219
        %v222 = vmul.f32 %v221, %v220
        %v223 = vmul.f32 0.5, %v222
        %v224 = vsub.f32 1.5, %v223
        %v225 = vmul.f32 %v220, %v224
        %vm226 = vweird.f32 %v219
        %vm227 = vweird.f32 %v220
        %vm228 = vmor %vm226, %vm227
        %v229 = vsel %vm228, %v220, %v225
        %v230 = vmul.f32 %v218, %v229
        %v231 = vmul.f32 %v185, %v230
        %232 = vst [vmem:[%s182] sm:$0x3f] %v231
        %v233 = vld [vmem:[%s188] sm:$0x3f]
        %v234 = vmul.f32 %v233, %v230
        %s235 = scalar_lea.vmem %s182, 6 [#allocation3]
        %236 = vst [vmem:[%s235] sm:$0x3f] %v234
        %v237 = vld [vmem:[%s192] sm:$0x3f]
        %v238 = vmul.f32 %v237, %v230
        %s239 = scalar_lea.vmem %s182, 12 [#allocation3]
        %240 = vst [vmem:[%s239] sm:$0x3f] %v238
        %v241 = vld [vmem:[%s196] sm:$0x3f]
        %v242 = vmul.f32 %v241, %v230
        %s243 = scalar_lea.vmem %s182, 18 [#allocation3]
        %244 = vst [vmem:[%s243] sm:$0x3f] %v242
        %v245 = vld [vmem:[%s200] sm:$0x3f]
        %v246 = vmul.f32 %v245, %v230
        %s247 = scalar_lea.vmem %s182, 24 [#allocation3]
        %248 = vst [vmem:[%s247] sm:$0x3f] %v246
        %v249 = vld [vmem:[%s204] sm:$0x3f]
        %v250 = vmul.f32 %v249, %v230
        %s251 = scalar_lea.vmem %s182, 30 [#allocation3]
        %252 = vst [vmem:[%s251] sm:$0x3f] %v250
        %v253 = vld [vmem:[%s208] sm:$0x3f]
        %v254 = vmul.f32 %v253, %v230
        %s255 = scalar_lea.vmem %s182, 36 [#allocation3]
        %256 = vst [vmem:[%s255] sm:$0x3f] %v254
        %v257 = vld [vmem:[%s212] sm:$0x3f]
        %v258 = vmul.f32 %v257, %v230
        %s259 = scalar_lea.vmem %s182, 42 [#allocation3]
        %260 = vst [vmem:[%s259] sm:$0x3f] %v258
        %s261 = sand.u32 %s46, 1
        %s262 = sand.u32 %s46, 1
        %s263 = smul.addr %s262, 48
        %s264 = scalar_lea.vmem [#allocation3], %s263
        // Predicated region
        $region66: #{capsule_network_forward.6} parent=60 // pred_check
          %p265 = pneg %p56
        $region67: #{capsule_network_forward.6} parent=60 // pred_check_branch
          %267 = sbr.rel (%p265) target = $region69
        $region68: #{capsule_network_forward.6} parent=60 // pred_region
          %s268 = smul.u32 3, %s12
          %s269 = smul.addr %s268, 2
          %s270 = scalar_lea.vmem %s1, %s269
          // Predicated region
          $region70: #{capsule_network_forward.6} parent=68 // pred_check
            _
          $region71: #{capsule_network_forward.6} parent=68 // pred_check_branch
            %272 = sbr.rel (0) target = $region73
          $region72: #{capsule_network_forward.6} parent=68 // pred_region
            // Predicated region
            $region74: #{capsule_network_forward.6} parent=72 // pred_check
              _
            $region75: #{capsule_network_forward.6} parent=72 // pred_check_branch
              %274 = sbr.rel target = $region77
            $region76: #{capsule_network_forward.6} parent=72 // pred_region
              // Predicated region
              $region89: #{capsule_network_forward.6} parent=76 // pred_check
                _
              $region90: #{capsule_network_forward.6} parent=76 // pred_check_branch
                %304 = sbr.rel (0) target = $region92
              $region91: #{capsule_network_forward.6} parent=76 // pred_region
                loop: start=0, step=1, limit=1
                $region93: #{capsule_network_forward.6} parent=91 // loop_pre_header
                  _
                $region94: #{capsule_network_forward.6} parent=91 // loop_header
                  %s306 = sphi 0, %s310
                  %p307 = scmp.ge.s32.totalorder %s306, 1
                  %s311 = sphi %s264, %s264
                  %s312 = sphi %s270, %s270
                $region95: #{capsule_network_forward.6} parent=91 // loop_header_branch
                  %309 = sbr.rel (%p307) target = $region99
                $region96: #{capsule_network_forward.6} parent=91 // loop_body
                  _
                $region97: #{capsule_network_forward.6} parent=91 // loop_footer
                  %s310 = sadd.s32 1, %s306
                $region98: #{capsule_network_forward.6} parent=91 // loop_footer_branch
                  %305 = sbr.rel target = $region94
                $region99: #{capsule_network_forward.6} parent=91 // loop_exit
                  _
                %s314 = ssub.s32 64, 1
                loop: start=0, step=1, limit=1
                $region100: #{capsule_network_forward.6} parent=91 // loop_pre_header
                  _
                $region101: #{capsule_network_forward.6} parent=91 // loop_header
                  %s316 = sphi 0, %s320
                  %p317 = scmp.ge.s32.totalorder %s316, 1
                  %s321 = sphi %s264, %s264
                  %s322 = sphi %s270, %s270
                $region102: #{capsule_network_forward.6} parent=91 // loop_header_branch
                  %319 = sbr.rel (%p317) target = $region106
                $region103: #{capsule_network_forward.6} parent=91 // loop_body
                  %v323 = vld [vmem:[%s321] sm:%s314]
                  %324 = vst [vmem:[%s322] sm:%s314] %v323
                  %v325 = vld [vmem:[%s321 + $0x6] sm:%s314]
                  %326 = vst [vmem:[%s322 + $0x12] sm:%s314] %v325
                  %v327 = vld [vmem:[%s321 + $0xc] sm:%s314]
                  %328 = vst [vmem:[%s322 + $0x24] sm:%s314] %v327
                  %v329 = vld [vmem:[%s321 + $0x12] sm:%s314]
                  %330 = vst [vmem:[%s322 + $0x36] sm:%s314] %v329
                  %v331 = vld [vmem:[%s321 + $0x18] sm:%s314]
                  %332 = vst [vmem:[%s322 + $0x48] sm:%s314] %v331
                  %v333 = vld [vmem:[%s321 + $0x1e] sm:%s314]
                  %334 = vst [vmem:[%s322 + $0x5a] sm:%s314] %v333
                  %v335 = vld [vmem:[%s321 + $0x24] sm:%s314]
                  %336 = vst [vmem:[%s322 + $0x6c] sm:%s314] %v335
                  %v337 = vld [vmem:[%s321 + $0x2a] sm:%s314]
                  %338 = vst [vmem:[%s322 + $0x7e] sm:%s314] %v337
                $region104: #{capsule_network_forward.6} parent=91 // loop_footer
                  %s320 = sadd.s32 1, %s316
                $region105: #{capsule_network_forward.6} parent=91 // loop_footer_branch
                  %315 = sbr.rel target = $region101
                $region106: #{capsule_network_forward.6} parent=91 // loop_exit
                  _
              $region92: #{capsule_network_forward.6} parent=76 // pred_fallthru
                _
            $region77: #{capsule_network_forward.6} parent=72 // pred_fallthru
              _
            // Predicated region
            $region78: #{capsule_network_forward.6} parent=72 // pred_check
              _
            $region79: #{capsule_network_forward.6} parent=72 // pred_check_branch
              %276 = sbr.rel (0) target = $region81
            $region80: #{capsule_network_forward.6} parent=72 // pred_region
              %s278 = ssub.s32 64, 1
              loop: start=0, step=1, limit=1
              $region82: #{capsule_network_forward.6} parent=80 // loop_pre_header
                _
              $region83: #{capsule_network_forward.6} parent=80 // loop_header
                %s280 = sphi 0, %s284
                %p281 = scmp.ge.s32.totalorder %s280, 1
                %s285 = sphi %s264, %s264
                %s286 = sphi %s270, %s270
              $region84: #{capsule_network_forward.6} parent=80 // loop_header_branch
                %283 = sbr.rel (%p281) target = $region88
              $region85: #{capsule_network_forward.6} parent=80 // loop_body
                %v287 = vld [vmem:[%s285] sm:%s278]
                %288 = vst [vmem:[%s286] sm:%s278] %v287
                %v289 = vld [vmem:[%s285 + $0x6] sm:%s278]
                %290 = vst [vmem:[%s286 + $0x12] sm:%s278] %v289
                %v291 = vld [vmem:[%s285 + $0xc] sm:%s278]
                %292 = vst [vmem:[%s286 + $0x24] sm:%s278] %v291
                %v293 = vld [vmem:[%s285 + $0x12] sm:%s278]
                %294 = vst [vmem:[%s286 + $0x36] sm:%s278] %v293
                %v295 = vld [vmem:[%s285 + $0x18] sm:%s278]
                %296 = vst [vmem:[%s286 + $0x48] sm:%s278] %v295
                %v297 = vld [vmem:[%s285 + $0x1e] sm:%s278]
                %298 = vst [vmem:[%s286 + $0x5a] sm:%s278] %v297
                %v299 = vld [vmem:[%s285 + $0x24] sm:%s278]
                %300 = vst [vmem:[%s286 + $0x6c] sm:%s278] %v299
                %v301 = vld [vmem:[%s285 + $0x2a] sm:%s278]
                %302 = vst [vmem:[%s286 + $0x7e] sm:%s278] %v301
              $region86: #{capsule_network_forward.6} parent=80 // loop_footer
                %s284 = sadd.s32 1, %s280
              $region87: #{capsule_network_forward.6} parent=80 // loop_footer_branch
                %279 = sbr.rel target = $region83
              $region88: #{capsule_network_forward.6} parent=80 // loop_exit
                _
            $region81: #{capsule_network_forward.6} parent=72 // pred_fallthru
              _
          $region73: #{capsule_network_forward.6} parent=68 // pred_fallthru
            _
          %339 = vnop
        $region69: #{capsule_network_forward.6} parent=60 // pred_fallthru
          _
      $region61: #{capsule_network_forward.6} parent=5 // pred_fallthru
        _
      %p340 = scmp.le.s32.totalorder 2, %s7
      // Predicated region
      $region107: #{capsule_network_forward.6} parent=5 // pred_check
        %p341 = pneg %p340
      $region108: #{capsule_network_forward.6} parent=5 // pred_check_branch
        %343 = sbr.rel (%p341) target = $region110
      $region109: #{capsule_network_forward.6} parent=5 // pred_region
        %s344 = ssub.s32 %s7, 2
        // Predicated region
        $region111: #{capsule_network_forward.6} parent=109 // pred_check
          %p345 = pneg %p62
        $region112: #{capsule_network_forward.6} parent=109 // pred_check_branch
          %347 = sbr.rel (%p345) target = $region114
        $region113: #{capsule_network_forward.6} parent=109 // pred_region
          %s348 = sand.u32 %s47, 1
          %s349 = sand.u32 %s47, 1
          %s350 = smul.addr %s349, 48
          %s351 = scalar_lea.vmem [#allocation3], %s350
        $region114: #{capsule_network_forward.6} parent=109 // pred_fallthru
          _
      $region110: #{capsule_network_forward.6} parent=5 // pred_fallthru
        _
    $region6: #{capsule_network_forward.6} parent=1 // loop_footer
      %s11 = sadd.s32 1, %s7
    $region7: #{capsule_network_forward.6} parent=1 // loop_footer_branch
      %6 = sbr.rel target = $region3
    $region8: #{capsule_network_forward.6} parent=1 // loop_exit
      _

// kernel: capsule_network_forward.7
$region0: #{capsule_network_forward.7}
  #allocation0 [shape = 'u32[]', space=smem, size = 0x4, offset = 0x4, fixed_abs, tag = 'smem constant byte address 0x4 - core index']
  #allocation1 [shape = 'u32[72,128]{1,0:T(1,128)}', space=vmem, size = 0x9000, scoped, tag = 'internal scratch']
  #allocation2 [shape = 'f32[2,16,1152]{2,1,0:T(8,128)}', space=vmem, size = 0x24000, scoped, tag = 'scratch operand']
  %s0 = inlined_call_operand.vmem [shape: f32[8,2,1152], index: 0, kind: input, shape index: {}]
  %s1 = inlined_call_operand.vmem [shape: f32[10,8,16,1152], index: 1, kind: input, shape index: {}]
  %s2 = inlined_call_operand.hbm [shape: f32[10,2,16], index: 2, kind: output, shape index: {}]
  %s3 = sld [smem:[#allocation0]]
  $region41: #{capsule_network_forward.7} parent=0
    _
  %s5 = ssub.s32 1, %s3
  %s6 = scalar_select 0, %s5, %s3
  $region1: #{capsule_network_forward.7} parent=0
    #allocation3 [shape = 'u8[2048]{0}', space=vmem, size = 0x800, scoped, tag = 'output window, operand 0']
    #allocation4 [shape = 's32[2]{0}', space=sflag, size = 0x8, scoped, tag = 'scoped memory for capsule_network_forward.7']
    %7 = vsyncpa [#allocation4], 0
    %s8 = scalar_lea.sflag [#allocation4], 1
    %9 = vsyncpa %s8, 0
    loop: start=0, step=1, limit=12
    $region2: #{capsule_network_forward.7} parent=1 // loop_pre_header
      _
    $region3: #{capsule_network_forward.7} parent=1 // loop_header
      %s11 = sphi 0, %s15
      %p12 = scmp.ge.s32.totalorder %s11, 12
      %s19 = sphi 0, %s19
      %s21 = sphi 0, %s19
      %s22 = sphi 0, %s21
      %s36 = sphi 0, %s22
      %s42 = sphi 0, %s44
      %s45 = sphi 0, %s42
      %s46 = sphi 0, %s45
      %s62 = sphi 0, %s46
      %s68 = sphi 0, %s70
      %s71 = sphi 0, %s68
      %s72 = sphi 0, %s71
      %s88 = sphi 0, %s72
    $region4: #{capsule_network_forward.7} parent=1 // loop_header_branch
      %14 = sbr.rel (%p12) target = $region8
    $region5: #{capsule_network_forward.7} parent=1 // loop_body
      %s16 = ssub.s32 %s11, 1
      %s17 = ssub.s32 %s11, 2
      %s18 = sadd.s32 %s11, 1
      %s20 = sadd.s32 %s19, 1
      %p23 = scmp.eq.s32.totalorder %s11, 9
      %p24 = scmp.ne.s32.totalorder %s19, %s21
      %p25 = scmp.eq.s32.totalorder %s11, 0
      %p26 = por %p24, %p25
      %p27 = scmp.ne.s32.totalorder %s19, %s21
      %p28 = scmp.eq.s32.totalorder %s16, 9
      %p29 = por %p27, %p28
      %p30 = scmp.ne.s32.totalorder %s21, %s22
      %p31 = scmp.eq.s32.totalorder %s16, 0
      %p32 = por %p30, %p31
      %p33 = scmp.ne.s32.totalorder %s21, %s22
      %p34 = scmp.eq.s32.totalorder %s17, 9
      %p35 = por %p33, %p34
      %p37 = scmp.ne.s32.totalorder %s22, %s36
      %p38 = scmp.eq.s32.totalorder %s17, 0
      %p39 = por %p37, %p38
      %s40 = ssub.s32 %s11, %s18
      %p41 = scmp.eq.s32.totalorder %s40, 0
      %s43 = sadd.s32 %s42, 1
      %s44 = scalar_select %p41, %s42, %s43
      %p47 = pneg %p41
      %p48 = scmp.eq.s32.totalorder %s11, 9
      %p49 = por %p47, %p48
      %p50 = scmp.ne.s32.totalorder %s42, %s45
      %p51 = scmp.eq.s32.totalorder %s11, 0
      %p52 = por %p50, %p51
      %p53 = scmp.ne.s32.totalorder %s42, %s45
      %p54 = scmp.eq.s32.totalorder %s16, 9
      %p55 = por %p53, %p54
      %p56 = scmp.ne.s32.totalorder %s45, %s46
      %p57 = scmp.eq.s32.totalorder %s16, 0
      %p58 = por %p56, %p57
      %p59 = scmp.ne.s32.totalorder %s45, %s46
      %p60 = scmp.eq.s32.totalorder %s17, 9
      %p61 = por %p59, %p60
      %p63 = scmp.ne.s32.totalorder %s46, %s62
      %p64 = scmp.eq.s32.totalorder %s17, 0
      %p65 = por %p63, %p64
      %s66 = ssub.s32 %s11, %s18
      %p67 = scmp.eq.s32.totalorder %s66, 0
      %s69 = sadd.s32 %s68, 1
      %s70 = scalar_select %p67, %s68, %s69
      %p73 = pneg %p67
      %p74 = scmp.eq.s32.totalorder %s11, 9
      %p75 = por %p73, %p74
      %p76 = scmp.ne.s32.totalorder %s68, %s71
      %p77 = scmp.eq.s32.totalorder %s11, 0
      %p78 = por %p76, %p77
      %p79 = scmp.ne.s32.totalorder %s68, %s71
      %p80 = scmp.eq.s32.totalorder %s16, 9
      %p81 = por %p79, %p80
      %p82 = scmp.ne.s32.totalorder %s71, %s72
      %p83 = scmp.eq.s32.totalorder %s16, 0
      %p84 = por %p82, %p83
      %p85 = scmp.ne.s32.totalorder %s71, %s72
      %p86 = scmp.eq.s32.totalorder %s17, 9
      %p87 = por %p85, %p86
      %p89 = scmp.ne.s32.totalorder %s72, %s88
      %p90 = scmp.eq.s32.totalorder %s17, 0
      %p91 = por %p89, %p90
      %p92 = scmp.le.s32.totalorder 1, %s11
      %p93 = scmp.lt.s32.totalorder %s11, 11
      %p94 = pnand %p92, %p93
      %p95 = pneg %p94
      // Predicated region
      $region9: #{capsule_network_forward.7} parent=5 // pred_check
        _
      $region10: #{capsule_network_forward.7} parent=5 // pred_check_branch
        %97 = sbr.rel (%p94) target = $region12
      $region11: #{capsule_network_forward.7} parent=5 // pred_region
        %s98 = ssub.s32 %s11, 1
        // Predicated region
        $region13: #{capsule_network_forward.7} parent=11 // pred_check
          %p99 = pneg %p32
        $region14: #{capsule_network_forward.7} parent=11 // pred_check_branch
          %101 = sbr.rel (%p99) target = $region16
        $region15: #{capsule_network_forward.7} parent=11 // pred_region
          _
        $region16: #{capsule_network_forward.7} parent=11 // pred_fallthru
          _
      $region12: #{capsule_network_forward.7} parent=5 // pred_fallthru
        _
      %p102 = scmp.lt.s32.totalorder %s11, 10
      // Predicated region
      $region17: #{capsule_network_forward.7} parent=5 // pred_check
        %p103 = pneg %p102
      $region18: #{capsule_network_forward.7} parent=5 // pred_check_branch
        %105 = sbr.rel (%p103) target = $region20
      $region19: #{capsule_network_forward.7} parent=5 // pred_region
        // Predicated region
        $region21: #{capsule_network_forward.7} parent=19 // pred_check
          %p106 = pneg %p52
        $region22: #{capsule_network_forward.7} parent=19 // pred_check_branch
          %108 = sbr.rel (%p106) target = $region24
        $region23: #{capsule_network_forward.7} parent=19 // pred_region
          %p109 = scmp.lt.s32.totalorder %s11, 9
          %s110 = scalar_select %p109, %s11, 9
          %s111 = smul.addr %s110, 144
          %s112 = smul.addr %s111, 8
          %s113 = scalar_lea.vmem %s1, %s112
        $region24: #{capsule_network_forward.7} parent=19 // pred_fallthru
          _
      $region20: #{capsule_network_forward.7} parent=5 // pred_fallthru
        _
      %p114 = scmp.le.s32.totalorder 1, %s11
      %p115 = scmp.lt.s32.totalorder %s11, 11
      %p116 = pnand %p114, %p115
      %p117 = pneg %p116
      // Predicated region
      $region25: #{capsule_network_forward.7} parent=5 // pred_check
        _
      $region26: #{capsule_network_forward.7} parent=5 // pred_check_branch
        %119 = sbr.rel (%p116) target = $region28
      $region27: #{capsule_network_forward.7} parent=5 // pred_region
        %s120 = ssub.s32 %s11, 1
        %p121 = pneg %p32
        %p122 = pneg %p29
        %p123 = scmp.lt.s32.totalorder %s16, 9
        %s124 = scalar_select %p123, %s16, 9
        %s125 = smul.addr %s124, 144
        %s126 = smul.addr %s125, 8
        %s127 = scalar_lea.vmem %s1, %s126
        %p128 = pneg %p58
        %p129 = pneg %p55
        %p130 = pneg %p84
        %p131 = pneg %p81
        %s132 = sand.u32 %s71, 1
        %s133 = scalar_lea.sflag [#allocation4], %s132
        %s134 = sand.u32 %s71, 1
        %s135 = smul.addr %s134, 2
        %s136 = scalar_lea.vmem [#allocation3], %s135
        %p137 = scmp.lt.s32.totalorder %s16, 9
        %s138 = scalar_select %p137, %s16, 9
        %s139 = smul.addr %s138, 144
        %s140 = smul.addr %s139, 8
        %s141 = scalar_lea.vmem %s1, %s140
        %v142 = vld [vmem:[%s0] sm:$0x3f]
        %v144 = vrot.slane %v142, 1
        %v145 = vrot.slane %v142, 2
        %v146 = vrot.slane %v142, 3
        %vm147 = vcmask 1040384
        %v148 = vsel %vm147, %v142, %v144
        %vm149 = vcmask 1042434
        %v150 = vsel %vm149, %v145, %v146
        %vm151 = vcmask 1041408
        %v152 = vsel %vm151, %v148, %v150
        %vm153 = vcmask 1041409
        %v154 = vsel %vm153, %v142, %v144
        %vm155 = vcmask 1043459
        %v156 = vsel %vm155, %v145, %v146
        %vm157 = vcmask 1042433
        %v158 = vsel %vm157, %v154, %v156
        %v159 = vrot.slane %v158, 1
        %v160 = vld [vmem:[%s141] sm:$0xff]
        %v161 = vld [vmem:[%s141 + $0x8] sm:$0xff]
        %v162 = vld [vmem:[%s141 + $0x10] sm:$0xff]
        %v163 = vld [vmem:[%s141 + $0x48] sm:$0xff]
        %v164 = vld [vmem:[%s141 + $0x50] sm:$0xff]
        %v165 = vld [vmem:[%s141 + $0x58] sm:$0xff]
        %v166 = vperm.slane %v152, 0
        %v167 = vperm.slane %v152, 1
        %v168 = vperm.slane %v152, 2
        %v169 = vperm.slane %v159, 0
        %v170 = vperm.slane %v159, 1
        %v171 = vperm.slane %v159, 2
        %v178 = vmul.f32 %v166, %v160
        %v179 = vmul.f32 %v167, %v161
        %v180 = vmul.f32 %v168, %v162
        %v181 = vmul.f32 %v166, %v163
        %v182 = vmul.f32 %v167, %v164
        %v183 = vmul.f32 %v168, %v165
        %v184 = vmul.f32 %v169, %v160
        %v185 = vmul.f32 %v170, %v161
        %v186 = vmul.f32 %v171, %v162
        %v187 = vmul.f32 %v169, %v163
        %v188 = vmul.f32 %v170, %v164
        %v189 = vmul.f32 %v171, %v165
        %v190 = vadd.f32 %v178, 0.0
        %v191 = vadd.f32 %v179, 0.0
        %v192 = vadd.f32 %v180, 0.0
        %v193 = vadd.f32 %v181, 0.0
        %v194 = vadd.f32 %v182, 0.0
        %v195 = vadd.f32 %v183, 0.0
        %v196 = vadd.f32 %v184, 0.0
        %v197 = vadd.f32 %v185, 0.0
        %v198 = vadd.f32 %v186, 0.0
        %v199 = vadd.f32 %v187, 0.0
        %v200 = vadd.f32 %v188, 0.0
        %v201 = vadd.f32 %v189, 0.0
        %s202 = scalar_lea.vmem %s0, 18
        %v203 = vld [vmem:[%s202] sm:$0x3f]
        %v205 = vrot.slane %v203, 1
        %v206 = vrot.slane %v203, 2
        %v207 = vrot.slane %v203, 3
        %v208 = vsel %vm147, %v203, %v205
        %v209 = vsel %vm149, %v206, %v207
        %v210 = vsel %vm151, %v208, %v209
        %v211 = vsel %vm153, %v203, %v205
        %v212 = vsel %vm155, %v206, %v207
        %v213 = vsel %vm157, %v211, %v212
        %v214 = vrot.slane %v213, 1
        %s215 = scalar_lea.vmem %s141, 144
        %v216 = vld [vmem:[%s215] sm:$0xff]
        %v217 = vld [vmem:[%s215 + $0x8] sm:$0xff]
        %v218 = vld [vmem:[%s215 + $0x10] sm:$0xff]
        %v219 = vld [vmem:[%s215 + $0x48] sm:$0xff]
        %v220 = vld [vmem:[%s215 + $0x50] sm:$0xff]
        %v221 = vld [vmem:[%s215 + $0x58] sm:$0xff]
        %v222 = vperm.slane %v210, 0
        %v223 = vperm.slane %v210, 1
        %v224 = vperm.slane %v210, 2
        %v225 = vperm.slane %v214, 0
        %v226 = vperm.slane %v214, 1
        %v227 = vperm.slane %v214, 2
        %v234 = vmul.f32 %v222, %v216
        %v235 = vmul.f32 %v223, %v217
        %v236 = vmul.f32 %v224, %v218
        %v237 = vmul.f32 %v222, %v219
        %v238 = vmul.f32 %v223, %v220
        %v239 = vmul.f32 %v224, %v221
        %v240 = vmul.f32 %v225, %v216
        %v241 = vmul.f32 %v226, %v217
        %v242 = vmul.f32 %v227, %v218
        %v243 = vmul.f32 %v225, %v219
        %v244 = vmul.f32 %v226, %v220
        %v245 = vmul.f32 %v227, %v221
        %v246 = vadd.f32 %v190, %v234
        %v247 = vadd.f32 %v191, %v235
        %v248 = vadd.f32 %v192, %v236
        %v249 = vadd.f32 %v193, %v237
        %v250 = vadd.f32 %v194, %v238
        %v251 = vadd.f32 %v195, %v239
        %v252 = vadd.f32 %v196, %v240
        %v253 = vadd.f32 %v197, %v241
        %v254 = vadd.f32 %v198, %v242
        %v255 = vadd.f32 %v199, %v243
        %v256 = vadd.f32 %v200, %v244
        %v257 = vadd.f32 %v201, %v245
        %s258 = scalar_lea.vmem %s0, 36
        %v259 = vld [vmem:[%s258] sm:$0x3f]
        %v261 = vrot.slane %v259, 1
        %v262 = vrot.slane %v259, 2
        %v263 = vrot.slane %v259, 3
        %v264 = vsel %vm147, %v259, %v261
        %v265 = vsel %vm149, %v262, %v263
        %v266 = vsel %vm151, %v264, %v265
        %v267 = vsel %vm153, %v259, %v261
        %v268 = vsel %vm155, %v262, %v263
        %v269 = vsel %vm157, %v267, %v268
        %v270 = vrot.slane %v269, 1
        %s271 = scalar_lea.vmem %s141, 288
        %v272 = vld [vmem:[%s271] sm:$0xff]
        %v273 = vld [vmem:[%s271 + $0x8] sm:$0xff]
        %v274 = vld [vmem:[%s271 + $0x10] sm:$0xff]
        %v275 = vld [vmem:[%s271 + $0x48] sm:$0xff]
        %v276 = vld [vmem:[%s271 + $0x50] sm:$0xff]
        %v277 = vld [vmem:[%s271 + $0x58] sm:$0xff]
        %v278 = vperm.slane %v266, 0
        %v279 = vperm.slane %v266, 1
        %v280 = vperm.slane %v266, 2
        %v281 = vperm.slane %v270, 0
        %v282 = vperm.slane %v270, 1
        %v283 = vperm.slane %v270, 2
        %v290 = vmul.f32 %v278, %v272
        %v291 = vmul.f32 %v279, %v273
        %v292 = vmul.f32 %v280, %v274
        %v293 = vmul.f32 %v278, %v275
        %v294 = vmul.f32 %v279, %v276
        %v295 = vmul.f32 %v280, %v277
        %v296 = vmul.f32 %v281, %v272
        %v297 = vmul.f32 %v282, %v273
        %v298 = vmul.f32 %v283, %v274
        %v299 = vmul.f32 %v281, %v275
        %v300 = vmul.f32 %v282, %v276
        %v301 = vmul.f32 %v283, %v277
        %v302 = vadd.f32 %v246, %v290
        %v303 = vadd.f32 %v247, %v291
        %v304 = vadd.f32 %v248, %v292
        %v305 = vadd.f32 %v249, %v293
        %v306 = vadd.f32 %v250, %v294
        %v307 = vadd.f32 %v251, %v295
        %v308 = vadd.f32 %v252, %v296
        %v309 = vadd.f32 %v253, %v297
        %v310 = vadd.f32 %v254, %v298
        %v311 = vadd.f32 %v255, %v299
        %v312 = vadd.f32 %v256, %v300
        %v313 = vadd.f32 %v257, %v301
        %s314 = scalar_lea.vmem %s0, 54
        %v315 = vld [vmem:[%s314] sm:$0x3f]
        %v317 = vrot.slane %v315, 1
        %v318 = vrot.slane %v315, 2
        %v319 = vrot.slane %v315, 3
        %v320 = vsel %vm147, %v315, %v317
        %v321 = vsel %vm149, %v318, %v319
        %v322 = vsel %vm151, %v320, %v321
        %v323 = vsel %vm153, %v315, %v317
        %v324 = vsel %vm155, %v318, %v319
        %v325 = vsel %vm157, %v323, %v324
        %v326 = vrot.slane %v325, 1
        %s327 = scalar_lea.vmem %s141, 432
        %v328 = vld [vmem:[%s327] sm:$0xff]
        %v329 = vld [vmem:[%s327 + $0x8] sm:$0xff]
        %v330 = vld [vmem:[%s327 + $0x10] sm:$0xff]
        %v331 = vld [vmem:[%s327 + $0x48] sm:$0xff]
        %v332 = vld [vmem:[%s327 + $0x50] sm:$0xff]
        %v333 = vld [vmem:[%s327 + $0x58] sm:$0xff]
        %v334 = vperm.slane %v322, 0
        %v335 = vperm.slane %v322, 1
        %v336 = vperm.slane %v322, 2
        %v337 = vperm.slane %v326, 0
        %v338 = vperm.slane %v326, 1
        %v339 = vperm.slane %v326, 2
        %v346 = vmul.f32 %v334, %v328
        %v347 = vmul.f32 %v335, %v329
        %v348 = vmul.f32 %v336, %v330
        %v349 = vmul.f32 %v334, %v331
        %v350 = vmul.f32 %v335, %v332
        %v351 = vmul.f32 %v336, %v333
        %v352 = vmul.f32 %v337, %v328
        %v353 = vmul.f32 %v338, %v329
        %v354 = vmul.f32 %v339, %v330
        %v355 = vmul.f32 %v337, %v331
        %v356 = vmul.f32 %v338, %v332
        %v357 = vmul.f32 %v339, %v333
        %v358 = vadd.f32 %v302, %v346
        %v359 = vadd.f32 %v303, %v347
        %v360 = vadd.f32 %v304, %v348
        %v361 = vadd.f32 %v305, %v349
        %v362 = vadd.f32 %v306, %v350
        %v363 = vadd.f32 %v307, %v351
        %v364 = vadd.f32 %v308, %v352
        %v365 = vadd.f32 %v309, %v353
        %v366 = vadd.f32 %v310, %v354
        %v367 = vadd.f32 %v311, %v355
        %v368 = vadd.f32 %v312, %v356
        %v369 = vadd.f32 %v313, %v357
        %s370 = scalar_lea.vmem %s0, 72
        %v371 = vld [vmem:[%s370] sm:$0x3f]
        %v373 = vrot.slane %v371, 1
        %v374 = vrot.slane %v371, 2
        %v375 = vrot.slane %v371, 3
        %v376 = vsel %vm147, %v371, %v373
        %v377 = vsel %vm149, %v374, %v375
        %v378 = vsel %vm151, %v376, %v377
        %v379 = vsel %vm153, %v371, %v373
        %v380 = vsel %vm155, %v374, %v375
        %v381 = vsel %vm157, %v379, %v380
        %v382 = vrot.slane %v381, 1
        %s383 = scalar_lea.vmem %s141, 576
        %v384 = vld [vmem:[%s383] sm:$0xff]
        %v385 = vld [vmem:[%s383 + $0x8] sm:$0xff]
        %v386 = vld [vmem:[%s383 + $0x10] sm:$0xff]
        %v387 = vld [vmem:[%s383 + $0x48] sm:$0xff]
        %v388 = vld [vmem:[%s383 + $0x50] sm:$0xff]
        %v389 = vld [vmem:[%s383 + $0x58] sm:$0xff]
        %v390 = vperm.slane %v378, 0
        %v391 = vperm.slane %v378, 1
        %v392 = vperm.slane %v378, 2
        %v393 = vperm.slane %v382, 0
        %v394 = vperm.slane %v382, 1
        %v395 = vperm.slane %v382, 2
        %v402 = vmul.f32 %v390, %v384
        %v403 = vmul.f32 %v391, %v385
        %v404 = vmul.f32 %v392, %v386
        %v405 = vmul.f32 %v390, %v387
        %v406 = vmul.f32 %v391, %v388
        %v407 = vmul.f32 %v392, %v389
        %v408 = vmul.f32 %v393, %v384
        %v409 = vmul.f32 %v394, %v385
        %v410 = vmul.f32 %v395, %v386
        %v411 = vmul.f32 %v393, %v387
        %v412 = vmul.f32 %v394, %v388
        %v413 = vmul.f32 %v395, %v389
        %v414 = vadd.f32 %v358, %v402
        %v415 = vadd.f32 %v359, %v403
        %v416 = vadd.f32 %v360, %v404
        %v417 = vadd.f32 %v361, %v405
        %v418 = vadd.f32 %v362, %v406
        %v419 = vadd.f32 %v363, %v407
        %v420 = vadd.f32 %v364, %v408
        %v421 = vadd.f32 %v365, %v409
        %v422 = vadd.f32 %v366, %v410
        %v423 = vadd.f32 %v367, %v411
        %v424 = vadd.f32 %v368, %v412
        %v425 = vadd.f32 %v369, %v413
        %s426 = scalar_lea.vmem %s0, 90
        %v427 = vld [vmem:[%s426] sm:$0x3f]
        %v429 = vrot.slane %v427, 1
        %v430 = vrot.slane %v427, 2
        %v431 = vrot.slane %v427, 3
        %v432 = vsel %vm147, %v427, %v429
        %v433 = vsel %vm149, %v430, %v431
        %v434 = vsel %vm151, %v432, %v433
        %v435 = vsel %vm153, %v427, %v429
        %v436 = vsel %vm155, %v430, %v431
        %v437 = vsel %vm157, %v435, %v436
        %v438 = vrot.slane %v437, 1
        %s439 = scalar_lea.vmem %s141, 720
        %v440 = vld [vmem:[%s439] sm:$0xff]
        %v441 = vld [vmem:[%s439 + $0x8] sm:$0xff]
        %v442 = vld [vmem:[%s439 + $0x10] sm:$0xff]
        %v443 = vld [vmem:[%s439 + $0x48] sm:$0xff]
        %v444 = vld [vmem:[%s439 + $0x50] sm:$0xff]
        %v445 = vld [vmem:[%s439 + $0x58] sm:$0xff]
        %v446 = vperm.slane %v434, 0
        %v447 = vperm.slane %v434, 1
        %v448 = vperm.slane %v434, 2
        %v449 = vperm.slane %v438, 0
        %v450 = vperm.slane %v438, 1
        %v451 = vperm.slane %v438, 2
        %v458 = vmul.f32 %v446, %v440
        %v459 = vmul.f32 %v447, %v441
        %v460 = vmul.f32 %v448, %v442
        %v461 = vmul.f32 %v446, %v443
        %v462 = vmul.f32 %v447, %v444
        %v463 = vmul.f32 %v448, %v445
        %v464 = vmul.f32 %v449, %v440
        %v465 = vmul.f32 %v450, %v441
        %v466 = vmul.f32 %v451, %v442
        %v467 = vmul.f32 %v449, %v443
        %v468 = vmul.f32 %v450, %v444
        %v469 = vmul.f32 %v451, %v445
        %v470 = vadd.f32 %v414, %v458
        %v471 = vadd.f32 %v415, %v459
        %v472 = vadd.f32 %v416, %v460
        %v473 = vadd.f32 %v417, %v461
        %v474 = vadd.f32 %v418, %v462
        %v475 = vadd.f32 %v419, %v463
        %v476 = vadd.f32 %v420, %v464
        %v477 = vadd.f32 %v421, %v465
        %v478 = vadd.f32 %v422, %v466
        %v479 = vadd.f32 %v423, %v467
        %v480 = vadd.f32 %v424, %v468
        %v481 = vadd.f32 %v425, %v469
        %s482 = scalar_lea.vmem %s0, 108
        %v483 = vld [vmem:[%s482] sm:$0x3f]
        %v485 = vrot.slane %v483, 1
        %v486 = vrot.slane %v483, 2
        %v487 = vrot.slane %v483, 3
        %v488 = vsel %vm147, %v483, %v485
        %v489 = vsel %vm149, %v486, %v487
        %v490 = vsel %vm151, %v488, %v489
        %v491 = vsel %vm153, %v483, %v485
        %v492 = vsel %vm155, %v486, %v487
        %v493 = vsel %vm157, %v491, %v492
        %v494 = vrot.slane %v493, 1
        %s495 = scalar_lea.vmem %s141, 864
        %v496 = vld [vmem:[%s495] sm:$0xff]
        %v497 = vld [vmem:[%s495 + $0x8] sm:$0xff]
        %v498 = vld [vmem:[%s495 + $0x10] sm:$0xff]
        %v499 = vld [vmem:[%s495 + $0x48] sm:$0xff]
        %v500 = vld [vmem:[%s495 + $0x50] sm:$0xff]
        %v501 = vld [vmem:[%s495 + $0x58] sm:$0xff]
        %v502 = vperm.slane %v490, 0
        %v503 = vperm.slane %v490, 1
        %v504 = vperm.slane %v490, 2
        %v505 = vperm.slane %v494, 0
        %v506 = vperm.slane %v494, 1
        %v507 = vperm.slane %v494, 2
        %v514 = vmul.f32 %v502, %v496
        %v515 = vmul.f32 %v503, %v497
        %v516 = vmul.f32 %v504, %v498
        %v517 = vmul.f32 %v502, %v499
        %v518 = vmul.f32 %v503, %v500
        %v519 = vmul.f32 %v504, %v501
        %v520 = vmul.f32 %v505, %v496
        %v521 = vmul.f32 %v506, %v497
        %v522 = vmul.f32 %v507, %v498
        %v523 = vmul.f32 %v505, %v499
        %v524 = vmul.f32 %v506, %v500
        %v525 = vmul.f32 %v507, %v501
        %v526 = vadd.f32 %v470, %v514
        %v527 = vadd.f32 %v471, %v515
        %v528 = vadd.f32 %v472, %v516
        %v529 = vadd.f32 %v473, %v517
        %v530 = vadd.f32 %v474, %v518
        %v531 = vadd.f32 %v475, %v519
        %v532 = vadd.f32 %v476, %v520
        %v533 = vadd.f32 %v477, %v521
        %v534 = vadd.f32 %v478, %v522
        %v535 = vadd.f32 %v479, %v523
        %v536 = vadd.f32 %v480, %v524
        %v537 = vadd.f32 %v481, %v525
        %s538 = scalar_lea.vmem %s0, 126
        %v539 = vld [vmem:[%s538] sm:$0x3f]
        %v541 = vrot.slane %v539, 1
        %v542 = vrot.slane %v539, 2
        %v543 = vrot.slane %v539, 3
        %v544 = vsel %vm147, %v539, %v541
        %v545 = vsel %vm149, %v542, %v543
        %v546 = vsel %vm151, %v544, %v545
        %v547 = vsel %vm153, %v539, %v541
        %v548 = vsel %vm155, %v542, %v543
        %v549 = vsel %vm157, %v547, %v548
        %v550 = vrot.slane %v549, 1
        %s551 = scalar_lea.vmem %s141, 1008
        %v552 = vld [vmem:[%s551] sm:$0xff]
        %v553 = vld [vmem:[%s551 + $0x8] sm:$0xff]
        %v554 = vld [vmem:[%s551 + $0x10] sm:$0xff]
        %v555 = vld [vmem:[%s551 + $0x48] sm:$0xff]
        %v556 = vld [vmem:[%s551 + $0x50] sm:$0xff]
        %v557 = vld [vmem:[%s551 + $0x58] sm:$0xff]
        %v558 = vperm.slane %v546, 0
        %v559 = vperm.slane %v546, 1
        %v560 = vperm.slane %v546, 2
        %v561 = vperm.slane %v550, 0
        %v562 = vperm.slane %v550, 1
        %v563 = vperm.slane %v550, 2
        %v570 = vmul.f32 %v558, %v552
        %v571 = vmul.f32 %v559, %v553
        %v572 = vmul.f32 %v560, %v554
        %v573 = vmul.f32 %v558, %v555
        %v574 = vmul.f32 %v559, %v556
        %v575 = vmul.f32 %v560, %v557
        %v576 = vmul.f32 %v561, %v552
        %v577 = vmul.f32 %v562, %v553
        %v578 = vmul.f32 %v563, %v554
        %v579 = vmul.f32 %v561, %v555
        %v580 = vmul.f32 %v562, %v556
        %v581 = vmul.f32 %v563, %v557
        %v582 = vadd.f32 %v526, %v570
        %v583 = vadd.f32 %v527, %v571
        %v584 = vadd.f32 %v528, %v572
        %v585 = vadd.f32 %v529, %v573
        %v586 = vadd.f32 %v530, %v574
        %v587 = vadd.f32 %v531, %v575
        %v588 = vadd.f32 %v532, %v576
        %v589 = vadd.f32 %v533, %v577
        %v590 = vadd.f32 %v534, %v578
        %v591 = vadd.f32 %v535, %v579
        %v592 = vadd.f32 %v536, %v580
        %v593 = vadd.f32 %v537, %v581
        %594 = vst [vmem:[#allocation2] sm:$0xff] %v582
        %595 = vst [vmem:[#allocation2 + $0x8] sm:$0xff] %v583
        %596 = vst [vmem:[#allocation2 + $0x10] sm:$0xff] %v584
        %597 = vst [vmem:[#allocation2 + $0x48] sm:$0xff] %v585
        %598 = vst [vmem:[#allocation2 + $0x50] sm:$0xff] %v586
        %599 = vst [vmem:[#allocation2 + $0x58] sm:$0xff] %v587
        %600 = vst [vmem:[#allocation2 + $0x90] sm:$0xff] %v588
        %601 = vst [vmem:[#allocation2 + $0x98] sm:$0xff] %v589
        %602 = vst [vmem:[#allocation2 + $0xa0] sm:$0xff] %v590
        %603 = vst [vmem:[#allocation2 + $0xd8] sm:$0xff] %v591
        %604 = vst [vmem:[#allocation2 + $0xe0] sm:$0xff] %v592
        %605 = vst [vmem:[#allocation2 + $0xe8] sm:$0xff] %v593
        %v606 = vld [vmem:[%s0 + $0x6] sm:$0x3f]
        %v608 = vrot.slane %v606, 1
        %v609 = vrot.slane %v606, 2
        %v610 = vrot.slane %v606, 3
        %v611 = vsel %vm147, %v606, %v608
        %v612 = vsel %vm149, %v609, %v610
        %v613 = vsel %vm151, %v611, %v612
        %v614 = vsel %vm153, %v606, %v608
        %v615 = vsel %vm155, %v609, %v610
        %v616 = vsel %vm157, %v614, %v615
        %v617 = vrot.slane %v616, 1
        %v618 = vld [vmem:[%s141 + $0x18] sm:$0xff]
        %v619 = vld [vmem:[%s141 + $0x20] sm:$0xff]
        %v620 = vld [vmem:[%s141 + $0x28] sm:$0xff]
        %v621 = vld [vmem:[%s141 + $0x60] sm:$0xff]
        %v622 = vld [vmem:[%s141 + $0x68] sm:$0xff]
        %v623 = vld [vmem:[%s141 + $0x70] sm:$0xff]
        %v624 = vperm.slane %v613, 0
        %v625 = vperm.slane %v613, 1
        %v626 = vperm.slane %v613, 2
        %v627 = vperm.slane %v617, 0
        %v628 = vperm.slane %v617, 1
        %v629 = vperm.slane %v617, 2
        %v636 = vmul.f32 %v624, %v618
        %v637 = vmul.f32 %v625, %v619
        %v638 = vmul.f32 %v626, %v620
        %v639 = vmul.f32 %v624, %v621
        %v640 = vmul.f32 %v625, %v622
        %v641 = vmul.f32 %v626, %v623
        %v642 = vmul.f32 %v627, %v618
        %v643 = vmul.f32 %v628, %v619
        %v644 = vmul.f32 %v629, %v620
        %v645 = vmul.f32 %v627, %v621
        %v646 = vmul.f32 %v628, %v622
        %v647 = vmul.f32 %v629, %v623
        %v648 = vadd.f32 %v636, 0.0
        %v649 = vadd.f32 %v637, 0.0
        %v650 = vadd.f32 %v638, 0.0
        %v651 = vadd.f32 %v639, 0.0
        %v652 = vadd.f32 %v640, 0.0
        %v653 = vadd.f32 %v641, 0.0
        %v654 = vadd.f32 %v642, 0.0
        %v655 = vadd.f32 %v643, 0.0
        %v656 = vadd.f32 %v644, 0.0
        %v657 = vadd.f32 %v645, 0.0
        %v658 = vadd.f32 %v646, 0.0
        %v659 = vadd.f32 %v647, 0.0
        %v660 = vld [vmem:[%s202 + $0x6] sm:$0x3f]
        %v662 = vrot.slane %v660, 1
        %v663 = vrot.slane %v660, 2
        %v664 = vrot.slane %v660, 3
        %v665 = vsel %vm147, %v660, %v662
        %v666 = vsel %vm149, %v663, %v664
        %v667 = vsel %vm151, %v665, %v666
        %v668 = vsel %vm153, %v660, %v662
        %v669 = vsel %vm155, %v663, %v664
        %v670 = vsel %vm157, %v668, %v669
        %v671 = vrot.slane %v670, 1
        %v672 = vld [vmem:[%s215 + $0x18] sm:$0xff]
        %v673 = vld [vmem:[%s215 + $0x20] sm:$0xff]
        %v674 = vld [vmem:[%s215 + $0x28] sm:$0xff]
        %v675 = vld [vmem:[%s215 + $0x60] sm:$0xff]
        %v676 = vld [vmem:[%s215 + $0x68] sm:$0xff]
        %v677 = vld [vmem:[%s215 + $0x70] sm:$0xff]
        %v678 = vperm.slane %v667, 0
        %v679 = vperm.slane %v667, 1
        %v680 = vperm.slane %v667, 2
        %v681 = vperm.slane %v671, 0
        %v682 = vperm.slane %v671, 1
        %v683 = vperm.slane %v671, 2
        %v690 = vmul.f32 %v678, %v672
        %v691 = vmul.f32 %v679, %v673
        %v692 = vmul.f32 %v680, %v674
        %v693 = vmul.f32 %v678, %v675
        %v694 = vmul.f32 %v679, %v676
        %v695 = vmul.f32 %v680, %v677
        %v696 = vmul.f32 %v681, %v672
        %v697 = vmul.f32 %v682, %v673
        %v698 = vmul.f32 %v683, %v674
        %v699 = vmul.f32 %v681, %v675
        %v700 = vmul.f32 %v682, %v676
        %v701 = vmul.f32 %v683, %v677
        %v702 = vadd.f32 %v648, %v690
        %v703 = vadd.f32 %v649, %v691
        %v704 = vadd.f32 %v650, %v692
        %v705 = vadd.f32 %v651, %v693
        %v706 = vadd.f32 %v652, %v694
        %v707 = vadd.f32 %v653, %v695
        %v708 = vadd.f32 %v654, %v696
        %v709 = vadd.f32 %v655, %v697
        %v710 = vadd.f32 %v656, %v698
        %v711 = vadd.f32 %v657, %v699
        %v712 = vadd.f32 %v658, %v700
        %v713 = vadd.f32 %v659, %v701
        %v714 = vld [vmem:[%s258 + $0x6] sm:$0x3f]
        %v716 = vrot.slane %v714, 1
        %v717 = vrot.slane %v714, 2
        %v718 = vrot.slane %v714, 3
        %v719 = vsel %vm147, %v714, %v716
        %v720 = vsel %vm149, %v717, %v718
        %v721 = vsel %vm151, %v719, %v720
        %v722 = vsel %vm153, %v714, %v716
        %v723 = vsel %vm155, %v717, %v718
        %v724 = vsel %vm157, %v722, %v723
        %v725 = vrot.slane %v724, 1
        %v726 = vld [vmem:[%s271 + $0x18] sm:$0xff]
        %v727 = vld [vmem:[%s271 + $0x20] sm:$0xff]
        %v728 = vld [vmem:[%s271 + $0x28] sm:$0xff]
        %v729 = vld [vmem:[%s271 + $0x60] sm:$0xff]
        %v730 = vld [vmem:[%s271 + $0x68] sm:$0xff]
        %v731 = vld [vmem:[%s271 + $0x70] sm:$0xff]
        %v732 = vperm.slane %v721, 0
        %v733 = vperm.slane %v721, 1
        %v734 = vperm.slane %v721, 2
        %v735 = vperm.slane %v725, 0
        %v736 = vperm.slane %v725, 1
        %v737 = vperm.slane %v725, 2
        %v744 = vmul.f32 %v732, %v726
        %v745 = vmul.f32 %v733, %v727
        %v746 = vmul.f32 %v734, %v728
        %v747 = vmul.f32 %v732, %v729
        %v748 = vmul.f32 %v733, %v730
        %v749 = vmul.f32 %v734, %v731
        %v750 = vmul.f32 %v735, %v726
        %v751 = vmul.f32 %v736, %v727
        %v752 = vmul.f32 %v737, %v728
        %v753 = vmul.f32 %v735, %v729
        %v754 = vmul.f32 %v736, %v730
        %v755 = vmul.f32 %v737, %v731
        %v756 = vadd.f32 %v702, %v744
        %v757 = vadd.f32 %v703, %v745
        %v758 = vadd.f32 %v704, %v746
        %v759 = vadd.f32 %v705, %v747
        %v760 = vadd.f32 %v706, %v748
        %v761 = vadd.f32 %v707, %v749
        %v762 = vadd.f32 %v708, %v750
        %v763 = vadd.f32 %v709, %v751
        %v764 = vadd.f32 %v710, %v752
        %v765 = vadd.f32 %v711, %v753
        %v766 = vadd.f32 %v712, %v754
        %v767 = vadd.f32 %v713, %v755
        %v768 = vld [vmem:[%s314 + $0x6] sm:$0x3f]
        %v770 = vrot.slane %v768, 1
        %v771 = vrot.slane %v768, 2
        %v772 = vrot.slane %v768, 3
        %v773 = vsel %vm147, %v768, %v770
        %v774 = vsel %vm149, %v771, %v772
        %v775 = vsel %vm151, %v773, %v774
        %v776 = vsel %vm153, %v768, %v770
        %v777 = vsel %vm155, %v771, %v772
        %v778 = vsel %vm157, %v776, %v777
        %v779 = vrot.slane %v778, 1
        %v780 = vld [vmem:[%s327 + $0x18] sm:$0xff]
        %v781 = vld [vmem:[%s327 + $0x20] sm:$0xff]
        %v782 = vld [vmem:[%s327 + $0x28] sm:$0xff]
        %v783 = vld [vmem:[%s327 + $0x60] sm:$0xff]
        %v784 = vld [vmem:[%s327 + $0x68] sm:$0xff]
        %v785 = vld [vmem:[%s327 + $0x70] sm:$0xff]
        %v786 = vperm.slane %v775, 0
        %v787 = vperm.slane %v775, 1
        %v788 = vperm.slane %v775, 2
        %v789 = vperm.slane %v779, 0
        %v790 = vperm.slane %v779, 1
        %v791 = vperm.slane %v779, 2
        %v798 = vmul.f32 %v786, %v780
        %v799 = vmul.f32 %v787, %v781
        %v800 = vmul.f32 %v788, %v782
        %v801 = vmul.f32 %v786, %v783
        %v802 = vmul.f32 %v787, %v784
        %v803 = vmul.f32 %v788, %v785
        %v804 = vmul.f32 %v789, %v780
        %v805 = vmul.f32 %v790, %v781
        %v806 = vmul.f32 %v791, %v782
        %v807 = vmul.f32 %v789, %v783
        %v808 = vmul.f32 %v790, %v784
        %v809 = vmul.f32 %v791, %v785
        %v810 = vadd.f32 %v756, %v798
        %v811 = vadd.f32 %v757, %v799
        %v812 = vadd.f32 %v758, %v800
        %v813 = vadd.f32 %v759, %v801
        %v814 = vadd.f32 %v760, %v802
        %v815 = vadd.f32 %v761, %v803
        %v816 = vadd.f32 %v762, %v804
        %v817 = vadd.f32 %v763, %v805
        %v818 = vadd.f32 %v764, %v806
        %v819 = vadd.f32 %v765, %v807
        %v820 = vadd.f32 %v766, %v808
        %v821 = vadd.f32 %v767, %v809
        %v822 = vld [vmem:[%s370 + $0x6] sm:$0x3f]
        %v824 = vrot.slane %v822, 1
        %v825 = vrot.slane %v822, 2
        %v826 = vrot.slane %v822, 3
        %v827 = vsel %vm147, %v822, %v824
        %v828 = vsel %vm149, %v825, %v826
        %v829 = vsel %vm151, %v827, %v828
        %v830 = vsel %vm153, %v822, %v824
        %v831 = vsel %vm155, %v825, %v826
        %v832 = vsel %vm157, %v830, %v831
        %v833 = vrot.slane %v832, 1
        %v834 = vld [vmem:[%s383 + $0x18] sm:$0xff]
        %v835 = vld [vmem:[%s383 + $0x20] sm:$0xff]
        %v836 = vld [vmem:[%s383 + $0x28] sm:$0xff]
        %v837 = vld [vmem:[%s383 + $0x60] sm:$0xff]
        %v838 = vld [vmem:[%s383 + $0x68] sm:$0xff]
        %v839 = vld [vmem:[%s383 + $0x70] sm:$0xff]
        %v840 = vperm.slane %v829, 0
        %v841 = vperm.slane %v829, 1
        %v842 = vperm.slane %v829, 2
        %v843 = vperm.slane %v833, 0
        %v844 = vperm.slane %v833, 1
        %v845 = vperm.slane %v833, 2
        %v852 = vmul.f32 %v840, %v834
        %v853 = vmul.f32 %v841, %v835
        %v854 = vmul.f32 %v842, %v836
        %v855 = vmul.f32 %v840, %v837
        %v856 = vmul.f32 %v841, %v838
        %v857 = vmul.f32 %v842, %v839
        %v858 = vmul.f32 %v843, %v834
        %v859 = vmul.f32 %v844, %v835
        %v860 = vmul.f32 %v845, %v836
        %v861 = vmul.f32 %v843, %v837
        %v862 = vmul.f32 %v844, %v838
        %v863 = vmul.f32 %v845, %v839
        %v864 = vadd.f32 %v810, %v852
        %v865 = vadd.f32 %v811, %v853
        %v866 = vadd.f32 %v812, %v854
        %v867 = vadd.f32 %v813, %v855
        %v868 = vadd.f32 %v814, %v856
        %v869 = vadd.f32 %v815, %v857
        %v870 = vadd.f32 %v816, %v858
        %v871 = vadd.f32 %v817, %v859
        %v872 = vadd.f32 %v818, %v860
        %v873 = vadd.f32 %v819, %v861
        %v874 = vadd.f32 %v820, %v862
        %v875 = vadd.f32 %v821, %v863
        %v876 = vld [vmem:[%s426 + $0x6] sm:$0x3f]
        %v878 = vrot.slane %v876, 1
        %v879 = vrot.slane %v876, 2
        %v880 = vrot.slane %v876, 3
        %v881 = vsel %vm147, %v876, %v878
        %v882 = vsel %vm149, %v879, %v880
        %v883 = vsel %vm151, %v881, %v882
        %v884 = vsel %vm153, %v876, %v878
        %v885 = vsel %vm155, %v879, %v880
        %v886 = vsel %vm157, %v884, %v885
        %v887 = vrot.slane %v886, 1
        %v888 = vld [vmem:[%s439 + $0x18] sm:$0xff]
        %v889 = vld [vmem:[%s439 + $0x20] sm:$0xff]
        %v890 = vld [vmem:[%s439 + $0x28] sm:$0xff]
        %v891 = vld [vmem:[%s439 + $0x60] sm:$0xff]
        %v892 = vld [vmem:[%s439 + $0x68] sm:$0xff]
        %v893 = vld [vmem:[%s439 + $0x70] sm:$0xff]
        %v894 = vperm.slane %v883, 0
        %v895 = vperm.slane %v883, 1
        %v896 = vperm.slane %v883, 2
        %v897 = vperm.slane %v887, 0
        %v898 = vperm.slane %v887, 1
        %v899 = vperm.slane %v887, 2
        %v906 = vmul.f32 %v894, %v888
        %v907 = vmul.f32 %v895, %v889
        %v908 = vmul.f32 %v896, %v890
        %v909 = vmul.f32 %v894, %v891
        %v910 = vmul.f32 %v895, %v892
        %v911 = vmul.f32 %v896, %v893
        %v912 = vmul.f32 %v897, %v888
        %v913 = vmul.f32 %v898, %v889
        %v914 = vmul.f32 %v899, %v890
        %v915 = vmul.f32 %v897, %v891
        %v916 = vmul.f32 %v898, %v892
        %v917 = vmul.f32 %v899, %v893
        %v918 = vadd.f32 %v864, %v906
        %v919 = vadd.f32 %v865, %v907
        %v920 = vadd.f32 %v866, %v908
        %v921 = vadd.f32 %v867, %v909
        %v922 = vadd.f32 %v868, %v910
        %v923 = vadd.f32 %v869, %v911
        %v924 = vadd.f32 %v870, %v912
        %v925 = vadd.f32 %v871, %v913
        %v926 = vadd.f32 %v872, %v914
        %v927 = vadd.f32 %v873, %v915
        %v928 = vadd.f32 %v874, %v916
        %v929 = vadd.f32 %v875, %v917
        %v930 = vld [vmem:[%s482 + $0x6] sm:$0x3f]
        %v932 = vrot.slane %v930, 1
        %v933 = vrot.slane %v930, 2
        %v934 = vrot.slane %v930, 3
        %v935 = vsel %vm147, %v930, %v932
        %v936 = vsel %vm149, %v933, %v934
        %v937 = vsel %vm151, %v935, %v936
        %v938 = vsel %vm153, %v930, %v932
        %v939 = vsel %vm155, %v933, %v934
        %v940 = vsel %vm157, %v938, %v939
        %v941 = vrot.slane %v940, 1
        %v942 = vld [vmem:[%s495 + $0x18] sm:$0xff]
        %v943 = vld [vmem:[%s495 + $0x20] sm:$0xff]
        %v944 = vld [vmem:[%s495 + $0x28] sm:$0xff]
        %v945 = vld [vmem:[%s495 + $0x60] sm:$0xff]
        %v946 = vld [vmem:[%s495 + $0x68] sm:$0xff]
        %v947 = vld [vmem:[%s495 + $0x70] sm:$0xff]
        %v948 = vperm.slane %v937, 0
        %v949 = vperm.slane %v937, 1
        %v950 = vperm.slane %v937, 2
        %v951 = vperm.slane %v941, 0
        %v952 = vperm.slane %v941, 1
        %v953 = vperm.slane %v941, 2
        %v960 = vmul.f32 %v948, %v942
        %v961 = vmul.f32 %v949, %v943
        %v962 = vmul.f32 %v950, %v944
        %v963 = vmul.f32 %v948, %v945
        %v964 = vmul.f32 %v949, %v946
        %v965 = vmul.f32 %v950, %v947
        %v966 = vmul.f32 %v951, %v942
        %v967 = vmul.f32 %v952, %v943
        %v968 = vmul.f32 %v953, %v944
        %v969 = vmul.f32 %v951, %v945
        %v970 = vmul.f32 %v952, %v946
        %v971 = vmul.f32 %v953, %v947
        %v972 = vadd.f32 %v918, %v960
        %v973 = vadd.f32 %v919, %v961
        %v974 = vadd.f32 %v920, %v962
        %v975 = vadd.f32 %v921, %v963
        %v976 = vadd.f32 %v922, %v964
        %v977 = vadd.f32 %v923, %v965
        %v978 = vadd.f32 %v924, %v966
        %v979 = vadd.f32 %v925, %v967
        %v980 = vadd.f32 %v926, %v968
        %v981 = vadd.f32 %v927, %v969
        %v982 = vadd.f32 %v928, %v970
        %v983 = vadd.f32 %v929, %v971
        %v984 = vld [vmem:[%s538 + $0x6] sm:$0x3f]
        %v986 = vrot.slane %v984, 1
        %v987 = vrot.slane %v984, 2
        %v988 = vrot.slane %v984, 3
        %v989 = vsel %vm147, %v984, %v986
        %v990 = vsel %vm149, %v987, %v988
        %v991 = vsel %vm151, %v989, %v990
        %v992 = vsel %vm153, %v984, %v986
        %v993 = vsel %vm155, %v987, %v988
        %v994 = vsel %vm157, %v992, %v993
        %v995 = vrot.slane %v994, 1
        %v996 = vld [vmem:[%s551 + $0x18] sm:$0xff]
        %v997 = vld [vmem:[%s551 + $0x20] sm:$0xff]
        %v998 = vld [vmem:[%s551 + $0x28] sm:$0xff]
        %v999 = vld [vmem:[%s551 + $0x60] sm:$0xff]
        %v1000 = vld [vmem:[%s551 + $0x68] sm:$0xff]
        %v1001 = vld [vmem:[%s551 + $0x70] sm:$0xff]
        %v1002 = vperm.slane %v991, 0
        %v1003 = vperm.slane %v991, 1
        %v1004 = vperm.slane %v991, 2
        %v1005 = vperm.slane %v995, 0
        %v1006 = vperm.slane %v995, 1
        %v1007 = vperm.slane %v995, 2
        %v1014 = vmul.f32 %v1002, %v996
        %v1015 = vmul.f32 %v1003, %v997
        %v1016 = vmul.f32 %v1004, %v998
        %v1017 = vmul.f32 %v1002, %v999
        %v1018 = vmul.f32 %v1003, %v1000
        %v1019 = vmul.f32 %v1004, %v1001
        %v1020 = vmul.f32 %v1005, %v996
        %v1021 = vmul.f32 %v1006, %v997
        %v1022 = vmul.f32 %v1007, %v998
        %v1023 = vmul.f32 %v1005, %v999
        %v1024 = vmul.f32 %v1006, %v1000
        %v1025 = vmul.f32 %v1007, %v1001
        %v1026 = vadd.f32 %v972, %v1014
        %v1027 = vadd.f32 %v973, %v1015
        %v1028 = vadd.f32 %v974, %v1016
        %v1029 = vadd.f32 %v975, %v1017
        %v1030 = vadd.f32 %v976, %v1018
        %v1031 = vadd.f32 %v977, %v1019
        %v1032 = vadd.f32 %v978, %v1020
        %v1033 = vadd.f32 %v979, %v1021
        %v1034 = vadd.f32 %v980, %v1022
        %v1035 = vadd.f32 %v981, %v1023
        %v1036 = vadd.f32 %v982, %v1024
        %v1037 = vadd.f32 %v983, %v1025
        %1038 = vst [vmem:[#allocation2 + $0x18] sm:$0xff] %v1026
        %1039 = vst [vmem:[#allocation2 + $0x20] sm:$0xff] %v1027
        %1040 = vst [vmem:[#allocation2 + $0x28] sm:$0xff] %v1028
        %1041 = vst [vmem:[#allocation2 + $0x60] sm:$0xff] %v1029
        %1042 = vst [vmem:[#allocation2 + $0x68] sm:$0xff] %v1030
        %1043 = vst [vmem:[#allocation2 + $0x70] sm:$0xff] %v1031
        %1044 = vst [vmem:[#allocation2 + $0xa8] sm:$0xff] %v1032
        %1045 = vst [vmem:[#allocation2 + $0xb0] sm:$0xff] %v1033
        %1046 = vst [vmem:[#allocation2 + $0xb8] sm:$0xff] %v1034
        %1047 = vst [vmem:[#allocation2 + $0xf0] sm:$0xff] %v1035
        %1048 = vst [vmem:[#allocation2 + $0xf8] sm:$0xff] %v1036
        %1049 = vst [vmem:[#allocation2 + $0x100] sm:$0xff] %v1037
        %v1050 = vld [vmem:[%s0 + $0xc] sm:$0x3f]
        %v1052 = vrot.slane %v1050, 1
        %v1053 = vrot.slane %v1050, 2
        %v1054 = vrot.slane %v1050, 3
        %v1055 = vsel %vm147, %v1050, %v1052
        %v1056 = vsel %vm149, %v1053, %v1054
        %v1057 = vsel %vm151, %v1055, %v1056
        %v1058 = vsel %vm153, %v1050, %v1052
        %v1059 = vsel %vm155, %v1053, %v1054
        %v1060 = vsel %vm157, %v1058, %v1059
        %v1061 = vrot.slane %v1060, 1
        %v1062 = vld [vmem:[%s141 + $0x30] sm:$0xff]
        %v1063 = vld [vmem:[%s141 + $0x38] sm:$0xff]
        %v1064 = vld [vmem:[%s141 + $0x40] sm:$0xff]
        %v1065 = vld [vmem:[%s141 + $0x78] sm:$0xff]
        %v1066 = vld [vmem:[%s141 + $0x80] sm:$0xff]
        %v1067 = vld [vmem:[%s141 + $0x88] sm:$0xff]
        %v1068 = vperm.slane %v1057, 0
        %v1069 = vperm.slane %v1057, 1
        %v1070 = vperm.slane %v1057, 2
        %v1071 = vperm.slane %v1061, 0
        %v1072 = vperm.slane %v1061, 1
        %v1073 = vperm.slane %v1061, 2
        %v1080 = vmul.f32 %v1068, %v1062
        %v1081 = vmul.f32 %v1069, %v1063
        %v1082 = vmul.f32 %v1070, %v1064
        %v1083 = vmul.f32 %v1068, %v1065
        %v1084 = vmul.f32 %v1069, %v1066
        %v1085 = vmul.f32 %v1070, %v1067
        %v1086 = vmul.f32 %v1071, %v1062
        %v1087 = vmul.f32 %v1072, %v1063
        %v1088 = vmul.f32 %v1073, %v1064
        %v1089 = vmul.f32 %v1071, %v1065
        %v1090 = vmul.f32 %v1072, %v1066
        %v1091 = vmul.f32 %v1073, %v1067
        %v1092 = vadd.f32 %v1080, 0.0
        %v1093 = vadd.f32 %v1081, 0.0
        %v1094 = vadd.f32 %v1082, 0.0
        %v1095 = vadd.f32 %v1083, 0.0
        %v1096 = vadd.f32 %v1084, 0.0
        %v1097 = vadd.f32 %v1085, 0.0
        %v1098 = vadd.f32 %v1086, 0.0
        %v1099 = vadd.f32 %v1087, 0.0
        %v1100 = vadd.f32 %v1088, 0.0
        %v1101 = vadd.f32 %v1089, 0.0
        %v1102 = vadd.f32 %v1090, 0.0
        %v1103 = vadd.f32 %v1091, 0.0
        %v1104 = vld [vmem:[%s202 + $0xc] sm:$0x3f]
        %v1106 = vrot.slane %v1104, 1
        %v1107 = vrot.slane %v1104, 2
        %v1108 = vrot.slane %v1104, 3
        %v1109 = vsel %vm147, %v1104, %v1106
        %v1110 = vsel %vm149, %v1107, %v1108
        %v1111 = vsel %vm151, %v1109, %v1110
        %v1112 = vsel %vm153, %v1104, %v1106
        %v1113 = vsel %vm155, %v1107, %v1108
        %v1114 = vsel %vm157, %v1112, %v1113
        %v1115 = vrot.slane %v1114, 1
        %v1116 = vld [vmem:[%s215 + $0x30] sm:$0xff]
        %v1117 = vld [vmem:[%s215 + $0x38] sm:$0xff]
        %v1118 = vld [vmem:[%s215 + $0x40] sm:$0xff]
        %v1119 = vld [vmem:[%s215 + $0x78] sm:$0xff]
        %v1120 = vld [vmem:[%s215 + $0x80] sm:$0xff]
        %v1121 = vld [vmem:[%s215 + $0x88] sm:$0xff]
        %v1122 = vperm.slane %v1111, 0
        %v1123 = vperm.slane %v1111, 1
        %v1124 = vperm.slane %v1111, 2
        %v1125 = vperm.slane %v1115, 0
        %v1126 = vperm.slane %v1115, 1
        %v1127 = vperm.slane %v1115, 2
        %v1134 = vmul.f32 %v1122, %v1116
        %v1135 = vmul.f32 %v1123, %v1117
        %v1136 = vmul.f32 %v1124, %v1118
        %v1137 = vmul.f32 %v1122, %v1119
        %v1138 = vmul.f32 %v1123, %v1120
        %v1139 = vmul.f32 %v1124, %v1121
        %v1140 = vmul.f32 %v1125, %v1116
        %v1141 = vmul.f32 %v1126, %v1117
        %v1142 = vmul.f32 %v1127, %v1118
        %v1143 = vmul.f32 %v1125, %v1119
        %v1144 = vmul.f32 %v1126, %v1120
        %v1145 = vmul.f32 %v1127, %v1121
        %v1146 = vadd.f32 %v1092, %v1134
        %v1147 = vadd.f32 %v1093, %v1135
        %v1148 = vadd.f32 %v1094, %v1136
        %v1149 = vadd.f32 %v1095, %v1137
        %v1150 = vadd.f32 %v1096, %v1138
        %v1151 = vadd.f32 %v1097, %v1139
        %v1152 = vadd.f32 %v1098, %v1140
        %v1153 = vadd.f32 %v1099, %v1141
        %v1154 = vadd.f32 %v1100, %v1142
        %v1155 = vadd.f32 %v1101, %v1143
        %v1156 = vadd.f32 %v1102, %v1144
        %v1157 = vadd.f32 %v1103, %v1145
        %v1158 = vld [vmem:[%s258 + $0xc] sm:$0x3f]
        %v1160 = vrot.slane %v1158, 1
        %v1161 = vrot.slane %v1158, 2
        %v1162 = vrot.slane %v1158, 3
        %v1163 = vsel %vm147, %v1158, %v1160
        %v1164 = vsel %vm149, %v1161, %v1162
        %v1165 = vsel %vm151, %v1163, %v1164
        %v1166 = vsel %vm153, %v1158, %v1160
        %v1167 = vsel %vm155, %v1161, %v1162
        %v1168 = vsel %vm157, %v1166, %v1167
        %v1169 = vrot.slane %v1168, 1
        %v1170 = vld [vmem:[%s271 + $0x30] sm:$0xff]
        %v1171 = vld [vmem:[%s271 + $0x38] sm:$0xff]
        %v1172 = vld [vmem:[%s271 + $0x40] sm:$0xff]
        %v1173 = vld [vmem:[%s271 + $0x78] sm:$0xff]
        %v1174 = vld [vmem:[%s271 + $0x80] sm:$0xff]
        %v1175 = vld [vmem:[%s271 + $0x88] sm:$0xff]
        %v1176 = vperm.slane %v1165, 0
        %v1177 = vperm.slane %v1165, 1
        %v1178 = vperm.slane %v1165, 2
        %v1179 = vperm.slane %v1169, 0
        %v1180 = vperm.slane %v1169, 1
        %v1181 = vperm.slane %v1169, 2
        %v1188 = vmul.f32 %v1176, %v1170
        %v1189 = vmul.f32 %v1177, %v1171
        %v1190 = vmul.f32 %v1178, %v1172
        %v1191 = vmul.f32 %v1176, %v1173
        %v1192 = vmul.f32 %v1177, %v1174
        %v1193 = vmul.f32 %v1178, %v1175
        %v1194 = vmul.f32 %v1179, %v1170
        %v1195 = vmul.f32 %v1180, %v1171
        %v1196 = vmul.f32 %v1181, %v1172
        %v1197 = vmul.f32 %v1179, %v1173
        %v1198 = vmul.f32 %v1180, %v1174
        %v1199 = vmul.f32 %v1181, %v1175
        %v1200 = vadd.f32 %v1146, %v1188
        %v1201 = vadd.f32 %v1147, %v1189
        %v1202 = vadd.f32 %v1148, %v1190
        %v1203 = vadd.f32 %v1149, %v1191
        %v1204 = vadd.f32 %v1150, %v1192
        %v1205 = vadd.f32 %v1151, %v1193
        %v1206 = vadd.f32 %v1152, %v1194
        %v1207 = vadd.f32 %v1153, %v1195
        %v1208 = vadd.f32 %v1154, %v1196
        %v1209 = vadd.f32 %v1155, %v1197
        %v1210 = vadd.f32 %v1156, %v1198
        %v1211 = vadd.f32 %v1157, %v1199
        %v1212 = vld [vmem:[%s314 + $0xc] sm:$0x3f]
        %v1214 = vrot.slane %v1212, 1
        %v1215 = vrot.slane %v1212, 2
        %v1216 = vrot.slane %v1212, 3
        %v1217 = vsel %vm147, %v1212, %v1214
        %v1218 = vsel %vm149, %v1215, %v1216
        %v1219 = vsel %vm151, %v1217, %v1218
        %v1220 = vsel %vm153, %v1212, %v1214
        %v1221 = vsel %vm155, %v1215, %v1216
        %v1222 = vsel %vm157, %v1220, %v1221
        %v1223 = vrot.slane %v1222, 1
        %v1224 = vld [vmem:[%s327 + $0x30] sm:$0xff]
        %v1225 = vld [vmem:[%s327 + $0x38] sm:$0xff]
        %v1226 = vld [vmem:[%s327 + $0x40] sm:$0xff]
        %v1227 = vld [vmem:[%s327 + $0x78] sm:$0xff]
        %v1228 = vld [vmem:[%s327 + $0x80] sm:$0xff]
        %v1229 = vld [vmem:[%s327 + $0x88] sm:$0xff]
        %v1230 = vperm.slane %v1219, 0
        %v1231 = vperm.slane %v1219, 1
        %v1232 = vperm.slane %v1219, 2
        %v1233 = vperm.slane %v1223, 0
        %v1234 = vperm.slane %v1223, 1
        %v1235 = vperm.slane %v1223, 2
        %v1242 = vmul.f32 %v1230, %v1224
        %v1243 = vmul.f32 %v1231, %v1225
        %v1244 = vmul.f32 %v1232, %v1226
        %v1245 = vmul.f32 %v1230, %v1227
        %v1246 = vmul.f32 %v1231, %v1228
        %v1247 = vmul.f32 %v1232, %v1229
        %v1248 = vmul.f32 %v1233, %v1224
        %v1249 = vmul.f32 %v1234, %v1225
        %v1250 = vmul.f32 %v1235, %v1226
        %v1251 = vmul.f32 %v1233, %v1227
        %v1252 = vmul.f32 %v1234, %v1228
        %v1253 = vmul.f32 %v1235, %v1229
        %v1254 = vadd.f32 %v1200, %v1242
        %v1255 = vadd.f32 %v1201, %v1243
        %v1256 = vadd.f32 %v1202, %v1244
        %v1257 = vadd.f32 %v1203, %v1245
        %v1258 = vadd.f32 %v1204, %v1246
        %v1259 = vadd.f32 %v1205, %v1247
        %v1260 = vadd.f32 %v1206, %v1248
        %v1261 = vadd.f32 %v1207, %v1249
        %v1262 = vadd.f32 %v1208, %v1250
        %v1263 = vadd.f32 %v1209, %v1251
        %v1264 = vadd.f32 %v1210, %v1252
        %v1265 = vadd.f32 %v1211, %v1253
        %v1266 = vld [vmem:[%s370 + $0xc] sm:$0x3f]
        %v1268 = vrot.slane %v1266, 1
        %v1269 = vrot.slane %v1266, 2
        %v1270 = vrot.slane %v1266, 3
        %v1271 = vsel %vm147, %v1266, %v1268
        %v1272 = vsel %vm149, %v1269, %v1270
        %v1273 = vsel %vm151, %v1271, %v1272
        %v1274 = vsel %vm153, %v1266, %v1268
        %v1275 = vsel %vm155, %v1269, %v1270
        %v1276 = vsel %vm157, %v1274, %v1275
        %v1277 = vrot.slane %v1276, 1
        %v1278 = vld [vmem:[%s383 + $0x30] sm:$0xff]
        %v1279 = vld [vmem:[%s383 + $0x38] sm:$0xff]
        %v1280 = vld [vmem:[%s383 + $0x40] sm:$0xff]
        %v1281 = vld [vmem:[%s383 + $0x78] sm:$0xff]
        %v1282 = vld [vmem:[%s383 + $0x80] sm:$0xff]
        %v1283 = vld [vmem:[%s383 + $0x88] sm:$0xff]
        %v1284 = vperm.slane %v1273, 0
        %v1285 = vperm.slane %v1273, 1
        %v1286 = vperm.slane %v1273, 2
        %v1287 = vperm.slane %v1277, 0
        %v1288 = vperm.slane %v1277, 1
        %v1289 = vperm.slane %v1277, 2
        %v1296 = vmul.f32 %v1284, %v1278
        %v1297 = vmul.f32 %v1285, %v1279
        %v1298 = vmul.f32 %v1286, %v1280
        %v1299 = vmul.f32 %v1284, %v1281
        %v1300 = vmul.f32 %v1285, %v1282
        %v1301 = vmul.f32 %v1286, %v1283
        %v1302 = vmul.f32 %v1287, %v1278
        %v1303 = vmul.f32 %v1288, %v1279
        %v1304 = vmul.f32 %v1289, %v1280
        %v1305 = vmul.f32 %v1287, %v1281
        %v1306 = vmul.f32 %v1288, %v1282
        %v1307 = vmul.f32 %v1289, %v1283
        %v1308 = vadd.f32 %v1254, %v1296
        %v1309 = vadd.f32 %v1255, %v1297
        %v1310 = vadd.f32 %v1256, %v1298
        %v1311 = vadd.f32 %v1257, %v1299
        %v1312 = vadd.f32 %v1258, %v1300
        %v1313 = vadd.f32 %v1259, %v1301
        %v1314 = vadd.f32 %v1260, %v1302
        %v1315 = vadd.f32 %v1261, %v1303
        %v1316 = vadd.f32 %v1262, %v1304
        %v1317 = vadd.f32 %v1263, %v1305
        %v1318 = vadd.f32 %v1264, %v1306
        %v1319 = vadd.f32 %v1265, %v1307
        %v1320 = vld [vmem:[%s426 + $0xc] sm:$0x3f]
        %v1322 = vrot.slane %v1320, 1
        %v1323 = vrot.slane %v1320, 2
        %v1324 = vrot.slane %v1320, 3
        %v1325 = vsel %vm147, %v1320, %v1322
        %v1326 = vsel %vm149, %v1323, %v1324
        %v1327 = vsel %vm151, %v1325, %v1326
        %v1328 = vsel %vm153, %v1320, %v1322
        %v1329 = vsel %vm155, %v1323, %v1324
        %v1330 = vsel %vm157, %v1328, %v1329
        %v1331 = vrot.slane %v1330, 1
        %v1332 = vld [vmem:[%s439 + $0x30] sm:$0xff]
        %v1333 = vld [vmem:[%s439 + $0x38] sm:$0xff]
        %v1334 = vld [vmem:[%s439 + $0x40] sm:$0xff]
        %v1335 = vld [vmem:[%s439 + $0x78] sm:$0xff]
        %v1336 = vld [vmem:[%s439 + $0x80] sm:$0xff]
        %v1337 = vld [vmem:[%s439 + $0x88] sm:$0xff]
        %v1338 = vperm.slane %v1327, 0
        %v1339 = vperm.slane %v1327, 1
        %v1340 = vperm.slane %v1327, 2
        %v1341 = vperm.slane %v1331, 0
        %v1342 = vperm.slane %v1331, 1
        %v1343 = vperm.slane %v1331, 2
        %v1350 = vmul.f32 %v1338, %v1332
        %v1351 = vmul.f32 %v1339, %v1333
        %v1352 = vmul.f32 %v1340, %v1334
        %v1353 = vmul.f32 %v1338, %v1335
        %v1354 = vmul.f32 %v1339, %v1336
        %v1355 = vmul.f32 %v1340, %v1337
        %v1356 = vmul.f32 %v1341, %v1332
        %v1357 = vmul.f32 %v1342, %v1333
        %v1358 = vmul.f32 %v1343, %v1334
        %v1359 = vmul.f32 %v1341, %v1335
        %v1360 = vmul.f32 %v1342, %v1336
        %v1361 = vmul.f32 %v1343, %v1337
        %v1362 = vadd.f32 %v1308, %v1350
        %v1363 = vadd.f32 %v1309, %v1351
        %v1364 = vadd.f32 %v1310, %v1352
        %v1365 = vadd.f32 %v1311, %v1353
        %v1366 = vadd.f32 %v1312, %v1354
        %v1367 = vadd.f32 %v1313, %v1355
        %v1368 = vadd.f32 %v1314, %v1356
        %v1369 = vadd.f32 %v1315, %v1357
        %v1370 = vadd.f32 %v1316, %v1358
        %v1371 = vadd.f32 %v1317, %v1359
        %v1372 = vadd.f32 %v1318, %v1360
        %v1373 = vadd.f32 %v1319, %v1361
        %v1374 = vld [vmem:[%s482 + $0xc] sm:$0x3f]
        %v1376 = vrot.slane %v1374, 1
        %v1377 = vrot.slane %v1374, 2
        %v1378 = vrot.slane %v1374, 3
        %v1379 = vsel %vm147, %v1374, %v1376
        %v1380 = vsel %vm149, %v1377, %v1378
        %v1381 = vsel %vm151, %v1379, %v1380
        %v1382 = vsel %vm153, %v1374, %v1376
        %v1383 = vsel %vm155, %v1377, %v1378
        %v1384 = vsel %vm157, %v1382, %v1383
        %v1385 = vrot.slane %v1384, 1
        %v1386 = vld [vmem:[%s495 + $0x30] sm:$0xff]
        %v1387 = vld [vmem:[%s495 + $0x38] sm:$0xff]
        %v1388 = vld [vmem:[%s495 + $0x40] sm:$0xff]
        %v1389 = vld [vmem:[%s495 + $0x78] sm:$0xff]
        %v1390 = vld [vmem:[%s495 + $0x80] sm:$0xff]
        %v1391 = vld [vmem:[%s495 + $0x88] sm:$0xff]
        %v1392 = vperm.slane %v1381, 0
        %v1393 = vperm.slane %v1381, 1
        %v1394 = vperm.slane %v1381, 2
        %v1395 = vperm.slane %v1385, 0
        %v1396 = vperm.slane %v1385, 1
        %v1397 = vperm.slane %v1385, 2
        %v1404 = vmul.f32 %v1392, %v1386
        %v1405 = vmul.f32 %v1393, %v1387
        %v1406 = vmul.f32 %v1394, %v1388
        %v1407 = vmul.f32 %v1392, %v1389
        %v1408 = vmul.f32 %v1393, %v1390
        %v1409 = vmul.f32 %v1394, %v1391
        %v1410 = vmul.f32 %v1395, %v1386
        %v1411 = vmul.f32 %v1396, %v1387
        %v1412 = vmul.f32 %v1397, %v1388
        %v1413 = vmul.f32 %v1395, %v1389
        %v1414 = vmul.f32 %v1396, %v1390
        %v1415 = vmul.f32 %v1397, %v1391
        %v1416 = vadd.f32 %v1362, %v1404
        %v1417 = vadd.f32 %v1363, %v1405
        %v1418 = vadd.f32 %v1364, %v1406
        %v1419 = vadd.f32 %v1365, %v1407
        %v1420 = vadd.f32 %v1366, %v1408
        %v1421 = vadd.f32 %v1367, %v1409
        %v1422 = vadd.f32 %v1368, %v1410
        %v1423 = vadd.f32 %v1369, %v1411
        %v1424 = vadd.f32 %v1370, %v1412
        %v1425 = vadd.f32 %v1371, %v1413
        %v1426 = vadd.f32 %v1372, %v1414
        %v1427 = vadd.f32 %v1373, %v1415
        %v1428 = vld [vmem:[%s538 + $0xc] sm:$0x3f]
        %v1430 = vrot.slane %v1428, 1
        %v1431 = vrot.slane %v1428, 2
        %v1432 = vrot.slane %v1428, 3
        %v1433 = vsel %vm147, %v1428, %v1430
        %v1434 = vsel %vm149, %v1431, %v1432
        %v1435 = vsel %vm151, %v1433, %v1434
        %v1436 = vsel %vm153, %v1428, %v1430
        %v1437 = vsel %vm155, %v1431, %v1432
        %v1438 = vsel %vm157, %v1436, %v1437
        %v1439 = vrot.slane %v1438, 1
        %v1440 = vld [vmem:[%s551 + $0x30] sm:$0xff]
        %v1441 = vld [vmem:[%s551 + $0x38] sm:$0xff]
        %v1442 = vld [vmem:[%s551 + $0x40] sm:$0xff]
        %v1443 = vld [vmem:[%s551 + $0x78] sm:$0xff]
        %v1444 = vld [vmem:[%s551 + $0x80] sm:$0xff]
        %v1445 = vld [vmem:[%s551 + $0x88] sm:$0xff]
        %v1446 = vperm.slane %v1435, 0
        %v1447 = vperm.slane %v1435, 1
        %v1448 = vperm.slane %v1435, 2
        %v1449 = vperm.slane %v1439, 0
        %v1450 = vperm.slane %v1439, 1
        %v1451 = vperm.slane %v1439, 2
        %v1458 = vmul.f32 %v1446, %v1440
        %v1459 = vmul.f32 %v1447, %v1441
        %v1460 = vmul.f32 %v1448, %v1442
        %v1461 = vmul.f32 %v1446, %v1443
        %v1462 = vmul.f32 %v1447, %v1444
        %v1463 = vmul.f32 %v1448, %v1445
        %v1464 = vmul.f32 %v1449, %v1440
        %v1465 = vmul.f32 %v1450, %v1441
        %v1466 = vmul.f32 %v1451, %v1442
        %v1467 = vmul.f32 %v1449, %v1443
        %v1468 = vmul.f32 %v1450, %v1444
        %v1469 = vmul.f32 %v1451, %v1445
        %v1470 = vadd.f32 %v1416, %v1458
        %v1471 = vadd.f32 %v1417, %v1459
        %v1472 = vadd.f32 %v1418, %v1460
        %v1473 = vadd.f32 %v1419, %v1461
        %v1474 = vadd.f32 %v1420, %v1462
        %v1475 = vadd.f32 %v1421, %v1463
        %v1476 = vadd.f32 %v1422, %v1464
        %v1477 = vadd.f32 %v1423, %v1465
        %v1478 = vadd.f32 %v1424, %v1466
        %v1479 = vadd.f32 %v1425, %v1467
        %v1480 = vadd.f32 %v1426, %v1468
        %v1481 = vadd.f32 %v1427, %v1469
        %1482 = vst [vmem:[#allocation2 + $0x30] sm:$0xff] %v1470
        %1483 = vst [vmem:[#allocation2 + $0x38] sm:$0xff] %v1471
        %1484 = vst [vmem:[#allocation2 + $0x40] sm:$0xff] %v1472
        %1485 = vst [vmem:[#allocation2 + $0x78] sm:$0xff] %v1473
        %1486 = vst [vmem:[#allocation2 + $0x80] sm:$0xff] %v1474
        %1487 = vst [vmem:[#allocation2 + $0x88] sm:$0xff] %v1475
        %1488 = vst [vmem:[#allocation2 + $0xc0] sm:$0xff] %v1476
        %1489 = vst [vmem:[#allocation2 + $0xc8] sm:$0xff] %v1477
        %1490 = vst [vmem:[#allocation2 + $0xd0] sm:$0xff] %v1478
        %1491 = vst [vmem:[#allocation2 + $0x108] sm:$0xff] %v1479
        %1492 = vst [vmem:[#allocation2 + $0x110] sm:$0xff] %v1480
        %1493 = vst [vmem:[#allocation2 + $0x118] sm:$0xff] %v1481
        %v1494 = vld [vmem:[#allocation2] sm:$0xff]
        %v1495 = vld [vmem:[#allocation2 + $0x8] sm:$0xff]
        %v1496 = vld [vmem:[#allocation2 + $0x10] sm:$0xff]
        %v1497 = vld [vmem:[#allocation2 + $0x18] sm:$0xff]
        %v1498 = vld [vmem:[#allocation2 + $0x20] sm:$0xff]
        %v1499 = vld [vmem:[#allocation2 + $0x28] sm:$0xff]
        %v1500 = vld [vmem:[#allocation2 + $0x30] sm:$0xff]
        %v1501 = vld [vmem:[#allocation2 + $0x38] sm:$0xff]
        %v1502 = vld [vmem:[#allocation2 + $0x40] sm:$0xff]
        %v1503 = vld [vmem:[#allocation2 + $0x48] sm:$0xff]
        %v1504 = vld [vmem:[#allocation2 + $0x50] sm:$0xff]
        %v1505 = vld [vmem:[#allocation2 + $0x58] sm:$0xff]
        %v1506 = vld [vmem:[#allocation2 + $0x60] sm:$0xff]
        %v1507 = vld [vmem:[#allocation2 + $0x68] sm:$0xff]
        %v1508 = vld [vmem:[#allocation2 + $0x70] sm:$0xff]
        %v1509 = vld [vmem:[#allocation2 + $0x78] sm:$0xff]
        %v1510 = vld [vmem:[#allocation2 + $0x80] sm:$0xff]
        %v1511 = vld [vmem:[#allocation2 + $0x88] sm:$0xff]
        %v1512 = vld [vmem:[#allocation2 + $0x90] sm:$0xff]
        %v1513 = vld [vmem:[#allocation2 + $0x98] sm:$0xff]
        %v1514 = vld [vmem:[#allocation2 + $0xa0] sm:$0xff]
        %v1515 = vld [vmem:[#allocation2 + $0xa8] sm:$0xff]
        %v1516 = vld [vmem:[#allocation2 + $0xb0] sm:$0xff]
        %v1517 = vld [vmem:[#allocation2 + $0xb8] sm:$0xff]
        %v1518 = vld [vmem:[#allocation2 + $0xc0] sm:$0xff]
        %v1519 = vld [vmem:[#allocation2 + $0xc8] sm:$0xff]
        %v1520 = vld [vmem:[#allocation2 + $0xd0] sm:$0xff]
        %v1521 = vld [vmem:[#allocation2 + $0xd8] sm:$0xff]
        %v1522 = vld [vmem:[#allocation2 + $0xe0] sm:$0xff]
        %v1523 = vld [vmem:[#allocation2 + $0xe8] sm:$0xff]
        %v1524 = vld [vmem:[#allocation2 + $0xf0] sm:$0xff]
        %v1525 = vld [vmem:[#allocation2 + $0xf8] sm:$0xff]
        %v1526 = vld [vmem:[#allocation2 + $0x100] sm:$0xff]
        %v1527 = vld [vmem:[#allocation2 + $0x108] sm:$0xff]
        %v1528 = vld [vmem:[#allocation2 + $0x110] sm:$0xff]
        %v1529 = vld [vmem:[#allocation2 + $0x118] sm:$0xff]
        %v1530 = vadd.f32 %v1494, %v1495
        %v1531 = vadd.f32 %v1530, %v1496
        %v1532 = vadd.f32 %v1531, %v1497
        %v1533 = vadd.f32 %v1532, %v1498
        %v1534 = vadd.f32 %v1533, %v1499
        %v1535 = vadd.f32 %v1534, %v1500
        %v1536 = vadd.f32 %v1535, %v1501
        %v1537 = vadd.f32 %v1536, %v1502
        %1538 = vadd.xlane.f32.xlu0 %v1537
        %v1539 = vpop.xlane.xlu0 %1538
        %v1540 = vadd.f32 %v1503, %v1504
        %v1541 = vadd.f32 %v1540, %v1505
        %v1542 = vadd.f32 %v1541, %v1506
        %v1543 = vadd.f32 %v1542, %v1507
        %v1544 = vadd.f32 %v1543, %v1508
        %v1545 = vadd.f32 %v1544, %v1509
        %v1546 = vadd.f32 %v1545, %v1510
        %v1547 = vadd.f32 %v1546, %v1511
        %1548 = vadd.xlane.f32.xlu0 %v1547
        %v1549 = vpop.xlane.xlu0 %1548
        %v1550 = vadd.f32 %v1512, %v1513
        %v1551 = vadd.f32 %v1550, %v1514
        %v1552 = vadd.f32 %v1551, %v1515
        %v1553 = vadd.f32 %v1552, %v1516
        %v1554 = vadd.f32 %v1553, %v1517
        %v1555 = vadd.f32 %v1554, %v1518
        %v1556 = vadd.f32 %v1555, %v1519
        %v1557 = vadd.f32 %v1556, %v1520
        %1558 = vadd.xlane.f32.xlu0 %v1557
        %v1559 = vpop.xlane.xlu0 %1558
        %v1560 = vadd.f32 %v1521, %v1522
        %v1561 = vadd.f32 %v1560, %v1523
        %v1562 = vadd.f32 %v1561, %v1524
        %v1563 = vadd.f32 %v1562, %v1525
        %v1564 = vadd.f32 %v1563, %v1526
        %v1565 = vadd.f32 %v1564, %v1527
        %v1566 = vadd.f32 %v1565, %v1528
        %v1567 = vadd.f32 %v1566, %v1529
        %1568 = vadd.xlane.f32.xlu0 %v1567
        %v1569 = vpop.xlane.xlu0 %1568
        %v1570 = vmul.f32 %v1539, 0.00086805556
        %v1571 = vmul.f32 %v1549, 0.00086805556
        %v1572 = vmul.f32 %v1559, 0.00086805556
        %v1573 = vmul.f32 %v1569, 0.00086805556
        %v1574 = vmul.f32 %v1570, %v1570
        %v1575 = vmul.f32 %v1571, %v1571
        %v1576 = vmul.f32 %v1572, %v1572
        %v1577 = vmul.f32 %v1573, %v1573
        %v1578 = vadd.f32 %v1574, %v1575
        %v1579 = vrot.slane %v1578, 4
        %v1580 = vadd.f32 %v1578, %v1579
        %v1581 = vrot.slane %v1580, 2
        %v1582 = vadd.f32 %v1580, %v1581
        %v1583 = vrot.slane %v1582, 1
        %v1584 = vadd.f32 %v1582, %v1583
        %v1585 = vadd.f32 %v1576, %v1577
        %v1586 = vrot.slane %v1585, 4
        %v1587 = vadd.f32 %v1585, %v1586
        %v1588 = vrot.slane %v1587, 2
        %v1589 = vadd.f32 %v1587, %v1588
        %v1590 = vrot.slane %v1589, 1
        %v1591 = vadd.f32 %v1589, %v1590
        %v1592 = vadd.f32 %v1584, 1.0
        %v1593 = vadd.f32 %v1591, 1.0
        %v1594 = vrcp.pop %v1592
        %v1595 = vrcp.pop %v1593
        %v1596 = vmul.f32 %v1584, %v1594
        %v1597 = vmul.f32 %v1591, %v1595
        %v1598 = vadd.f32 %v1584, 1e-12
        %v1599 = vadd.f32 %v1591, 1e-12
        %v1600 = vrsqrt.pop %v1598
        %v1601 = vmul.f32 %v1600, %v1598
        %v1602 = vmul.f32 %v1601, %v1600
        %v1603 = vmul.f32 0.5, %v1602
        %v1604 = vsub.f32 1.5, %v1603
        %v1605 = vmul.f32 %v1600, %v1604
        %vm1606 = vweird.f32 %v1598
        %vm1607 = vweird.f32 %v1600
        %vm1608 = vmor %vm1606, %vm1607
        %v1609 = vsel %vm1608, %v1600, %v1605
        %v1610 = vrsqrt.pop %v1599
        %v1611 = vmul.f32 %v1610, %v1599
        %v1612 = vmul.f32 %v1611, %v1610
        %v1613 = vmul.f32 0.5, %v1612
        %v1614 = vsub.f32 1.5, %v1613
        %v1615 = vmul.f32 %v1610, %v1614
        %vm1616 = vweird.f32 %v1599
        %vm1617 = vweird.f32 %v1610
        %vm1618 = vmor %vm1616, %vm1617
        %v1619 = vsel %vm1618, %v1610, %v1615
        %v1620 = vmul.f32 %v1596, %v1609
        %v1621 = vmul.f32 %v1597, %v1619
        %v1622 = vmul.f32 %v1570, %v1620
        %v1623 = vmul.f32 %v1571, %v1620
        %v1624 = vmul.f32 %v1572, %v1621
        %v1625 = vmul.f32 %v1573, %v1621
        %v1626 = vmul.f32 %v1494, %v1622
        %v1627 = vmul.f32 %v1495, %v1622
        %v1628 = vmul.f32 %v1496, %v1622
        %v1629 = vmul.f32 %v1497, %v1622
        %v1630 = vmul.f32 %v1498, %v1622
        %v1631 = vmul.f32 %v1499, %v1622
        %v1632 = vmul.f32 %v1500, %v1622
        %v1633 = vmul.f32 %v1501, %v1622
        %v1634 = vmul.f32 %v1502, %v1622
        %v1635 = vmul.f32 %v1503, %v1623
        %v1636 = vmul.f32 %v1504, %v1623
        %v1637 = vmul.f32 %v1505, %v1623
        %v1638 = vmul.f32 %v1506, %v1623
        %v1639 = vmul.f32 %v1507, %v1623
        %v1640 = vmul.f32 %v1508, %v1623
        %v1641 = vmul.f32 %v1509, %v1623
        %v1642 = vmul.f32 %v1510, %v1623
        %v1643 = vmul.f32 %v1511, %v1623
        %v1644 = vmul.f32 %v1512, %v1624
        %v1645 = vmul.f32 %v1513, %v1624
        %v1646 = vmul.f32 %v1514, %v1624
        %v1647 = vmul.f32 %v1515, %v1624
        %v1648 = vmul.f32 %v1516, %v1624
        %v1649 = vmul.f32 %v1517, %v1624
        %v1650 = vmul.f32 %v1518, %v1624
        %v1651 = vmul.f32 %v1519, %v1624
        %v1652 = vmul.f32 %v1520, %v1624
        %v1653 = vmul.f32 %v1521, %v1625
        %v1654 = vmul.f32 %v1522, %v1625
        %v1655 = vmul.f32 %v1523, %v1625
        %v1656 = vmul.f32 %v1524, %v1625
        %v1657 = vmul.f32 %v1525, %v1625
        %v1658 = vmul.f32 %v1526, %v1625
        %v1659 = vmul.f32 %v1527, %v1625
        %v1660 = vmul.f32 %v1528, %v1625
        %v1661 = vmul.f32 %v1529, %v1625
        %v1662 = vadd.f32 %v1626, %v1635
        %v1663 = vrot.slane %v1662, 4
        %v1664 = vadd.f32 %v1662, %v1663
        %v1665 = vrot.slane %v1664, 2
        %v1666 = vadd.f32 %v1664, %v1665
        %v1667 = vrot.slane %v1666, 1
        %v1668 = vadd.f32 %v1666, %v1667
        %v1669 = vadd.f32 %v1627, %v1636
        %v1670 = vrot.slane %v1669, 4
        %v1671 = vadd.f32 %v1669, %v1670
        %v1672 = vrot.slane %v1671, 2
        %v1673 = vadd.f32 %v1671, %v1672
        %v1674 = vrot.slane %v1673, 1
        %v1675 = vadd.f32 %v1673, %v1674
        %v1676 = vadd.f32 %v1628, %v1637
        %v1677 = vrot.slane %v1676, 4
        %v1678 = vadd.f32 %v1676, %v1677
        %v1679 = vrot.slane %v1678, 2
        %v1680 = vadd.f32 %v1678, %v1679
        %v1681 = vrot.slane %v1680, 1
        %v1682 = vadd.f32 %v1680, %v1681
        %v1683 = vadd.f32 %v1629, %v1638
        %v1684 = vrot.slane %v1683, 4
        %v1685 = vadd.f32 %v1683, %v1684
        %v1686 = vrot.slane %v1685, 2
        %v1687 = vadd.f32 %v1685, %v1686
        %v1688 = vrot.slane %v1687, 1
        %v1689 = vadd.f32 %v1687, %v1688
        %v1690 = vadd.f32 %v1630, %v1639
        %v1691 = vrot.slane %v1690, 4
        %v1692 = vadd.f32 %v1690, %v1691
        %v1693 = vrot.slane %v1692, 2
        %v1694 = vadd.f32 %v1692, %v1693
        %v1695 = vrot.slane %v1694, 1
        %v1696 = vadd.f32 %v1694, %v1695
        %v1697 = vadd.f32 %v1631, %v1640
        %v1698 = vrot.slane %v1697, 4
        %v1699 = vadd.f32 %v1697, %v1698
        %v1700 = vrot.slane %v1699, 2
        %v1701 = vadd.f32 %v1699, %v1700
        %v1702 = vrot.slane %v1701, 1
        %v1703 = vadd.f32 %v1701, %v1702
        %v1704 = vadd.f32 %v1632, %v1641
        %v1705 = vrot.slane %v1704, 4
        %v1706 = vadd.f32 %v1704, %v1705
        %v1707 = vrot.slane %v1706, 2
        %v1708 = vadd.f32 %v1706, %v1707
        %v1709 = vrot.slane %v1708, 1
        %v1710 = vadd.f32 %v1708, %v1709
        %v1711 = vadd.f32 %v1633, %v1642
        %v1712 = vrot.slane %v1711, 4
        %v1713 = vadd.f32 %v1711, %v1712
        %v1714 = vrot.slane %v1713, 2
        %v1715 = vadd.f32 %v1713, %v1714
        %v1716 = vrot.slane %v1715, 1
        %v1717 = vadd.f32 %v1715, %v1716
        %v1718 = vadd.f32 %v1634, %v1643
        %v1719 = vrot.slane %v1718, 4
        %v1720 = vadd.f32 %v1718, %v1719
        %v1721 = vrot.slane %v1720, 2
        %v1722 = vadd.f32 %v1720, %v1721
        %v1723 = vrot.slane %v1722, 1
        %v1724 = vadd.f32 %v1722, %v1723
        %v1725 = vadd.f32 %v1644, %v1653
        %v1726 = vrot.slane %v1725, 4
        %v1727 = vadd.f32 %v1725, %v1726
        %v1728 = vrot.slane %v1727, 2
        %v1729 = vadd.f32 %v1727, %v1728
        %v1730 = vrot.slane %v1729, 1
        %v1731 = vadd.f32 %v1729, %v1730
        %v1732 = vadd.f32 %v1645, %v1654
        %v1733 = vrot.slane %v1732, 4
        %v1734 = vadd.f32 %v1732, %v1733
        %v1735 = vrot.slane %v1734, 2
        %v1736 = vadd.f32 %v1734, %v1735
        %v1737 = vrot.slane %v1736, 1
        %v1738 = vadd.f32 %v1736, %v1737
        %v1739 = vadd.f32 %v1646, %v1655
        %v1740 = vrot.slane %v1739, 4
        %v1741 = vadd.f32 %v1739, %v1740
        %v1742 = vrot.slane %v1741, 2
        %v1743 = vadd.f32 %v1741, %v1742
        %v1744 = vrot.slane %v1743, 1
        %v1745 = vadd.f32 %v1743, %v1744
        %v1746 = vadd.f32 %v1647, %v1656
        %v1747 = vrot.slane %v1746, 4
        %v1748 = vadd.f32 %v1746, %v1747
        %v1749 = vrot.slane %v1748, 2
        %v1750 = vadd.f32 %v1748, %v1749
        %v1751 = vrot.slane %v1750, 1
        %v1752 = vadd.f32 %v1750, %v1751
        %v1753 = vadd.f32 %v1648, %v1657
        %v1754 = vrot.slane %v1753, 4
        %v1755 = vadd.f32 %v1753, %v1754
        %v1756 = vrot.slane %v1755, 2
        %v1757 = vadd.f32 %v1755, %v1756
        %v1758 = vrot.slane %v1757, 1
        %v1759 = vadd.f32 %v1757, %v1758
        %v1760 = vadd.f32 %v1649, %v1658
        %v1761 = vrot.slane %v1760, 4
        %v1762 = vadd.f32 %v1760, %v1761
        %v1763 = vrot.slane %v1762, 2
        %v1764 = vadd.f32 %v1762, %v1763
        %v1765 = vrot.slane %v1764, 1
        %v1766 = vadd.f32 %v1764, %v1765
        %v1767 = vadd.f32 %v1650, %v1659
        %v1768 = vrot.slane %v1767, 4
        %v1769 = vadd.f32 %v1767, %v1768
        %v1770 = vrot.slane %v1769, 2
        %v1771 = vadd.f32 %v1769, %v1770
        %v1772 = vrot.slane %v1771, 1
        %v1773 = vadd.f32 %v1771, %v1772
        %v1774 = vadd.f32 %v1651, %v1660
        %v1775 = vrot.slane %v1774, 4
        %v1776 = vadd.f32 %v1774, %v1775
        %v1777 = vrot.slane %v1776, 2
        %v1778 = vadd.f32 %v1776, %v1777
        %v1779 = vrot.slane %v1778, 1
        %v1780 = vadd.f32 %v1778, %v1779
        %v1781 = vadd.f32 %v1652, %v1661
        %v1782 = vrot.slane %v1781, 4
        %v1783 = vadd.f32 %v1781, %v1782
        %v1784 = vrot.slane %v1783, 2
        %v1785 = vadd.f32 %v1783, %v1784
        %v1786 = vrot.slane %v1785, 1
        %v1787 = vadd.f32 %v1785, %v1786
        %v1788 = vmax.f32 %v1668, %v1682
        %v1789 = vmax.f32 %v1675, %v1689
        %v1790 = vmax.f32 %v1788, %v1696
        %v1791 = vmax.f32 %v1789, %v1703
        %v1792 = vmax.f32 %v1790, %v1710
        %v1793 = vmax.f32 %v1791, %v1717
        %v1794 = vmax.f32 %v1792, %v1724
        %v1795 = vmax.f32 %v1794, %v1793
        %1796 = vmax.xlane.f32.xlu0 %v1795
        %v1797 = vpop.xlane.xlu0 %1796
        %v1798 = vmax.f32 %v1731, %v1745
        %v1799 = vmax.f32 %v1738, %v1752
        %v1800 = vmax.f32 %v1798, %v1759
        %v1801 = vmax.f32 %v1799, %v1766
        %v1802 = vmax.f32 %v1800, %v1773
        %v1803 = vmax.f32 %v1801, %v1780
        %v1804 = vmax.f32 %v1802, %v1787
        %v1805 = vmax.f32 %v1804, %v1803
        %1806 = vmax.xlane.f32.xlu0 %v1805
        %v1807 = vpop.xlane.xlu0 %1806
        %v1808 = vsub.f32 %v1668, %v1797
        %v1809 = vsub.f32 %v1675, %v1797
        %v1810 = vsub.f32 %v1682, %v1797
        %v1811 = vsub.f32 %v1689, %v1797
        %v1812 = vsub.f32 %v1696, %v1797
        %v1813 = vsub.f32 %v1703, %v1797
        %v1814 = vsub.f32 %v1710, %v1797
        %v1815 = vsub.f32 %v1717, %v1797
        %v1816 = vsub.f32 %v1724, %v1797
        %v1817 = vsub.f32 %v1731, %v1807
        %v1818 = vsub.f32 %v1738, %v1807
        %v1819 = vsub.f32 %v1745, %v1807
        %v1820 = vsub.f32 %v1752, %v1807
        %v1821 = vsub.f32 %v1759, %v1807
        %v1822 = vsub.f32 %v1766, %v1807
        %v1823 = vsub.f32 %v1773, %v1807
        %v1824 = vsub.f32 %v1780, %v1807
        %v1825 = vsub.f32 %v1787, %v1807
        %v1826 = vmul.f32 %v1808, 1.442695
        %v1827 = vpow.pop %v1826
        %v1828 = vmul.f32 %v1809, 1.442695
        %v1829 = vpow.pop %v1828
        %v1830 = vmul.f32 %v1810, 1.442695
        %v1831 = vpow.pop %v1830
        %v1832 = vmul.f32 %v1811, 1.442695
        %v1833 = vpow.pop %v1832
        %v1834 = vmul.f32 %v1812, 1.442695
        %v1835 = vpow.pop %v1834
        %v1836 = vmul.f32 %v1813, 1.442695
        %v1837 = vpow.pop %v1836
        %v1838 = vmul.f32 %v1814, 1.442695
        %v1839 = vpow.pop %v1838
        %v1840 = vmul.f32 %v1815, 1.442695
        %v1841 = vpow.pop %v1840
        %v1842 = vmul.f32 %v1816, 1.442695
        %v1843 = vpow.pop %v1842
        %v1844 = vmul.f32 %v1817, 1.442695
        %v1845 = vpow.pop %v1844
        %v1846 = vmul.f32 %v1818, 1.442695
        %v1847 = vpow.pop %v1846
        %v1848 = vmul.f32 %v1819, 1.442695
        %v1849 = vpow.pop %v1848
        %v1850 = vmul.f32 %v1820, 1.442695
        %v1851 = vpow.pop %v1850
        %v1852 = vmul.f32 %v1821, 1.442695
        %v1853 = vpow.pop %v1852
        %v1854 = vmul.f32 %v1822, 1.442695
        %v1855 = vpow.pop %v1854
        %v1856 = vmul.f32 %v1823, 1.442695
        %v1857 = vpow.pop %v1856
        %v1858 = vmul.f32 %v1824, 1.442695
        %v1859 = vpow.pop %v1858
        %v1860 = vmul.f32 %v1825, 1.442695
        %v1861 = vpow.pop %v1860
        %v1862 = vadd.f32 %v1827, %v1829
        %v1863 = vadd.f32 %v1862, %v1831
        %v1864 = vadd.f32 %v1863, %v1833
        %v1865 = vadd.f32 %v1864, %v1835
        %v1866 = vadd.f32 %v1865, %v1837
        %v1867 = vadd.f32 %v1866, %v1839
        %v1868 = vadd.f32 %v1867, %v1841
        %v1869 = vadd.f32 %v1868, %v1843
        %1870 = vadd.xlane.f32.xlu0 %v1869
        %v1871 = vpop.xlane.xlu0 %1870
        %v1872 = vadd.f32 %v1845, %v1847
        %v1873 = vadd.f32 %v1872, %v1849
        %v1874 = vadd.f32 %v1873, %v1851
        %v1875 = vadd.f32 %v1874, %v1853
        %v1876 = vadd.f32 %v1875, %v1855
        %v1877 = vadd.f32 %v1876, %v1857
        %v1878 = vadd.f32 %v1877, %v1859
        %v1879 = vadd.f32 %v1878, %v1861
        %1880 = vadd.xlane.f32.xlu0 %v1879
        %v1881 = vpop.xlane.xlu0 %1880
        %v1882 = vrcp.pop %v1871
        %v1883 = vrcp.pop %v1881
        %v1884 = vmul.f32 %v1827, %v1882
        %v1885 = vmul.f32 %v1829, %v1882
        %v1886 = vmul.f32 %v1831, %v1882
        %v1887 = vmul.f32 %v1833, %v1882
        %v1888 = vmul.f32 %v1835, %v1882
        %v1889 = vmul.f32 %v1837, %v1882
        %v1890 = vmul.f32 %v1839, %v1882
        %v1891 = vmul.f32 %v1841, %v1882
        %v1892 = vmul.f32 %v1843, %v1882
        %v1893 = vmul.f32 %v1845, %v1883
        %v1894 = vmul.f32 %v1847, %v1883
        %v1895 = vmul.f32 %v1849, %v1883
        %v1896 = vmul.f32 %v1851, %v1883
        %v1897 = vmul.f32 %v1853, %v1883
        %v1898 = vmul.f32 %v1855, %v1883
        %v1899 = vmul.f32 %v1857, %v1883
        %v1900 = vmul.f32 %v1859, %v1883
        %v1901 = vmul.f32 %v1861, %v1883
        %v1902 = vmul.f32 %v1884, %v1494
        %v1903 = vmul.f32 %v1885, %v1495
        %v1904 = vmul.f32 %v1886, %v1496
        %v1905 = vmul.f32 %v1887, %v1497
        %v1906 = vmul.f32 %v1888, %v1498
        %v1907 = vmul.f32 %v1889, %v1499
        %v1908 = vmul.f32 %v1890, %v1500
        %v1909 = vmul.f32 %v1891, %v1501
        %v1910 = vmul.f32 %v1892, %v1502
        %v1911 = vmul.f32 %v1884, %v1503
        %v1912 = vmul.f32 %v1885, %v1504
        %v1913 = vmul.f32 %v1886, %v1505
        %v1914 = vmul.f32 %v1887, %v1506
        %v1915 = vmul.f32 %v1888, %v1507
        %v1916 = vmul.f32 %v1889, %v1508
        %v1917 = vmul.f32 %v1890, %v1509
        %v1918 = vmul.f32 %v1891, %v1510
        %v1919 = vmul.f32 %v1892, %v1511
        %v1920 = vmul.f32 %v1893, %v1512
        %v1921 = vmul.f32 %v1894, %v1513
        %v1922 = vmul.f32 %v1895, %v1514
        %v1923 = vmul.f32 %v1896, %v1515
        %v1924 = vmul.f32 %v1897, %v1516
        %v1925 = vmul.f32 %v1898, %v1517
        %v1926 = vmul.f32 %v1899, %v1518
        %v1927 = vmul.f32 %v1900, %v1519
        %v1928 = vmul.f32 %v1901, %v1520
        %v1929 = vmul.f32 %v1893, %v1521
        %v1930 = vmul.f32 %v1894, %v1522
        %v1931 = vmul.f32 %v1895, %v1523
        %v1932 = vmul.f32 %v1896, %v1524
        %v1933 = vmul.f32 %v1897, %v1525
        %v1934 = vmul.f32 %v1898, %v1526
        %v1935 = vmul.f32 %v1899, %v1527
        %v1936 = vmul.f32 %v1900, %v1528
        %v1937 = vmul.f32 %v1901, %v1529
        %v1938 = vadd.f32 %v1902, %v1903
        %v1939 = vadd.f32 %v1938, %v1904
        %v1940 = vadd.f32 %v1939, %v1905
        %v1941 = vadd.f32 %v1940, %v1906
        %v1942 = vadd.f32 %v1941, %v1907
        %v1943 = vadd.f32 %v1942, %v1908
        %v1944 = vadd.f32 %v1943, %v1909
        %v1945 = vadd.f32 %v1944, %v1910
        %1946 = vadd.xlane.f32.xlu0 %v1945
        %v1947 = vpop.xlane.xlu0 %1946
        %v1948 = vadd.f32 %v1911, %v1912
        %v1949 = vadd.f32 %v1948, %v1913
        %v1950 = vadd.f32 %v1949, %v1914
        %v1951 = vadd.f32 %v1950, %v1915
        %v1952 = vadd.f32 %v1951, %v1916
        %v1953 = vadd.f32 %v1952, %v1917
        %v1954 = vadd.f32 %v1953, %v1918
        %v1955 = vadd.f32 %v1954, %v1919
        %1956 = vadd.xlane.f32.xlu0 %v1955
        %v1957 = vpop.xlane.xlu0 %1956
        %v1958 = vadd.f32 %v1920, %v1921
        %v1959 = vadd.f32 %v1958, %v1922
        %v1960 = vadd.f32 %v1959, %v1923
        %v1961 = vadd.f32 %v1960, %v1924
        %v1962 = vadd.f32 %v1961, %v1925
        %v1963 = vadd.f32 %v1962, %v1926
        %v1964 = vadd.f32 %v1963, %v1927
        %v1965 = vadd.f32 %v1964, %v1928
        %1966 = vadd.xlane.f32.xlu0 %v1965
        %v1967 = vpop.xlane.xlu0 %1966
        %v1968 = vadd.f32 %v1929, %v1930
        %v1969 = vadd.f32 %v1968, %v1931
        %v1970 = vadd.f32 %v1969, %v1932
        %v1971 = vadd.f32 %v1970, %v1933
        %v1972 = vadd.f32 %v1971, %v1934
        %v1973 = vadd.f32 %v1972, %v1935
        %v1974 = vadd.f32 %v1973, %v1936
        %v1975 = vadd.f32 %v1974, %v1937
        %1976 = vadd.xlane.f32.xlu0 %v1975
        %v1977 = vpop.xlane.xlu0 %1976
        %v1978 = vmul.f32 %v1947, %v1947
        %v1979 = vmul.f32 %v1957, %v1957
        %v1980 = vmul.f32 %v1967, %v1967
        %v1981 = vmul.f32 %v1977, %v1977
        %v1982 = vadd.f32 %v1978, %v1979
        %v1983 = vrot.slane %v1982, 4
        %v1984 = vadd.f32 %v1982, %v1983
        %v1985 = vrot.slane %v1984, 2
        %v1986 = vadd.f32 %v1984, %v1985
        %v1987 = vrot.slane %v1986, 1
        %v1988 = vadd.f32 %v1986, %v1987
        %v1989 = vadd.f32 %v1980, %v1981
        %v1990 = vrot.slane %v1989, 4
        %v1991 = vadd.f32 %v1989, %v1990
        %v1992 = vrot.slane %v1991, 2
        %v1993 = vadd.f32 %v1991, %v1992
        %v1994 = vrot.slane %v1993, 1
        %v1995 = vadd.f32 %v1993, %v1994
        %v1996 = vadd.f32 %v1988, 1.0
        %v1997 = vadd.f32 %v1995, 1.0
        %v1998 = vrcp.pop %v1996
        %v1999 = vrcp.pop %v1997
        %v2000 = vmul.f32 %v1988, %v1998
        %v2001 = vmul.f32 %v1995, %v1999
        %v2002 = vadd.f32 %v1988, 1e-12
        %v2003 = vadd.f32 %v1995, 1e-12
        %v2004 = vrsqrt.pop %v2002
        %v2005 = vmul.f32 %v2004, %v2002
        %v2006 = vmul.f32 %v2005, %v2004
        %v2007 = vmul.f32 0.5, %v2006
        %v2008 = vsub.f32 1.5, %v2007
        %v2009 = vmul.f32 %v2004, %v2008
        %vm2010 = vweird.f32 %v2002
        %vm2011 = vweird.f32 %v2004
        %vm2012 = vmor %vm2010, %vm2011
        %v2013 = vsel %vm2012, %v2004, %v2009
        %v2014 = vrsqrt.pop %v2003
        %v2015 = vmul.f32 %v2014, %v2003
        %v2016 = vmul.f32 %v2015, %v2014
        %v2017 = vmul.f32 0.5, %v2016
        %v2018 = vsub.f32 1.5, %v2017
        %v2019 = vmul.f32 %v2014, %v2018
        %vm2020 = vweird.f32 %v2003
        %vm2021 = vweird.f32 %v2014
        %vm2022 = vmor %vm2020, %vm2021
        %v2023 = vsel %vm2022, %v2014, %v2019
        %v2024 = vmul.f32 %v2000, %v2013
        %v2025 = vmul.f32 %v2001, %v2023
        %v2026 = vmul.f32 %v1947, %v2024
        %v2027 = vmul.f32 %v1957, %v2024
        %v2028 = vmul.f32 %v1967, %v2025
        %v2029 = vmul.f32 %v1977, %v2025
        %v2030 = vmul.f32 %v1494, %v2026
        %v2031 = vmul.f32 %v1495, %v2026
        %v2032 = vmul.f32 %v1496, %v2026
        %v2033 = vmul.f32 %v1497, %v2026
        %v2034 = vmul.f32 %v1498, %v2026
        %v2035 = vmul.f32 %v1499, %v2026
        %v2036 = vmul.f32 %v1500, %v2026
        %v2037 = vmul.f32 %v1501, %v2026
        %v2038 = vmul.f32 %v1502, %v2026
        %v2039 = vmul.f32 %v1503, %v2027
        %v2040 = vmul.f32 %v1504, %v2027
        %v2041 = vmul.f32 %v1505, %v2027
        %v2042 = vmul.f32 %v1506, %v2027
        %v2043 = vmul.f32 %v1507, %v2027
        %v2044 = vmul.f32 %v1508, %v2027
        %v2045 = vmul.f32 %v1509, %v2027
        %v2046 = vmul.f32 %v1510, %v2027
        %v2047 = vmul.f32 %v1511, %v2027
        %v2048 = vmul.f32 %v1512, %v2028
        %v2049 = vmul.f32 %v1513, %v2028
        %v2050 = vmul.f32 %v1514, %v2028
        %v2051 = vmul.f32 %v1515, %v2028
        %v2052 = vmul.f32 %v1516, %v2028
        %v2053 = vmul.f32 %v1517, %v2028
        %v2054 = vmul.f32 %v1518, %v2028
        %v2055 = vmul.f32 %v1519, %v2028
        %v2056 = vmul.f32 %v1520, %v2028
        %v2057 = vmul.f32 %v1521, %v2029
        %v2058 = vmul.f32 %v1522, %v2029
        %v2059 = vmul.f32 %v1523, %v2029
        %v2060 = vmul.f32 %v1524, %v2029
        %v2061 = vmul.f32 %v1525, %v2029
        %v2062 = vmul.f32 %v1526, %v2029
        %v2063 = vmul.f32 %v1527, %v2029
        %v2064 = vmul.f32 %v1528, %v2029
        %v2065 = vmul.f32 %v1529, %v2029
        %v2066 = vadd.f32 %v2030, %v2039
        %v2067 = vrot.slane %v2066, 4
        %v2068 = vadd.f32 %v2066, %v2067
        %v2069 = vrot.slane %v2068, 2
        %v2070 = vadd.f32 %v2068, %v2069
        %v2071 = vrot.slane %v2070, 1
        %v2072 = vadd.f32 %v2070, %v2071
        %v2073 = vadd.f32 %v2031, %v2040
        %v2074 = vrot.slane %v2073, 4
        %v2075 = vadd.f32 %v2073, %v2074
        %v2076 = vrot.slane %v2075, 2
        %v2077 = vadd.f32 %v2075, %v2076
        %v2078 = vrot.slane %v2077, 1
        %v2079 = vadd.f32 %v2077, %v2078
        %v2080 = vadd.f32 %v2032, %v2041
        %v2081 = vrot.slane %v2080, 4
        %v2082 = vadd.f32 %v2080, %v2081
        %v2083 = vrot.slane %v2082, 2
        %v2084 = vadd.f32 %v2082, %v2083
        %v2085 = vrot.slane %v2084, 1
        %v2086 = vadd.f32 %v2084, %v2085
        %v2087 = vadd.f32 %v2033, %v2042
        %v2088 = vrot.slane %v2087, 4
        %v2089 = vadd.f32 %v2087, %v2088
        %v2090 = vrot.slane %v2089, 2
        %v2091 = vadd.f32 %v2089, %v2090
        %v2092 = vrot.slane %v2091, 1
        %v2093 = vadd.f32 %v2091, %v2092
        %v2094 = vadd.f32 %v2034, %v2043
        %v2095 = vrot.slane %v2094, 4
        %v2096 = vadd.f32 %v2094, %v2095
        %v2097 = vrot.slane %v2096, 2
        %v2098 = vadd.f32 %v2096, %v2097
        %v2099 = vrot.slane %v2098, 1
        %v2100 = vadd.f32 %v2098, %v2099
        %v2101 = vadd.f32 %v2035, %v2044
        %v2102 = vrot.slane %v2101, 4
        %v2103 = vadd.f32 %v2101, %v2102
        %v2104 = vrot.slane %v2103, 2
        %v2105 = vadd.f32 %v2103, %v2104
        %v2106 = vrot.slane %v2105, 1
        %v2107 = vadd.f32 %v2105, %v2106
        %v2108 = vadd.f32 %v2036, %v2045
        %v2109 = vrot.slane %v2108, 4
        %v2110 = vadd.f32 %v2108, %v2109
        %v2111 = vrot.slane %v2110, 2
        %v2112 = vadd.f32 %v2110, %v2111
        %v2113 = vrot.slane %v2112, 1
        %v2114 = vadd.f32 %v2112, %v2113
        %v2115 = vadd.f32 %v2037, %v2046
        %v2116 = vrot.slane %v2115, 4
        %v2117 = vadd.f32 %v2115, %v2116
        %v2118 = vrot.slane %v2117, 2
        %v2119 = vadd.f32 %v2117, %v2118
        %v2120 = vrot.slane %v2119, 1
        %v2121 = vadd.f32 %v2119, %v2120
        %v2122 = vadd.f32 %v2038, %v2047
        %v2123 = vrot.slane %v2122, 4
        %v2124 = vadd.f32 %v2122, %v2123
        %v2125 = vrot.slane %v2124, 2
        %v2126 = vadd.f32 %v2124, %v2125
        %v2127 = vrot.slane %v2126, 1
        %v2128 = vadd.f32 %v2126, %v2127
        %v2129 = vadd.f32 %v2048, %v2057
        %v2130 = vrot.slane %v2129, 4
        %v2131 = vadd.f32 %v2129, %v2130
        %v2132 = vrot.slane %v2131, 2
        %v2133 = vadd.f32 %v2131, %v2132
        %v2134 = vrot.slane %v2133, 1
        %v2135 = vadd.f32 %v2133, %v2134
        %v2136 = vadd.f32 %v2049, %v2058
        %v2137 = vrot.slane %v2136, 4
        %v2138 = vadd.f32 %v2136, %v2137
        %v2139 = vrot.slane %v2138, 2
        %v2140 = vadd.f32 %v2138, %v2139
        %v2141 = vrot.slane %v2140, 1
        %v2142 = vadd.f32 %v2140, %v2141
        %v2143 = vadd.f32 %v2050, %v2059
        %v2144 = vrot.slane %v2143, 4
        %v2145 = vadd.f32 %v2143, %v2144
        %v2146 = vrot.slane %v2145, 2
        %v2147 = vadd.f32 %v2145, %v2146
        %v2148 = vrot.slane %v2147, 1
        %v2149 = vadd.f32 %v2147, %v2148
        %v2150 = vadd.f32 %v2051, %v2060
        %v2151 = vrot.slane %v2150, 4
        %v2152 = vadd.f32 %v2150, %v2151
        %v2153 = vrot.slane %v2152, 2
        %v2154 = vadd.f32 %v2152, %v2153
        %v2155 = vrot.slane %v2154, 1
        %v2156 = vadd.f32 %v2154, %v2155
        %v2157 = vadd.f32 %v2052, %v2061
        %v2158 = vrot.slane %v2157, 4
        %v2159 = vadd.f32 %v2157, %v2158
        %v2160 = vrot.slane %v2159, 2
        %v2161 = vadd.f32 %v2159, %v2160
        %v2162 = vrot.slane %v2161, 1
        %v2163 = vadd.f32 %v2161, %v2162
        %v2164 = vadd.f32 %v2053, %v2062
        %v2165 = vrot.slane %v2164, 4
        %v2166 = vadd.f32 %v2164, %v2165
        %v2167 = vrot.slane %v2166, 2
        %v2168 = vadd.f32 %v2166, %v2167
        %v2169 = vrot.slane %v2168, 1
        %v2170 = vadd.f32 %v2168, %v2169
        %v2171 = vadd.f32 %v2054, %v2063
        %v2172 = vrot.slane %v2171, 4
        %v2173 = vadd.f32 %v2171, %v2172
        %v2174 = vrot.slane %v2173, 2
        %v2175 = vadd.f32 %v2173, %v2174
        %v2176 = vrot.slane %v2175, 1
        %v2177 = vadd.f32 %v2175, %v2176
        %v2178 = vadd.f32 %v2055, %v2064
        %v2179 = vrot.slane %v2178, 4
        %v2180 = vadd.f32 %v2178, %v2179
        %v2181 = vrot.slane %v2180, 2
        %v2182 = vadd.f32 %v2180, %v2181
        %v2183 = vrot.slane %v2182, 1
        %v2184 = vadd.f32 %v2182, %v2183
        %v2185 = vadd.f32 %v2056, %v2065
        %v2186 = vrot.slane %v2185, 4
        %v2187 = vadd.f32 %v2185, %v2186
        %v2188 = vrot.slane %v2187, 2
        %v2189 = vadd.f32 %v2187, %v2188
        %v2190 = vrot.slane %v2189, 1
        %v2191 = vadd.f32 %v2189, %v2190
        %v2192 = vadd.f32 %v1668, %v2072
        %v2193 = vadd.f32 %v1675, %v2079
        %v2194 = vadd.f32 %v1682, %v2086
        %v2195 = vadd.f32 %v1689, %v2093
        %v2196 = vadd.f32 %v1696, %v2100
        %v2197 = vadd.f32 %v1703, %v2107
        %v2198 = vadd.f32 %v1710, %v2114
        %v2199 = vadd.f32 %v1717, %v2121
        %v2200 = vadd.f32 %v1724, %v2128
        %v2201 = vadd.f32 %v1731, %v2135
        %v2202 = vadd.f32 %v1738, %v2142
        %v2203 = vadd.f32 %v1745, %v2149
        %v2204 = vadd.f32 %v1752, %v2156
        %v2205 = vadd.f32 %v1759, %v2163
        %v2206 = vadd.f32 %v1766, %v2170
        %v2207 = vadd.f32 %v1773, %v2177
        %v2208 = vadd.f32 %v1780, %v2184
        %v2209 = vadd.f32 %v1787, %v2191
        %v2210 = vmax.f32 %v2192, %v2194
        %v2211 = vmax.f32 %v2193, %v2195
        %v2212 = vmax.f32 %v2210, %v2196
        %v2213 = vmax.f32 %v2211, %v2197
        %v2214 = vmax.f32 %v2212, %v2198
        %v2215 = vmax.f32 %v2213, %v2199
        %v2216 = vmax.f32 %v2214, %v2200
        %v2217 = vmax.f32 %v2216, %v2215
        %2218 = vmax.xlane.f32.xlu0 %v2217
        %v2219 = vpop.xlane.xlu0 %2218
        %v2220 = vmax.f32 %v2201, %v2203
        %v2221 = vmax.f32 %v2202, %v2204
        %v2222 = vmax.f32 %v2220, %v2205
        %v2223 = vmax.f32 %v2221, %v2206
        %v2224 = vmax.f32 %v2222, %v2207
        %v2225 = vmax.f32 %v2223, %v2208
        %v2226 = vmax.f32 %v2224, %v2209
        %v2227 = vmax.f32 %v2226, %v2225
        %2228 = vmax.xlane.f32.xlu0 %v2227
        %v2229 = vpop.xlane.xlu0 %2228
        %v2230 = vsub.f32 %v2192, %v2219
        %v2231 = vsub.f32 %v2193, %v2219
        %v2232 = vsub.f32 %v2194, %v2219
        %v2233 = vsub.f32 %v2195, %v2219
        %v2234 = vsub.f32 %v2196, %v2219
        %v2235 = vsub.f32 %v2197, %v2219
        %v2236 = vsub.f32 %v2198, %v2219
        %v2237 = vsub.f32 %v2199, %v2219
        %v2238 = vsub.f32 %v2200, %v2219
        %v2239 = vsub.f32 %v2201, %v2229
        %v2240 = vsub.f32 %v2202, %v2229
        %v2241 = vsub.f32 %v2203, %v2229
        %v2242 = vsub.f32 %v2204, %v2229
        %v2243 = vsub.f32 %v2205, %v2229
        %v2244 = vsub.f32 %v2206, %v2229
        %v2245 = vsub.f32 %v2207, %v2229
        %v2246 = vsub.f32 %v2208, %v2229
        %v2247 = vsub.f32 %v2209, %v2229
        %v2248 = vmul.f32 %v2230, 1.442695
        %v2249 = vpow.pop %v2248
        %v2250 = vmul.f32 %v2231, 1.442695
        %v2251 = vpow.pop %v2250
        %v2252 = vmul.f32 %v2232, 1.442695
        %v2253 = vpow.pop %v2252
        %v2254 = vmul.f32 %v2233, 1.442695
        %v2255 = vpow.pop %v2254
        %v2256 = vmul.f32 %v2234, 1.442695
        %v2257 = vpow.pop %v2256
        %v2258 = vmul.f32 %v2235, 1.442695
        %v2259 = vpow.pop %v2258
        %v2260 = vmul.f32 %v2236, 1.442695
        %v2261 = vpow.pop %v2260
        %v2262 = vmul.f32 %v2237, 1.442695
        %v2263 = vpow.pop %v2262
        %v2264 = vmul.f32 %v2238, 1.442695
        %v2265 = vpow.pop %v2264
        %v2266 = vmul.f32 %v2239, 1.442695
        %v2267 = vpow.pop %v2266
        %v2268 = vmul.f32 %v2240, 1.442695
        %v2269 = vpow.pop %v2268
        %v2270 = vmul.f32 %v2241, 1.442695
        %v2271 = vpow.pop %v2270
        %v2272 = vmul.f32 %v2242, 1.442695
        %v2273 = vpow.pop %v2272
        %v2274 = vmul.f32 %v2243, 1.442695
        %v2275 = vpow.pop %v2274
        %v2276 = vmul.f32 %v2244, 1.442695
        %v2277 = vpow.pop %v2276
        %v2278 = vmul.f32 %v2245, 1.442695
        %v2279 = vpow.pop %v2278
        %v2280 = vmul.f32 %v2246, 1.442695
        %v2281 = vpow.pop %v2280
        %v2282 = vmul.f32 %v2247, 1.442695
        %v2283 = vpow.pop %v2282
        %v2284 = vadd.f32 %v2249, %v2251
        %v2285 = vadd.f32 %v2284, %v2253
        %v2286 = vadd.f32 %v2285, %v2255
        %v2287 = vadd.f32 %v2286, %v2257
        %v2288 = vadd.f32 %v2287, %v2259
        %v2289 = vadd.f32 %v2288, %v2261
        %v2290 = vadd.f32 %v2289, %v2263
        %v2291 = vadd.f32 %v2290, %v2265
        %2292 = vadd.xlane.f32.xlu0 %v2291
        %v2293 = vpop.xlane.xlu0 %2292
        %v2294 = vadd.f32 %v2267, %v2269
        %v2295 = vadd.f32 %v2294, %v2271
        %v2296 = vadd.f32 %v2295, %v2273
        %v2297 = vadd.f32 %v2296, %v2275
        %v2298 = vadd.f32 %v2297, %v2277
        %v2299 = vadd.f32 %v2298, %v2279
        %v2300 = vadd.f32 %v2299, %v2281
        %v2301 = vadd.f32 %v2300, %v2283
        %2302 = vadd.xlane.f32.xlu0 %v2301
        %v2303 = vpop.xlane.xlu0 %2302
        %v2304 = vrcp.pop %v2293
        %v2305 = vrcp.pop %v2303
        %v2306 = vmul.f32 %v2249, %v2304
        %v2307 = vmul.f32 %v2251, %v2304
        %v2308 = vmul.f32 %v2253, %v2304
        %v2309 = vmul.f32 %v2255, %v2304
        %v2310 = vmul.f32 %v2257, %v2304
        %v2311 = vmul.f32 %v2259, %v2304
        %v2312 = vmul.f32 %v2261, %v2304
        %v2313 = vmul.f32 %v2263, %v2304
        %v2314 = vmul.f32 %v2265, %v2304
        %v2315 = vmul.f32 %v2267, %v2305
        %v2316 = vmul.f32 %v2269, %v2305
        %v2317 = vmul.f32 %v2271, %v2305
        %v2318 = vmul.f32 %v2273, %v2305
        %v2319 = vmul.f32 %v2275, %v2305
        %v2320 = vmul.f32 %v2277, %v2305
        %v2321 = vmul.f32 %v2279, %v2305
        %v2322 = vmul.f32 %v2281, %v2305
        %v2323 = vmul.f32 %v2283, %v2305
        %v2324 = vmul.f32 %v2306, %v1494
        %v2325 = vmul.f32 %v2307, %v1495
        %v2326 = vmul.f32 %v2308, %v1496
        %v2327 = vmul.f32 %v2309, %v1497
        %v2328 = vmul.f32 %v2310, %v1498
        %v2329 = vmul.f32 %v2311, %v1499
        %v2330 = vmul.f32 %v2312, %v1500
        %v2331 = vmul.f32 %v2313, %v1501
        %v2332 = vmul.f32 %v2314, %v1502
        %v2333 = vmul.f32 %v2306, %v1503
        %v2334 = vmul.f32 %v2307, %v1504
        %v2335 = vmul.f32 %v2308, %v1505
        %v2336 = vmul.f32 %v2309, %v1506
        %v2337 = vmul.f32 %v2310, %v1507
        %v2338 = vmul.f32 %v2311, %v1508
        %v2339 = vmul.f32 %v2312, %v1509
        %v2340 = vmul.f32 %v2313, %v1510
        %v2341 = vmul.f32 %v2314, %v1511
        %v2342 = vmul.f32 %v2315, %v1512
        %v2343 = vmul.f32 %v2316, %v1513
        %v2344 = vmul.f32 %v2317, %v1514
        %v2345 = vmul.f32 %v2318, %v1515
        %v2346 = vmul.f32 %v2319, %v1516
        %v2347 = vmul.f32 %v2320, %v1517
        %v2348 = vmul.f32 %v2321, %v1518
        %v2349 = vmul.f32 %v2322, %v1519
        %v2350 = vmul.f32 %v2323, %v1520
        %v2351 = vmul.f32 %v2315, %v1521
        %v2352 = vmul.f32 %v2316, %v1522
        %v2353 = vmul.f32 %v2317, %v1523
        %v2354 = vmul.f32 %v2318, %v1524
        %v2355 = vmul.f32 %v2319, %v1525
        %v2356 = vmul.f32 %v2320, %v1526
        %v2357 = vmul.f32 %v2321, %v1527
        %v2358 = vmul.f32 %v2322, %v1528
        %v2359 = vmul.f32 %v2323, %v1529
        %v2360 = vadd.f32 %v2324, %v2325
        %v2361 = vadd.f32 %v2360, %v2326
        %v2362 = vadd.f32 %v2361, %v2327
        %v2363 = vadd.f32 %v2362, %v2328
        %v2364 = vadd.f32 %v2363, %v2329
        %v2365 = vadd.f32 %v2364, %v2330
        %v2366 = vadd.f32 %v2365, %v2331
        %v2367 = vadd.f32 %v2366, %v2332
        %2368 = vadd.xlane.f32.xlu0 %v2367
        %v2369 = vpop.xlane.xlu0 %2368
        %v2370 = vadd.f32 %v2333, %v2334
        %v2371 = vadd.f32 %v2370, %v2335
        %v2372 = vadd.f32 %v2371, %v2336
        %v2373 = vadd.f32 %v2372, %v2337
        %v2374 = vadd.f32 %v2373, %v2338
        %v2375 = vadd.f32 %v2374, %v2339
        %v2376 = vadd.f32 %v2375, %v2340
        %v2377 = vadd.f32 %v2376, %v2341
        %2378 = vadd.xlane.f32.xlu0 %v2377
        %v2379 = vpop.xlane.xlu0 %2378
        %v2380 = vadd.f32 %v2342, %v2343
        %v2381 = vadd.f32 %v2380, %v2344
        %v2382 = vadd.f32 %v2381, %v2345
        %v2383 = vadd.f32 %v2382, %v2346
        %v2384 = vadd.f32 %v2383, %v2347
        %v2385 = vadd.f32 %v2384, %v2348
        %v2386 = vadd.f32 %v2385, %v2349
        %v2387 = vadd.f32 %v2386, %v2350
        %2388 = vadd.xlane.f32.xlu0 %v2387
        %v2389 = vpop.xlane.xlu0 %2388
        %v2390 = vadd.f32 %v2351, %v2352
        %v2391 = vadd.f32 %v2390, %v2353
        %v2392 = vadd.f32 %v2391, %v2354
        %v2393 = vadd.f32 %v2392, %v2355
        %v2394 = vadd.f32 %v2393, %v2356
        %v2395 = vadd.f32 %v2394, %v2357
        %v2396 = vadd.f32 %v2395, %v2358
        %v2397 = vadd.f32 %v2396, %v2359
        %2398 = vadd.xlane.f32.xlu0 %v2397
        %v2399 = vpop.xlane.xlu0 %2398
        %v2400 = vmul.f32 %v2369, %v2369
        %v2401 = vmul.f32 %v2379, %v2379
        %v2402 = vmul.f32 %v2389, %v2389
        %v2403 = vmul.f32 %v2399, %v2399
        %v2404 = vadd.f32 %v2400, %v2401
        %v2405 = vrot.slane %v2404, 4
        %v2406 = vadd.f32 %v2404, %v2405
        %v2407 = vrot.slane %v2406, 2
        %v2408 = vadd.f32 %v2406, %v2407
        %v2409 = vrot.slane %v2408, 1
        %v2410 = vadd.f32 %v2408, %v2409
        %v2411 = vadd.f32 %v2402, %v2403
        %v2412 = vrot.slane %v2411, 4
        %v2413 = vadd.f32 %v2411, %v2412
        %v2414 = vrot.slane %v2413, 2
        %v2415 = vadd.f32 %v2413, %v2414
        %v2416 = vrot.slane %v2415, 1
        %v2417 = vadd.f32 %v2415, %v2416
        %v2418 = vadd.f32 %v2410, 1.0
        %v2419 = vadd.f32 %v2417, 1.0
        %v2420 = vrcp.pop %v2418
        %v2421 = vrcp.pop %v2419
        %v2422 = vmul.f32 %v2410, %v2420
        %v2423 = vmul.f32 %v2417, %v2421
        %v2424 = vadd.f32 %v2410, 1e-12
        %v2425 = vadd.f32 %v2417, 1e-12
        %v2426 = vrsqrt.pop %v2424
        %v2427 = vmul.f32 %v2426, %v2424
        %v2428 = vmul.f32 %v2427, %v2426
        %v2429 = vmul.f32 0.5, %v2428
        %v2430 = vsub.f32 1.5, %v2429
        %v2431 = vmul.f32 %v2426, %v2430
        %vm2432 = vweird.f32 %v2424
        %vm2433 = vweird.f32 %v2426
        %vm2434 = vmor %vm2432, %vm2433
        %v2435 = vsel %vm2434, %v2426, %v2431
        %v2436 = vrsqrt.pop %v2425
        %v2437 = vmul.f32 %v2436, %v2425
        %v2438 = vmul.f32 %v2437, %v2436
        %v2439 = vmul.f32 0.5, %v2438
        %v2440 = vsub.f32 1.5, %v2439
        %v2441 = vmul.f32 %v2436, %v2440
        %vm2442 = vweird.f32 %v2425
        %vm2443 = vweird.f32 %v2436
        %vm2444 = vmor %vm2442, %vm2443
        %v2445 = vsel %vm2444, %v2436, %v2441
        %v2446 = vmul.f32 %v2422, %v2435
        %v2447 = vmul.f32 %v2423, %v2445
        %v2448 = vmul.f32 %v2369, %v2446
        %v2449 = vmul.f32 %v2379, %v2446
        %v2450 = vmul.f32 %v2389, %v2447
        %v2451 = vmul.f32 %v2399, %v2447
        %v2456 = vlaneseq
        %v2457 = vand.u32 %v2456, 127
        %v2458 = vperm.slane %v2448, %v2457
        %v2459 = vadd.s32 %v2457, 4294967288
        %v2460 = vperm.slane %v2449, %v2459
        %vm2461 = vcmask 130112
        %v2462 = vsel %vm2461, %v2460, %v2458
        %v2463 = vperm.slane %v2450, %v2457
        %v2464 = vperm.slane %v2451, %v2459
        %v2465 = vsel %vm2461, %v2464, %v2463
        %v2466 = vsel %vm153, %v2465, %v2462
        %vm2468 = vcmask 123904
        %2469 = vst.msk [vmem:[%s136] sm:$0x3] %vm2468, %v2466
        %s2470 = sand.u32 %s71, 1
        %s2471 = scalar_lea.sflag [#allocation4], %s2470
        %s2472 = sand.u32 %s71, 1
        %s2473 = smul.addr %s2472, 2
        %s2474 = scalar_lea.vmem [#allocation3], %s2473
        // Predicated region
        $region29: #{capsule_network_forward.7} parent=27 // pred_check
          %p2475 = pneg %p81
        $region30: #{capsule_network_forward.7} parent=27 // pred_check_branch
          %2477 = sbr.rel (%p2475) target = $region32
        $region31: #{capsule_network_forward.7} parent=27 // pred_region
          %2479 = vsyncadd %s2471, 0
          %s2480 = smul.addr %s16, 2
          %s2481 = scalar_lea.hbm %s2, %s2480
          %s2483 = sshll.u32 %s2474, 4
          %s2484 = int_to_ptr.vmem [resolvable:$true] %s2483
          %s2485 = sshll.u32 %s2481, 4
          %s2486 = int_to_ptr.hbm [resolvable:$true] %s2485
          %2488 = dma.vmem_to_hbm [thread:$0]  %s2484, 32, %s2486, %s2471
        $region32: #{capsule_network_forward.7} parent=27 // pred_fallthru
          _
      $region28: #{capsule_network_forward.7} parent=5 // pred_fallthru
        _
      %p2489 = scmp.le.s32.totalorder 2, %s11
      // Predicated region
      $region33: #{capsule_network_forward.7} parent=5 // pred_check
        %p2490 = pneg %p2489
      $region34: #{capsule_network_forward.7} parent=5 // pred_check_branch
        %2492 = sbr.rel (%p2490) target = $region36
      $region35: #{capsule_network_forward.7} parent=5 // pred_region
        %s2493 = ssub.s32 %s11, 2
        // Predicated region
        $region37: #{capsule_network_forward.7} parent=35 // pred_check
          %p2494 = pneg %p87
        $region38: #{capsule_network_forward.7} parent=35 // pred_check_branch
          %2496 = sbr.rel (%p2494) target = $region40
        $region39: #{capsule_network_forward.7} parent=35 // pred_region
          %s2497 = sand.u32 %s72, 1
          %s2498 = scalar_lea.sflag [#allocation4], %s2497
          %s2499 = sand.u32 %s72, 1
          %s2500 = smul.addr %s2499, 2
          %s2501 = scalar_lea.vmem [#allocation3], %s2500
          %2503 = dma.done %s2498, 32
        $region40: #{capsule_network_forward.7} parent=35 // pred_fallthru
          _
      $region36: #{capsule_network_forward.7} parent=5 // pred_fallthru
        _
    $region6: #{capsule_network_forward.7} parent=1 // loop_footer
      %s15 = sadd.s32 1, %s11
    $region7: #{capsule_network_forward.7} parent=1 // loop_footer_branch
      %10 = sbr.rel target = $region3
    $region8: #{capsule_network_forward.7} parent=1 // loop_exit
      _
    %2504 = vsyncpa [#allocation4], 1
    %s2505 = scalar_lea.sflag [#allocation4], 1
    %2506 = vsyncpa %s2505, 1

</llo_original>
